<compile_context>
chip_gen: v7x
topology: tpu7x:2x2x1
jax: 0.10.0
libtpu: 0.0.40
codegen_flags: <defaults>
</compile_context>

<pallas_src>
import functools

import jax
import jax.numpy as jnp
from jax import lax
from jax.experimental import pallas as pl
from jax.experimental.pallas import tpu as pltpu

LANE = 128
_VMEM_LIMIT = 32 * 1024 * 1024      # scoped VMEM cap: safe on v5e/v6e (128 MiB) and v7x (64 MiB)
_TILE_BUDGET = 12 * 1024 * 1024     # activation-band budget used to pick the row tile


def _round_up(x, m):
    return (x + m - 1) // m * m


def _choose_row_tile(H, W, C, act_bytes=2, budget=_TILE_BUDGET):
    """Largest even row tile TH that (a) divides H, (b) keeps band scratch + I/O blocks
    within `budget`, (c) leaves >= 2 row tiles whenever H allows it.  Prefers multiples
    of 8 (sublane-friendly).  Evenness is required by the 2-row halo blocks."""
    def cost(th):
        band = (th + 4) * (W + 2) * C * act_bytes        # xband scratch
        band += (th + 2) * (W + 2) * C * act_bytes       # hband scratch
        band += 2 * th * W * C * act_bytes               # double-buffered input band
        band += 2 * th * W * C * act_bytes               # double-buffered output band
        return band

    divs = [d for d in range(1, H + 1) if H % d == 0]
    cands = [d for d in divs if d < H and d % 2 == 0 and cost(d) <= budget]
    if not cands:
        # Single-tile fallback (small / awkward H); halo content is zeroed in-kernel.
        # TODO(synk): masked partial last tile (pl.cdiv grid) for prime H that overflows VMEM.
        return H
    mult8 = [d for d in cands if d % 8 == 0]
    return max(mult8) if mult8 else max(cands)


# ---------------------------------------------------------------------------------------
# Fused ResBlock kernel: out = res_scale * conv2(lrelu(conv1(x))) + x   (one row band)
# ---------------------------------------------------------------------------------------

def _resblock_kernel(x_ref, xtop_ref, xbot_ref, w1_ref, b1_ref, w2_ref, b2_ref, o_ref,
                     xband, hband, *, W, TH, res_scale):
    C = x_ref.shape[-1]
    Wp = W + 2
    r = pl.program_id(1)
    n_r = pl.num_programs(1)

    # ---- assemble the 2-row-halo input band (bf16, no full zero-fill) ------------------
    # xband row i <-> image row r*TH - 2 + i ; xband col j <-> image col j - 1
    xband[2:2 + TH, 1:1 + W, :] = x_ref[0]

    @pl.when(r > 0)
    def _():
        xband[0:2, 1:1 + W, :] = xtop_ref[0]

    @pl.when(r == 0)
    def _():  # image border: conv zero-padding
        xband[0:2, :, :] = jnp.zeros((2, Wp, C), xband.dtype)

    @pl.when(r < n_r - 1)
    def _():
        xband[TH + 2:TH + 4, 1:1 + W, :] = xbot_ref[0]

    @pl.when(r == n_r - 1)
    def _():
        xband[TH + 2:TH + 4, :, :] = jnp.zeros((2, Wp, C), xband.dtype)

    # zero only the two pad columns (tiny; redone every step so each core's scratch is
    # valid regardless of how the parallel grid is split across cores)
    xband[:, 0:1, :] = jnp.zeros((TH + 4, 1, C), xband.dtype)
    xband[:, W + 1:W + 2, :] = jnp.zeros((TH + 4, 1, C), xband.dtype)

    # ---- conv1 + LeakyReLU(0.2): rows [r*TH-1, r*TH+TH+1), f32 accumulation -------------
    R1 = TH + 2
    M1 = R1 * W
    acc1 = jnp.broadcast_to(b1_ref[...].astype(jnp.float32), (M1, C))
    for ky in range(3):
        for kx in range(3):
            patch = xband[ky:ky + R1, kx:kx + W, :].reshape(M1, C)     # bf16 operand
            acc1 = acc1 + jnp.dot(patch, w1_ref[ky, kx],
                                  preferred_element_type=jnp.float32)
    h = jnp.where(acc1 >= 0, acc1, 0.2 * acc1)                         # LeakyReLU(0.2), f32

    # padded intermediate (bf16); cast once on the store
    hband[:, 1:1 + W, :] = h.reshape(R1, W, C).astype(hband.dtype)

    # conv2 zero-pads the *image*: hband rows falling outside the image must be zero,
    # not conv1(zero-padded x).
    @pl.when(r == 0)
    def _():
        hband[0:1, :, :] = jnp.zeros((1, Wp, C), hband.dtype)

    @pl.when(r == n_r - 1)
    def _():
        hband[TH + 1:TH + 2, :, :] = jnp.zeros((1, Wp, C), hband.dtype)

    hband[:, 0:1, :] = jnp.zeros((R1, 1, C), hband.dtype)
    hband[:, W + 1:W + 2, :] = jnp.zeros((R1, 1, C), hband.dtype)

    # ---- conv2, then res_scale * out + skip (skip read from the resident band, f32) ----
    M2 = TH * W
    acc2 = jnp.broadcast_to(b2_ref[...].astype(jnp.float32), (M2, C))
    for ky in range(3):
        for kx in range(3):
            patch = hband[ky:ky + TH, kx:kx + W, :].reshape(M2, C)     # bf16 operand
            acc2 = acc2 + jnp.dot(patch, w2_ref[ky, kx],
                                  preferred_element_type=jnp.float32)
    skip = x_ref[0].reshape(M2, C).astype(jnp.float32)
    out = acc2 * res_scale + skip
    o_ref[0] = out.reshape(TH, W, C).astype(o_ref.dtype)


def resblock_pallas(x_nhwc, w1, b1, w2, b2, *, res_scale=1.0):
    N, H, W, C = x_nhwc.shape
    TH = _choose_row_tile(H, W, C)
    n_r = H // TH
    half = max(TH // 2, 1)
    bot_clamp = max(H // 2 - 1, 0)
    kernel = functools.partial(_resblock_kernel, W=W, TH=TH, res_scale=float(res_scale))

    flops = 2 * (2 * 9 * H * W * C * C) * N                   # two 3x3 convs per block
    bytes_acc = 2 * N * H * W * C * 2 + 2 * 9 * C * C * 2 + 2 * C * 4

    return pl.pallas_call(
        kernel,
        out_shape=jax.ShapeDtypeStruct((N, H, W, C), x_nhwc.dtype),
        grid_spec=pltpu.PrefetchScalarGridSpec(
            num_scalar_prefetch=0,
            grid=(N, n_r),
            in_specs=[
                # halo'd row band: main TH-row band + 2-row halos (clamped at the image
                # borders; border halo content is zero-overridden in the kernel)
                pl.BlockSpec((1, TH, W, C), lambda n, r: (n, r, 0, 0)),
                pl.BlockSpec((1, 2, W, C),
                             lambda n, r: (n, jnp.maximum(r * half - 1, 0), 0, 0)),
                pl.BlockSpec((1, 2, W, C),
                             lambda n, r: (n, jnp.minimum((r + 1) * half, bot_clamp), 0, 0)),
                pl.BlockSpec((3, 3, C, C), lambda n, r: (0, 0, 0, 0)),   # w1 (bf16)
                pl.BlockSpec((1, C), lambda n, r: (0, 0)),               # b1 (f32)
                pl.BlockSpec((3, 3, C, C), lambda n, r: (0, 0, 0, 0)),   # w2 (bf16)
                pl.BlockSpec((1, C), lambda n, r: (0, 0)),               # b2 (f32)
            ],
            out_specs=pl.BlockSpec((1, TH, W, C), lambda n, r: (n, r, 0, 0)),
            scratch_shapes=[
                pltpu.VMEM((TH + 4, W + 2, C), jnp.bfloat16),   # zero-pad-col x band
                pltpu.VMEM((TH + 2, W + 2, C), jnp.bfloat16),   # padded intermediate h
            ]),
        compiler_params=pltpu.CompilerParams(
            dimension_semantics=("parallel", "parallel"),
            vmem_limit_bytes=_VMEM_LIMIT),
        cost_estimate=pl.CostEstimate(flops=flops, transcendentals=0,
                                      bytes_accessed=bytes_acc),
    )(x_nhwc, x_nhwc, x_nhwc, w1, b1, w2, b2)


# ---------------------------------------------------------------------------------------
# Tail kernel: out = conv3x3(x) + bias + residual  (global skip), one row band
# ---------------------------------------------------------------------------------------

def _tail_kernel(x_ref, xtop_ref, xbot_ref, res_ref, w_ref, b_ref, o_ref, xband, *, W, TH):
    C = x_ref.shape[-1]
    Wp = W + 2
    r = pl.program_id(1)
    n_r = pl.num_programs(1)

    xband[1:1 + TH, 1:1 + W, :] = x_ref[0]

    @pl.when(r > 0)
    def _():
        xband[0:1, 1:1 + W, :] = xtop_ref[0]

    @pl.when(r == 0)
    def _():
        xband[0:1, :, :] = jnp.zeros((1, Wp, C), xband.dtype)

    @pl.when(r < n_r - 1)
    def _():
        xband[TH + 1:TH + 2, 1:1 + W, :] = xbot_ref[0]

    @pl.when(r == n_r - 1)
    def _():
        xband[TH + 1:TH + 2, :, :] = jnp.zeros((1, Wp, C), xband.dtype)

    xband[:, 0:1, :] = jnp.zeros((TH + 2, 1, C), xband.dtype)
    xband[:, W + 1:W + 2, :] = jnp.zeros((TH + 2, 1, C), xband.dtype)

    M = TH * W
    acc = jnp.broadcast_to(b_ref[...].astype(jnp.float32), (M, C))
    for ky in range(3):
        for kx in range(3):
            patch = xband[ky:ky + TH, kx:kx + W, :].reshape(M, C)      # bf16 operand
            acc = acc + jnp.dot(patch, w_ref[ky, kx],
                                preferred_element_type=jnp.float32)
    out = acc + res_ref[0].reshape(M, C).astype(jnp.float32)           # global skip, f32
    o_ref[0] = out.reshape(TH, W, C).astype(o_ref.dtype)


def tailconv_pallas(x_nhwc, residual, w, b):
    N, H, W, C = x_nhwc.shape
    TH = _choose_row_tile(H, W, C)
    n_r = H // TH
    bot_clamp = max(H - 1, 0)
    kernel = functools.partial(_tail_kernel, W=W, TH=TH)

    flops = (2 * 9 * H * W * C * C) * N
    bytes_acc = 2 * N * H * W * C * 2 + N * H * W * C * 4 + 9 * C * C * 2 + C * 4

    return pl.pallas_call(
        kernel,
        out_shape=jax.ShapeDtypeStruct((N, H, W, C), jnp.float32),      # network exit in f32
        grid_spec=pltpu.PrefetchScalarGridSpec(
            num_scalar_prefetch=0,
            grid=(N, n_r),
            in_specs=[
                pl.BlockSpec((1, TH, W, C), lambda n, r: (n, r, 0, 0)),  # row band
                pl.BlockSpec((1, 1, W, C),
                             lambda n, r: (n, jnp.maximum(r * TH - 1, 0), 0, 0)),   # top halo
                pl.BlockSpec((1, 1, W, C),
                             lambda n, r: (n, jnp.minimum((r + 1) * TH, bot_clamp), 0, 0)),
                pl.BlockSpec((1, TH, W, C), lambda n, r: (n, r, 0, 0)),  # global skip x1
                pl.BlockSpec((3, 3, C, C), lambda n, r: (0, 0, 0, 0)),   # w (bf16)
                pl.BlockSpec((1, C), lambda n, r: (0, 0)),               # b (f32)
            ],
            out_specs=pl.BlockSpec((1, TH, W, C), lambda n, r: (n, r, 0, 0)),
            scratch_shapes=[pltpu.VMEM((TH + 2, W + 2, C), jnp.bfloat16)]),
        compiler_params=pltpu.CompilerParams(
            dimension_semantics=("parallel", "parallel"),
            vmem_limit_bytes=_VMEM_LIMIT),
        cost_estimate=pl.CostEstimate(flops=flops, transcendentals=0,
                                      bytes_accessed=bytes_acc),
    )(x_nhwc, x_nhwc, x_nhwc, residual, w, b)


# ---------------- parameter init (deterministic, synthetic, f32 reference params) -------

def _conv_init(key, n_feats):
    kw, kb = jax.random.split(key)
    w = jax.random.normal(kw, (3, 3, n_feats, n_feats), jnp.float32) * 0.05  # HWIO
    b = jax.random.normal(kb, (n_feats,), jnp.float32) * 0.05
    return w, b


def init_reslist_params(key, num_res_blocks, n_feats):
    keys = jax.random.split(key, 2 * num_res_blocks + 1)
    rb_params = []
    for i in range(num_res_blocks):
        rb_params.append({
            "conv1": _conv_init(keys[2 * i], n_feats),
            "conv2": _conv_init(keys[2 * i + 1], n_feats),
        })
    tail_params = _conv_init(keys[-1], n_feats)
    return rb_params, tail_params


def prepare_pallas_params(rb_params, tail_params, n_feats):
    """Pad channel axes to a multiple of 128 (lane-dense MXU) and pre-cast weights to
    bf16.  Padded lanes stay exactly zero through the whole network (zero weights/bias),
    so semantics are unchanged."""
    Cp = max(LANE, _round_up(n_feats, LANE))

    def prep(wb):
        w, b = wb
        wp = jnp.zeros((3, 3, Cp, Cp), jnp.float32).at[:, :, :n_feats, :n_feats].set(w)
        bp = jnp.zeros((1, Cp), jnp.float32).at[0, :n_feats].set(b)
        return wp.astype(jnp.bfloat16), bp

    rb_p = [{"conv1": prep(p["conv1"]), "conv2": prep(p["conv2"])} for p in rb_params]
    tail_p = prep(tail_params)
    return rb_p, tail_p, Cp


# ---------------- ResList forward (Pallas) ----------------

def reslist_forward(x_nchw, rb_params_p, tail_params_p, Cp, res_scale=1.0):
    N, C, H, W = x_nchw.shape
    x = jnp.transpose(x_nchw, (0, 2, 3, 1))                     # NCHW -> NHWC
    x = jnp.pad(x, ((0, 0), (0, 0), (0, 0), (0, Cp - C)))       # channel pad ONCE at entry
    x = x.astype(jnp.bfloat16)                                  # bf16 inter-block activations
    x1 = x
    for p in rb_params_p:
        w1, b1 = p["conv1"]
        w2, b2 = p["conv2"]
        x = resblock_pallas(x, w1, b1, w2, b2, res_scale=res_scale)   # fused ResBlock
    wt, bt = tail_params_p
    y = tailconv_pallas(x, x1, wt, bt)                          # conv_tail + global skip (f32)
    y = y[..., :C]                                              # drop channel padding
    return jnp.transpose(y, (0, 3, 1, 2))                       # NHWC -> NCHW


# ---------------- pure-JAX reference for verification ----------------

def _conv3x3_ref(x_nhwc, w, b):
    y = lax.conv_general_dilated(x_nhwc, w, window_strides=(1, 1),
                                 padding=((1, 1), (1, 1)),
                                 dimension_numbers=("NHWC", "HWIO", "NHWC"))
    return y + b


def reslist_ref(x_nchw, rb_params, tail_params, res_scale=1.0):
    x = jnp.transpose(x_nchw, (0, 2, 3, 1))
    x1 = x
    for p in rb_params:
        w1, b1 = p["conv1"]
        w2, b2 = p["conv2"]
        h = _conv3x3_ref(x, w1, b1)
        h = jnp.where(h >= 0, h, 0.2 * h)
        x = _conv3x3_ref(h, w2, b2) * res_scale + x
    wt, bt = tail_params
    x = _conv3x3_ref(x, wt, bt) + x1
    return jnp.transpose(x, (0, 3, 1, 2))


if __name__ == "__main__":
    num_res_blocks = 2
    n_feats = 8
    N, H, W = 2, 16, 16
    res_scale = 1.0

    key = jax.random.PRNGKey(0)
    kx_, kp = jax.random.split(key)
    x = jax.random.normal(kx_, (N, n_feats, H, W), jnp.float32)  # NCHW like PyTorch
    rb_params, tail_params = init_reslist_params(kp, num_res_blocks, n_feats)
    rb_p, tail_p, Cp = prepare_pallas_params(rb_params, tail_params, n_feats)

    out = jax.block_until_ready(reslist_forward(x, rb_p, tail_p, Cp, res_scale))
    ref = jax.block_until_ready(reslist_ref(x, rb_params, tail_params, res_scale))

    assert out.shape == (N, n_feats, H, W)
    # bf16 weights / MXU operands / inter-block activation storage (f32 accumulation and
    # residual adds) -> relaxed tolerance vs. the pure-f32 reference.
    max_err = float(jnp.max(jnp.abs(out - ref)))
    assert jnp.allclose(out, ref, rtol=1e-1, atol=5e-2), \
        f"Pallas output mismatch vs reference (max abs err={max_err})"
    print("KERNEL_OK")
</pallas_src>

<mosaic_0001>
module attributes {stable_mosaic.version = 11 : i64} {
  func.func @_resblock_kernel(%arg0: i32, %arg1: i32, %arg2: memref<1x8x16x128xbf16, #tpu.memory_space<vmem>>, %arg3: memref<1x2x16x128xbf16, #tpu.memory_space<vmem>>, %arg4: memref<1x2x16x128xbf16, #tpu.memory_space<vmem>>, %arg5: memref<3x3x128x128xbf16, #tpu.memory_space<vmem>>, %arg6: memref<1x128xf32, #tpu.memory_space<vmem>>, %arg7: memref<3x3x128x128xbf16, #tpu.memory_space<vmem>>, %arg8: memref<1x128xf32, #tpu.memory_space<vmem>>, %arg9: memref<1x8x16x128xbf16, #tpu.memory_space<vmem>>, %arg10: memref<12x18x128xbf16, #tpu.memory_space<vmem>>, %arg11: memref<10x18x128xbf16, #tpu.memory_space<vmem>>) attributes {dimension_semantics = [#tpu.dimension_semantics<parallel>, #tpu.dimension_semantics<parallel>], iteration_bounds = array<i64: 2, 2>, scalar_prefetch = 0 : i64, scratch_operands = 2 : i64, tpu.core_type = #tpu.core_type<tc>, window_params = [{transform_indices = @transform_0, window_bounds = array<i64: 1, 8, 16, 128>}, {transform_indices = @transform_1, window_bounds = array<i64: 1, 2, 16, 128>}, {transform_indices = @transform_2, window_bounds = array<i64: 1, 2, 16, 128>}, {pipeline_mode = #tpu.pipeline_mode<synchronous>, transform_indices = @transform_3, window_bounds = array<i64: 3, 3, 128, 128>}, {pipeline_mode = #tpu.pipeline_mode<synchronous>, transform_indices = @transform_4, window_bounds = array<i64: 1, 128>}, {pipeline_mode = #tpu.pipeline_mode<synchronous>, transform_indices = @transform_5, window_bounds = array<i64: 3, 3, 128, 128>}, {pipeline_mode = #tpu.pipeline_mode<synchronous>, transform_indices = @transform_6, window_bounds = array<i64: 1, 128>}, {transform_indices = @transform_7, window_bounds = array<i64: 1, 8, 16, 128>}]} {
    %c0 = arith.constant 0 : index
    %c0_0 = arith.constant 0 : index
    %c0_1 = arith.constant 0 : index
    %c0_2 = arith.constant 0 : index
    %0 = vector.load %arg2[%c0, %c0_0, %c0_1, %c0_2] : memref<1x8x16x128xbf16, #tpu.memory_space<vmem>>, vector<1x8x16x128xbf16>
    %1 = vector.shape_cast %0 : vector<1x8x16x128xbf16> to vector<8x16x128xbf16>
    %c2 = arith.constant 2 : index
    %c1 = arith.constant 1 : index
    %c0_3 = arith.constant 0 : index
    %2 = vector.load %arg10[%c2, %c1, %c0_3] : memref<12x18x128xbf16, #tpu.memory_space<vmem>>, vector<8x16x128xbf16>
    tpu.vector_store %arg10[%c2, %c1, %c0_3], %1 {strides = array<i32>} : memref<12x18x128xbf16, #tpu.memory_space<vmem>>, vector<8x16x128xbf16>,
    %c0_i32 = arith.constant 0 : i32
    %3 = arith.cmpi sgt, %arg1, %c0_i32 : i32
    %4 = arith.extui %3 : i1 to i32
    %c0_i32_4 = arith.constant 0 : i32
    %5 = arith.cmpi ne, %4, %c0_i32_4 : i32
    scf.if %5 {
      %c0_190 = arith.constant 0 : index
      %c0_191 = arith.constant 0 : index
      %c0_192 = arith.constant 0 : index
      %c0_193 = arith.constant 0 : index
      %163 = vector.load %arg3[%c0_190, %c0_191, %c0_192, %c0_193] : memref<1x2x16x128xbf16, #tpu.memory_space<vmem>>, vector<1x2x16x128xbf16>
      %164 = vector.shape_cast %163 : vector<1x2x16x128xbf16> to vector<2x16x128xbf16>
      %c0_194 = arith.constant 0 : index
      %c1_195 = arith.constant 1 : index
      %c0_196 = arith.constant 0 : index
      %165 = vector.load %arg10[%c0_194, %c1_195, %c0_196] : memref<12x18x128xbf16, #tpu.memory_space<vmem>>, vector<2x16x128xbf16>
      tpu.vector_store %arg10[%c0_194, %c1_195, %c0_196], %164 {strides = array<i32>} : memref<12x18x128xbf16, #tpu.memory_space<vmem>>, vector<2x16x128xbf16>,
    } else {
    }
    %c0_i32_5 = arith.constant 0 : i32
    %6 = arith.cmpi eq, %arg1, %c0_i32_5 : i32
    %7 = arith.extui %6 : i1 to i32
    %c0_i32_6 = arith.constant 0 : i32
    %8 = arith.cmpi ne, %7, %c0_i32_6 : i32
    scf.if %8 {
      %cst_190 = arith.constant 0.000000e+00 : bf16
      %163 = vector.broadcast %cst_190 : bf16 to vector<2x18x128xbf16>
      %c0_191 = arith.constant 0 : index
      %c0_192 = arith.constant 0 : index
      %c0_193 = arith.constant 0 : index
      %164 = vector.load %arg10[%c0_191, %c0_192, %c0_193] : memref<12x18x128xbf16, #tpu.memory_space<vmem>>, vector<2x18x128xbf16>
      tpu.vector_store %arg10[%c0_191, %c0_192, %c0_193], %163 {strides = array<i32>} : memref<12x18x128xbf16, #tpu.memory_space<vmem>>, vector<2x18x128xbf16>,
    } else {
    }
    %c1_i32 = arith.constant 1 : i32
    %9 = arith.cmpi slt, %arg1, %c1_i32 : i32
    %10 = arith.extui %9 : i1 to i32
    %c0_i32_7 = arith.constant 0 : i32
    %11 = arith.cmpi ne, %10, %c0_i32_7 : i32
    scf.if %11 {
      %c0_190 = arith.constant 0 : index
      %c0_191 = arith.constant 0 : index
      %c0_192 = arith.constant 0 : index
      %c0_193 = arith.constant 0 : index
      %163 = vector.load %arg4[%c0_190, %c0_191, %c0_192, %c0_193] : memref<1x2x16x128xbf16, #tpu.memory_space<vmem>>, vector<1x2x16x128xbf16>
      %164 = vector.shape_cast %163 : vector<1x2x16x128xbf16> to vector<2x16x128xbf16>
      %c10 = arith.constant 10 : index
      %c1_194 = arith.constant 1 : index
      %c0_195 = arith.constant 0 : index
      %165 = vector.load %arg10[%c10, %c1_194, %c0_195] : memref<12x18x128xbf16, #tpu.memory_space<vmem>>, vector<2x16x128xbf16>
      tpu.vector_store %arg10[%c10, %c1_194, %c0_195], %164 {strides = array<i32>} : memref<12x18x128xbf16, #tpu.memory_space<vmem>>, vector<2x16x128xbf16>,
    } else {
    }
    %c1_i32_8 = arith.constant 1 : i32
    %12 = arith.cmpi eq, %arg1, %c1_i32_8 : i32
    %13 = arith.extui %12 : i1 to i32
    %c0_i32_9 = arith.constant 0 : i32
    %14 = arith.cmpi ne, %13, %c0_i32_9 : i32
    scf.if %14 {
      %cst_190 = arith.constant 0.000000e+00 : bf16
      %163 = vector.broadcast %cst_190 : bf16 to vector<2x18x128xbf16>
      %c10 = arith.constant 10 : index
      %c0_191 = arith.constant 0 : index
      %c0_192 = arith.constant 0 : index
      %164 = vector.load %arg10[%c10, %c0_191, %c0_192] : memref<12x18x128xbf16, #tpu.memory_space<vmem>>, vector<2x18x128xbf16>
      tpu.vector_store %arg10[%c10, %c0_191, %c0_192], %163 {strides = array<i32>} : memref<12x18x128xbf16, #tpu.memory_space<vmem>>, vector<2x18x128xbf16>,
    } else {
    }
    %cst = arith.constant 0.000000e+00 : bf16
    %15 = vector.broadcast %cst : bf16 to vector<12x1x128xbf16>
    %c0_10 = arith.constant 0 : index
    %c0_11 = arith.constant 0 : index
    %c0_12 = arith.constant 0 : index
    %16 = vector.load %arg10[%c0_10, %c0_11, %c0_12] : memref<12x18x128xbf16, #tpu.memory_space<vmem>>, vector<12x1x128xbf16>
    tpu.vector_store %arg10[%c0_10, %c0_11, %c0_12], %15 {strides = array<i32>} : memref<12x18x128xbf16, #tpu.memory_space<vmem>>, vector<12x1x128xbf16>,
    %cst_13 = arith.constant 0.000000e+00 : bf16
    %17 = vector.broadcast %cst_13 : bf16 to vector<12x1x128xbf16>
    %c0_14 = arith.constant 0 : index
    %c17 = arith.constant 17 : index
    %c0_15 = arith.constant 0 : index
    %18 = vector.load %arg10[%c0_14, %c17, %c0_15] : memref<12x18x128xbf16, #tpu.memory_space<vmem>>, vector<12x1x128xbf16>
    tpu.vector_store %arg10[%c0_14, %c17, %c0_15], %17 {strides = array<i32>} : memref<12x18x128xbf16, #tpu.memory_space<vmem>>, vector<12x1x128xbf16>,
    %c0_16 = arith.constant 0 : index
    %c0_17 = arith.constant 0 : index
    %19 = vector.load %arg6[%c0_16, %c0_17] : memref<1x128xf32, #tpu.memory_space<vmem>>, vector<1x128xf32>
    %20 = vector.shape_cast %19 : vector<1x128xf32> to vector<1x128xf32>
    %21 = vector.broadcast %20 : vector<1x128xf32> to vector<160x128xf32>
    %c0_18 = arith.constant 0 : index
    %c0_19 = arith.constant 0 : index
    %c0_20 = arith.constant 0 : index
    %22 = vector.load %arg10[%c0_18, %c0_19, %c0_20] : memref<12x18x128xbf16, #tpu.memory_space<vmem>>, vector<10x16x128xbf16>
    %23 = vector.shape_cast %22 : vector<10x16x128xbf16> to vector<160x128xbf16>
    %c0_21 = arith.constant 0 : index
    %c0_22 = arith.constant 0 : index
    %c0_23 = arith.constant 0 : index
    %c0_24 = arith.constant 0 : index
    %24 = vector.load %arg5[%c0_21, %c0_22, %c0_23, %c0_24] : memref<3x3x128x128xbf16, #tpu.memory_space<vmem>>, vector<1x1x128x128xbf16>
    %25 = vector.shape_cast %24 : vector<1x1x128x128xbf16> to vector<128x128xbf16>
    %cst_25 = arith.constant dense<0.000000e+00> : vector<160x128xf32>
    %26 = tpu.matmul %23, %25, %cst_25 {dimension_numbers = #tpu.dot_dimension_numbers<[1], [0], [0], [1], [0, 0, 1, 1], [], []>} : vector<160x128xbf16>, vector<128x128xbf16>, vector<160x128xf32> -> vector<160x128xf32>
    %27 = arith.addf %21, %26 : vector<160x128xf32>
    %c0_26 = arith.constant 0 : index
    %c1_27 = arith.constant 1 : index
    %c0_28 = arith.constant 0 : index
    %28 = vector.load %arg10[%c0_26, %c1_27, %c0_28] : memref<12x18x128xbf16, #tpu.memory_space<vmem>>, vector<10x16x128xbf16>
    %29 = vector.shape_cast %28 : vector<10x16x128xbf16> to vector<160x128xbf16>
    %c0_29 = arith.constant 0 : index
    %c1_30 = arith.constant 1 : index
    %c0_31 = arith.constant 0 : index
    %c0_32 = arith.constant 0 : index
    %30 = vector.load %arg5[%c0_29, %c1_30, %c0_31, %c0_32] : memref<3x3x128x128xbf16, #tpu.memory_space<vmem>>, vector<1x1x128x128xbf16>
    %31 = vector.shape_cast %30 : vector<1x1x128x128xbf16> to vector<128x128xbf16>
    %cst_33 = arith.constant dense<0.000000e+00> : vector<160x128xf32>
    %32 = tpu.matmul %29, %31, %cst_33 {dimension_numbers = #tpu.dot_dimension_numbers<[1], [0], [0], [1], [0, 0, 1, 1], [], []>} : vector<160x128xbf16>, vector<128x128xbf16>, vector<160x128xf32> -> vector<160x128xf32>
    %33 = arith.addf %27, %32 : vector<160x128xf32>
    %c0_34 = arith.constant 0 : index
    %c2_35 = arith.constant 2 : index
    %c0_36 = arith.constant 0 : index
    %34 = vector.load %arg10[%c0_34, %c2_35, %c0_36] : memref<12x18x128xbf16, #tpu.memory_space<vmem>>, vector<10x16x128xbf16>
    %35 = vector.shape_cast %34 : vector<10x16x128xbf16> to vector<160x128xbf16>
    %c0_37 = arith.constant 0 : index
    %c2_38 = arith.constant 2 : index
    %c0_39 = arith.constant 0 : index
    %c0_40 = arith.constant 0 : index
    %36 = vector.load %arg5[%c0_37, %c2_38, %c0_39, %c0_40] : memref<3x3x128x128xbf16, #tpu.memory_space<vmem>>, vector<1x1x128x128xbf16>
    %37 = vector.shape_cast %36 : vector<1x1x128x128xbf16> to vector<128x128xbf16>
    %cst_41 = arith.constant dense<0.000000e+00> : vector<160x128xf32>
    %38 = tpu.matmul %35, %37, %cst_41 {dimension_numbers = #tpu.dot_dimension_numbers<[1], [0], [0], [1], [0, 0, 1, 1], [], []>} : vector<160x128xbf16>, vector<128x128xbf16>, vector<160x128xf32> -> vector<160x128xf32>
    %39 = arith.addf %33, %38 : vector<160x128xf32>
    %c1_42 = arith.constant 1 : index
    %c0_43 = arith.constant 0 : index
    %c0_44 = arith.constant 0 : index
    %40 = vector.load %arg10[%c1_42, %c0_43, %c0_44] : memref<12x18x128xbf16, #tpu.memory_space<vmem>>, vector<10x16x128xbf16>
    %41 = vector.shape_cast %40 : vector<10x16x128xbf16> to vector<160x128xbf16>
    %c1_45 = arith.constant 1 : index
    %c0_46 = arith.constant 0 : index
    %c0_47 = arith.constant 0 : index
    %c0_48 = arith.constant 0 : index
    %42 = vector.load %arg5[%c1_45, %c0_46, %c0_47, %c0_48] : memref<3x3x128x128xbf16, #tpu.memory_space<vmem>>, vector<1x1x128x128xbf16>
    %43 = vector.shape_cast %42 : vector<1x1x128x128xbf16> to vector<128x128xbf16>
    %cst_49 = arith.constant dense<0.000000e+00> : vector<160x128xf32>
    %44 = tpu.matmul %41, %43, %cst_49 {dimension_numbers = #tpu.dot_dimension_numbers<[1], [0], [0], [1], [0, 0, 1, 1], [], []>} : vector<160x128xbf16>, vector<128x128xbf16>, vector<160x128xf32> -> vector<160x128xf32>
    %45 = arith.addf %39, %44 : vector<160x128xf32>
    %c1_50 = arith.constant 1 : index
    %c1_51 = arith.constant 1 : index
    %c0_52 = arith.constant 0 : index
    %46 = vector.load %arg10[%c1_50, %c1_51, %c0_52] : memref<12x18x128xbf16, #tpu.memory_space<vmem>>, vector<10x16x128xbf16>
    %47 = vector.shape_cast %46 : vector<10x16x128xbf16> to vector<160x128xbf16>
    %c1_53 = arith.constant 1 : index
    %c1_54 = arith.constant 1 : index
    %c0_55 = arith.constant 0 : index
    %c0_56 = arith.constant 0 : index
    %48 = vector.load %arg5[%c1_53, %c1_54, %c0_55, %c0_56] : memref<3x3x128x128xbf16, #tpu.memory_space<vmem>>, vector<1x1x128x128xbf16>
    %49 = vector.shape_cast %48 : vector<1x1x128x128xbf16> to vector<128x128xbf16>
    %cst_57 = arith.constant dense<0.000000e+00> : vector<160x128xf32>
    %50 = tpu.matmul %47, %49, %cst_57 {dimension_numbers = #tpu.dot_dimension_numbers<[1], [0], [0], [1], [0, 0, 1, 1], [], []>} : vector<160x128xbf16>, vector<128x128xbf16>, vector<160x128xf32> -> vector<160x128xf32>
    %51 = arith.addf %45, %50 : vector<160x128xf32>
    %c1_58 = arith.constant 1 : index
    %c2_59 = arith.constant 2 : index
    %c0_60 = arith.constant 0 : index
    %52 = vector.load %arg10[%c1_58, %c2_59, %c0_60] : memref<12x18x128xbf16, #tpu.memory_space<vmem>>, vector<10x16x128xbf16>
    %53 = vector.shape_cast %52 : vector<10x16x128xbf16> to vector<160x128xbf16>
    %c1_61 = arith.constant 1 : index
    %c2_62 = arith.constant 2 : index
    %c0_63 = arith.constant 0 : index
    %c0_64 = arith.constant 0 : index
    %54 = vector.load %arg5[%c1_61, %c2_62, %c0_63, %c0_64] : memref<3x3x128x128xbf16, #tpu.memory_space<vmem>>, vector<1x1x128x128xbf16>
    %55 = vector.shape_cast %54 : vector<1x1x128x128xbf16> to vector<128x128xbf16>
    %cst_65 = arith.constant dense<0.000000e+00> : vector<160x128xf32>
    %56 = tpu.matmul %53, %55, %cst_65 {dimension_numbers = #tpu.dot_dimension_numbers<[1], [0], [0], [1], [0, 0, 1, 1], [], []>} : vector<160x128xbf16>, vector<128x128xbf16>, vector<160x128xf32> -> vector<160x128xf32>
    %57 = arith.addf %51, %56 : vector<160x128xf32>
    %c2_66 = arith.constant 2 : index
    %c0_67 = arith.constant 0 : index
    %c0_68 = arith.constant 0 : index
    %58 = vector.load %arg10[%c2_66, %c0_67, %c0_68] : memref<12x18x128xbf16, #tpu.memory_space<vmem>>, vector<10x16x128xbf16>
    %59 = vector.shape_cast %58 : vector<10x16x128xbf16> to vector<160x128xbf16>
    %c2_69 = arith.constant 2 : index
    %c0_70 = arith.constant 0 : index
    %c0_71 = arith.constant 0 : index
    %c0_72 = arith.constant 0 : index
    %60 = vector.load %arg5[%c2_69, %c0_70, %c0_71, %c0_72] : memref<3x3x128x128xbf16, #tpu.memory_space<vmem>>, vector<1x1x128x128xbf16>
    %61 = vector.shape_cast %60 : vector<1x1x128x128xbf16> to vector<128x128xbf16>
    %cst_73 = arith.constant dense<0.000000e+00> : vector<160x128xf32>
    %62 = tpu.matmul %59, %61, %cst_73 {dimension_numbers = #tpu.dot_dimension_numbers<[1], [0], [0], [1], [0, 0, 1, 1], [], []>} : vector<160x128xbf16>, vector<128x128xbf16>, vector<160x128xf32> -> vector<160x128xf32>
    %63 = arith.addf %57, %62 : vector<160x128xf32>
    %c2_74 = arith.constant 2 : index
    %c1_75 = arith.constant 1 : index
    %c0_76 = arith.constant 0 : index
    %64 = vector.load %arg10[%c2_74, %c1_75, %c0_76] : memref<12x18x128xbf16, #tpu.memory_space<vmem>>, vector<10x16x128xbf16>
    %65 = vector.shape_cast %64 : vector<10x16x128xbf16> to vector<160x128xbf16>
    %c2_77 = arith.constant 2 : index
    %c1_78 = arith.constant 1 : index
    %c0_79 = arith.constant 0 : index
    %c0_80 = arith.constant 0 : index
    %66 = vector.load %arg5[%c2_77, %c1_78, %c0_79, %c0_80] : memref<3x3x128x128xbf16, #tpu.memory_space<vmem>>, vector<1x1x128x128xbf16>
    %67 = vector.shape_cast %66 : vector<1x1x128x128xbf16> to vector<128x128xbf16>
    %cst_81 = arith.constant dense<0.000000e+00> : vector<160x128xf32>
    %68 = tpu.matmul %65, %67, %cst_81 {dimension_numbers = #tpu.dot_dimension_numbers<[1], [0], [0], [1], [0, 0, 1, 1], [], []>} : vector<160x128xbf16>, vector<128x128xbf16>, vector<160x128xf32> -> vector<160x128xf32>
    %69 = arith.addf %63, %68 : vector<160x128xf32>
    %c2_82 = arith.constant 2 : index
    %c2_83 = arith.constant 2 : index
    %c0_84 = arith.constant 0 : index
    %70 = vector.load %arg10[%c2_82, %c2_83, %c0_84] : memref<12x18x128xbf16, #tpu.memory_space<vmem>>, vector<10x16x128xbf16>
    %71 = vector.shape_cast %70 : vector<10x16x128xbf16> to vector<160x128xbf16>
    %c2_85 = arith.constant 2 : index
    %c2_86 = arith.constant 2 : index
    %c0_87 = arith.constant 0 : index
    %c0_88 = arith.constant 0 : index
    %72 = vector.load %arg5[%c2_85, %c2_86, %c0_87, %c0_88] : memref<3x3x128x128xbf16, #tpu.memory_space<vmem>>, vector<1x1x128x128xbf16>
    %73 = vector.shape_cast %72 : vector<1x1x128x128xbf16> to vector<128x128xbf16>
    %cst_89 = arith.constant dense<0.000000e+00> : vector<160x128xf32>
    %74 = tpu.matmul %71, %73, %cst_89 {dimension_numbers = #tpu.dot_dimension_numbers<[1], [0], [0], [1], [0, 0, 1, 1], [], []>} : vector<160x128xbf16>, vector<128x128xbf16>, vector<160x128xf32> -> vector<160x128xf32>
    %75 = arith.addf %69, %74 : vector<160x128xf32>
    %cst_90 = arith.constant 0.000000e+00 : f32
    %76 = vector.broadcast %cst_90 : f32 to vector<160x128xf32>
    %77 = arith.cmpf oge, %75, %76 : vector<160x128xf32>
    %cst_91 = arith.constant 2.000000e-01 : f32
    %78 = vector.broadcast %cst_91 : f32 to vector<160x128xf32>
    %79 = arith.mulf %78, %75 : vector<160x128xf32>
    %80 = arith.select %77, %75, %79 : vector<160x128xi1>, vector<160x128xf32>
    %81 = vector.shape_cast %80 : vector<160x128xf32> to vector<10x16x128xf32>
    %82 = arith.truncf %81 : vector<10x16x128xf32> to vector<10x16x128xbf16>
    %c0_92 = arith.constant 0 : index
    %c1_93 = arith.constant 1 : index
    %c0_94 = arith.constant 0 : index
    %83 = vector.load %arg11[%c0_92, %c1_93, %c0_94] : memref<10x18x128xbf16, #tpu.memory_space<vmem>>, vector<10x16x128xbf16>
    tpu.vector_store %arg11[%c0_92, %c1_93, %c0_94], %82 {strides = array<i32>} : memref<10x18x128xbf16, #tpu.memory_space<vmem>>, vector<10x16x128xbf16>,
    %c0_i32_95 = arith.constant 0 : i32
    %84 = arith.cmpi eq, %arg1, %c0_i32_95 : i32
    %85 = arith.extui %84 : i1 to i32
    %c0_i32_96 = arith.constant 0 : i32
    %86 = arith.cmpi ne, %85, %c0_i32_96 : i32
    scf.if %86 {
      %cst_190 = arith.constant 0.000000e+00 : bf16
      %163 = vector.broadcast %cst_190 : bf16 to vector<1x18x128xbf16>
      %c0_191 = arith.constant 0 : index
      %c0_192 = arith.constant 0 : index
      %c0_193 = arith.constant 0 : index
      %164 = vector.load %arg11[%c0_191, %c0_192, %c0_193] : memref<10x18x128xbf16, #tpu.memory_space<vmem>>, vector<1x18x128xbf16>
      tpu.vector_store %arg11[%c0_191, %c0_192, %c0_193], %163 {strides = array<i32>} : memref<10x18x128xbf16, #tpu.memory_space<vmem>>, vector<1x18x128xbf16>,
    } else {
    }
    %c1_i32_97 = arith.constant 1 : i32
    %87 = arith.cmpi eq, %arg1, %c1_i32_97 : i32
    %88 = arith.extui %87 : i1 to i32
    %c0_i32_98 = arith.constant 0 : i32
    %89 = arith.cmpi ne, %88, %c0_i32_98 : i32
    scf.if %89 {
      %cst_190 = arith.constant 0.000000e+00 : bf16
      %163 = vector.broadcast %cst_190 : bf16 to vector<1x18x128xbf16>
      %c9 = arith.constant 9 : index
      %c0_191 = arith.constant 0 : index
      %c0_192 = arith.constant 0 : index
      %164 = vector.load %arg11[%c9, %c0_191, %c0_192] : memref<10x18x128xbf16, #tpu.memory_space<vmem>>, vector<1x18x128xbf16>
      tpu.vector_store %arg11[%c9, %c0_191, %c0_192], %163 {strides = array<i32>} : memref<10x18x128xbf16, #tpu.memory_space<vmem>>, vector<1x18x128xbf16>,
    } else {
    }
    %cst_99 = arith.constant 0.000000e+00 : bf16
    %90 = vector.broadcast %cst_99 : bf16 to vector<10x1x128xbf16>
    %c0_100 = arith.constant 0 : index
    %c0_101 = arith.constant 0 : index
    %c0_102 = arith.constant 0 : index
    %91 = vector.load %arg11[%c0_100, %c0_101, %c0_102] : memref<10x18x128xbf16, #tpu.memory_space<vmem>>, vector<10x1x128xbf16>
    tpu.vector_store %arg11[%c0_100, %c0_101, %c0_102], %90 {strides = array<i32>} : memref<10x18x128xbf16, #tpu.memory_space<vmem>>, vector<10x1x128xbf16>,
    %cst_103 = arith.constant 0.000000e+00 : bf16
    %92 = vector.broadcast %cst_103 : bf16 to vector<10x1x128xbf16>
    %c0_104 = arith.constant 0 : index
    %c17_105 = arith.constant 17 : index
    %c0_106 = arith.constant 0 : index
    %93 = vector.load %arg11[%c0_104, %c17_105, %c0_106] : memref<10x18x128xbf16, #tpu.memory_space<vmem>>, vector<10x1x128xbf16>
    tpu.vector_store %arg11[%c0_104, %c17_105, %c0_106], %92 {strides = array<i32>} : memref<10x18x128xbf16, #tpu.memory_space<vmem>>, vector<10x1x128xbf16>,
    %c0_107 = arith.constant 0 : index
    %c0_108 = arith.constant 0 : index
    %94 = vector.load %arg8[%c0_107, %c0_108] : memref<1x128xf32, #tpu.memory_space<vmem>>, vector<1x128xf32>
    %95 = vector.shape_cast %94 : vector<1x128xf32> to vector<1x128xf32>
    %96 = vector.broadcast %95 : vector<1x128xf32> to vector<128x128xf32>
    %c0_109 = arith.constant 0 : index
    %c0_110 = arith.constant 0 : index
    %c0_111 = arith.constant 0 : index
    %97 = vector.load %arg11[%c0_109, %c0_110, %c0_111] : memref<10x18x128xbf16, #tpu.memory_space<vmem>>, vector<8x16x128xbf16>
    %98 = vector.shape_cast %97 : vector<8x16x128xbf16> to vector<128x128xbf16>
    %c0_112 = arith.constant 0 : index
    %c0_113 = arith.constant 0 : index
    %c0_114 = arith.constant 0 : index
    %c0_115 = arith.constant 0 : index
    %99 = vector.load %arg7[%c0_112, %c0_113, %c0_114, %c0_115] : memref<3x3x128x128xbf16, #tpu.memory_space<vmem>>, vector<1x1x128x128xbf16>
    %100 = vector.shape_cast %99 : vector<1x1x128x128xbf16> to vector<128x128xbf16>
    %cst_116 = arith.constant dense<0.000000e+00> : vector<128x128xf32>
    %101 = tpu.matmul %98, %100, %cst_116 {dimension_numbers = #tpu.dot_dimension_numbers<[1], [0], [0], [1], [0, 0, 1, 1], [], []>} : vector<128x128xbf16>, vector<128x128xbf16>, vector<128x128xf32> -> vector<128x128xf32>
    %102 = arith.addf %96, %101 : vector<128x128xf32>
    %c0_117 = arith.constant 0 : index
    %c1_118 = arith.constant 1 : index
    %c0_119 = arith.constant 0 : index
    %103 = vector.load %arg11[%c0_117, %c1_118, %c0_119] : memref<10x18x128xbf16, #tpu.memory_space<vmem>>, vector<8x16x128xbf16>
    %104 = vector.shape_cast %103 : vector<8x16x128xbf16> to vector<128x128xbf16>
    %c0_120 = arith.constant 0 : index
    %c1_121 = arith.constant 1 : index
    %c0_122 = arith.constant 0 : index
    %c0_123 = arith.constant 0 : index
    %105 = vector.load %arg7[%c0_120, %c1_121, %c0_122, %c0_123] : memref<3x3x128x128xbf16, #tpu.memory_space<vmem>>, vector<1x1x128x128xbf16>
    %106 = vector.shape_cast %105 : vector<1x1x128x128xbf16> to vector<128x128xbf16>
    %cst_124 = arith.constant dense<0.000000e+00> : vector<128x128xf32>
    %107 = tpu.matmul %104, %106, %cst_124 {dimension_numbers = #tpu.dot_dimension_numbers<[1], [0], [0], [1], [0, 0, 1, 1], [], []>} : vector<128x128xbf16>, vector<128x128xbf16>, vector<128x128xf32> -> vector<128x128xf32>
    %108 = arith.addf %102, %107 : vector<128x128xf32>
    %c0_125 = arith.constant 0 : index
    %c2_126 = arith.constant 2 : index
    %c0_127 = arith.constant 0 : index
    %109 = vector.load %arg11[%c0_125, %c2_126, %c0_127] : memref<10x18x128xbf16, #tpu.memory_space<vmem>>, vector<8x16x128xbf16>
    %110 = vector.shape_cast %109 : vector<8x16x128xbf16> to vector<128x128xbf16>
    %c0_128 = arith.constant 0 : index
    %c2_129 = arith.constant 2 : index
    %c0_130 = arith.constant 0 : index
    %c0_131 = arith.constant 0 : index
    %111 = vector.load %arg7[%c0_128, %c2_129, %c0_130, %c0_131] : memref<3x3x128x128xbf16, #tpu.memory_space<vmem>>, vector<1x1x128x128xbf16>
    %112 = vector.shape_cast %111 : vector<1x1x128x128xbf16> to vector<128x128xbf16>
    %cst_132 = arith.constant dense<0.000000e+00> : vector<128x128xf32>
    %113 = tpu.matmul %110, %112, %cst_132 {dimension_numbers = #tpu.dot_dimension_numbers<[1], [0], [0], [1], [0, 0, 1, 1], [], []>} : vector<128x128xbf16>, vector<128x128xbf16>, vector<128x128xf32> -> vector<128x128xf32>
    %114 = arith.addf %108, %113 : vector<128x128xf32>
    %c1_133 = arith.constant 1 : index
    %c0_134 = arith.constant 0 : index
    %c0_135 = arith.constant 0 : index
    %115 = vector.load %arg11[%c1_133, %c0_134, %c0_135] : memref<10x18x128xbf16, #tpu.memory_space<vmem>>, vector<8x16x128xbf16>
    %116 = vector.shape_cast %115 : vector<8x16x128xbf16> to vector<128x128xbf16>
    %c1_136 = arith.constant 1 : index
    %c0_137 = arith.constant 0 : index
    %c0_138 = arith.constant 0 : index
    %c0_139 = arith.constant 0 : index
    %117 = vector.load %arg7[%c1_136, %c0_137, %c0_138, %c0_139] : memref<3x3x128x128xbf16, #tpu.memory_space<vmem>>, vector<1x1x128x128xbf16>
    %118 = vector.shape_cast %117 : vector<1x1x128x128xbf16> to vector<128x128xbf16>
    %cst_140 = arith.constant dense<0.000000e+00> : vector<128x128xf32>
    %119 = tpu.matmul %116, %118, %cst_140 {dimension_numbers = #tpu.dot_dimension_numbers<[1], [0], [0], [1], [0, 0, 1, 1], [], []>} : vector<128x128xbf16>, vector<128x128xbf16>, vector<128x128xf32> -> vector<128x128xf32>
    %120 = arith.addf %114, %119 : vector<128x128xf32>
    %c1_141 = arith.constant 1 : index
    %c1_142 = arith.constant 1 : index
    %c0_143 = arith.constant 0 : index
    %121 = vector.load %arg11[%c1_141, %c1_142, %c0_143] : memref<10x18x128xbf16, #tpu.memory_space<vmem>>, vector<8x16x128xbf16>
    %122 = vector.shape_cast %121 : vector<8x16x128xbf16> to vector<128x128xbf16>
    %c1_144 = arith.constant 1 : index
    %c1_145 = arith.constant 1 : index
    %c0_146 = arith.constant 0 : index
    %c0_147 = arith.constant 0 : index
    %123 = vector.load %arg7[%c1_144, %c1_145, %c0_146, %c0_147] : memref<3x3x128x128xbf16, #tpu.memory_space<vmem>>, vector<1x1x128x128xbf16>
    %124 = vector.shape_cast %123 : vector<1x1x128x128xbf16> to vector<128x128xbf16>
    %cst_148 = arith.constant dense<0.000000e+00> : vector<128x128xf32>
    %125 = tpu.matmul %122, %124, %cst_148 {dimension_numbers = #tpu.dot_dimension_numbers<[1], [0], [0], [1], [0, 0, 1, 1], [], []>} : vector<128x128xbf16>, vector<128x128xbf16>, vector<128x128xf32> -> vector<128x128xf32>
    %126 = arith.addf %120, %125 : vector<128x128xf32>
    %c1_149 = arith.constant 1 : index
    %c2_150 = arith.constant 2 : index
    %c0_151 = arith.constant 0 : index
    %127 = vector.load %arg11[%c1_149, %c2_150, %c0_151] : memref<10x18x128xbf16, #tpu.memory_space<vmem>>, vector<8x16x128xbf16>
    %128 = vector.shape_cast %127 : vector<8x16x128xbf16> to vector<128x128xbf16>
    %c1_152 = arith.constant 1 : index
    %c2_153 = arith.constant 2 : index
    %c0_154 = arith.constant 0 : index
    %c0_155 = arith.constant 0 : index
    %129 = vector.load %arg7[%c1_152, %c2_153, %c0_154, %c0_155] : memref<3x3x128x128xbf16, #tpu.memory_space<vmem>>, vector<1x1x128x128xbf16>
    %130 = vector.shape_cast %129 : vector<1x1x128x128xbf16> to vector<128x128xbf16>
    %cst_156 = arith.constant dense<0.000000e+00> : vector<128x128xf32>
    %131 = tpu.matmul %128, %130, %cst_156 {dimension_numbers = #tpu.dot_dimension_numbers<[1], [0], [0], [1], [0, 0, 1, 1], [], []>} : vector<128x128xbf16>, vector<128x128xbf16>, vector<128x128xf32> -> vector<128x128xf32>
    %132 = arith.addf %126, %131 : vector<128x128xf32>
    %c2_157 = arith.constant 2 : index
    %c0_158 = arith.constant 0 : index
    %c0_159 = arith.constant 0 : index
    %133 = vector.load %arg11[%c2_157, %c0_158, %c0_159] : memref<10x18x128xbf16, #tpu.memory_space<vmem>>, vector<8x16x128xbf16>
    %134 = vector.shape_cast %133 : vector<8x16x128xbf16> to vector<128x128xbf16>
    %c2_160 = arith.constant 2 : index
    %c0_161 = arith.constant 0 : index
    %c0_162 = arith.constant 0 : index
    %c0_163 = arith.constant 0 : index
    %135 = vector.load %arg7[%c2_160, %c0_161, %c0_162, %c0_163] : memref<3x3x128x128xbf16, #tpu.memory_space<vmem>>, vector<1x1x128x128xbf16>
    %136 = vector.shape_cast %135 : vector<1x1x128x128xbf16> to vector<128x128xbf16>
    %cst_164 = arith.constant dense<0.000000e+00> : vector<128x128xf32>
    %137 = tpu.matmul %134, %136, %cst_164 {dimension_numbers = #tpu.dot_dimension_numbers<[1], [0], [0], [1], [0, 0, 1, 1], [], []>} : vector<128x128xbf16>, vector<128x128xbf16>, vector<128x128xf32> -> vector<128x128xf32>
    %138 = arith.addf %132, %137 : vector<128x128xf32>
    %c2_165 = arith.constant 2 : index
    %c1_166 = arith.constant 1 : index
    %c0_167 = arith.constant 0 : index
    %139 = vector.load %arg11[%c2_165, %c1_166, %c0_167] : memref<10x18x128xbf16, #tpu.memory_space<vmem>>, vector<8x16x128xbf16>
    %140 = vector.shape_cast %139 : vector<8x16x128xbf16> to vector<128x128xbf16>
    %c2_168 = arith.constant 2 : index
    %c1_169 = arith.constant 1 : index
    %c0_170 = arith.constant 0 : index
    %c0_171 = arith.constant 0 : index
    %141 = vector.load %arg7[%c2_168, %c1_169, %c0_170, %c0_171] : memref<3x3x128x128xbf16, #tpu.memory_space<vmem>>, vector<1x1x128x128xbf16>
    %142 = vector.shape_cast %141 : vector<1x1x128x128xbf16> to vector<128x128xbf16>
    %cst_172 = arith.constant dense<0.000000e+00> : vector<128x128xf32>
    %143 = tpu.matmul %140, %142, %cst_172 {dimension_numbers = #tpu.dot_dimension_numbers<[1], [0], [0], [1], [0, 0, 1, 1], [], []>} : vector<128x128xbf16>, vector<128x128xbf16>, vector<128x128xf32> -> vector<128x128xf32>
    %144 = arith.addf %138, %143 : vector<128x128xf32>
    %c2_173 = arith.constant 2 : index
    %c2_174 = arith.constant 2 : index
    %c0_175 = arith.constant 0 : index
    %145 = vector.load %arg11[%c2_173, %c2_174, %c0_175] : memref<10x18x128xbf16, #tpu.memory_space<vmem>>, vector<8x16x128xbf16>
    %146 = vector.shape_cast %145 : vector<8x16x128xbf16> to vector<128x128xbf16>
    %c2_176 = arith.constant 2 : index
    %c2_177 = arith.constant 2 : index
    %c0_178 = arith.constant 0 : index
    %c0_179 = arith.constant 0 : index
    %147 = vector.load %arg7[%c2_176, %c2_177, %c0_178, %c0_179] : memref<3x3x128x128xbf16, #tpu.memory_space<vmem>>, vector<1x1x128x128xbf16>
    %148 = vector.shape_cast %147 : vector<1x1x128x128xbf16> to vector<128x128xbf16>
    %cst_180 = arith.constant dense<0.000000e+00> : vector<128x128xf32>
    %149 = tpu.matmul %146, %148, %cst_180 {dimension_numbers = #tpu.dot_dimension_numbers<[1], [0], [0], [1], [0, 0, 1, 1], [], []>} : vector<128x128xbf16>, vector<128x128xbf16>, vector<128x128xf32> -> vector<128x128xf32>
    %150 = arith.addf %144, %149 : vector<128x128xf32>
    %c0_181 = arith.constant 0 : index
    %c0_182 = arith.constant 0 : index
    %c0_183 = arith.constant 0 : index
    %c0_184 = arith.constant 0 : index
    %151 = vector.load %arg2[%c0_181, %c0_182, %c0_183, %c0_184] : memref<1x8x16x128xbf16, #tpu.memory_space<vmem>>, vector<1x8x16x128xbf16>
    %152 = vector.shape_cast %151 : vector<1x8x16x128xbf16> to vector<8x16x128xbf16>
    %153 = vector.shape_cast %152 : vector<8x16x128xbf16> to vector<128x128xbf16>
    %154 = arith.extf %153 : vector<128x128xbf16> to vector<128x128xf32>
    %cst_185 = arith.constant 1.000000e+00 : f32
    %155 = vector.broadcast %cst_185 : f32 to vector<128x128xf32>
    %156 = arith.mulf %150, %155 : vector<128x128xf32>
    %157 = arith.addf %156, %154 : vector<128x128xf32>
    %158 = vector.shape_cast %157 : vector<128x128xf32> to vector<8x16x128xf32>
    %159 = arith.truncf %158 : vector<8x16x128xf32> to vector<8x16x128xbf16>
    %c0_186 = arith.constant 0 : index
    %c0_187 = arith.constant 0 : index
    %c0_188 = arith.constant 0 : index
    %c0_189 = arith.constant 0 : index
    %160 = vector.load %arg9[%c0_186, %c0_187, %c0_188, %c0_189] : memref<1x8x16x128xbf16, #tpu.memory_space<vmem>>, vector<1x8x16x128xbf16>
    %161 = vector.shape_cast %160 : vector<1x8x16x128xbf16> to vector<8x16x128xbf16>
    %162 = vector.shape_cast %159 : vector<8x16x128xbf16> to vector<1x8x16x128xbf16>
    tpu.vector_store %arg9[%c0_186, %c0_187, %c0_188, %c0_189], %162 {strides = array<i32>} : memref<1x8x16x128xbf16, #tpu.memory_space<vmem>>, vector<1x8x16x128xbf16>,
    return
  }
  func.func @transform_0(%arg0: i32, %arg1: i32) -> (i32, i32, i32, i32) {
    %c0_i32 = arith.constant 0 : i32
    %c0_i32_0 = arith.constant 0 : i32
    %c0_i32_1 = arith.constant 0 : i32
    return %arg0, %arg1, %c0_i32, %c0_i32_0 : i32, i32, i32, i32
  }
  func.func @transform_1(%arg0: i32, %arg1: i32) -> (i32, i32, i32, i32) {
    %c4_i32 = arith.constant 4 : i32
    %0 = arith.muli %arg1, %c4_i32 : i32
    %c1_i32 = arith.constant 1 : i32
    %1 = arith.subi %0, %c1_i32 : i32
    %c0_i32 = arith.constant 0 : i32
    %2 = arith.maxsi %1, %c0_i32 : i32
    %c0_i32_0 = arith.constant 0 : i32
    %c0_i32_1 = arith.constant 0 : i32
    %c0_i32_2 = arith.constant 0 : i32
    return %arg0, %2, %c0_i32_0, %c0_i32_1 : i32, i32, i32, i32
  }
  func.func @transform_2(%arg0: i32, %arg1: i32) -> (i32, i32, i32, i32) {
    %c1_i32 = arith.constant 1 : i32
    %0 = arith.addi %arg1, %c1_i32 : i32
    %c4_i32 = arith.constant 4 : i32
    %1 = arith.muli %0, %c4_i32 : i32
    %c7_i32 = arith.constant 7 : i32
    %2 = arith.minsi %1, %c7_i32 : i32
    %c0_i32 = arith.constant 0 : i32
    %c0_i32_0 = arith.constant 0 : i32
    %c0_i32_1 = arith.constant 0 : i32
    return %arg0, %2, %c0_i32, %c0_i32_0 : i32, i32, i32, i32
  }
  func.func @transform_3(%arg0: i32, %arg1: i32) -> (i32, i32, i32, i32) {
    %c0_i32 = arith.constant 0 : i32
    %c0_i32_0 = arith.constant 0 : i32
    %c0_i32_1 = arith.constant 0 : i32
    %c0_i32_2 = arith.constant 0 : i32
    %c0_i32_3 = arith.constant 0 : i32
    return %c0_i32, %c0_i32_0, %c0_i32_1, %c0_i32_2 : i32, i32, i32, i32
  }
  func.func @transform_4(%arg0: i32, %arg1: i32) -> (i32, i32) {
    %c0_i32 = arith.constant 0 : i32
    %c0_i32_0 = arith.constant 0 : i32
    %c0_i32_1 = arith.constant 0 : i32
    return %c0_i32, %c0_i32_0 : i32, i32
  }
  func.func @transform_5(%arg0: i32, %arg1: i32) -> (i32, i32, i32, i32) {
    %c0_i32 = arith.constant 0 : i32
    %c0_i32_0 = arith.constant 0 : i32
    %c0_i32_1 = arith.constant 0 : i32
    %c0_i32_2 = arith.constant 0 : i32
    %c0_i32_3 = arith.constant 0 : i32
    return %c0_i32, %c0_i32_0, %c0_i32_1, %c0_i32_2 : i32, i32, i32, i32
  }
  func.func @transform_6(%arg0: i32, %arg1: i32) -> (i32, i32) {
    %c0_i32 = arith.constant 0 : i32
    %c0_i32_0 = arith.constant 0 : i32
    %c0_i32_1 = arith.constant 0 : i32
    return %c0_i32, %c0_i32_0 : i32, i32
  }
  func.func @transform_7(%arg0: i32, %arg1: i32) -> (i32, i32, i32, i32) {
    %c0_i32 = arith.constant 0 : i32
    %c0_i32_0 = arith.constant 0 : i32
    %c0_i32_1 = arith.constant 0 : i32
    return %arg0, %arg1, %c0_i32, %c0_i32_0 : i32, i32, i32, i32
  }
}

</mosaic_0001>

<llo_original>
// kernel: tpu_custom_call.1
$region0: #{tpu_custom_call.1}
  #allocation0 [shape = 'u32[]', space=smem, size = 0x4, offset = 0x4, fixed_abs, tag = 'smem constant byte address 0x4 - core index']
  #allocation1 [shape = 'u32[144,128]{1,0:T(1,128)}', space=vmem, size = 0x12000, scoped, tag = 'internal scratch']
  #allocation2 [shape = 'bf16[12,18,128]{2,1,0:T(8,128)(2,1)}', space=vmem, size = 0x12000, scoped, tag = 'scratch operand']
  #allocation3 [shape = 'bf16[10,18,128]{2,1,0:T(8,128)(2,1)}', space=vmem, size = 0xf000, scoped, tag = 'scratch operand']
  %s0 = inlined_call_operand.hbm [shape: bf16[2,16,16,128], index: 0, kind: input, shape index: {}]
  %s1 = inlined_call_operand.hbm [shape: bf16[2,16,16,128], index: 1, kind: input, shape index: {}]
  %s2 = inlined_call_operand.hbm [shape: bf16[2,16,16,128], index: 2, kind: input, shape index: {}]
  %s3 = inlined_call_operand.hbm [shape: bf16[3,3,128,128], index: 3, kind: input, shape index: {}]
  %s4 = inlined_call_operand.vmem [shape: f32[1,128], index: 4, kind: input, shape index: {}]
  %s5 = inlined_call_operand.hbm [shape: bf16[3,3,128,128], index: 5, kind: input, shape index: {}]
  %s6 = inlined_call_operand.vmem [shape: f32[1,128], index: 6, kind: input, shape index: {}]
  %s7 = inlined_call_operand.hbm [shape: bf16[2,16,16,128], index: 7, kind: output, shape index: {}]
  %s8 = sld [smem:[#allocation0]]
  $region105: #{tpu_custom_call.1} parent=0
    _
  %s10 = ssub.s32 1, %s8
  %s11 = scalar_select 0, %s10, %s8
  $region1: #{tpu_custom_call.1} parent=0
    #allocation4 [shape = 'u8[65536]{0}', space=vmem, size = 0x10000, scoped, tag = 'input window, operand 0']
    #allocation5 [shape = 's32[2]{0}', space=sflag, size = 0x8, scoped, tag = 'scoped memory for tpu_custom_call.1']
    #allocation6 [shape = 's32[2]{0}', space=sflag, size = 0x8, scoped, tag = 'scoped memory for tpu_custom_call.1']
    #allocation7 [shape = 'u8[16384]{0}', space=vmem, size = 0x4000, scoped, tag = 'input window, operand 1']
    #allocation8 [shape = 's32[2]{0}', space=sflag, size = 0x8, scoped, tag = 'scoped memory for tpu_custom_call.1']
    #allocation9 [shape = 'u8[16384]{0}', space=vmem, size = 0x4000, scoped, tag = 'input window, operand 2']
    #allocation10 [shape = 'u8[294912]{0}', space=vmem, size = 0x48000, scoped, tag = 'input window, operand 3, single buffered']
    #allocation11 [shape = 's32[1]{0}', space=sflag, size = 0x4, scoped, tag = 'scoped memory for tpu_custom_call.1']
    #allocation12 [shape = 'u8[294912]{0}', space=vmem, size = 0x48000, scoped, tag = 'input window, operand 5, single buffered']
    #allocation13 [shape = 'u8[65536]{0}', space=vmem, size = 0x10000, scoped, tag = 'output window, operand 0']
    %12 = vsyncpa [#allocation5], 0
    %s13 = scalar_lea.sflag [#allocation5], 1
    %14 = vsyncpa %s13, 0
    %15 = vsyncpa [#allocation8], 0
    %s16 = scalar_lea.sflag [#allocation8], 1
    %17 = vsyncpa %s16, 0
    %18 = vsyncpa [#allocation11], 0
    %19 = vsyncpa [#allocation6], 0
    %s20 = scalar_lea.sflag [#allocation6], 1
    %21 = vsyncpa %s20, 0
    loop: start=0, step=1, limit=6
    $region2: #{tpu_custom_call.1} parent=1 // loop_pre_header
      _
    $region3: #{tpu_custom_call.1} parent=1 // loop_header
      %s23 = sphi 0, %s27
      %p24 = scmp.ge.s32.totalorder %s23, 6
      %s30 = sphi 0, %s42
      %s31 = sphi 0, %s38
      %s32 = sphi 0, %s30
      %s33 = sphi 0, %s31
      %s34 = sphi 0, %s32
      %s35 = sphi 0, %s33
      %s47 = sphi 0, %s49
      %s50 = sphi 0, %s47
      %s51 = sphi 0, %s50
      %s67 = sphi 0, %s51
      %s83 = sphi 0, %s85
      %s86 = sphi 0, %s83
      %s87 = sphi 0, %s86
      %s103 = sphi 0, %s87
      %s119 = sphi 0, %s121
      %s122 = sphi 0, %s119
      %s123 = sphi 0, %s122
      %s139 = sphi 0, %s123
      %s143 = sphi 0, %s143
      %s145 = sphi 0, %s143
      %s146 = sphi 0, %s145
      %s160 = sphi 0, %s146
      %s164 = sphi 0, %s164
      %s166 = sphi 0, %s164
      %s167 = sphi 0, %s166
      %s181 = sphi 0, %s167
      %s185 = sphi 0, %s185
      %s187 = sphi 0, %s185
      %s188 = sphi 0, %s187
      %s202 = sphi 0, %s188
      %s206 = sphi 0, %s206
      %s208 = sphi 0, %s206
      %s209 = sphi 0, %s208
      %s223 = sphi 0, %s209
      %s231 = sphi 0, %s233
      %s234 = sphi 0, %s231
      %s235 = sphi 0, %s234
      %s251 = sphi 0, %s235
    $region4: #{tpu_custom_call.1} parent=1 // loop_header_branch
      %26 = sbr.rel (%p24) target = $region8
    $region5: #{tpu_custom_call.1} parent=1 // loop_body
      %s28 = ssub.s32 %s23, 1
      %s29 = ssub.s32 %s23, 2
      %s36 = sadd.s32 1, %s31
      %p37 = scmp.ge.s32.totalorder %s36, 2
      %s38 = scalar_select %p37, 0, %s36
      %s39 = sadd.s32 1, %s30
      %s40 = scalar_select %p37, %s39, %s30
      %p41 = scmp.ge.s32.totalorder %s40, 2
      %s42 = scalar_select %p41, 0, %s40
      %s43 = ssub.s32 %s30, %s42
      %s44 = ssub.s32 %s31, %s38
      %s45 = sor.u32 %s43, %s44
      %p46 = scmp.eq.s32.totalorder %s45, 0
      %s48 = sadd.s32 %s47, 1
      %s49 = scalar_select %p46, %s47, %s48
      %p52 = pneg %p46
      %p53 = scmp.eq.s32.totalorder %s23, 3
      %p54 = por %p52, %p53
      %p55 = scmp.ne.s32.totalorder %s47, %s50
      %p56 = scmp.eq.s32.totalorder %s23, 0
      %p57 = por %p55, %p56
      %p58 = scmp.ne.s32.totalorder %s47, %s50
      %p59 = scmp.eq.s32.totalorder %s28, 3
      %p60 = por %p58, %p59
      %p61 = scmp.ne.s32.totalorder %s50, %s51
      %p62 = scmp.eq.s32.totalorder %s28, 0
      %p63 = por %p61, %p62
      %p64 = scmp.ne.s32.totalorder %s50, %s51
      %p65 = scmp.eq.s32.totalorder %s29, 3
      %p66 = por %p64, %p65
      %p68 = scmp.ne.s32.totalorder %s51, %s67
      %p69 = scmp.eq.s32.totalorder %s29, 0
      %p70 = por %p68, %p69
      %s71 = smul.u32 %s31, 4
      %s72 = ssub.s32 %s71, 1
      %p73 = scmp.gt.s32.totalorder %s72, 0
      %s74 = scalar_select %p73, %s72, 0
      %s75 = smul.u32 %s38, 4
      %s76 = ssub.s32 %s75, 1
      %p77 = scmp.gt.s32.totalorder %s76, 0
      %s78 = scalar_select %p77, %s76, 0
      %s79 = ssub.s32 %s30, %s42
      %s80 = ssub.s32 %s74, %s78
      %s81 = sor.u32 %s79, %s80
      %p82 = scmp.eq.s32.totalorder %s81, 0
      %s84 = sadd.s32 %s83, 1
      %s85 = scalar_select %p82, %s83, %s84
      %p88 = pneg %p82
      %p89 = scmp.eq.s32.totalorder %s23, 3
      %p90 = por %p88, %p89
      %p91 = scmp.ne.s32.totalorder %s83, %s86
      %p92 = scmp.eq.s32.totalorder %s23, 0
      %p93 = por %p91, %p92
      %p94 = scmp.ne.s32.totalorder %s83, %s86
      %p95 = scmp.eq.s32.totalorder %s28, 3
      %p96 = por %p94, %p95
      %p97 = scmp.ne.s32.totalorder %s86, %s87
      %p98 = scmp.eq.s32.totalorder %s28, 0
      %p99 = por %p97, %p98
      %p100 = scmp.ne.s32.totalorder %s86, %s87
      %p101 = scmp.eq.s32.totalorder %s29, 3
      %p102 = por %p100, %p101
      %p104 = scmp.ne.s32.totalorder %s87, %s103
      %p105 = scmp.eq.s32.totalorder %s29, 0
      %p106 = por %p104, %p105
      %s107 = sadd.s32 %s31, 1
      %s108 = smul.u32 %s107, 4
      %p109 = scmp.lt.s32.totalorder %s108, 7
      %s110 = scalar_select %p109, %s108, 7
      %s111 = sadd.s32 %s38, 1
      %s112 = smul.u32 %s111, 4
      %p113 = scmp.lt.s32.totalorder %s112, 7
      %s114 = scalar_select %p113, %s112, 7
      %s115 = ssub.s32 %s30, %s42
      %s116 = ssub.s32 %s110, %s114
      %s117 = sor.u32 %s115, %s116
      %p118 = scmp.eq.s32.totalorder %s117, 0
      %s120 = sadd.s32 %s119, 1
      %s121 = scalar_select %p118, %s119, %s120
      %p124 = pneg %p118
      %p125 = scmp.eq.s32.totalorder %s23, 3
      %p126 = por %p124, %p125
      %p127 = scmp.ne.s32.totalorder %s119, %s122
      %p128 = scmp.eq.s32.totalorder %s23, 0
      %p129 = por %p127, %p128
      %p130 = scmp.ne.s32.totalorder %s119, %s122
      %p131 = scmp.eq.s32.totalorder %s28, 3
      %p132 = por %p130, %p131
      %p133 = scmp.ne.s32.totalorder %s122, %s123
      %p134 = scmp.eq.s32.totalorder %s28, 0
      %p135 = por %p133, %p134
      %p136 = scmp.ne.s32.totalorder %s122, %s123
      %p137 = scmp.eq.s32.totalorder %s29, 3
      %p138 = por %p136, %p137
      %p140 = scmp.ne.s32.totalorder %s123, %s139
      %p141 = scmp.eq.s32.totalorder %s29, 0
      %p142 = por %p140, %p141
      %s144 = sadd.s32 %s143, 1
      %p147 = scmp.eq.s32.totalorder %s23, 3
      %p148 = scmp.ne.s32.totalorder %s143, %s145
      %p149 = scmp.eq.s32.totalorder %s23, 0
      %p150 = por %p148, %p149
      %p151 = scmp.ne.s32.totalorder %s143, %s145
      %p152 = scmp.eq.s32.totalorder %s28, 3
      %p153 = por %p151, %p152
      %p154 = scmp.ne.s32.totalorder %s145, %s146
      %p155 = scmp.eq.s32.totalorder %s28, 0
      %p156 = por %p154, %p155
      %p157 = scmp.ne.s32.totalorder %s145, %s146
      %p158 = scmp.eq.s32.totalorder %s29, 3
      %p159 = por %p157, %p158
      %p161 = scmp.ne.s32.totalorder %s146, %s160
      %p162 = scmp.eq.s32.totalorder %s29, 0
      %p163 = por %p161, %p162
      %s165 = sadd.s32 %s164, 1
      %p168 = scmp.eq.s32.totalorder %s23, 3
      %p169 = scmp.ne.s32.totalorder %s164, %s166
      %p170 = scmp.eq.s32.totalorder %s23, 0
      %p171 = por %p169, %p170
      %p172 = scmp.ne.s32.totalorder %s164, %s166
      %p173 = scmp.eq.s32.totalorder %s28, 3
      %p174 = por %p172, %p173
      %p175 = scmp.ne.s32.totalorder %s166, %s167
      %p176 = scmp.eq.s32.totalorder %s28, 0
      %p177 = por %p175, %p176
      %p178 = scmp.ne.s32.totalorder %s166, %s167
      %p179 = scmp.eq.s32.totalorder %s29, 3
      %p180 = por %p178, %p179
      %p182 = scmp.ne.s32.totalorder %s167, %s181
      %p183 = scmp.eq.s32.totalorder %s29, 0
      %p184 = por %p182, %p183
      %s186 = sadd.s32 %s185, 1
      %p189 = scmp.eq.s32.totalorder %s23, 3
      %p190 = scmp.ne.s32.totalorder %s185, %s187
      %p191 = scmp.eq.s32.totalorder %s23, 0
      %p192 = por %p190, %p191
      %p193 = scmp.ne.s32.totalorder %s185, %s187
      %p194 = scmp.eq.s32.totalorder %s28, 3
      %p195 = por %p193, %p194
      %p196 = scmp.ne.s32.totalorder %s187, %s188
      %p197 = scmp.eq.s32.totalorder %s28, 0
      %p198 = por %p196, %p197
      %p199 = scmp.ne.s32.totalorder %s187, %s188
      %p200 = scmp.eq.s32.totalorder %s29, 3
      %p201 = por %p199, %p200
      %p203 = scmp.ne.s32.totalorder %s188, %s202
      %p204 = scmp.eq.s32.totalorder %s29, 0
      %p205 = por %p203, %p204
      %s207 = sadd.s32 %s206, 1
      %p210 = scmp.eq.s32.totalorder %s23, 3
      %p211 = scmp.ne.s32.totalorder %s206, %s208
      %p212 = scmp.eq.s32.totalorder %s23, 0
      %p213 = por %p211, %p212
      %p214 = scmp.ne.s32.totalorder %s206, %s208
      %p215 = scmp.eq.s32.totalorder %s28, 3
      %p216 = por %p214, %p215
      %p217 = scmp.ne.s32.totalorder %s208, %s209
      %p218 = scmp.eq.s32.totalorder %s28, 0
      %p219 = por %p217, %p218
      %p220 = scmp.ne.s32.totalorder %s208, %s209
      %p221 = scmp.eq.s32.totalorder %s29, 3
      %p222 = por %p220, %p221
      %p224 = scmp.ne.s32.totalorder %s209, %s223
      %p225 = scmp.eq.s32.totalorder %s29, 0
      %p226 = por %p224, %p225
      %s227 = ssub.s32 %s30, %s42
      %s228 = ssub.s32 %s31, %s38
      %s229 = sor.u32 %s227, %s228
      %p230 = scmp.eq.s32.totalorder %s229, 0
      %s232 = sadd.s32 %s231, 1
      %s233 = scalar_select %p230, %s231, %s232
      %p236 = pneg %p230
      %p237 = scmp.eq.s32.totalorder %s23, 3
      %p238 = por %p236, %p237
      %p239 = scmp.ne.s32.totalorder %s231, %s234
      %p240 = scmp.eq.s32.totalorder %s23, 0
      %p241 = por %p239, %p240
      %p242 = scmp.ne.s32.totalorder %s231, %s234
      %p243 = scmp.eq.s32.totalorder %s28, 3
      %p244 = por %p242, %p243
      %p245 = scmp.ne.s32.totalorder %s234, %s235
      %p246 = scmp.eq.s32.totalorder %s28, 0
      %p247 = por %p245, %p246
      %p248 = scmp.ne.s32.totalorder %s234, %s235
      %p249 = scmp.eq.s32.totalorder %s29, 3
      %p250 = por %p248, %p249
      %p252 = scmp.ne.s32.totalorder %s235, %s251
      %p253 = scmp.eq.s32.totalorder %s29, 0
      %p254 = por %p252, %p253
      %p255 = scmp.le.s32.totalorder 1, %s23
      %p256 = scmp.lt.s32.totalorder %s23, 5
      %p257 = pnand %p255, %p256
      %p258 = pneg %p257
      // Predicated region
      $region9: #{tpu_custom_call.1} parent=5 // pred_check
        _
      $region10: #{tpu_custom_call.1} parent=5 // pred_check_branch
        %260 = sbr.rel (%p257) target = $region12
      $region11: #{tpu_custom_call.1} parent=5 // pred_region
        %s261 = ssub.s32 %s23, 1
        // Predicated region
        $region13: #{tpu_custom_call.1} parent=11 // pred_check
          %p262 = pneg %p156
        $region14: #{tpu_custom_call.1} parent=11 // pred_check_branch
          %264 = sbr.rel (%p262) target = $region16
        $region15: #{tpu_custom_call.1} parent=11 // pred_region
          %s266 = ssub.s32 9216, 9216
          %267 = vsyncadd [#allocation11], %s266
          %s268 = sshll.u32 [#allocation10], 4
          %s269 = int_to_ptr.vmem [resolvable:$true] %s268
          %274 = dma.hbm_to_vmem [thread:$0]  %s3, 9216, %s269, [#allocation11], 64, 64, 4
        $region16: #{tpu_custom_call.1} parent=11 // pred_fallthru
          _
        // Predicated region
        $region17: #{tpu_custom_call.1} parent=11 // pred_check
          %p275 = pneg %p177
        $region18: #{tpu_custom_call.1} parent=11 // pred_check_branch
          %277 = sbr.rel (%p275) target = $region20
        $region19: #{tpu_custom_call.1} parent=11 // pred_region
          _
        $region20: #{tpu_custom_call.1} parent=11 // pred_fallthru
          _
        // Predicated region
        $region21: #{tpu_custom_call.1} parent=11 // pred_check
          %p278 = pneg %p198
        $region22: #{tpu_custom_call.1} parent=11 // pred_check_branch
          %280 = sbr.rel (%p278) target = $region24
        $region23: #{tpu_custom_call.1} parent=11 // pred_region
          %s282 = ssub.s32 9216, 9216
          %283 = vsyncadd [#allocation11], %s282
          %s284 = sshll.u32 [#allocation12], 4
          %s285 = int_to_ptr.vmem [resolvable:$true] %s284
          %290 = dma.hbm_to_vmem [thread:$0]  %s5, 9216, %s285, [#allocation11], 64, 64, 4
        $region24: #{tpu_custom_call.1} parent=11 // pred_fallthru
          _
        // Predicated region
        $region25: #{tpu_custom_call.1} parent=11 // pred_check
          %p291 = pneg %p219
        $region26: #{tpu_custom_call.1} parent=11 // pred_check_branch
          %293 = sbr.rel (%p291) target = $region28
        $region27: #{tpu_custom_call.1} parent=11 // pred_region
          _
        $region28: #{tpu_custom_call.1} parent=11 // pred_fallthru
          _
      $region12: #{tpu_custom_call.1} parent=5 // pred_fallthru
        _
      %p294 = scmp.lt.s32.totalorder %s23, 4
      // Predicated region
      $region29: #{tpu_custom_call.1} parent=5 // pred_check
        %p295 = pneg %p294
      $region30: #{tpu_custom_call.1} parent=5 // pred_check_branch
        %297 = sbr.rel (%p295) target = $region32
      $region31: #{tpu_custom_call.1} parent=5 // pred_region
        // Predicated region
        $region33: #{tpu_custom_call.1} parent=31 // pred_check
          %p298 = pneg %p57
        $region34: #{tpu_custom_call.1} parent=31 // pred_check_branch
          %300 = sbr.rel (%p298) target = $region36
        $region35: #{tpu_custom_call.1} parent=31 // pred_region
          %s301 = sand.u32 %s47, 1
          %s302 = scalar_lea.sflag [#allocation5], %s301
          %s303 = sand.u32 %s47, 1
          %s304 = smul.addr %s303, 64
          %s305 = scalar_lea.vmem [#allocation4], %s304
          %s306 = smul.u32 8, %s31
          %s308 = ssub.s32 1024, 1024
          %309 = vsyncadd %s302, %s308
          %s310 = smul.addr %s306, 2
          %s311 = smul.addr %s30, 32
          %s312 = sadd.s32 %s310, %s311
          %s313 = smul.addr %s312, 64
          %s314 = scalar_lea.hbm %s0, %s313
          %s315 = sshll.u32 %s305, 4
          %s316 = int_to_ptr.vmem [resolvable:$true] %s315
          %321 = dma.hbm_to_vmem [thread:$0]  %s314, 1024, %s316, %s302, 64, 64, 4
        $region36: #{tpu_custom_call.1} parent=31 // pred_fallthru
          _
        // Predicated region
        $region37: #{tpu_custom_call.1} parent=31 // pred_check
          %p322 = pneg %p93
        $region38: #{tpu_custom_call.1} parent=31 // pred_check_branch
          %324 = sbr.rel (%p322) target = $region40
        $region39: #{tpu_custom_call.1} parent=31 // pred_region
          %s325 = sand.u32 %s23, 1
          %s326 = scalar_lea.sflag [#allocation8], %s325
          %s327 = sand.u32 %s83, 1
          %s328 = smul.addr %s327, 16
          %s329 = scalar_lea.vmem [#allocation7], %s328
          %s330 = smul.u32 %s31, 4
          %s331 = ssub.s32 %s330, 1
          %p332 = scmp.gt.s32.totalorder %s331, 0
          %s333 = scalar_select %p332, %s331, 0
          %s334 = smul.u32 2, %s333
          %s336 = ssub.s32 256, 256
          %337 = vsyncadd %s326, %s336
          %s338 = smul.addr %s334, 2
          %s339 = smul.addr %s30, 32
          %s340 = sadd.s32 %s338, %s339
          %s341 = smul.addr %s340, 64
          %s342 = scalar_lea.hbm %s1, %s341
          %s343 = sshll.u32 %s329, 4
          %s344 = int_to_ptr.vmem [resolvable:$true] %s343
          %349 = dma.hbm_to_vmem [thread:$0]  %s342, 256, %s344, %s326, 64, 64, 4
        $region40: #{tpu_custom_call.1} parent=31 // pred_fallthru
          _
        // Predicated region
        $region41: #{tpu_custom_call.1} parent=31 // pred_check
          %p350 = pneg %p129
        $region42: #{tpu_custom_call.1} parent=31 // pred_check_branch
          %352 = sbr.rel (%p350) target = $region44
        $region43: #{tpu_custom_call.1} parent=31 // pred_region
          %s353 = sand.u32 %s23, 1
          %s354 = scalar_lea.sflag [#allocation8], %s353
          %s355 = sand.u32 %s119, 1
          %s356 = smul.addr %s355, 16
          %s357 = scalar_lea.vmem [#allocation9], %s356
          %s358 = sadd.s32 %s31, 1
          %s359 = smul.u32 %s358, 4
          %p360 = scmp.lt.s32.totalorder %s359, 7
          %s361 = scalar_select %p360, %s359, 7
          %s362 = smul.u32 2, %s361
          %s364 = ssub.s32 256, 256
          %365 = vsyncadd %s354, %s364
          %s366 = smul.addr %s362, 2
          %s367 = smul.addr %s30, 32
          %s368 = sadd.s32 %s366, %s367
          %s369 = smul.addr %s368, 64
          %s370 = scalar_lea.hbm %s2, %s369
          %s371 = sshll.u32 %s357, 4
          %s372 = int_to_ptr.vmem [resolvable:$true] %s371
          %377 = dma.hbm_to_vmem [thread:$0]  %s370, 256, %s372, %s354, 64, 64, 4
        $region44: #{tpu_custom_call.1} parent=31 // pred_fallthru
          _
      $region32: #{tpu_custom_call.1} parent=5 // pred_fallthru
        _
      %p378 = scmp.le.s32.totalorder 1, %s23
      %p379 = scmp.lt.s32.totalorder %s23, 5
      %p380 = pnand %p378, %p379
      %p381 = pneg %p380
      // Predicated region
      $region45: #{tpu_custom_call.1} parent=5 // pred_check
        _
      $region46: #{tpu_custom_call.1} parent=5 // pred_check_branch
        %383 = sbr.rel (%p380) target = $region48
      $region47: #{tpu_custom_call.1} parent=5 // pred_region
        %s384 = ssub.s32 %s23, 1
        %s385 = sand.u32 %s50, 1
        %s386 = scalar_lea.sflag [#allocation5], %s385
        %s387 = sand.u32 %s50, 1
        %s388 = smul.addr %s387, 64
        %s389 = scalar_lea.vmem [#allocation4], %s388
        // Predicated region
        $region49: #{tpu_custom_call.1} parent=47 // pred_check
          %p390 = pneg %p63
        $region50: #{tpu_custom_call.1} parent=47 // pred_check_branch
          %392 = sbr.rel (%p390) target = $region52
        $region51: #{tpu_custom_call.1} parent=47 // pred_region
          %393 = dma.done %s386, 1024
        $region52: #{tpu_custom_call.1} parent=47 // pred_fallthru
          _
        %s394 = sand.u32 %s28, 1
        %s395 = scalar_lea.sflag [#allocation8], %s394
        %s396 = sand.u32 %s86, 1
        %s397 = smul.addr %s396, 16
        %s398 = scalar_lea.vmem [#allocation7], %s397
        // Predicated region
        $region53: #{tpu_custom_call.1} parent=47 // pred_check
          %p399 = pneg %p99
        $region54: #{tpu_custom_call.1} parent=47 // pred_check_branch
          %401 = sbr.rel (%p399) target = $region56
        $region55: #{tpu_custom_call.1} parent=47 // pred_region
          %402 = dma.done %s395, 256
        $region56: #{tpu_custom_call.1} parent=47 // pred_fallthru
          _
        %s403 = sand.u32 %s28, 1
        %s404 = scalar_lea.sflag [#allocation8], %s403
        %s405 = sand.u32 %s122, 1
        %s406 = smul.addr %s405, 16
        %s407 = scalar_lea.vmem [#allocation9], %s406
        // Predicated region
        $region57: #{tpu_custom_call.1} parent=47 // pred_check
          %p408 = pneg %p135
        $region58: #{tpu_custom_call.1} parent=47 // pred_check_branch
          %410 = sbr.rel (%p408) target = $region60
        $region59: #{tpu_custom_call.1} parent=47 // pred_region
          %411 = dma.done %s404, 256
        $region60: #{tpu_custom_call.1} parent=47 // pred_fallthru
          _
        // Predicated region
        $region61: #{tpu_custom_call.1} parent=47 // pred_check
          %p412 = pneg %p156
        $region62: #{tpu_custom_call.1} parent=47 // pred_check_branch
          %414 = sbr.rel (%p412) target = $region64
        $region63: #{tpu_custom_call.1} parent=47 // pred_region
          %415 = dma.done [#allocation11], 9216
        $region64: #{tpu_custom_call.1} parent=47 // pred_fallthru
          _
        // Predicated region
        $region65: #{tpu_custom_call.1} parent=47 // pred_check
          %p416 = pneg %p198
        $region66: #{tpu_custom_call.1} parent=47 // pred_check_branch
          %418 = sbr.rel (%p416) target = $region68
        $region67: #{tpu_custom_call.1} parent=47 // pred_region
          %419 = dma.done [#allocation11], 9216
        $region68: #{tpu_custom_call.1} parent=47 // pred_fallthru
          _
        %s420 = sand.u32 %s50, 1
        %s421 = scalar_lea.sflag [#allocation5], %s420
        %s422 = sand.u32 %s50, 1
        %s423 = smul.addr %s422, 64
        %s424 = scalar_lea.vmem [#allocation4], %s423
        %p425 = pneg %p63
        %p426 = pneg %p60
        %s427 = sand.u32 %s28, 1
        %s428 = scalar_lea.sflag [#allocation8], %s427
        %s429 = sand.u32 %s86, 1
        %s430 = smul.addr %s429, 16
        %s431 = scalar_lea.vmem [#allocation7], %s430
        %p432 = pneg %p99
        %p433 = pneg %p96
        %s434 = sand.u32 %s28, 1
        %s435 = scalar_lea.sflag [#allocation8], %s434
        %s436 = sand.u32 %s122, 1
        %s437 = smul.addr %s436, 16
        %s438 = scalar_lea.vmem [#allocation9], %s437
        %p439 = pneg %p135
        %p440 = pneg %p132
        %p441 = pneg %p156
        %p442 = pneg %p153
        %p443 = pneg %p177
        %p444 = pneg %p174
        %p445 = pneg %p198
        %p446 = pneg %p195
        %p447 = pneg %p219
        %p448 = pneg %p216
        %p449 = pneg %p247
        %p450 = pneg %p244
        %s451 = sand.u32 %s234, 1
        %s452 = scalar_lea.sflag [#allocation6], %s451
        %s453 = sand.u32 %s234, 1
        %s454 = smul.addr %s453, 64
        %s455 = scalar_lea.vmem [#allocation13], %s454
        %s456 = smul.u32 8, %s33
        %s457 = smul.u32 %s33, 4
        %s458 = ssub.s32 %s457, 1
        %p459 = scmp.gt.s32.totalorder %s458, 0
        %s460 = scalar_select %p459, %s458, 0
        %s461 = smul.u32 2, %s460
        %s462 = sadd.s32 %s33, 1
        %s463 = smul.u32 %s462, 4
        %p464 = scmp.lt.s32.totalorder %s463, 7
        %s465 = scalar_select %p464, %s463, 7
        %s466 = smul.u32 2, %s465
        %s467 = smul.u32 8, %s33
        %v469 = vld [vmem:[%s389] sm:$0xf]
        %v470 = vld [vmem:[%s389 + $0x4] sm:$0xf]
        %v471 = vld [vmem:[%s389 + $0x8] sm:$0xf]
        %v472 = vld [vmem:[%s389 + $0xc] sm:$0xf]
        %v473 = vld [vmem:[%s389 + $0x10] sm:$0xf]
        %v474 = vld [vmem:[%s389 + $0x14] sm:$0xf]
        %v475 = vld [vmem:[%s389 + $0x18] sm:$0xf]
        %v476 = vld [vmem:[%s389 + $0x1c] sm:$0xf]
        %v477 = vld [vmem:[%s389 + $0x20] sm:$0xf]
        %v478 = vld [vmem:[%s389 + $0x24] sm:$0xf]
        %v479 = vld [vmem:[%s389 + $0x28] sm:$0xf]
        %v480 = vld [vmem:[%s389 + $0x2c] sm:$0xf]
        %v481 = vld [vmem:[%s389 + $0x30] sm:$0xf]
        %v482 = vld [vmem:[%s389 + $0x34] sm:$0xf]
        %v483 = vld [vmem:[%s389 + $0x38] sm:$0xf]
        %v484 = vld [vmem:[%s389 + $0x3c] sm:$0xf]
        %vm485 = vsmask.f32 256
        %vm486 = vsmask.f32 4368
        %vm487 = vmor %vm485, %vm486
        %v489 = vshrl.u32 %v469, 16
        %v491 = vrot.slane %v489, 7
        %v492 = vshll.u32 %v469, 16
        %v494 = vor.u32 %v491, %v492
        %v495 = vrot.slane %v491, 4
        %v497 = vshrl.u32 %v470, 16
        %v499 = vrot.slane %v497, 7
        %v500 = vshll.u32 %v470, 16
        %v502 = vor.u32 %v499, %v500
        %v503 = vsel %vm487, %v495, %v502
        %v504 = vrot.slane %v499, 4
        %v506 = vshrl.u32 %v471, 16
        %v508 = vrot.slane %v506, 7
        %v509 = vshll.u32 %v471, 16
        %v511 = vor.u32 %v508, %v509
        %v512 = vrot.slane %v508, 4
        %v514 = vshrl.u32 %v472, 16
        %v516 = vrot.slane %v514, 7
        %v517 = vshll.u32 %v472, 16
        %v519 = vor.u32 %v516, %v517
        %v520 = vsel %vm487, %v512, %v519
        %v521 = vrot.slane %v516, 4
        %v523 = vshrl.u32 %v473, 16
        %v525 = vrot.slane %v523, 7
        %v526 = vshll.u32 %v473, 16
        %v528 = vor.u32 %v525, %v526
        %v529 = vrot.slane %v525, 4
        %v531 = vshrl.u32 %v474, 16
        %v533 = vrot.slane %v531, 7
        %v534 = vshll.u32 %v474, 16
        %v536 = vor.u32 %v533, %v534
        %v537 = vsel %vm487, %v529, %v536
        %v538 = vrot.slane %v533, 4
        %v540 = vshrl.u32 %v475, 16
        %v542 = vrot.slane %v540, 7
        %v543 = vshll.u32 %v475, 16
        %v545 = vor.u32 %v542, %v543
        %v546 = vrot.slane %v542, 4
        %v548 = vshrl.u32 %v476, 16
        %v550 = vrot.slane %v548, 7
        %v551 = vshll.u32 %v476, 16
        %v553 = vor.u32 %v550, %v551
        %v554 = vsel %vm487, %v546, %v553
        %v555 = vrot.slane %v550, 4
        %v557 = vshrl.u32 %v477, 16
        %v559 = vrot.slane %v557, 7
        %v560 = vshll.u32 %v477, 16
        %v562 = vor.u32 %v559, %v560
        %v563 = vrot.slane %v559, 4
        %v565 = vshrl.u32 %v478, 16
        %v567 = vrot.slane %v565, 7
        %v568 = vshll.u32 %v478, 16
        %v570 = vor.u32 %v567, %v568
        %v571 = vsel %vm487, %v563, %v570
        %v572 = vrot.slane %v567, 4
        %v574 = vshrl.u32 %v479, 16
        %v576 = vrot.slane %v574, 7
        %v577 = vshll.u32 %v479, 16
        %v579 = vor.u32 %v576, %v577
        %v580 = vrot.slane %v576, 4
        %v582 = vshrl.u32 %v480, 16
        %v584 = vrot.slane %v582, 7
        %v585 = vshll.u32 %v480, 16
        %v587 = vor.u32 %v584, %v585
        %v588 = vsel %vm487, %v580, %v587
        %v589 = vrot.slane %v584, 4
        %v591 = vshrl.u32 %v481, 16
        %v593 = vrot.slane %v591, 7
        %v594 = vshll.u32 %v481, 16
        %v596 = vor.u32 %v593, %v594
        %v597 = vrot.slane %v593, 4
        %v599 = vshrl.u32 %v482, 16
        %v601 = vrot.slane %v599, 7
        %v602 = vshll.u32 %v482, 16
        %v604 = vor.u32 %v601, %v602
        %v605 = vsel %vm487, %v597, %v604
        %v606 = vrot.slane %v601, 4
        %v608 = vshrl.u32 %v483, 16
        %v610 = vrot.slane %v608, 7
        %v611 = vshll.u32 %v483, 16
        %v613 = vor.u32 %v610, %v611
        %v614 = vrot.slane %v610, 4
        %v616 = vshrl.u32 %v484, 16
        %v618 = vrot.slane %v616, 7
        %v619 = vshll.u32 %v484, 16
        %v621 = vor.u32 %v618, %v619
        %v622 = vsel %vm487, %v614, %v621
        %v623 = vrot.slane %v618, 4
        %s648 = scalar_lea.vmem [#allocation2], 24
        %vm649 = vcmask 1043456
        %vm650 = vsmask.f32 7938
        %vm651 = vmand %vm649, %vm650
        %v652 = vld [vmem:[%s648] sm:$0xf]
        %v653 = vsel %vm651, %v494, %v652
        %654 = vst [vmem:[%s648] sm:$0xf] %v653
        %655 = vst [vmem:[%s648 + $0x4] sm:$0xf] %v503
        %vm656 = vcmask 1040384
        %vm657 = vmand %vm656, %vm485
        %v658 = vld [vmem:[%s648 + $0x8] sm:$0x1]
        %v659 = vsel %vm657, %v504, %v658
        %660 = vst [vmem:[%s648 + $0x8] sm:$0x1] %v659
        %v661 = vld [vmem:[%s648 + $0xc] sm:$0xf]
        %v662 = vsel %vm651, %v511, %v661
        %663 = vst [vmem:[%s648 + $0xc] sm:$0xf] %v662
        %664 = vst [vmem:[%s648 + $0x10] sm:$0xf] %v520
        %v665 = vld [vmem:[%s648 + $0x14] sm:$0x1]
        %v666 = vsel %vm657, %v521, %v665
        %667 = vst [vmem:[%s648 + $0x14] sm:$0x1] %v666
        %v668 = vld [vmem:[%s648 + $0x18] sm:$0xf]
        %v669 = vsel %vm651, %v528, %v668
        %670 = vst [vmem:[%s648 + $0x18] sm:$0xf] %v669
        %671 = vst [vmem:[%s648 + $0x1c] sm:$0xf] %v537
        %v672 = vld [vmem:[%s648 + $0x20] sm:$0x1]
        %v673 = vsel %vm657, %v538, %v672
        %674 = vst [vmem:[%s648 + $0x20] sm:$0x1] %v673
        %v675 = vld [vmem:[%s648 + $0x24] sm:$0xf]
        %v676 = vsel %vm651, %v545, %v675
        %677 = vst [vmem:[%s648 + $0x24] sm:$0xf] %v676
        %678 = vst [vmem:[%s648 + $0x28] sm:$0xf] %v554
        %v679 = vld [vmem:[%s648 + $0x2c] sm:$0x1]
        %v680 = vsel %vm657, %v555, %v679
        %681 = vst [vmem:[%s648 + $0x2c] sm:$0x1] %v680
        %v682 = vld [vmem:[%s648 + $0x30] sm:$0xf]
        %v683 = vsel %vm651, %v562, %v682
        %684 = vst [vmem:[%s648 + $0x30] sm:$0xf] %v683
        %685 = vst [vmem:[%s648 + $0x34] sm:$0xf] %v571
        %v686 = vld [vmem:[%s648 + $0x38] sm:$0x1]
        %v687 = vsel %vm657, %v572, %v686
        %688 = vst [vmem:[%s648 + $0x38] sm:$0x1] %v687
        %v689 = vld [vmem:[%s648 + $0x3c] sm:$0xf]
        %v690 = vsel %vm651, %v579, %v689
        %691 = vst [vmem:[%s648 + $0x3c] sm:$0xf] %v690
        %692 = vst [vmem:[%s648 + $0x40] sm:$0xf] %v588
        %v693 = vld [vmem:[%s648 + $0x44] sm:$0x1]
        %v694 = vsel %vm657, %v589, %v693
        %695 = vst [vmem:[%s648 + $0x44] sm:$0x1] %v694
        %v696 = vld [vmem:[%s648 + $0x48] sm:$0xf]
        %v697 = vsel %vm651, %v596, %v696
        %698 = vst [vmem:[%s648 + $0x48] sm:$0xf] %v697
        %699 = vst [vmem:[%s648 + $0x4c] sm:$0xf] %v605
        %v700 = vld [vmem:[%s648 + $0x50] sm:$0x1]
        %v701 = vsel %vm657, %v606, %v700
        %702 = vst [vmem:[%s648 + $0x50] sm:$0x1] %v701
        %v703 = vld [vmem:[%s648 + $0x54] sm:$0xf]
        %v704 = vsel %vm651, %v613, %v703
        %705 = vst [vmem:[%s648 + $0x54] sm:$0xf] %v704
        %706 = vst [vmem:[%s648 + $0x58] sm:$0xf] %v622
        %v707 = vld [vmem:[%s648 + $0x5c] sm:$0x1]
        %v708 = vsel %vm657, %v623, %v707
        %709 = vst [vmem:[%s648 + $0x5c] sm:$0x1] %v708
        %p710 = scmp.gt.s32.totalorder %s33, 0
        // Predicated region
        $region69: #{tpu_custom_call.1} parent=47 // pred_check
          %p711 = pneg %p710
        $region70: #{tpu_custom_call.1} parent=47 // pred_check_branch
          %713 = sbr.rel (%p711) target = $region72
        $region71: #{tpu_custom_call.1} parent=47 // pred_region
          %v714 = vld [vmem:[%s398] sm:$0xf]
          %v715 = vld [vmem:[%s398 + $0x4] sm:$0xf]
          %v716 = vld [vmem:[%s398 + $0x8] sm:$0xf]
          %v717 = vld [vmem:[%s398 + $0xc] sm:$0xf]
          %v719 = vshrl.u32 %v714, 16
          %v721 = vrot.slane %v719, 7
          %v722 = vshll.u32 %v714, 16
          %v724 = vor.u32 %v721, %v722
          %v725 = vrot.slane %v721, 4
          %v727 = vshrl.u32 %v715, 16
          %v729 = vrot.slane %v727, 7
          %v730 = vshll.u32 %v715, 16
          %v732 = vor.u32 %v729, %v730
          %v733 = vsel %vm487, %v725, %v732
          %v734 = vrot.slane %v729, 4
          %v736 = vshrl.u32 %v716, 16
          %v738 = vrot.slane %v736, 7
          %v739 = vshll.u32 %v716, 16
          %v741 = vor.u32 %v738, %v739
          %v742 = vrot.slane %v738, 4
          %v744 = vshrl.u32 %v717, 16
          %v746 = vrot.slane %v744, 7
          %v747 = vshll.u32 %v717, 16
          %v749 = vor.u32 %v746, %v747
          %v750 = vsel %vm487, %v742, %v749
          %v751 = vrot.slane %v746, 4
          %v758 = vld [vmem:[#allocation2] sm:$0xf]
          %v759 = vsel %vm651, %v724, %v758
          %760 = vst [vmem:[#allocation2] sm:$0xf] %v759
          %761 = vst [vmem:[#allocation2 + $0x4] sm:$0xf] %v733
          %v762 = vld [vmem:[#allocation2 + $0x8] sm:$0x1]
          %v763 = vsel %vm657, %v734, %v762
          %764 = vst [vmem:[#allocation2 + $0x8] sm:$0x1] %v763
          %v765 = vld [vmem:[#allocation2 + $0xc] sm:$0xf]
          %v766 = vsel %vm651, %v741, %v765
          %767 = vst [vmem:[#allocation2 + $0xc] sm:$0xf] %v766
          %768 = vst [vmem:[#allocation2 + $0x10] sm:$0xf] %v750
          %v769 = vld [vmem:[#allocation2 + $0x14] sm:$0x1]
          %v770 = vsel %vm657, %v751, %v769
          %771 = vst [vmem:[#allocation2 + $0x14] sm:$0x1] %v770
        $region72: #{tpu_custom_call.1} parent=47 // pred_fallthru
          _
        %p772 = scmp.eq.s32.totalorder %s33, 0
        // Predicated region
        $region73: #{tpu_custom_call.1} parent=47 // pred_check
          %p773 = pneg %p772
        $region74: #{tpu_custom_call.1} parent=47 // pred_check_branch
          %775 = sbr.rel (%p773) target = $region76
        $region75: #{tpu_custom_call.1} parent=47 // pred_region
          %776 = vst [vmem:[#allocation2] sm:$0xf] 0
          %777 = vst [vmem:[#allocation2 + $0x4] sm:$0xf] 0
          %778 = vst [vmem:[#allocation2 + $0x8] sm:$0x1] 0
          %779 = vst [vmem:[#allocation2 + $0xc] sm:$0xf] 0
          %780 = vst [vmem:[#allocation2 + $0x10] sm:$0xf] 0
          %781 = vst [vmem:[#allocation2 + $0x14] sm:$0x1] 0
        $region76: #{tpu_custom_call.1} parent=47 // pred_fallthru
          _
        %p782 = scmp.lt.s32.totalorder %s33, 1
        // Predicated region
        $region77: #{tpu_custom_call.1} parent=47 // pred_check
          %p783 = pneg %p782
        $region78: #{tpu_custom_call.1} parent=47 // pred_check_branch
          %785 = sbr.rel (%p783) target = $region80
        $region79: #{tpu_custom_call.1} parent=47 // pred_region
          %v786 = vld [vmem:[%s407] sm:$0xf]
          %v787 = vld [vmem:[%s407 + $0x4] sm:$0xf]
          %v788 = vld [vmem:[%s407 + $0x8] sm:$0xf]
          %v789 = vld [vmem:[%s407 + $0xc] sm:$0xf]
          %v791 = vshrl.u32 %v786, 16
          %v793 = vrot.slane %v791, 7
          %v794 = vshll.u32 %v786, 16
          %v796 = vor.u32 %v793, %v794
          %v797 = vrot.slane %v793, 4
          %v799 = vshrl.u32 %v787, 16
          %v801 = vrot.slane %v799, 7
          %v802 = vshll.u32 %v787, 16
          %v804 = vor.u32 %v801, %v802
          %v805 = vsel %vm487, %v797, %v804
          %v806 = vrot.slane %v801, 4
          %v808 = vshrl.u32 %v788, 16
          %v810 = vrot.slane %v808, 7
          %v811 = vshll.u32 %v788, 16
          %v813 = vor.u32 %v810, %v811
          %v814 = vrot.slane %v810, 4
          %v816 = vshrl.u32 %v789, 16
          %v818 = vrot.slane %v816, 7
          %v819 = vshll.u32 %v789, 16
          %v821 = vor.u32 %v818, %v819
          %v822 = vsel %vm487, %v814, %v821
          %v823 = vrot.slane %v818, 4
          %s830 = scalar_lea.vmem [#allocation2], 120
          %v831 = vld [vmem:[%s830] sm:$0xf]
          %v832 = vsel %vm651, %v796, %v831
          %833 = vst [vmem:[%s830] sm:$0xf] %v832
          %834 = vst [vmem:[%s830 + $0x4] sm:$0xf] %v805
          %v835 = vld [vmem:[%s830 + $0x8] sm:$0x1]
          %v836 = vsel %vm657, %v806, %v835
          %837 = vst [vmem:[%s830 + $0x8] sm:$0x1] %v836
          %v838 = vld [vmem:[%s830 + $0xc] sm:$0xf]
          %v839 = vsel %vm651, %v813, %v838
          %840 = vst [vmem:[%s830 + $0xc] sm:$0xf] %v839
          %841 = vst [vmem:[%s830 + $0x10] sm:$0xf] %v822
          %v842 = vld [vmem:[%s830 + $0x14] sm:$0x1]
          %v843 = vsel %vm657, %v823, %v842
          %844 = vst [vmem:[%s830 + $0x14] sm:$0x1] %v843
        $region80: #{tpu_custom_call.1} parent=47 // pred_fallthru
          _
        %p845 = scmp.eq.s32.totalorder %s33, 1
        // Predicated region
        $region81: #{tpu_custom_call.1} parent=47 // pred_check
          %p846 = pneg %p845
        $region82: #{tpu_custom_call.1} parent=47 // pred_check_branch
          %848 = sbr.rel (%p846) target = $region84
        $region83: #{tpu_custom_call.1} parent=47 // pred_region
          %s849 = scalar_lea.vmem [#allocation2], 120
          %850 = vst [vmem:[%s849] sm:$0xf] 0
          %851 = vst [vmem:[%s849 + $0x4] sm:$0xf] 0
          %852 = vst [vmem:[%s849 + $0x8] sm:$0x1] 0
          %853 = vst [vmem:[%s849 + $0xc] sm:$0xf] 0
          %854 = vst [vmem:[%s849 + $0x10] sm:$0xf] 0
          %855 = vst [vmem:[%s849 + $0x14] sm:$0x1] 0
        $region84: #{tpu_custom_call.1} parent=47 // pred_fallthru
          _
        %v856 = vld [vmem:[#allocation2] sm:$0x1]
        %v857 = vsel %vm657, 0, %v856
        %858 = vst [vmem:[#allocation2] sm:$0x1] %v857
        %v859 = vld [vmem:[#allocation2 + $0xc] sm:$0x1]
        %v860 = vsel %vm657, 0, %v859
        %861 = vst [vmem:[#allocation2 + $0xc] sm:$0x1] %v860
        %v862 = vld [vmem:[#allocation2 + $0x18] sm:$0x1]
        %v863 = vsel %vm657, 0, %v862
        %864 = vst [vmem:[#allocation2 + $0x18] sm:$0x1] %v863
        %v865 = vld [vmem:[#allocation2 + $0x24] sm:$0x1]
        %v866 = vsel %vm657, 0, %v865
        %867 = vst [vmem:[#allocation2 + $0x24] sm:$0x1] %v866
        %v868 = vld [vmem:[#allocation2 + $0x30] sm:$0x1]
        %v869 = vsel %vm657, 0, %v868
        %870 = vst [vmem:[#allocation2 + $0x30] sm:$0x1] %v869
        %v871 = vld [vmem:[#allocation2 + $0x3c] sm:$0x1]
        %v872 = vsel %vm657, 0, %v871
        %873 = vst [vmem:[#allocation2 + $0x3c] sm:$0x1] %v872
        %v874 = vld [vmem:[#allocation2 + $0x48] sm:$0x1]
        %v875 = vsel %vm657, 0, %v874
        %876 = vst [vmem:[#allocation2 + $0x48] sm:$0x1] %v875
        %v877 = vld [vmem:[#allocation2 + $0x54] sm:$0x1]
        %v878 = vsel %vm657, 0, %v877
        %879 = vst [vmem:[#allocation2 + $0x54] sm:$0x1] %v878
        %v880 = vld [vmem:[#allocation2 + $0x60] sm:$0x1]
        %v881 = vsel %vm657, 0, %v880
        %882 = vst [vmem:[#allocation2 + $0x60] sm:$0x1] %v881
        %v883 = vld [vmem:[#allocation2 + $0x6c] sm:$0x1]
        %v884 = vsel %vm657, 0, %v883
        %885 = vst [vmem:[#allocation2 + $0x6c] sm:$0x1] %v884
        %v886 = vld [vmem:[#allocation2 + $0x78] sm:$0x1]
        %v887 = vsel %vm657, 0, %v886
        %888 = vst [vmem:[#allocation2 + $0x78] sm:$0x1] %v887
        %v889 = vld [vmem:[#allocation2 + $0x84] sm:$0x1]
        %v890 = vsel %vm657, 0, %v889
        %891 = vst [vmem:[#allocation2 + $0x84] sm:$0x1] %v890
        %vm892 = vmand %vm656, %vm650
        %v893 = vld [vmem:[#allocation2 + $0x8] sm:$0x1]
        %v894 = vsel %vm892, 0, %v893
        %895 = vst [vmem:[#allocation2 + $0x8] sm:$0x1] %v894
        %v896 = vld [vmem:[#allocation2 + $0x14] sm:$0x1]
        %v897 = vsel %vm892, 0, %v896
        %898 = vst [vmem:[#allocation2 + $0x14] sm:$0x1] %v897
        %v899 = vld [vmem:[#allocation2 + $0x20] sm:$0x1]
        %v900 = vsel %vm892, 0, %v899
        %901 = vst [vmem:[#allocation2 + $0x20] sm:$0x1] %v900
        %v902 = vld [vmem:[#allocation2 + $0x2c] sm:$0x1]
        %v903 = vsel %vm892, 0, %v902
        %904 = vst [vmem:[#allocation2 + $0x2c] sm:$0x1] %v903
        %v905 = vld [vmem:[#allocation2 + $0x38] sm:$0x1]
        %v906 = vsel %vm892, 0, %v905
        %907 = vst [vmem:[#allocation2 + $0x38] sm:$0x1] %v906
        %v908 = vld [vmem:[#allocation2 + $0x44] sm:$0x1]
        %v909 = vsel %vm892, 0, %v908
        %910 = vst [vmem:[#allocation2 + $0x44] sm:$0x1] %v909
        %v911 = vld [vmem:[#allocation2 + $0x50] sm:$0x1]
        %v912 = vsel %vm892, 0, %v911
        %913 = vst [vmem:[#allocation2 + $0x50] sm:$0x1] %v912
        %v914 = vld [vmem:[#allocation2 + $0x5c] sm:$0x1]
        %v915 = vsel %vm892, 0, %v914
        %916 = vst [vmem:[#allocation2 + $0x5c] sm:$0x1] %v915
        %v917 = vld [vmem:[#allocation2 + $0x68] sm:$0x1]
        %v918 = vsel %vm892, 0, %v917
        %919 = vst [vmem:[#allocation2 + $0x68] sm:$0x1] %v918
        %v920 = vld [vmem:[#allocation2 + $0x74] sm:$0x1]
        %v921 = vsel %vm892, 0, %v920
        %922 = vst [vmem:[#allocation2 + $0x74] sm:$0x1] %v921
        %v923 = vld [vmem:[#allocation2 + $0x80] sm:$0x1]
        %v924 = vsel %vm892, 0, %v923
        %925 = vst [vmem:[#allocation2 + $0x80] sm:$0x1] %v924
        %v926 = vld [vmem:[#allocation2 + $0x8c] sm:$0x1]
        %v927 = vsel %vm892, 0, %v926
        %928 = vst [vmem:[#allocation2 + $0x8c] sm:$0x1] %v927
        %v929 = vld [vmem:[%s4] sm:$0x1]
        %v931 = vlaneseq
        %v932 = vshrl.u32 %v931, 7
        %v933 = vsub.s32 0, %v932
        %v934 = vrot.slane %v929, %v933
        %v936 = vld [vmem:[#allocation2] sm:$0xf]
        %v937 = vld [vmem:[#allocation2 + $0x4] sm:$0xf]
        %v938 = vld [vmem:[#allocation2 + $0xc] sm:$0xf]
        %v939 = vld [vmem:[#allocation2 + $0x10] sm:$0xf]
        %v940 = vld [vmem:[#allocation2 + $0x18] sm:$0xf]
        %v941 = vld [vmem:[#allocation2 + $0x1c] sm:$0xf]
        %v942 = vld [vmem:[#allocation2 + $0x24] sm:$0xf]
        %v943 = vld [vmem:[#allocation2 + $0x28] sm:$0xf]
        %v944 = vld [vmem:[#allocation2 + $0x30] sm:$0xf]
        %v945 = vld [vmem:[#allocation2 + $0x34] sm:$0xf]
        %v946 = vld [vmem:[#allocation2 + $0x3c] sm:$0xf]
        %v947 = vld [vmem:[#allocation2 + $0x40] sm:$0xf]
        %v948 = vld [vmem:[#allocation2 + $0x48] sm:$0xf]
        %v949 = vld [vmem:[#allocation2 + $0x4c] sm:$0xf]
        %v950 = vld [vmem:[#allocation2 + $0x54] sm:$0xf]
        %v951 = vld [vmem:[#allocation2 + $0x58] sm:$0xf]
        %v952 = vld [vmem:[#allocation2 + $0x60] sm:$0xf]
        %v953 = vld [vmem:[#allocation2 + $0x64] sm:$0xf]
        %v954 = vld [vmem:[#allocation2 + $0x6c] sm:$0xf]
        %v955 = vld [vmem:[#allocation2 + $0x70] sm:$0xf]
        %v956 = vld [vmem:[#allocation10] sm:$0xf]
        %v957 = vld [vmem:[#allocation10 + $0x4] sm:$0xf]
        %v958 = vld [vmem:[#allocation10 + $0x8] sm:$0xf]
        %v959 = vld [vmem:[#allocation10 + $0xc] sm:$0xf]
        %v960 = vld [vmem:[#allocation10 + $0x10] sm:$0xf]
        %v961 = vld [vmem:[#allocation10 + $0x14] sm:$0xf]
        %v962 = vld [vmem:[#allocation10 + $0x18] sm:$0xf]
        %v963 = vld [vmem:[#allocation10 + $0x1c] sm:$0xf]
        %v964 = vld [vmem:[#allocation10 + $0x20] sm:$0xf]
        %v965 = vld [vmem:[#allocation10 + $0x24] sm:$0xf]
        %v966 = vld [vmem:[#allocation10 + $0x28] sm:$0xf]
        %v967 = vld [vmem:[#allocation10 + $0x2c] sm:$0xf]
        %v968 = vld [vmem:[#allocation10 + $0x30] sm:$0xf]
        %v969 = vld [vmem:[#allocation10 + $0x34] sm:$0xf]
        %v970 = vld [vmem:[#allocation10 + $0x38] sm:$0xf]
        %v971 = vld [vmem:[#allocation10 + $0x3c] sm:$0xf]
        %v992 = vunpack.c.l.b16 %v936
        %v993 = vunpack.c.l.b16 %v937
        %v994 = vunpack.c.l.b16 %v938
        %v995 = vunpack.c.l.b16 %v939
        %v996 = vunpack.c.l.b16 %v940
        %v997 = vunpack.c.l.b16 %v941
        %v998 = vunpack.c.l.b16 %v942
        %v999 = vunpack.c.l.b16 %v943
        %v1000 = vunpack.c.l.b16 %v944
        %v1001 = vunpack.c.l.b16 %v945
        %v1002 = vunpack.c.l.b16 %v946
        %v1003 = vunpack.c.l.b16 %v947
        %v1004 = vunpack.c.l.b16 %v948
        %v1005 = vunpack.c.l.b16 %v949
        %v1006 = vunpack.c.l.b16 %v950
        %v1007 = vunpack.c.l.b16 %v951
        %v1008 = vunpack.c.l.b16 %v952
        %v1009 = vunpack.c.l.b16 %v953
        %v1010 = vunpack.c.l.b16 %v954
        %v1011 = vunpack.c.l.b16 %v955
        %v1012 = vpack.c.b16 %v993, %v992
        %v1013 = vpack.c.b16 %v995, %v994
        %v1014 = vpack.c.b16 %v997, %v996
        %v1015 = vpack.c.b16 %v999, %v998
        %v1016 = vpack.c.b16 %v1001, %v1000
        %v1017 = vpack.c.b16 %v1003, %v1002
        %v1018 = vpack.c.b16 %v1005, %v1004
        %v1019 = vpack.c.b16 %v1007, %v1006
        %v1020 = vpack.c.b16 %v1009, %v1008
        %v1021 = vpack.c.b16 %v1011, %v1010
        %v1048 = vunpack.c.l.b16 %v956
        %v1049 = vunpack.c.l.b16 %v957
        %v1050 = vunpack.c.l.b16 %v958
        %v1051 = vunpack.c.l.b16 %v959
        %v1052 = vunpack.c.l.b16 %v960
        %v1053 = vunpack.c.l.b16 %v961
        %v1054 = vunpack.c.l.b16 %v962
        %v1055 = vunpack.c.l.b16 %v963
        %v1056 = vunpack.c.l.b16 %v964
        %v1057 = vunpack.c.l.b16 %v965
        %v1058 = vunpack.c.l.b16 %v966
        %v1059 = vunpack.c.l.b16 %v967
        %v1060 = vunpack.c.l.b16 %v968
        %v1061 = vunpack.c.l.b16 %v969
        %v1062 = vunpack.c.l.b16 %v970
        %v1063 = vunpack.c.l.b16 %v971
        %v1064 = vpack.c.b16 %v1049, %v1048
        %v1065 = vpack.c.b16 %v1051, %v1050
        %v1066 = vpack.c.b16 %v1053, %v1052
        %v1067 = vpack.c.b16 %v1055, %v1054
        %v1068 = vpack.c.b16 %v1057, %v1056
        %v1069 = vpack.c.b16 %v1059, %v1058
        %v1070 = vpack.c.b16 %v1061, %v1060
        %v1071 = vpack.c.b16 %v1063, %v1062
        %1080 = vmatprep.subr.bf16.mxu0 0
        %1081 = vmatpush1.bf16.msra.mxu0 %v1064
        %1082 = vmatprep.subr.bf16.mxu0 0
        %1083 = vmatpush1.bf16.msra.mxu0 %v1065
        %1084 = vmatprep.subr.bf16.mxu0 0
        %1085 = vmatpush1.bf16.msra.mxu0 %v1066
        %1086 = vmatprep.subr.bf16.mxu0 0
        %1087 = vmatpush1.bf16.msra.mxu0 %v1067
        %1088 = vmatprep.subr.bf16.mxu0 0
        %1089 = vmatpush1.bf16.msra.mxu0 %v1068
        %1090 = vmatprep.subr.bf16.mxu0 0
        %1091 = vmatpush1.bf16.msra.mxu0 %v1069
        %1092 = vmatprep.subr.bf16.mxu0 0
        %1093 = vmatpush1.bf16.msra.mxu0 %v1070
        %1094 = vmatprep.subr.bf16.mxu0 0
        %1095 = vmatpush1.bf16.msra.mxu0 %v1071
        %1096 = vmatprep.subr.bf16.mxu0 0
        %1097 = vmatpush1.bf16.msra.mxu0 0
        %1098 = vmatprep.subr.bf16.mxu0 0
        %1099 = vmatpush1.bf16.msra.mxu0 0
        %1100 = vmatprep.subr.bf16.mxu0 0
        %1101 = vmatpush1.bf16.msra.mxu0 0
        %1102 = vmatprep.subr.bf16.mxu0 0
        %1103 = vmatpush1.bf16.msra.mxu0 0
        %1104 = vmatprep.subr.bf16.mxu0 0
        %1105 = vmatpush1.bf16.msra.mxu0 0
        %1106 = vmatprep.subr.bf16.mxu0 0
        %1107 = vmatpush1.bf16.msra.mxu0 0
        %1108 = vmatprep.subr.bf16.mxu0 0
        %1109 = vmatpush1.bf16.msra.mxu0 0
        %1110 = vmatprep.subr.bf16.mxu0 0
        %1111 = vmatpush1.bf16.msra.mxu0 0
        %1112 = vmatprep.mubr.bf16.mxu0 0
        %1113 = vmatmul.mubr.bf16.gmra.mrb[0].mxu0 %v1012
        %v1114 = vpop.f32.mrb[0].mxu0
        %v1115 = vadd.f32 0.0, %v1114
        %v1116 = vpop.f32.mrb[0].mxu0
        %v1117 = vpop.f32.mrb[0].mxu0
        %v1118 = vadd.f32 0.0, %v1117
        %v1119 = vpop.f32.mrb[0].mxu0
        %1120 = vmatprep.mubr.bf16.mxu0 0
        %1121 = vmatmul.mubr.bf16.gmra.mrb[0].mxu0 %v1013
        %v1122 = vpop.f32.mrb[0].mxu0
        %v1123 = vadd.f32 0.0, %v1122
        %v1124 = vpop.f32.mrb[0].mxu0
        %v1125 = vpop.f32.mrb[0].mxu0
        %v1126 = vadd.f32 0.0, %v1125
        %v1127 = vpop.f32.mrb[0].mxu0
        %1128 = vmatprep.mubr.bf16.mxu0 0
        %1129 = vmatmul.mubr.bf16.gmra.mrb[0].mxu0 %v1014
        %v1130 = vpop.f32.mrb[0].mxu0
        %v1131 = vadd.f32 0.0, %v1130
        %v1132 = vpop.f32.mrb[0].mxu0
        %v1133 = vpop.f32.mrb[0].mxu0
        %v1134 = vadd.f32 0.0, %v1133
        %v1135 = vpop.f32.mrb[0].mxu0
        %1136 = vmatprep.mubr.bf16.mxu0 0
        %1137 = vmatmul.mubr.bf16.gmra.mrb[0].mxu0 %v1015
        %v1138 = vpop.f32.mrb[0].mxu0
        %v1139 = vadd.f32 0.0, %v1138
        %v1140 = vpop.f32.mrb[0].mxu0
        %v1141 = vpop.f32.mrb[0].mxu0
        %v1142 = vadd.f32 0.0, %v1141
        %v1143 = vpop.f32.mrb[0].mxu0
        %1144 = vmatprep.mubr.bf16.mxu0 0
        %1145 = vmatmul.mubr.bf16.gmra.mrb[0].mxu0 %v1016
        %v1146 = vpop.f32.mrb[0].mxu0
        %v1147 = vadd.f32 0.0, %v1146
        %v1148 = vpop.f32.mrb[0].mxu0
        %v1149 = vpop.f32.mrb[0].mxu0
        %v1150 = vadd.f32 0.0, %v1149
        %v1151 = vpop.f32.mrb[0].mxu0
        %1152 = vmatprep.mubr.bf16.mxu0 0
        %1153 = vmatmul.mubr.bf16.gmra.mrb[0].mxu0 %v1017
        %v1154 = vpop.f32.mrb[0].mxu0
        %v1155 = vadd.f32 0.0, %v1154
        %v1156 = vpop.f32.mrb[0].mxu0
        %v1157 = vpop.f32.mrb[0].mxu0
        %v1158 = vadd.f32 0.0, %v1157
        %v1159 = vpop.f32.mrb[0].mxu0
        %1160 = vmatprep.mubr.bf16.mxu0 0
        %1161 = vmatmul.mubr.bf16.gmra.mrb[0].mxu0 %v1018
        %v1162 = vpop.f32.mrb[0].mxu0
        %v1163 = vadd.f32 0.0, %v1162
        %v1164 = vpop.f32.mrb[0].mxu0
        %v1165 = vpop.f32.mrb[0].mxu0
        %v1166 = vadd.f32 0.0, %v1165
        %v1167 = vpop.f32.mrb[0].mxu0
        %1168 = vmatprep.mubr.bf16.mxu0 0
        %1169 = vmatmul.mubr.bf16.gmra.mrb[0].mxu0 %v1019
        %v1170 = vpop.f32.mrb[0].mxu0
        %v1171 = vadd.f32 0.0, %v1170
        %v1172 = vpop.f32.mrb[0].mxu0
        %v1173 = vpop.f32.mrb[0].mxu0
        %v1174 = vadd.f32 0.0, %v1173
        %v1175 = vpop.f32.mrb[0].mxu0
        %1176 = vmatprep.mubr.bf16.mxu0 0
        %1177 = vmatmul.mubr.bf16.gmra.mrb[0].mxu0 %v1020
        %v1178 = vpop.f32.mrb[0].mxu0
        %v1179 = vadd.f32 0.0, %v1178
        %v1180 = vpop.f32.mrb[0].mxu0
        %v1181 = vpop.f32.mrb[0].mxu0
        %v1182 = vadd.f32 0.0, %v1181
        %v1183 = vpop.f32.mrb[0].mxu0
        %1184 = vmatprep.mubr.bf16.mxu0 0
        %1185 = vmatmul.mubr.bf16.gmra.mrb[0].mxu0 %v1021
        %v1186 = vpop.f32.mrb[0].mxu0
        %v1187 = vadd.f32 0.0, %v1186
        %v1188 = vpop.f32.mrb[0].mxu0
        %v1189 = vpop.f32.mrb[0].mxu0
        %v1190 = vadd.f32 0.0, %v1189
        %v1191 = vpop.f32.mrb[0].mxu0
        %1192 = vdwg.mxu0
        %v1193 = vadd.f32 %v934, %v1115
        %v1194 = vadd.f32 %v934, %v1118
        %v1195 = vadd.f32 %v934, %v1123
        %v1196 = vadd.f32 %v934, %v1126
        %v1197 = vadd.f32 %v934, %v1131
        %v1198 = vadd.f32 %v934, %v1134
        %v1199 = vadd.f32 %v934, %v1139
        %v1200 = vadd.f32 %v934, %v1142
        %v1201 = vadd.f32 %v934, %v1147
        %v1202 = vadd.f32 %v934, %v1150
        %v1203 = vadd.f32 %v934, %v1155
        %v1204 = vadd.f32 %v934, %v1158
        %v1205 = vadd.f32 %v934, %v1163
        %v1206 = vadd.f32 %v934, %v1166
        %v1207 = vadd.f32 %v934, %v1171
        %v1208 = vadd.f32 %v934, %v1174
        %v1209 = vadd.f32 %v934, %v1179
        %v1210 = vadd.f32 %v934, %v1182
        %v1211 = vadd.f32 %v934, %v1187
        %v1212 = vadd.f32 %v934, %v1190
        %v1213 = vld [vmem:[#allocation2] sm:$0xf]
        %v1214 = vld [vmem:[#allocation2 + $0x4] sm:$0xf]
        %v1215 = vld [vmem:[#allocation2 + $0x8] sm:$0x1]
        %v1216 = vld [vmem:[#allocation2 + $0xc] sm:$0xf]
        %v1217 = vld [vmem:[#allocation2 + $0x10] sm:$0xf]
        %v1218 = vld [vmem:[#allocation2 + $0x14] sm:$0x1]
        %v1219 = vld [vmem:[#allocation2 + $0x18] sm:$0xf]
        %v1220 = vld [vmem:[#allocation2 + $0x1c] sm:$0xf]
        %v1221 = vld [vmem:[#allocation2 + $0x20] sm:$0x1]
        %v1222 = vld [vmem:[#allocation2 + $0x24] sm:$0xf]
        %v1223 = vld [vmem:[#allocation2 + $0x28] sm:$0xf]
        %v1224 = vld [vmem:[#allocation2 + $0x2c] sm:$0x1]
        %v1225 = vld [vmem:[#allocation2 + $0x30] sm:$0xf]
        %v1226 = vld [vmem:[#allocation2 + $0x34] sm:$0xf]
        %v1227 = vld [vmem:[#allocation2 + $0x38] sm:$0x1]
        %v1228 = vld [vmem:[#allocation2 + $0x3c] sm:$0xf]
        %v1229 = vld [vmem:[#allocation2 + $0x40] sm:$0xf]
        %v1230 = vld [vmem:[#allocation2 + $0x44] sm:$0x1]
        %v1231 = vld [vmem:[#allocation2 + $0x48] sm:$0xf]
        %v1232 = vld [vmem:[#allocation2 + $0x4c] sm:$0xf]
        %v1233 = vld [vmem:[#allocation2 + $0x50] sm:$0x1]
        %v1234 = vld [vmem:[#allocation2 + $0x54] sm:$0xf]
        %v1235 = vld [vmem:[#allocation2 + $0x58] sm:$0xf]
        %v1236 = vld [vmem:[#allocation2 + $0x5c] sm:$0x1]
        %v1237 = vld [vmem:[#allocation2 + $0x60] sm:$0xf]
        %v1238 = vld [vmem:[#allocation2 + $0x64] sm:$0xf]
        %v1239 = vld [vmem:[#allocation2 + $0x68] sm:$0x1]
        %v1240 = vld [vmem:[#allocation2 + $0x6c] sm:$0xf]
        %v1241 = vld [vmem:[#allocation2 + $0x70] sm:$0xf]
        %v1242 = vld [vmem:[#allocation2 + $0x74] sm:$0x1]
        %vm1243 = vsmask.f32 3328
        %vm1244 = vsmask.f32 7440
        %vm1245 = vmor %vm1243, %vm1244
        %v1247 = vshrl.u32 %v1213, 16
        %v1249 = vrot.slane %v1247, 4
        %v1250 = vshll.u32 %v1213, 16
        %v1252 = vrot.slane %v1250, 5
        %v1253 = vor.u32 %v1249, %v1252
        %v1254 = vrot.slane %v1253, 4
        %v1256 = vshll.u32 %v1214, 16
        %v1258 = vrot.slane %v1256, 5
        %v1259 = vsel %vm1245, %v1254, %v1258
        %v1260 = vshrl.u32 %v1214, 16
        %v1262 = vrot.slane %v1260, 4
        %v1263 = vor.u32 %v1262, %v1258
        %v1264 = vrot.slane %v1263, 4
        %v1266 = vshll.u32 %v1215, 16
        %v1268 = vrot.slane %v1266, 5
        %v1269 = vsel %vm1245, %v1264, %v1268
        %v1271 = vshrl.u32 %v1216, 16
        %v1273 = vrot.slane %v1271, 4
        %v1274 = vshll.u32 %v1216, 16
        %v1276 = vrot.slane %v1274, 5
        %v1277 = vor.u32 %v1273, %v1276
        %v1278 = vrot.slane %v1277, 4
        %v1280 = vshll.u32 %v1217, 16
        %v1282 = vrot.slane %v1280, 5
        %v1283 = vsel %vm1245, %v1278, %v1282
        %v1284 = vshrl.u32 %v1217, 16
        %v1286 = vrot.slane %v1284, 4
        %v1287 = vor.u32 %v1286, %v1282
        %v1288 = vrot.slane %v1287, 4
        %v1290 = vshll.u32 %v1218, 16
        %v1292 = vrot.slane %v1290, 5
        %v1293 = vsel %vm1245, %v1288, %v1292
        %v1295 = vshrl.u32 %v1219, 16
        %v1297 = vrot.slane %v1295, 4
        %v1298 = vshll.u32 %v1219, 16
        %v1300 = vrot.slane %v1298, 5
        %v1301 = vor.u32 %v1297, %v1300
        %v1302 = vrot.slane %v1301, 4
        %v1304 = vshll.u32 %v1220, 16
        %v1306 = vrot.slane %v1304, 5
        %v1307 = vsel %vm1245, %v1302, %v1306
        %v1308 = vshrl.u32 %v1220, 16
        %v1310 = vrot.slane %v1308, 4
        %v1311 = vor.u32 %v1310, %v1306
        %v1312 = vrot.slane %v1311, 4
        %v1314 = vshll.u32 %v1221, 16
        %v1316 = vrot.slane %v1314, 5
        %v1317 = vsel %vm1245, %v1312, %v1316
        %v1319 = vshrl.u32 %v1222, 16
        %v1321 = vrot.slane %v1319, 4
        %v1322 = vshll.u32 %v1222, 16
        %v1324 = vrot.slane %v1322, 5
        %v1325 = vor.u32 %v1321, %v1324
        %v1326 = vrot.slane %v1325, 4
        %v1328 = vshll.u32 %v1223, 16
        %v1330 = vrot.slane %v1328, 5
        %v1331 = vsel %vm1245, %v1326, %v1330
        %v1332 = vshrl.u32 %v1223, 16
        %v1334 = vrot.slane %v1332, 4
        %v1335 = vor.u32 %v1334, %v1330
        %v1336 = vrot.slane %v1335, 4
        %v1338 = vshll.u32 %v1224, 16
        %v1340 = vrot.slane %v1338, 5
        %v1341 = vsel %vm1245, %v1336, %v1340
        %v1343 = vshrl.u32 %v1225, 16
        %v1345 = vrot.slane %v1343, 4
        %v1346 = vshll.u32 %v1225, 16
        %v1348 = vrot.slane %v1346, 5
        %v1349 = vor.u32 %v1345, %v1348
        %v1350 = vrot.slane %v1349, 4
        %v1352 = vshll.u32 %v1226, 16
        %v1354 = vrot.slane %v1352, 5
        %v1355 = vsel %vm1245, %v1350, %v1354
        %v1356 = vshrl.u32 %v1226, 16
        %v1358 = vrot.slane %v1356, 4
        %v1359 = vor.u32 %v1358, %v1354
        %v1360 = vrot.slane %v1359, 4
        %v1362 = vshll.u32 %v1227, 16
        %v1364 = vrot.slane %v1362, 5
        %v1365 = vsel %vm1245, %v1360, %v1364
        %v1367 = vshrl.u32 %v1228, 16
        %v1369 = vrot.slane %v1367, 4
        %v1370 = vshll.u32 %v1228, 16
        %v1372 = vrot.slane %v1370, 5
        %v1373 = vor.u32 %v1369, %v1372
        %v1374 = vrot.slane %v1373, 4
        %v1376 = vshll.u32 %v1229, 16
        %v1378 = vrot.slane %v1376, 5
        %v1379 = vsel %vm1245, %v1374, %v1378
        %v1380 = vshrl.u32 %v1229, 16
        %v1382 = vrot.slane %v1380, 4
        %v1383 = vor.u32 %v1382, %v1378
        %v1384 = vrot.slane %v1383, 4
        %v1386 = vshll.u32 %v1230, 16
        %v1388 = vrot.slane %v1386, 5
        %v1389 = vsel %vm1245, %v1384, %v1388
        %v1391 = vshrl.u32 %v1231, 16
        %v1393 = vrot.slane %v1391, 4
        %v1394 = vshll.u32 %v1231, 16
        %v1396 = vrot.slane %v1394, 5
        %v1397 = vor.u32 %v1393, %v1396
        %v1398 = vrot.slane %v1397, 4
        %v1400 = vshll.u32 %v1232, 16
        %v1402 = vrot.slane %v1400, 5
        %v1403 = vsel %vm1245, %v1398, %v1402
        %v1404 = vshrl.u32 %v1232, 16
        %v1406 = vrot.slane %v1404, 4
        %v1407 = vor.u32 %v1406, %v1402
        %v1408 = vrot.slane %v1407, 4
        %v1410 = vshll.u32 %v1233, 16
        %v1412 = vrot.slane %v1410, 5
        %v1413 = vsel %vm1245, %v1408, %v1412
        %v1415 = vshrl.u32 %v1234, 16
        %v1417 = vrot.slane %v1415, 4
        %v1418 = vshll.u32 %v1234, 16
        %v1420 = vrot.slane %v1418, 5
        %v1421 = vor.u32 %v1417, %v1420
        %v1422 = vrot.slane %v1421, 4
        %v1424 = vshll.u32 %v1235, 16
        %v1426 = vrot.slane %v1424, 5
        %v1427 = vsel %vm1245, %v1422, %v1426
        %v1428 = vshrl.u32 %v1235, 16
        %v1430 = vrot.slane %v1428, 4
        %v1431 = vor.u32 %v1430, %v1426
        %v1432 = vrot.slane %v1431, 4
        %v1434 = vshll.u32 %v1236, 16
        %v1436 = vrot.slane %v1434, 5
        %v1437 = vsel %vm1245, %v1432, %v1436
        %v1439 = vshrl.u32 %v1237, 16
        %v1441 = vrot.slane %v1439, 4
        %v1442 = vshll.u32 %v1237, 16
        %v1444 = vrot.slane %v1442, 5
        %v1445 = vor.u32 %v1441, %v1444
        %v1446 = vrot.slane %v1445, 4
        %v1448 = vshll.u32 %v1238, 16
        %v1450 = vrot.slane %v1448, 5
        %v1451 = vsel %vm1245, %v1446, %v1450
        %v1452 = vshrl.u32 %v1238, 16
        %v1454 = vrot.slane %v1452, 4
        %v1455 = vor.u32 %v1454, %v1450
        %v1456 = vrot.slane %v1455, 4
        %v1458 = vshll.u32 %v1239, 16
        %v1460 = vrot.slane %v1458, 5
        %v1461 = vsel %vm1245, %v1456, %v1460
        %v1463 = vshrl.u32 %v1240, 16
        %v1465 = vrot.slane %v1463, 4
        %v1466 = vshll.u32 %v1240, 16
        %v1468 = vrot.slane %v1466, 5
        %v1469 = vor.u32 %v1465, %v1468
        %v1470 = vrot.slane %v1469, 4
        %v1472 = vshll.u32 %v1241, 16
        %v1474 = vrot.slane %v1472, 5
        %v1475 = vsel %vm1245, %v1470, %v1474
        %v1476 = vshrl.u32 %v1241, 16
        %v1478 = vrot.slane %v1476, 4
        %v1479 = vor.u32 %v1478, %v1474
        %v1480 = vrot.slane %v1479, 4
        %v1482 = vshll.u32 %v1242, 16
        %v1484 = vrot.slane %v1482, 5
        %v1485 = vsel %vm1245, %v1480, %v1484
        %s1486 = scalar_lea.vmem [#allocation10], 64
        %v1487 = vld [vmem:[%s1486] sm:$0xf]
        %v1488 = vld [vmem:[%s1486 + $0x4] sm:$0xf]
        %v1489 = vld [vmem:[%s1486 + $0x8] sm:$0xf]
        %v1490 = vld [vmem:[%s1486 + $0xc] sm:$0xf]
        %v1491 = vld [vmem:[%s1486 + $0x10] sm:$0xf]
        %v1492 = vld [vmem:[%s1486 + $0x14] sm:$0xf]
        %v1493 = vld [vmem:[%s1486 + $0x18] sm:$0xf]
        %v1494 = vld [vmem:[%s1486 + $0x1c] sm:$0xf]
        %v1495 = vld [vmem:[%s1486 + $0x20] sm:$0xf]
        %v1496 = vld [vmem:[%s1486 + $0x24] sm:$0xf]
        %v1497 = vld [vmem:[%s1486 + $0x28] sm:$0xf]
        %v1498 = vld [vmem:[%s1486 + $0x2c] sm:$0xf]
        %v1499 = vld [vmem:[%s1486 + $0x30] sm:$0xf]
        %v1500 = vld [vmem:[%s1486 + $0x34] sm:$0xf]
        %v1501 = vld [vmem:[%s1486 + $0x38] sm:$0xf]
        %v1502 = vld [vmem:[%s1486 + $0x3c] sm:$0xf]
        %v1503 = vunpack.c.l.b16 %v1259
        %v1504 = vunpack.c.l.b16 %v1269
        %v1505 = vunpack.c.l.b16 %v1283
        %v1506 = vunpack.c.l.b16 %v1293
        %v1507 = vunpack.c.l.b16 %v1307
        %v1508 = vunpack.c.l.b16 %v1317
        %v1509 = vunpack.c.l.b16 %v1331
        %v1510 = vunpack.c.l.b16 %v1341
        %v1511 = vunpack.c.l.b16 %v1355
        %v1512 = vunpack.c.l.b16 %v1365
        %v1513 = vunpack.c.l.b16 %v1379
        %v1514 = vunpack.c.l.b16 %v1389
        %v1515 = vunpack.c.l.b16 %v1403
        %v1516 = vunpack.c.l.b16 %v1413
        %v1517 = vunpack.c.l.b16 %v1427
        %v1518 = vunpack.c.l.b16 %v1437
        %v1519 = vunpack.c.l.b16 %v1451
        %v1520 = vunpack.c.l.b16 %v1461
        %v1521 = vunpack.c.l.b16 %v1475
        %v1522 = vunpack.c.l.b16 %v1485
        %v1523 = vpack.c.b16 %v1504, %v1503
        %v1524 = vpack.c.b16 %v1506, %v1505
        %v1525 = vpack.c.b16 %v1508, %v1507
        %v1526 = vpack.c.b16 %v1510, %v1509
        %v1527 = vpack.c.b16 %v1512, %v1511
        %v1528 = vpack.c.b16 %v1514, %v1513
        %v1529 = vpack.c.b16 %v1516, %v1515
        %v1530 = vpack.c.b16 %v1518, %v1517
        %v1531 = vpack.c.b16 %v1520, %v1519
        %v1532 = vpack.c.b16 %v1522, %v1521
        %v1559 = vunpack.c.l.b16 %v1487
        %v1560 = vunpack.c.l.b16 %v1488
        %v1561 = vunpack.c.l.b16 %v1489
        %v1562 = vunpack.c.l.b16 %v1490
        %v1563 = vunpack.c.l.b16 %v1491
        %v1564 = vunpack.c.l.b16 %v1492
        %v1565 = vunpack.c.l.b16 %v1493
        %v1566 = vunpack.c.l.b16 %v1494
        %v1567 = vunpack.c.l.b16 %v1495
        %v1568 = vunpack.c.l.b16 %v1496
        %v1569 = vunpack.c.l.b16 %v1497
        %v1570 = vunpack.c.l.b16 %v1498
        %v1571 = vunpack.c.l.b16 %v1499
        %v1572 = vunpack.c.l.b16 %v1500
        %v1573 = vunpack.c.l.b16 %v1501
        %v1574 = vunpack.c.l.b16 %v1502
        %v1575 = vpack.c.b16 %v1560, %v1559
        %v1576 = vpack.c.b16 %v1562, %v1561
        %v1577 = vpack.c.b16 %v1564, %v1563
        %v1578 = vpack.c.b16 %v1566, %v1565
        %v1579 = vpack.c.b16 %v1568, %v1567
        %v1580 = vpack.c.b16 %v1570, %v1569
        %v1581 = vpack.c.b16 %v1572, %v1571
        %v1582 = vpack.c.b16 %v1574, %v1573
        %1591 = vmatprep.subr.bf16.mxu0 0
        %1592 = vmatpush1.bf16.msra.mxu0 %v1575
        %1593 = vmatprep.subr.bf16.mxu0 0
        %1594 = vmatpush1.bf16.msra.mxu0 %v1576
        %1595 = vmatprep.subr.bf16.mxu0 0
        %1596 = vmatpush1.bf16.msra.mxu0 %v1577
        %1597 = vmatprep.subr.bf16.mxu0 0
        %1598 = vmatpush1.bf16.msra.mxu0 %v1578
        %1599 = vmatprep.subr.bf16.mxu0 0
        %1600 = vmatpush1.bf16.msra.mxu0 %v1579
        %1601 = vmatprep.subr.bf16.mxu0 0
        %1602 = vmatpush1.bf16.msra.mxu0 %v1580
        %1603 = vmatprep.subr.bf16.mxu0 0
        %1604 = vmatpush1.bf16.msra.mxu0 %v1581
        %1605 = vmatprep.subr.bf16.mxu0 0
        %1606 = vmatpush1.bf16.msra.mxu0 %v1582
        %1607 = vmatprep.subr.bf16.mxu0 0
        %1608 = vmatpush1.bf16.msra.mxu0 0
        %1609 = vmatprep.subr.bf16.mxu0 0
        %1610 = vmatpush1.bf16.msra.mxu0 0
        %1611 = vmatprep.subr.bf16.mxu0 0
        %1612 = vmatpush1.bf16.msra.mxu0 0
        %1613 = vmatprep.subr.bf16.mxu0 0
        %1614 = vmatpush1.bf16.msra.mxu0 0
        %1615 = vmatprep.subr.bf16.mxu0 0
        %1616 = vmatpush1.bf16.msra.mxu0 0
        %1617 = vmatprep.subr.bf16.mxu0 0
        %1618 = vmatpush1.bf16.msra.mxu0 0
        %1619 = vmatprep.subr.bf16.mxu0 0
        %1620 = vmatpush1.bf16.msra.mxu0 0
        %1621 = vmatprep.subr.bf16.mxu0 0
        %1622 = vmatpush1.bf16.msra.mxu0 0
        %1623 = vmatprep.mubr.bf16.mxu0 0
        %1624 = vmatmul.mubr.bf16.gmra.mrb[0].mxu0 %v1523
        %v1625 = vpop.f32.mrb[0].mxu0
        %v1626 = vadd.f32 0.0, %v1625
        %v1627 = vpop.f32.mrb[0].mxu0
        %v1628 = vpop.f32.mrb[0].mxu0
        %v1629 = vadd.f32 0.0, %v1628
        %v1630 = vpop.f32.mrb[0].mxu0
        %1631 = vmatprep.mubr.bf16.mxu0 0
        %1632 = vmatmul.mubr.bf16.gmra.mrb[0].mxu0 %v1524
        %v1633 = vpop.f32.mrb[0].mxu0
        %v1634 = vadd.f32 0.0, %v1633
        %v1635 = vpop.f32.mrb[0].mxu0
        %v1636 = vpop.f32.mrb[0].mxu0
        %v1637 = vadd.f32 0.0, %v1636
        %v1638 = vpop.f32.mrb[0].mxu0
        %1639 = vmatprep.mubr.bf16.mxu0 0
        %1640 = vmatmul.mubr.bf16.gmra.mrb[0].mxu0 %v1525
        %v1641 = vpop.f32.mrb[0].mxu0
        %v1642 = vadd.f32 0.0, %v1641
        %v1643 = vpop.f32.mrb[0].mxu0
        %v1644 = vpop.f32.mrb[0].mxu0
        %v1645 = vadd.f32 0.0, %v1644
        %v1646 = vpop.f32.mrb[0].mxu0
        %1647 = vmatprep.mubr.bf16.mxu0 0
        %1648 = vmatmul.mubr.bf16.gmra.mrb[0].mxu0 %v1526
        %v1649 = vpop.f32.mrb[0].mxu0
        %v1650 = vadd.f32 0.0, %v1649
        %v1651 = vpop.f32.mrb[0].mxu0
        %v1652 = vpop.f32.mrb[0].mxu0
        %v1653 = vadd.f32 0.0, %v1652
        %v1654 = vpop.f32.mrb[0].mxu0
        %1655 = vmatprep.mubr.bf16.mxu0 0
        %1656 = vmatmul.mubr.bf16.gmra.mrb[0].mxu0 %v1527
        %v1657 = vpop.f32.mrb[0].mxu0
        %v1658 = vadd.f32 0.0, %v1657
        %v1659 = vpop.f32.mrb[0].mxu0
        %v1660 = vpop.f32.mrb[0].mxu0
        %v1661 = vadd.f32 0.0, %v1660
        %v1662 = vpop.f32.mrb[0].mxu0
        %1663 = vmatprep.mubr.bf16.mxu0 0
        %1664 = vmatmul.mubr.bf16.gmra.mrb[0].mxu0 %v1528
        %v1665 = vpop.f32.mrb[0].mxu0
        %v1666 = vadd.f32 0.0, %v1665
        %v1667 = vpop.f32.mrb[0].mxu0
        %v1668 = vpop.f32.mrb[0].mxu0
        %v1669 = vadd.f32 0.0, %v1668
        %v1670 = vpop.f32.mrb[0].mxu0
        %1671 = vmatprep.mubr.bf16.mxu0 0
        %1672 = vmatmul.mubr.bf16.gmra.mrb[0].mxu0 %v1529
        %v1673 = vpop.f32.mrb[0].mxu0
        %v1674 = vadd.f32 0.0, %v1673
        %v1675 = vpop.f32.mrb[0].mxu0
        %v1676 = vpop.f32.mrb[0].mxu0
        %v1677 = vadd.f32 0.0, %v1676
        %v1678 = vpop.f32.mrb[0].mxu0
        %1679 = vmatprep.mubr.bf16.mxu0 0
        %1680 = vmatmul.mubr.bf16.gmra.mrb[0].mxu0 %v1530
        %v1681 = vpop.f32.mrb[0].mxu0
        %v1682 = vadd.f32 0.0, %v1681
        %v1683 = vpop.f32.mrb[0].mxu0
        %v1684 = vpop.f32.mrb[0].mxu0
        %v1685 = vadd.f32 0.0, %v1684
        %v1686 = vpop.f32.mrb[0].mxu0
        %1687 = vmatprep.mubr.bf16.mxu0 0
        %1688 = vmatmul.mubr.bf16.gmra.mrb[0].mxu0 %v1531
        %v1689 = vpop.f32.mrb[0].mxu0
        %v1690 = vadd.f32 0.0, %v1689
        %v1691 = vpop.f32.mrb[0].mxu0
        %v1692 = vpop.f32.mrb[0].mxu0
        %v1693 = vadd.f32 0.0, %v1692
        %v1694 = vpop.f32.mrb[0].mxu0
        %1695 = vmatprep.mubr.bf16.mxu0 0
        %1696 = vmatmul.mubr.bf16.gmra.mrb[0].mxu0 %v1532
        %v1697 = vpop.f32.mrb[0].mxu0
        %v1698 = vadd.f32 0.0, %v1697
        %v1699 = vpop.f32.mrb[0].mxu0
        %v1700 = vpop.f32.mrb[0].mxu0
        %v1701 = vadd.f32 0.0, %v1700
        %v1702 = vpop.f32.mrb[0].mxu0
        %1703 = vdwg.mxu0
        %v1704 = vadd.f32 %v1193, %v1626
        %v1705 = vadd.f32 %v1194, %v1629
        %v1706 = vadd.f32 %v1195, %v1634
        %v1707 = vadd.f32 %v1196, %v1637
        %v1708 = vadd.f32 %v1197, %v1642
        %v1709 = vadd.f32 %v1198, %v1645
        %v1710 = vadd.f32 %v1199, %v1650
        %v1711 = vadd.f32 %v1200, %v1653
        %v1712 = vadd.f32 %v1201, %v1658
        %v1713 = vadd.f32 %v1202, %v1661
        %v1714 = vadd.f32 %v1203, %v1666
        %v1715 = vadd.f32 %v1204, %v1669
        %v1716 = vadd.f32 %v1205, %v1674
        %v1717 = vadd.f32 %v1206, %v1677
        %v1718 = vadd.f32 %v1207, %v1682
        %v1719 = vadd.f32 %v1208, %v1685
        %v1720 = vadd.f32 %v1209, %v1690
        %v1721 = vadd.f32 %v1210, %v1693
        %v1722 = vadd.f32 %v1211, %v1698
        %v1723 = vadd.f32 %v1212, %v1701
        %v1724 = vld [vmem:[#allocation2] sm:$0xe]
        %v1725 = vld [vmem:[#allocation2 + $0xc] sm:$0xe]
        %v1726 = vld [vmem:[#allocation2 + $0x18] sm:$0xe]
        %v1727 = vld [vmem:[#allocation2 + $0x24] sm:$0xe]
        %v1728 = vld [vmem:[#allocation2 + $0x30] sm:$0xe]
        %v1729 = vld [vmem:[#allocation2 + $0x3c] sm:$0xe]
        %v1730 = vld [vmem:[#allocation2 + $0x48] sm:$0xe]
        %v1731 = vld [vmem:[#allocation2 + $0x54] sm:$0xe]
        %v1732 = vld [vmem:[#allocation2 + $0x60] sm:$0xe]
        %v1733 = vld [vmem:[#allocation2 + $0x6c] sm:$0xe]
        %vm1764 = vcmask 1042432
        %vm1765 = vcmask 1046532
        %vm1766 = vmor %vm1764, %vm1765
        %v1767 = vrot.slane %v1724, 5
        %v1768 = vrot.slane %v1767, 4
        %v1769 = vrot.slane %v1214, 5
        %v1770 = vsel %vm1766, %v1768, %v1769
        %v1771 = vrot.slane %v1769, 4
        %v1772 = vrot.slane %v1215, 5
        %v1773 = vsel %vm1766, %v1771, %v1772
        %v1774 = vrot.slane %v1725, 5
        %v1775 = vrot.slane %v1774, 4
        %v1776 = vrot.slane %v1217, 5
        %v1777 = vsel %vm1766, %v1775, %v1776
        %v1778 = vrot.slane %v1776, 4
        %v1779 = vrot.slane %v1218, 5
        %v1780 = vsel %vm1766, %v1778, %v1779
        %v1781 = vrot.slane %v1726, 5
        %v1782 = vrot.slane %v1781, 4
        %v1783 = vrot.slane %v1220, 5
        %v1784 = vsel %vm1766, %v1782, %v1783
        %v1785 = vrot.slane %v1783, 4
        %v1786 = vrot.slane %v1221, 5
        %v1787 = vsel %vm1766, %v1785, %v1786
        %v1788 = vrot.slane %v1727, 5
        %v1789 = vrot.slane %v1788, 4
        %v1790 = vrot.slane %v1223, 5
        %v1791 = vsel %vm1766, %v1789, %v1790
        %v1792 = vrot.slane %v1790, 4
        %v1793 = vrot.slane %v1224, 5
        %v1794 = vsel %vm1766, %v1792, %v1793
        %v1795 = vrot.slane %v1728, 5
        %v1796 = vrot.slane %v1795, 4
        %v1797 = vrot.slane %v1226, 5
        %v1798 = vsel %vm1766, %v1796, %v1797
        %v1799 = vrot.slane %v1797, 4
        %v1800 = vrot.slane %v1227, 5
        %v1801 = vsel %vm1766, %v1799, %v1800
        %v1802 = vrot.slane %v1729, 5
        %v1803 = vrot.slane %v1802, 4
        %v1804 = vrot.slane %v1229, 5
        %v1805 = vsel %vm1766, %v1803, %v1804
        %v1806 = vrot.slane %v1804, 4
        %v1807 = vrot.slane %v1230, 5
        %v1808 = vsel %vm1766, %v1806, %v1807
        %v1809 = vrot.slane %v1730, 5
        %v1810 = vrot.slane %v1809, 4
        %v1811 = vrot.slane %v1232, 5
        %v1812 = vsel %vm1766, %v1810, %v1811
        %v1813 = vrot.slane %v1811, 4
        %v1814 = vrot.slane %v1233, 5
        %v1815 = vsel %vm1766, %v1813, %v1814
        %v1816 = vrot.slane %v1731, 5
        %v1817 = vrot.slane %v1816, 4
        %v1818 = vrot.slane %v1235, 5
        %v1819 = vsel %vm1766, %v1817, %v1818
        %v1820 = vrot.slane %v1818, 4
        %v1821 = vrot.slane %v1236, 5
        %v1822 = vsel %vm1766, %v1820, %v1821
        %v1823 = vrot.slane %v1732, 5
        %v1824 = vrot.slane %v1823, 4
        %v1825 = vrot.slane %v1238, 5
        %v1826 = vsel %vm1766, %v1824, %v1825
        %v1827 = vrot.slane %v1825, 4
        %v1828 = vrot.slane %v1239, 5
        %v1829 = vsel %vm1766, %v1827, %v1828
        %v1830 = vrot.slane %v1733, 5
        %v1831 = vrot.slane %v1830, 4
        %v1832 = vrot.slane %v1241, 5
        %v1833 = vsel %vm1766, %v1831, %v1832
        %v1834 = vrot.slane %v1832, 4
        %v1835 = vrot.slane %v1242, 5
        %v1836 = vsel %vm1766, %v1834, %v1835
        %s1837 = scalar_lea.vmem [#allocation10], 128
        %v1838 = vld [vmem:[%s1837] sm:$0xf]
        %v1839 = vld [vmem:[%s1837 + $0x4] sm:$0xf]
        %v1840 = vld [vmem:[%s1837 + $0x8] sm:$0xf]
        %v1841 = vld [vmem:[%s1837 + $0xc] sm:$0xf]
        %v1842 = vld [vmem:[%s1837 + $0x10] sm:$0xf]
        %v1843 = vld [vmem:[%s1837 + $0x14] sm:$0xf]
        %v1844 = vld [vmem:[%s1837 + $0x18] sm:$0xf]
        %v1845 = vld [vmem:[%s1837 + $0x1c] sm:$0xf]
        %v1846 = vld [vmem:[%s1837 + $0x20] sm:$0xf]
        %v1847 = vld [vmem:[%s1837 + $0x24] sm:$0xf]
        %v1848 = vld [vmem:[%s1837 + $0x28] sm:$0xf]
        %v1849 = vld [vmem:[%s1837 + $0x2c] sm:$0xf]
        %v1850 = vld [vmem:[%s1837 + $0x30] sm:$0xf]
        %v1851 = vld [vmem:[%s1837 + $0x34] sm:$0xf]
        %v1852 = vld [vmem:[%s1837 + $0x38] sm:$0xf]
        %v1853 = vld [vmem:[%s1837 + $0x3c] sm:$0xf]
        %v1854 = vunpack.c.l.b16 %v1770
        %v1855 = vunpack.c.l.b16 %v1773
        %v1856 = vunpack.c.l.b16 %v1777
        %v1857 = vunpack.c.l.b16 %v1780
        %v1858 = vunpack.c.l.b16 %v1784
        %v1859 = vunpack.c.l.b16 %v1787
        %v1860 = vunpack.c.l.b16 %v1791
        %v1861 = vunpack.c.l.b16 %v1794
        %v1862 = vunpack.c.l.b16 %v1798
        %v1863 = vunpack.c.l.b16 %v1801
        %v1864 = vunpack.c.l.b16 %v1805
        %v1865 = vunpack.c.l.b16 %v1808
        %v1866 = vunpack.c.l.b16 %v1812
        %v1867 = vunpack.c.l.b16 %v1815
        %v1868 = vunpack.c.l.b16 %v1819
        %v1869 = vunpack.c.l.b16 %v1822
        %v1870 = vunpack.c.l.b16 %v1826
        %v1871 = vunpack.c.l.b16 %v1829
        %v1872 = vunpack.c.l.b16 %v1833
        %v1873 = vunpack.c.l.b16 %v1836
        %v1874 = vpack.c.b16 %v1855, %v1854
        %v1875 = vpack.c.b16 %v1857, %v1856
        %v1876 = vpack.c.b16 %v1859, %v1858
        %v1877 = vpack.c.b16 %v1861, %v1860
        %v1878 = vpack.c.b16 %v1863, %v1862
        %v1879 = vpack.c.b16 %v1865, %v1864
        %v1880 = vpack.c.b16 %v1867, %v1866
        %v1881 = vpack.c.b16 %v1869, %v1868
        %v1882 = vpack.c.b16 %v1871, %v1870
        %v1883 = vpack.c.b16 %v1873, %v1872
        %v1910 = vunpack.c.l.b16 %v1838
        %v1911 = vunpack.c.l.b16 %v1839
        %v1912 = vunpack.c.l.b16 %v1840
        %v1913 = vunpack.c.l.b16 %v1841
        %v1914 = vunpack.c.l.b16 %v1842
        %v1915 = vunpack.c.l.b16 %v1843
        %v1916 = vunpack.c.l.b16 %v1844
        %v1917 = vunpack.c.l.b16 %v1845
        %v1918 = vunpack.c.l.b16 %v1846
        %v1919 = vunpack.c.l.b16 %v1847
        %v1920 = vunpack.c.l.b16 %v1848
        %v1921 = vunpack.c.l.b16 %v1849
        %v1922 = vunpack.c.l.b16 %v1850
        %v1923 = vunpack.c.l.b16 %v1851
        %v1924 = vunpack.c.l.b16 %v1852
        %v1925 = vunpack.c.l.b16 %v1853
        %v1926 = vpack.c.b16 %v1911, %v1910
        %v1927 = vpack.c.b16 %v1913, %v1912
        %v1928 = vpack.c.b16 %v1915, %v1914
        %v1929 = vpack.c.b16 %v1917, %v1916
        %v1930 = vpack.c.b16 %v1919, %v1918
        %v1931 = vpack.c.b16 %v1921, %v1920
        %v1932 = vpack.c.b16 %v1923, %v1922
        %v1933 = vpack.c.b16 %v1925, %v1924
        %1942 = vmatprep.subr.bf16.mxu0 0
        %1943 = vmatpush1.bf16.msra.mxu0 %v1926
        %1944 = vmatprep.subr.bf16.mxu0 0
        %1945 = vmatpush1.bf16.msra.mxu0 %v1927
        %1946 = vmatprep.subr.bf16.mxu0 0
        %1947 = vmatpush1.bf16.msra.mxu0 %v1928
        %1948 = vmatprep.subr.bf16.mxu0 0
        %1949 = vmatpush1.bf16.msra.mxu0 %v1929
        %1950 = vmatprep.subr.bf16.mxu0 0
        %1951 = vmatpush1.bf16.msra.mxu0 %v1930
        %1952 = vmatprep.subr.bf16.mxu0 0
        %1953 = vmatpush1.bf16.msra.mxu0 %v1931
        %1954 = vmatprep.subr.bf16.mxu0 0
        %1955 = vmatpush1.bf16.msra.mxu0 %v1932
        %1956 = vmatprep.subr.bf16.mxu0 0
        %1957 = vmatpush1.bf16.msra.mxu0 %v1933
        %1958 = vmatprep.subr.bf16.mxu0 0
        %1959 = vmatpush1.bf16.msra.mxu0 0
        %1960 = vmatprep.subr.bf16.mxu0 0
        %1961 = vmatpush1.bf16.msra.mxu0 0
        %1962 = vmatprep.subr.bf16.mxu0 0
        %1963 = vmatpush1.bf16.msra.mxu0 0
        %1964 = vmatprep.subr.bf16.mxu0 0
        %1965 = vmatpush1.bf16.msra.mxu0 0
        %1966 = vmatprep.subr.bf16.mxu0 0
        %1967 = vmatpush1.bf16.msra.mxu0 0
        %1968 = vmatprep.subr.bf16.mxu0 0
        %1969 = vmatpush1.bf16.msra.mxu0 0
        %1970 = vmatprep.subr.bf16.mxu0 0
        %1971 = vmatpush1.bf16.msra.mxu0 0
        %1972 = vmatprep.subr.bf16.mxu0 0
        %1973 = vmatpush1.bf16.msra.mxu0 0
        %1974 = vmatprep.mubr.bf16.mxu0 0
        %1975 = vmatmul.mubr.bf16.gmra.mrb[0].mxu0 %v1874
        %v1976 = vpop.f32.mrb[0].mxu0
        %v1977 = vadd.f32 0.0, %v1976
        %v1978 = vpop.f32.mrb[0].mxu0
        %v1979 = vpop.f32.mrb[0].mxu0
        %v1980 = vadd.f32 0.0, %v1979
        %v1981 = vpop.f32.mrb[0].mxu0
        %1982 = vmatprep.mubr.bf16.mxu0 0
        %1983 = vmatmul.mubr.bf16.gmra.mrb[0].mxu0 %v1875
        %v1984 = vpop.f32.mrb[0].mxu0
        %v1985 = vadd.f32 0.0, %v1984
        %v1986 = vpop.f32.mrb[0].mxu0
        %v1987 = vpop.f32.mrb[0].mxu0
        %v1988 = vadd.f32 0.0, %v1987
        %v1989 = vpop.f32.mrb[0].mxu0
        %1990 = vmatprep.mubr.bf16.mxu0 0
        %1991 = vmatmul.mubr.bf16.gmra.mrb[0].mxu0 %v1876
        %v1992 = vpop.f32.mrb[0].mxu0
        %v1993 = vadd.f32 0.0, %v1992
        %v1994 = vpop.f32.mrb[0].mxu0
        %v1995 = vpop.f32.mrb[0].mxu0
        %v1996 = vadd.f32 0.0, %v1995
        %v1997 = vpop.f32.mrb[0].mxu0
        %1998 = vmatprep.mubr.bf16.mxu0 0
        %1999 = vmatmul.mubr.bf16.gmra.mrb[0].mxu0 %v1877
        %v2000 = vpop.f32.mrb[0].mxu0
        %v2001 = vadd.f32 0.0, %v2000
        %v2002 = vpop.f32.mrb[0].mxu0
        %v2003 = vpop.f32.mrb[0].mxu0
        %v2004 = vadd.f32 0.0, %v2003
        %v2005 = vpop.f32.mrb[0].mxu0
        %2006 = vmatprep.mubr.bf16.mxu0 0
        %2007 = vmatmul.mubr.bf16.gmra.mrb[0].mxu0 %v1878
        %v2008 = vpop.f32.mrb[0].mxu0
        %v2009 = vadd.f32 0.0, %v2008
        %v2010 = vpop.f32.mrb[0].mxu0
        %v2011 = vpop.f32.mrb[0].mxu0
        %v2012 = vadd.f32 0.0, %v2011
        %v2013 = vpop.f32.mrb[0].mxu0
        %2014 = vmatprep.mubr.bf16.mxu0 0
        %2015 = vmatmul.mubr.bf16.gmra.mrb[0].mxu0 %v1879
        %v2016 = vpop.f32.mrb[0].mxu0
        %v2017 = vadd.f32 0.0, %v2016
        %v2018 = vpop.f32.mrb[0].mxu0
        %v2019 = vpop.f32.mrb[0].mxu0
        %v2020 = vadd.f32 0.0, %v2019
        %v2021 = vpop.f32.mrb[0].mxu0
        %2022 = vmatprep.mubr.bf16.mxu0 0
        %2023 = vmatmul.mubr.bf16.gmra.mrb[0].mxu0 %v1880
        %v2024 = vpop.f32.mrb[0].mxu0
        %v2025 = vadd.f32 0.0, %v2024
        %v2026 = vpop.f32.mrb[0].mxu0
        %v2027 = vpop.f32.mrb[0].mxu0
        %v2028 = vadd.f32 0.0, %v2027
        %v2029 = vpop.f32.mrb[0].mxu0
        %2030 = vmatprep.mubr.bf16.mxu0 0
        %2031 = vmatmul.mubr.bf16.gmra.mrb[0].mxu0 %v1881
        %v2032 = vpop.f32.mrb[0].mxu0
        %v2033 = vadd.f32 0.0, %v2032
        %v2034 = vpop.f32.mrb[0].mxu0
        %v2035 = vpop.f32.mrb[0].mxu0
        %v2036 = vadd.f32 0.0, %v2035
        %v2037 = vpop.f32.mrb[0].mxu0
        %2038 = vmatprep.mubr.bf16.mxu0 0
        %2039 = vmatmul.mubr.bf16.gmra.mrb[0].mxu0 %v1882
        %v2040 = vpop.f32.mrb[0].mxu0
        %v2041 = vadd.f32 0.0, %v2040
        %v2042 = vpop.f32.mrb[0].mxu0
        %v2043 = vpop.f32.mrb[0].mxu0
        %v2044 = vadd.f32 0.0, %v2043
        %v2045 = vpop.f32.mrb[0].mxu0
        %2046 = vmatprep.mubr.bf16.mxu0 0
        %2047 = vmatmul.mubr.bf16.gmra.mrb[0].mxu0 %v1883
        %v2048 = vpop.f32.mrb[0].mxu0
        %v2049 = vadd.f32 0.0, %v2048
        %v2050 = vpop.f32.mrb[0].mxu0
        %v2051 = vpop.f32.mrb[0].mxu0
        %v2052 = vadd.f32 0.0, %v2051
        %v2053 = vpop.f32.mrb[0].mxu0
        %2054 = vdwg.mxu0
        %v2055 = vadd.f32 %v1704, %v1977
        %v2056 = vadd.f32 %v1705, %v1980
        %v2057 = vadd.f32 %v1706, %v1985
        %v2058 = vadd.f32 %v1707, %v1988
        %v2059 = vadd.f32 %v1708, %v1993
        %v2060 = vadd.f32 %v1709, %v1996
        %v2061 = vadd.f32 %v1710, %v2001
        %v2062 = vadd.f32 %v1711, %v2004
        %v2063 = vadd.f32 %v1712, %v2009
        %v2064 = vadd.f32 %v1713, %v2012
        %v2065 = vadd.f32 %v1714, %v2017
        %v2066 = vadd.f32 %v1715, %v2020
        %v2067 = vadd.f32 %v1716, %v2025
        %v2068 = vadd.f32 %v1717, %v2028
        %v2069 = vadd.f32 %v1718, %v2033
        %v2070 = vadd.f32 %v1719, %v2036
        %v2071 = vadd.f32 %v1720, %v2041
        %v2072 = vadd.f32 %v1721, %v2044
        %v2073 = vadd.f32 %v1722, %v2049
        %v2074 = vadd.f32 %v1723, %v2052
        %s2075 = scalar_lea.vmem [#allocation2], 12
        %v2076 = vld [vmem:[%s2075] sm:$0xf]
        %v2077 = vld [vmem:[%s2075 + $0x4] sm:$0xf]
        %v2078 = vld [vmem:[%s2075 + $0xc] sm:$0xf]
        %v2079 = vld [vmem:[%s2075 + $0x10] sm:$0xf]
        %v2080 = vld [vmem:[%s2075 + $0x18] sm:$0xf]
        %v2081 = vld [vmem:[%s2075 + $0x1c] sm:$0xf]
        %v2082 = vld [vmem:[%s2075 + $0x24] sm:$0xf]
        %v2083 = vld [vmem:[%s2075 + $0x28] sm:$0xf]
        %v2084 = vld [vmem:[%s2075 + $0x30] sm:$0xf]
        %v2085 = vld [vmem:[%s2075 + $0x34] sm:$0xf]
        %v2086 = vld [vmem:[%s2075 + $0x3c] sm:$0xf]
        %v2087 = vld [vmem:[%s2075 + $0x40] sm:$0xf]
        %v2088 = vld [vmem:[%s2075 + $0x48] sm:$0xf]
        %v2089 = vld [vmem:[%s2075 + $0x4c] sm:$0xf]
        %v2090 = vld [vmem:[%s2075 + $0x54] sm:$0xf]
        %v2091 = vld [vmem:[%s2075 + $0x58] sm:$0xf]
        %v2092 = vld [vmem:[%s2075 + $0x60] sm:$0xf]
        %v2093 = vld [vmem:[%s2075 + $0x64] sm:$0xf]
        %v2094 = vld [vmem:[%s2075 + $0x6c] sm:$0xf]
        %v2095 = vld [vmem:[%s2075 + $0x70] sm:$0xf]
        %s2096 = scalar_lea.vmem [#allocation10], 192
        %v2097 = vld [vmem:[%s2096] sm:$0xf]
        %v2098 = vld [vmem:[%s2096 + $0x4] sm:$0xf]
        %v2099 = vld [vmem:[%s2096 + $0x8] sm:$0xf]
        %v2100 = vld [vmem:[%s2096 + $0xc] sm:$0xf]
        %v2101 = vld [vmem:[%s2096 + $0x10] sm:$0xf]
        %v2102 = vld [vmem:[%s2096 + $0x14] sm:$0xf]
        %v2103 = vld [vmem:[%s2096 + $0x18] sm:$0xf]
        %v2104 = vld [vmem:[%s2096 + $0x1c] sm:$0xf]
        %v2105 = vld [vmem:[%s2096 + $0x20] sm:$0xf]
        %v2106 = vld [vmem:[%s2096 + $0x24] sm:$0xf]
        %v2107 = vld [vmem:[%s2096 + $0x28] sm:$0xf]
        %v2108 = vld [vmem:[%s2096 + $0x2c] sm:$0xf]
        %v2109 = vld [vmem:[%s2096 + $0x30] sm:$0xf]
        %v2110 = vld [vmem:[%s2096 + $0x34] sm:$0xf]
        %v2111 = vld [vmem:[%s2096 + $0x38] sm:$0xf]
        %v2112 = vld [vmem:[%s2096 + $0x3c] sm:$0xf]
        %v2133 = vunpack.c.l.b16 %v2076
        %v2134 = vunpack.c.l.b16 %v2077
        %v2135 = vunpack.c.l.b16 %v2078
        %v2136 = vunpack.c.l.b16 %v2079
        %v2137 = vunpack.c.l.b16 %v2080
        %v2138 = vunpack.c.l.b16 %v2081
        %v2139 = vunpack.c.l.b16 %v2082
        %v2140 = vunpack.c.l.b16 %v2083
        %v2141 = vunpack.c.l.b16 %v2084
        %v2142 = vunpack.c.l.b16 %v2085
        %v2143 = vunpack.c.l.b16 %v2086
        %v2144 = vunpack.c.l.b16 %v2087
        %v2145 = vunpack.c.l.b16 %v2088
        %v2146 = vunpack.c.l.b16 %v2089
        %v2147 = vunpack.c.l.b16 %v2090
        %v2148 = vunpack.c.l.b16 %v2091
        %v2149 = vunpack.c.l.b16 %v2092
        %v2150 = vunpack.c.l.b16 %v2093
        %v2151 = vunpack.c.l.b16 %v2094
        %v2152 = vunpack.c.l.b16 %v2095
        %v2153 = vpack.c.b16 %v2134, %v2133
        %v2154 = vpack.c.b16 %v2136, %v2135
        %v2155 = vpack.c.b16 %v2138, %v2137
        %v2156 = vpack.c.b16 %v2140, %v2139
        %v2157 = vpack.c.b16 %v2142, %v2141
        %v2158 = vpack.c.b16 %v2144, %v2143
        %v2159 = vpack.c.b16 %v2146, %v2145
        %v2160 = vpack.c.b16 %v2148, %v2147
        %v2161 = vpack.c.b16 %v2150, %v2149
        %v2162 = vpack.c.b16 %v2152, %v2151
        %v2189 = vunpack.c.l.b16 %v2097
        %v2190 = vunpack.c.l.b16 %v2098
        %v2191 = vunpack.c.l.b16 %v2099
        %v2192 = vunpack.c.l.b16 %v2100
        %v2193 = vunpack.c.l.b16 %v2101
        %v2194 = vunpack.c.l.b16 %v2102
        %v2195 = vunpack.c.l.b16 %v2103
        %v2196 = vunpack.c.l.b16 %v2104
        %v2197 = vunpack.c.l.b16 %v2105
        %v2198 = vunpack.c.l.b16 %v2106
        %v2199 = vunpack.c.l.b16 %v2107
        %v2200 = vunpack.c.l.b16 %v2108
        %v2201 = vunpack.c.l.b16 %v2109
        %v2202 = vunpack.c.l.b16 %v2110
        %v2203 = vunpack.c.l.b16 %v2111
        %v2204 = vunpack.c.l.b16 %v2112
        %v2205 = vpack.c.b16 %v2190, %v2189
        %v2206 = vpack.c.b16 %v2192, %v2191
        %v2207 = vpack.c.b16 %v2194, %v2193
        %v2208 = vpack.c.b16 %v2196, %v2195
        %v2209 = vpack.c.b16 %v2198, %v2197
        %v2210 = vpack.c.b16 %v2200, %v2199
        %v2211 = vpack.c.b16 %v2202, %v2201
        %v2212 = vpack.c.b16 %v2204, %v2203
        %2221 = vmatprep.subr.bf16.mxu0 0
        %2222 = vmatpush1.bf16.msra.mxu0 %v2205
        %2223 = vmatprep.subr.bf16.mxu0 0
        %2224 = vmatpush1.bf16.msra.mxu0 %v2206
        %2225 = vmatprep.subr.bf16.mxu0 0
        %2226 = vmatpush1.bf16.msra.mxu0 %v2207
        %2227 = vmatprep.subr.bf16.mxu0 0
        %2228 = vmatpush1.bf16.msra.mxu0 %v2208
        %2229 = vmatprep.subr.bf16.mxu0 0
        %2230 = vmatpush1.bf16.msra.mxu0 %v2209
        %2231 = vmatprep.subr.bf16.mxu0 0
        %2232 = vmatpush1.bf16.msra.mxu0 %v2210
        %2233 = vmatprep.subr.bf16.mxu0 0
        %2234 = vmatpush1.bf16.msra.mxu0 %v2211
        %2235 = vmatprep.subr.bf16.mxu0 0
        %2236 = vmatpush1.bf16.msra.mxu0 %v2212
        %2237 = vmatprep.subr.bf16.mxu0 0
        %2238 = vmatpush1.bf16.msra.mxu0 0
        %2239 = vmatprep.subr.bf16.mxu0 0
        %2240 = vmatpush1.bf16.msra.mxu0 0
        %2241 = vmatprep.subr.bf16.mxu0 0
        %2242 = vmatpush1.bf16.msra.mxu0 0
        %2243 = vmatprep.subr.bf16.mxu0 0
        %2244 = vmatpush1.bf16.msra.mxu0 0
        %2245 = vmatprep.subr.bf16.mxu0 0
        %2246 = vmatpush1.bf16.msra.mxu0 0
        %2247 = vmatprep.subr.bf16.mxu0 0
        %2248 = vmatpush1.bf16.msra.mxu0 0
        %2249 = vmatprep.subr.bf16.mxu0 0
        %2250 = vmatpush1.bf16.msra.mxu0 0
        %2251 = vmatprep.subr.bf16.mxu0 0
        %2252 = vmatpush1.bf16.msra.mxu0 0
        %2253 = vmatprep.mubr.bf16.mxu0 0
        %2254 = vmatmul.mubr.bf16.gmra.mrb[0].mxu0 %v2153
        %v2255 = vpop.f32.mrb[0].mxu0
        %v2256 = vadd.f32 0.0, %v2255
        %v2257 = vpop.f32.mrb[0].mxu0
        %v2258 = vpop.f32.mrb[0].mxu0
        %v2259 = vadd.f32 0.0, %v2258
        %v2260 = vpop.f32.mrb[0].mxu0
        %2261 = vmatprep.mubr.bf16.mxu0 0
        %2262 = vmatmul.mubr.bf16.gmra.mrb[0].mxu0 %v2154
        %v2263 = vpop.f32.mrb[0].mxu0
        %v2264 = vadd.f32 0.0, %v2263
        %v2265 = vpop.f32.mrb[0].mxu0
        %v2266 = vpop.f32.mrb[0].mxu0
        %v2267 = vadd.f32 0.0, %v2266
        %v2268 = vpop.f32.mrb[0].mxu0
        %2269 = vmatprep.mubr.bf16.mxu0 0
        %2270 = vmatmul.mubr.bf16.gmra.mrb[0].mxu0 %v2155
        %v2271 = vpop.f32.mrb[0].mxu0
        %v2272 = vadd.f32 0.0, %v2271
        %v2273 = vpop.f32.mrb[0].mxu0
        %v2274 = vpop.f32.mrb[0].mxu0
        %v2275 = vadd.f32 0.0, %v2274
        %v2276 = vpop.f32.mrb[0].mxu0
        %2277 = vmatprep.mubr.bf16.mxu0 0
        %2278 = vmatmul.mubr.bf16.gmra.mrb[0].mxu0 %v2156
        %v2279 = vpop.f32.mrb[0].mxu0
        %v2280 = vadd.f32 0.0, %v2279
        %v2281 = vpop.f32.mrb[0].mxu0
        %v2282 = vpop.f32.mrb[0].mxu0
        %v2283 = vadd.f32 0.0, %v2282
        %v2284 = vpop.f32.mrb[0].mxu0
        %2285 = vmatprep.mubr.bf16.mxu0 0
        %2286 = vmatmul.mubr.bf16.gmra.mrb[0].mxu0 %v2157
        %v2287 = vpop.f32.mrb[0].mxu0
        %v2288 = vadd.f32 0.0, %v2287
        %v2289 = vpop.f32.mrb[0].mxu0
        %v2290 = vpop.f32.mrb[0].mxu0
        %v2291 = vadd.f32 0.0, %v2290
        %v2292 = vpop.f32.mrb[0].mxu0
        %2293 = vmatprep.mubr.bf16.mxu0 0
        %2294 = vmatmul.mubr.bf16.gmra.mrb[0].mxu0 %v2158
        %v2295 = vpop.f32.mrb[0].mxu0
        %v2296 = vadd.f32 0.0, %v2295
        %v2297 = vpop.f32.mrb[0].mxu0
        %v2298 = vpop.f32.mrb[0].mxu0
        %v2299 = vadd.f32 0.0, %v2298
        %v2300 = vpop.f32.mrb[0].mxu0
        %2301 = vmatprep.mubr.bf16.mxu0 0
        %2302 = vmatmul.mubr.bf16.gmra.mrb[0].mxu0 %v2159
        %v2303 = vpop.f32.mrb[0].mxu0
        %v2304 = vadd.f32 0.0, %v2303
        %v2305 = vpop.f32.mrb[0].mxu0
        %v2306 = vpop.f32.mrb[0].mxu0
        %v2307 = vadd.f32 0.0, %v2306
        %v2308 = vpop.f32.mrb[0].mxu0
        %2309 = vmatprep.mubr.bf16.mxu0 0
        %2310 = vmatmul.mubr.bf16.gmra.mrb[0].mxu0 %v2160
        %v2311 = vpop.f32.mrb[0].mxu0
        %v2312 = vadd.f32 0.0, %v2311
        %v2313 = vpop.f32.mrb[0].mxu0
        %v2314 = vpop.f32.mrb[0].mxu0
        %v2315 = vadd.f32 0.0, %v2314
        %v2316 = vpop.f32.mrb[0].mxu0
        %2317 = vmatprep.mubr.bf16.mxu0 0
        %2318 = vmatmul.mubr.bf16.gmra.mrb[0].mxu0 %v2161
        %v2319 = vpop.f32.mrb[0].mxu0
        %v2320 = vadd.f32 0.0, %v2319
        %v2321 = vpop.f32.mrb[0].mxu0
        %v2322 = vpop.f32.mrb[0].mxu0
        %v2323 = vadd.f32 0.0, %v2322
        %v2324 = vpop.f32.mrb[0].mxu0
        %2325 = vmatprep.mubr.bf16.mxu0 0
        %2326 = vmatmul.mubr.bf16.gmra.mrb[0].mxu0 %v2162
        %v2327 = vpop.f32.mrb[0].mxu0
        %v2328 = vadd.f32 0.0, %v2327
        %v2329 = vpop.f32.mrb[0].mxu0
        %v2330 = vpop.f32.mrb[0].mxu0
        %v2331 = vadd.f32 0.0, %v2330
        %v2332 = vpop.f32.mrb[0].mxu0
        %2333 = vdwg.mxu0
        %v2334 = vadd.f32 %v2055, %v2256
        %v2335 = vadd.f32 %v2056, %v2259
        %v2336 = vadd.f32 %v2057, %v2264
        %v2337 = vadd.f32 %v2058, %v2267
        %v2338 = vadd.f32 %v2059, %v2272
        %v2339 = vadd.f32 %v2060, %v2275
        %v2340 = vadd.f32 %v2061, %v2280
        %v2341 = vadd.f32 %v2062, %v2283
        %v2342 = vadd.f32 %v2063, %v2288
        %v2343 = vadd.f32 %v2064, %v2291
        %v2344 = vadd.f32 %v2065, %v2296
        %v2345 = vadd.f32 %v2066, %v2299
        %v2346 = vadd.f32 %v2067, %v2304
        %v2347 = vadd.f32 %v2068, %v2307
        %v2348 = vadd.f32 %v2069, %v2312
        %v2349 = vadd.f32 %v2070, %v2315
        %v2350 = vadd.f32 %v2071, %v2320
        %v2351 = vadd.f32 %v2072, %v2323
        %v2352 = vadd.f32 %v2073, %v2328
        %v2353 = vadd.f32 %v2074, %v2331
        %v2354 = vld [vmem:[%s2075] sm:$0xf]
        %v2355 = vld [vmem:[%s2075 + $0x4] sm:$0xf]
        %v2356 = vld [vmem:[%s2075 + $0x8] sm:$0x1]
        %v2357 = vld [vmem:[%s2075 + $0xc] sm:$0xf]
        %v2358 = vld [vmem:[%s2075 + $0x10] sm:$0xf]
        %v2359 = vld [vmem:[%s2075 + $0x14] sm:$0x1]
        %v2360 = vld [vmem:[%s2075 + $0x18] sm:$0xf]
        %v2361 = vld [vmem:[%s2075 + $0x1c] sm:$0xf]
        %v2362 = vld [vmem:[%s2075 + $0x20] sm:$0x1]
        %v2363 = vld [vmem:[%s2075 + $0x24] sm:$0xf]
        %v2364 = vld [vmem:[%s2075 + $0x28] sm:$0xf]
        %v2365 = vld [vmem:[%s2075 + $0x2c] sm:$0x1]
        %v2366 = vld [vmem:[%s2075 + $0x30] sm:$0xf]
        %v2367 = vld [vmem:[%s2075 + $0x34] sm:$0xf]
        %v2368 = vld [vmem:[%s2075 + $0x38] sm:$0x1]
        %v2369 = vld [vmem:[%s2075 + $0x3c] sm:$0xf]
        %v2370 = vld [vmem:[%s2075 + $0x40] sm:$0xf]
        %v2371 = vld [vmem:[%s2075 + $0x44] sm:$0x1]
        %v2372 = vld [vmem:[%s2075 + $0x48] sm:$0xf]
        %v2373 = vld [vmem:[%s2075 + $0x4c] sm:$0xf]
        %v2374 = vld [vmem:[%s2075 + $0x50] sm:$0x1]
        %v2375 = vld [vmem:[%s2075 + $0x54] sm:$0xf]
        %v2376 = vld [vmem:[%s2075 + $0x58] sm:$0xf]
        %v2377 = vld [vmem:[%s2075 + $0x5c] sm:$0x1]
        %v2378 = vld [vmem:[%s2075 + $0x60] sm:$0xf]
        %v2379 = vld [vmem:[%s2075 + $0x64] sm:$0xf]
        %v2380 = vld [vmem:[%s2075 + $0x68] sm:$0x1]
        %v2381 = vld [vmem:[%s2075 + $0x6c] sm:$0xf]
        %v2382 = vld [vmem:[%s2075 + $0x70] sm:$0xf]
        %v2383 = vld [vmem:[%s2075 + $0x74] sm:$0x1]
        %v2385 = vshrl.u32 %v2354, 16
        %v2387 = vrot.slane %v2385, 4
        %v2388 = vshll.u32 %v2354, 16
        %v2390 = vrot.slane %v2388, 5
        %v2391 = vor.u32 %v2387, %v2390
        %v2392 = vrot.slane %v2391, 4
        %v2394 = vshll.u32 %v2355, 16
        %v2396 = vrot.slane %v2394, 5
        %v2397 = vsel %vm1245, %v2392, %v2396
        %v2398 = vshrl.u32 %v2355, 16
        %v2400 = vrot.slane %v2398, 4
        %v2401 = vor.u32 %v2400, %v2396
        %v2402 = vrot.slane %v2401, 4
        %v2404 = vshll.u32 %v2356, 16
        %v2406 = vrot.slane %v2404, 5
        %v2407 = vsel %vm1245, %v2402, %v2406
        %v2409 = vshrl.u32 %v2357, 16
        %v2411 = vrot.slane %v2409, 4
        %v2412 = vshll.u32 %v2357, 16
        %v2414 = vrot.slane %v2412, 5
        %v2415 = vor.u32 %v2411, %v2414
        %v2416 = vrot.slane %v2415, 4
        %v2418 = vshll.u32 %v2358, 16
        %v2420 = vrot.slane %v2418, 5
        %v2421 = vsel %vm1245, %v2416, %v2420
        %v2422 = vshrl.u32 %v2358, 16
        %v2424 = vrot.slane %v2422, 4
        %v2425 = vor.u32 %v2424, %v2420
        %v2426 = vrot.slane %v2425, 4
        %v2428 = vshll.u32 %v2359, 16
        %v2430 = vrot.slane %v2428, 5
        %v2431 = vsel %vm1245, %v2426, %v2430
        %v2433 = vshrl.u32 %v2360, 16
        %v2435 = vrot.slane %v2433, 4
        %v2436 = vshll.u32 %v2360, 16
        %v2438 = vrot.slane %v2436, 5
        %v2439 = vor.u32 %v2435, %v2438
        %v2440 = vrot.slane %v2439, 4
        %v2442 = vshll.u32 %v2361, 16
        %v2444 = vrot.slane %v2442, 5
        %v2445 = vsel %vm1245, %v2440, %v2444
        %v2446 = vshrl.u32 %v2361, 16
        %v2448 = vrot.slane %v2446, 4
        %v2449 = vor.u32 %v2448, %v2444
        %v2450 = vrot.slane %v2449, 4
        %v2452 = vshll.u32 %v2362, 16
        %v2454 = vrot.slane %v2452, 5
        %v2455 = vsel %vm1245, %v2450, %v2454
        %v2457 = vshrl.u32 %v2363, 16
        %v2459 = vrot.slane %v2457, 4
        %v2460 = vshll.u32 %v2363, 16
        %v2462 = vrot.slane %v2460, 5
        %v2463 = vor.u32 %v2459, %v2462
        %v2464 = vrot.slane %v2463, 4
        %v2466 = vshll.u32 %v2364, 16
        %v2468 = vrot.slane %v2466, 5
        %v2469 = vsel %vm1245, %v2464, %v2468
        %v2470 = vshrl.u32 %v2364, 16
        %v2472 = vrot.slane %v2470, 4
        %v2473 = vor.u32 %v2472, %v2468
        %v2474 = vrot.slane %v2473, 4
        %v2476 = vshll.u32 %v2365, 16
        %v2478 = vrot.slane %v2476, 5
        %v2479 = vsel %vm1245, %v2474, %v2478
        %v2481 = vshrl.u32 %v2366, 16
        %v2483 = vrot.slane %v2481, 4
        %v2484 = vshll.u32 %v2366, 16
        %v2486 = vrot.slane %v2484, 5
        %v2487 = vor.u32 %v2483, %v2486
        %v2488 = vrot.slane %v2487, 4
        %v2490 = vshll.u32 %v2367, 16
        %v2492 = vrot.slane %v2490, 5
        %v2493 = vsel %vm1245, %v2488, %v2492
        %v2494 = vshrl.u32 %v2367, 16
        %v2496 = vrot.slane %v2494, 4
        %v2497 = vor.u32 %v2496, %v2492
        %v2498 = vrot.slane %v2497, 4
        %v2500 = vshll.u32 %v2368, 16
        %v2502 = vrot.slane %v2500, 5
        %v2503 = vsel %vm1245, %v2498, %v2502
        %v2505 = vshrl.u32 %v2369, 16
        %v2507 = vrot.slane %v2505, 4
        %v2508 = vshll.u32 %v2369, 16
        %v2510 = vrot.slane %v2508, 5
        %v2511 = vor.u32 %v2507, %v2510
        %v2512 = vrot.slane %v2511, 4
        %v2514 = vshll.u32 %v2370, 16
        %v2516 = vrot.slane %v2514, 5
        %v2517 = vsel %vm1245, %v2512, %v2516
        %v2518 = vshrl.u32 %v2370, 16
        %v2520 = vrot.slane %v2518, 4
        %v2521 = vor.u32 %v2520, %v2516
        %v2522 = vrot.slane %v2521, 4
        %v2524 = vshll.u32 %v2371, 16
        %v2526 = vrot.slane %v2524, 5
        %v2527 = vsel %vm1245, %v2522, %v2526
        %v2529 = vshrl.u32 %v2372, 16
        %v2531 = vrot.slane %v2529, 4
        %v2532 = vshll.u32 %v2372, 16
        %v2534 = vrot.slane %v2532, 5
        %v2535 = vor.u32 %v2531, %v2534
        %v2536 = vrot.slane %v2535, 4
        %v2538 = vshll.u32 %v2373, 16
        %v2540 = vrot.slane %v2538, 5
        %v2541 = vsel %vm1245, %v2536, %v2540
        %v2542 = vshrl.u32 %v2373, 16
        %v2544 = vrot.slane %v2542, 4
        %v2545 = vor.u32 %v2544, %v2540
        %v2546 = vrot.slane %v2545, 4
        %v2548 = vshll.u32 %v2374, 16
        %v2550 = vrot.slane %v2548, 5
        %v2551 = vsel %vm1245, %v2546, %v2550
        %v2553 = vshrl.u32 %v2375, 16
        %v2555 = vrot.slane %v2553, 4
        %v2556 = vshll.u32 %v2375, 16
        %v2558 = vrot.slane %v2556, 5
        %v2559 = vor.u32 %v2555, %v2558
        %v2560 = vrot.slane %v2559, 4
        %v2562 = vshll.u32 %v2376, 16
        %v2564 = vrot.slane %v2562, 5
        %v2565 = vsel %vm1245, %v2560, %v2564
        %v2566 = vshrl.u32 %v2376, 16
        %v2568 = vrot.slane %v2566, 4
        %v2569 = vor.u32 %v2568, %v2564
        %v2570 = vrot.slane %v2569, 4
        %v2572 = vshll.u32 %v2377, 16
        %v2574 = vrot.slane %v2572, 5
        %v2575 = vsel %vm1245, %v2570, %v2574
        %v2577 = vshrl.u32 %v2378, 16
        %v2579 = vrot.slane %v2577, 4
        %v2580 = vshll.u32 %v2378, 16
        %v2582 = vrot.slane %v2580, 5
        %v2583 = vor.u32 %v2579, %v2582
        %v2584 = vrot.slane %v2583, 4
        %v2586 = vshll.u32 %v2379, 16
        %v2588 = vrot.slane %v2586, 5
        %v2589 = vsel %vm1245, %v2584, %v2588
        %v2590 = vshrl.u32 %v2379, 16
        %v2592 = vrot.slane %v2590, 4
        %v2593 = vor.u32 %v2592, %v2588
        %v2594 = vrot.slane %v2593, 4
        %v2596 = vshll.u32 %v2380, 16
        %v2598 = vrot.slane %v2596, 5
        %v2599 = vsel %vm1245, %v2594, %v2598
        %v2601 = vshrl.u32 %v2381, 16
        %v2603 = vrot.slane %v2601, 4
        %v2604 = vshll.u32 %v2381, 16
        %v2606 = vrot.slane %v2604, 5
        %v2607 = vor.u32 %v2603, %v2606
        %v2608 = vrot.slane %v2607, 4
        %v2610 = vshll.u32 %v2382, 16
        %v2612 = vrot.slane %v2610, 5
        %v2613 = vsel %vm1245, %v2608, %v2612
        %v2614 = vshrl.u32 %v2382, 16
        %v2616 = vrot.slane %v2614, 4
        %v2617 = vor.u32 %v2616, %v2612
        %v2618 = vrot.slane %v2617, 4
        %v2620 = vshll.u32 %v2383, 16
        %v2622 = vrot.slane %v2620, 5
        %v2623 = vsel %vm1245, %v2618, %v2622
        %s2624 = scalar_lea.vmem [#allocation10], 256
        %v2625 = vld [vmem:[%s2624] sm:$0xf]
        %v2626 = vld [vmem:[%s2624 + $0x4] sm:$0xf]
        %v2627 = vld [vmem:[%s2624 + $0x8] sm:$0xf]
        %v2628 = vld [vmem:[%s2624 + $0xc] sm:$0xf]
        %v2629 = vld [vmem:[%s2624 + $0x10] sm:$0xf]
        %v2630 = vld [vmem:[%s2624 + $0x14] sm:$0xf]
        %v2631 = vld [vmem:[%s2624 + $0x18] sm:$0xf]
        %v2632 = vld [vmem:[%s2624 + $0x1c] sm:$0xf]
        %v2633 = vld [vmem:[%s2624 + $0x20] sm:$0xf]
        %v2634 = vld [vmem:[%s2624 + $0x24] sm:$0xf]
        %v2635 = vld [vmem:[%s2624 + $0x28] sm:$0xf]
        %v2636 = vld [vmem:[%s2624 + $0x2c] sm:$0xf]
        %v2637 = vld [vmem:[%s2624 + $0x30] sm:$0xf]
        %v2638 = vld [vmem:[%s2624 + $0x34] sm:$0xf]
        %v2639 = vld [vmem:[%s2624 + $0x38] sm:$0xf]
        %v2640 = vld [vmem:[%s2624 + $0x3c] sm:$0xf]
        %v2641 = vunpack.c.l.b16 %v2397
        %v2642 = vunpack.c.l.b16 %v2407
        %v2643 = vunpack.c.l.b16 %v2421
        %v2644 = vunpack.c.l.b16 %v2431
        %v2645 = vunpack.c.l.b16 %v2445
        %v2646 = vunpack.c.l.b16 %v2455
        %v2647 = vunpack.c.l.b16 %v2469
        %v2648 = vunpack.c.l.b16 %v2479
        %v2649 = vunpack.c.l.b16 %v2493
        %v2650 = vunpack.c.l.b16 %v2503
        %v2651 = vunpack.c.l.b16 %v2517
        %v2652 = vunpack.c.l.b16 %v2527
        %v2653 = vunpack.c.l.b16 %v2541
        %v2654 = vunpack.c.l.b16 %v2551
        %v2655 = vunpack.c.l.b16 %v2565
        %v2656 = vunpack.c.l.b16 %v2575
        %v2657 = vunpack.c.l.b16 %v2589
        %v2658 = vunpack.c.l.b16 %v2599
        %v2659 = vunpack.c.l.b16 %v2613
        %v2660 = vunpack.c.l.b16 %v2623
        %v2661 = vpack.c.b16 %v2642, %v2641
        %v2662 = vpack.c.b16 %v2644, %v2643
        %v2663 = vpack.c.b16 %v2646, %v2645
        %v2664 = vpack.c.b16 %v2648, %v2647
        %v2665 = vpack.c.b16 %v2650, %v2649
        %v2666 = vpack.c.b16 %v2652, %v2651
        %v2667 = vpack.c.b16 %v2654, %v2653
        %v2668 = vpack.c.b16 %v2656, %v2655
        %v2669 = vpack.c.b16 %v2658, %v2657
        %v2670 = vpack.c.b16 %v2660, %v2659
        %v2697 = vunpack.c.l.b16 %v2625
        %v2698 = vunpack.c.l.b16 %v2626
        %v2699 = vunpack.c.l.b16 %v2627
        %v2700 = vunpack.c.l.b16 %v2628
        %v2701 = vunpack.c.l.b16 %v2629
        %v2702 = vunpack.c.l.b16 %v2630
        %v2703 = vunpack.c.l.b16 %v2631
        %v2704 = vunpack.c.l.b16 %v2632
        %v2705 = vunpack.c.l.b16 %v2633
        %v2706 = vunpack.c.l.b16 %v2634
        %v2707 = vunpack.c.l.b16 %v2635
        %v2708 = vunpack.c.l.b16 %v2636
        %v2709 = vunpack.c.l.b16 %v2637
        %v2710 = vunpack.c.l.b16 %v2638
        %v2711 = vunpack.c.l.b16 %v2639
        %v2712 = vunpack.c.l.b16 %v2640
        %v2713 = vpack.c.b16 %v2698, %v2697
        %v2714 = vpack.c.b16 %v2700, %v2699
        %v2715 = vpack.c.b16 %v2702, %v2701
        %v2716 = vpack.c.b16 %v2704, %v2703
        %v2717 = vpack.c.b16 %v2706, %v2705
        %v2718 = vpack.c.b16 %v2708, %v2707
        %v2719 = vpack.c.b16 %v2710, %v2709
        %v2720 = vpack.c.b16 %v2712, %v2711
        %2729 = vmatprep.subr.bf16.mxu0 0
        %2730 = vmatpush1.bf16.msra.mxu0 %v2713
        %2731 = vmatprep.subr.bf16.mxu0 0
        %2732 = vmatpush1.bf16.msra.mxu0 %v2714
        %2733 = vmatprep.subr.bf16.mxu0 0
        %2734 = vmatpush1.bf16.msra.mxu0 %v2715
        %2735 = vmatprep.subr.bf16.mxu0 0
        %2736 = vmatpush1.bf16.msra.mxu0 %v2716
        %2737 = vmatprep.subr.bf16.mxu0 0
        %2738 = vmatpush1.bf16.msra.mxu0 %v2717
        %2739 = vmatprep.subr.bf16.mxu0 0
        %2740 = vmatpush1.bf16.msra.mxu0 %v2718
        %2741 = vmatprep.subr.bf16.mxu0 0
        %2742 = vmatpush1.bf16.msra.mxu0 %v2719
        %2743 = vmatprep.subr.bf16.mxu0 0
        %2744 = vmatpush1.bf16.msra.mxu0 %v2720
        %2745 = vmatprep.subr.bf16.mxu0 0
        %2746 = vmatpush1.bf16.msra.mxu0 0
        %2747 = vmatprep.subr.bf16.mxu0 0
        %2748 = vmatpush1.bf16.msra.mxu0 0
        %2749 = vmatprep.subr.bf16.mxu0 0
        %2750 = vmatpush1.bf16.msra.mxu0 0
        %2751 = vmatprep.subr.bf16.mxu0 0
        %2752 = vmatpush1.bf16.msra.mxu0 0
        %2753 = vmatprep.subr.bf16.mxu0 0
        %2754 = vmatpush1.bf16.msra.mxu0 0
        %2755 = vmatprep.subr.bf16.mxu0 0
        %2756 = vmatpush1.bf16.msra.mxu0 0
        %2757 = vmatprep.subr.bf16.mxu0 0
        %2758 = vmatpush1.bf16.msra.mxu0 0
        %2759 = vmatprep.subr.bf16.mxu0 0
        %2760 = vmatpush1.bf16.msra.mxu0 0
        %2761 = vmatprep.mubr.bf16.mxu0 0
        %2762 = vmatmul.mubr.bf16.gmra.mrb[0].mxu0 %v2661
        %v2763 = vpop.f32.mrb[0].mxu0
        %v2764 = vadd.f32 0.0, %v2763
        %v2765 = vpop.f32.mrb[0].mxu0
        %v2766 = vpop.f32.mrb[0].mxu0
        %v2767 = vadd.f32 0.0, %v2766
        %v2768 = vpop.f32.mrb[0].mxu0
        %2769 = vmatprep.mubr.bf16.mxu0 0
        %2770 = vmatmul.mubr.bf16.gmra.mrb[0].mxu0 %v2662
        %v2771 = vpop.f32.mrb[0].mxu0
        %v2772 = vadd.f32 0.0, %v2771
        %v2773 = vpop.f32.mrb[0].mxu0
        %v2774 = vpop.f32.mrb[0].mxu0
        %v2775 = vadd.f32 0.0, %v2774
        %v2776 = vpop.f32.mrb[0].mxu0
        %2777 = vmatprep.mubr.bf16.mxu0 0
        %2778 = vmatmul.mubr.bf16.gmra.mrb[0].mxu0 %v2663
        %v2779 = vpop.f32.mrb[0].mxu0
        %v2780 = vadd.f32 0.0, %v2779
        %v2781 = vpop.f32.mrb[0].mxu0
        %v2782 = vpop.f32.mrb[0].mxu0
        %v2783 = vadd.f32 0.0, %v2782
        %v2784 = vpop.f32.mrb[0].mxu0
        %2785 = vmatprep.mubr.bf16.mxu0 0
        %2786 = vmatmul.mubr.bf16.gmra.mrb[0].mxu0 %v2664
        %v2787 = vpop.f32.mrb[0].mxu0
        %v2788 = vadd.f32 0.0, %v2787
        %v2789 = vpop.f32.mrb[0].mxu0
        %v2790 = vpop.f32.mrb[0].mxu0
        %v2791 = vadd.f32 0.0, %v2790
        %v2792 = vpop.f32.mrb[0].mxu0
        %2793 = vmatprep.mubr.bf16.mxu0 0
        %2794 = vmatmul.mubr.bf16.gmra.mrb[0].mxu0 %v2665
        %v2795 = vpop.f32.mrb[0].mxu0
        %v2796 = vadd.f32 0.0, %v2795
        %v2797 = vpop.f32.mrb[0].mxu0
        %v2798 = vpop.f32.mrb[0].mxu0
        %v2799 = vadd.f32 0.0, %v2798
        %v2800 = vpop.f32.mrb[0].mxu0
        %2801 = vmatprep.mubr.bf16.mxu0 0
        %2802 = vmatmul.mubr.bf16.gmra.mrb[0].mxu0 %v2666
        %v2803 = vpop.f32.mrb[0].mxu0
        %v2804 = vadd.f32 0.0, %v2803
        %v2805 = vpop.f32.mrb[0].mxu0
        %v2806 = vpop.f32.mrb[0].mxu0
        %v2807 = vadd.f32 0.0, %v2806
        %v2808 = vpop.f32.mrb[0].mxu0
        %2809 = vmatprep.mubr.bf16.mxu0 0
        %2810 = vmatmul.mubr.bf16.gmra.mrb[0].mxu0 %v2667
        %v2811 = vpop.f32.mrb[0].mxu0
        %v2812 = vadd.f32 0.0, %v2811
        %v2813 = vpop.f32.mrb[0].mxu0
        %v2814 = vpop.f32.mrb[0].mxu0
        %v2815 = vadd.f32 0.0, %v2814
        %v2816 = vpop.f32.mrb[0].mxu0
        %2817 = vmatprep.mubr.bf16.mxu0 0
        %2818 = vmatmul.mubr.bf16.gmra.mrb[0].mxu0 %v2668
        %v2819 = vpop.f32.mrb[0].mxu0
        %v2820 = vadd.f32 0.0, %v2819
        %v2821 = vpop.f32.mrb[0].mxu0
        %v2822 = vpop.f32.mrb[0].mxu0
        %v2823 = vadd.f32 0.0, %v2822
        %v2824 = vpop.f32.mrb[0].mxu0
        %2825 = vmatprep.mubr.bf16.mxu0 0
        %2826 = vmatmul.mubr.bf16.gmra.mrb[0].mxu0 %v2669
        %v2827 = vpop.f32.mrb[0].mxu0
        %v2828 = vadd.f32 0.0, %v2827
        %v2829 = vpop.f32.mrb[0].mxu0
        %v2830 = vpop.f32.mrb[0].mxu0
        %v2831 = vadd.f32 0.0, %v2830
        %v2832 = vpop.f32.mrb[0].mxu0
        %2833 = vmatprep.mubr.bf16.mxu0 0
        %2834 = vmatmul.mubr.bf16.gmra.mrb[0].mxu0 %v2670
        %v2835 = vpop.f32.mrb[0].mxu0
        %v2836 = vadd.f32 0.0, %v2835
        %v2837 = vpop.f32.mrb[0].mxu0
        %v2838 = vpop.f32.mrb[0].mxu0
        %v2839 = vadd.f32 0.0, %v2838
        %v2840 = vpop.f32.mrb[0].mxu0
        %2841 = vdwg.mxu0
        %v2842 = vadd.f32 %v2334, %v2764
        %v2843 = vadd.f32 %v2335, %v2767
        %v2844 = vadd.f32 %v2336, %v2772
        %v2845 = vadd.f32 %v2337, %v2775
        %v2846 = vadd.f32 %v2338, %v2780
        %v2847 = vadd.f32 %v2339, %v2783
        %v2848 = vadd.f32 %v2340, %v2788
        %v2849 = vadd.f32 %v2341, %v2791
        %v2850 = vadd.f32 %v2342, %v2796
        %v2851 = vadd.f32 %v2343, %v2799
        %v2852 = vadd.f32 %v2344, %v2804
        %v2853 = vadd.f32 %v2345, %v2807
        %v2854 = vadd.f32 %v2346, %v2812
        %v2855 = vadd.f32 %v2347, %v2815
        %v2856 = vadd.f32 %v2348, %v2820
        %v2857 = vadd.f32 %v2349, %v2823
        %v2858 = vadd.f32 %v2350, %v2828
        %v2859 = vadd.f32 %v2351, %v2831
        %v2860 = vadd.f32 %v2352, %v2836
        %v2861 = vadd.f32 %v2353, %v2839
        %v2862 = vld [vmem:[%s2075] sm:$0xe]
        %v2863 = vld [vmem:[%s2075 + $0xc] sm:$0xe]
        %v2864 = vld [vmem:[%s2075 + $0x18] sm:$0xe]
        %v2865 = vld [vmem:[%s2075 + $0x24] sm:$0xe]
        %v2866 = vld [vmem:[%s2075 + $0x30] sm:$0xe]
        %v2867 = vld [vmem:[%s2075 + $0x3c] sm:$0xe]
        %v2868 = vld [vmem:[%s2075 + $0x48] sm:$0xe]
        %v2869 = vld [vmem:[%s2075 + $0x54] sm:$0xe]
        %v2870 = vld [vmem:[%s2075 + $0x60] sm:$0xe]
        %v2871 = vld [vmem:[%s2075 + $0x6c] sm:$0xe]
        %v2902 = vrot.slane %v2862, 5
        %v2903 = vrot.slane %v2902, 4
        %v2904 = vrot.slane %v2355, 5
        %v2905 = vsel %vm1766, %v2903, %v2904
        %v2906 = vrot.slane %v2904, 4
        %v2907 = vrot.slane %v2356, 5
        %v2908 = vsel %vm1766, %v2906, %v2907
        %v2909 = vrot.slane %v2863, 5
        %v2910 = vrot.slane %v2909, 4
        %v2911 = vrot.slane %v2358, 5
        %v2912 = vsel %vm1766, %v2910, %v2911
        %v2913 = vrot.slane %v2911, 4
        %v2914 = vrot.slane %v2359, 5
        %v2915 = vsel %vm1766, %v2913, %v2914
        %v2916 = vrot.slane %v2864, 5
        %v2917 = vrot.slane %v2916, 4
        %v2918 = vrot.slane %v2361, 5
        %v2919 = vsel %vm1766, %v2917, %v2918
        %v2920 = vrot.slane %v2918, 4
        %v2921 = vrot.slane %v2362, 5
        %v2922 = vsel %vm1766, %v2920, %v2921
        %v2923 = vrot.slane %v2865, 5
        %v2924 = vrot.slane %v2923, 4
        %v2925 = vrot.slane %v2364, 5
        %v2926 = vsel %vm1766, %v2924, %v2925
        %v2927 = vrot.slane %v2925, 4
        %v2928 = vrot.slane %v2365, 5
        %v2929 = vsel %vm1766, %v2927, %v2928
        %v2930 = vrot.slane %v2866, 5
        %v2931 = vrot.slane %v2930, 4
        %v2932 = vrot.slane %v2367, 5
        %v2933 = vsel %vm1766, %v2931, %v2932
        %v2934 = vrot.slane %v2932, 4
        %v2935 = vrot.slane %v2368, 5
        %v2936 = vsel %vm1766, %v2934, %v2935
        %v2937 = vrot.slane %v2867, 5
        %v2938 = vrot.slane %v2937, 4
        %v2939 = vrot.slane %v2370, 5
        %v2940 = vsel %vm1766, %v2938, %v2939
        %v2941 = vrot.slane %v2939, 4
        %v2942 = vrot.slane %v2371, 5
        %v2943 = vsel %vm1766, %v2941, %v2942
        %v2944 = vrot.slane %v2868, 5
        %v2945 = vrot.slane %v2944, 4
        %v2946 = vrot.slane %v2373, 5
        %v2947 = vsel %vm1766, %v2945, %v2946
        %v2948 = vrot.slane %v2946, 4
        %v2949 = vrot.slane %v2374, 5
        %v2950 = vsel %vm1766, %v2948, %v2949
        %v2951 = vrot.slane %v2869, 5
        %v2952 = vrot.slane %v2951, 4
        %v2953 = vrot.slane %v2376, 5
        %v2954 = vsel %vm1766, %v2952, %v2953
        %v2955 = vrot.slane %v2953, 4
        %v2956 = vrot.slane %v2377, 5
        %v2957 = vsel %vm1766, %v2955, %v2956
        %v2958 = vrot.slane %v2870, 5
        %v2959 = vrot.slane %v2958, 4
        %v2960 = vrot.slane %v2379, 5
        %v2961 = vsel %vm1766, %v2959, %v2960
        %v2962 = vrot.slane %v2960, 4
        %v2963 = vrot.slane %v2380, 5
        %v2964 = vsel %vm1766, %v2962, %v2963
        %v2965 = vrot.slane %v2871, 5
        %v2966 = vrot.slane %v2965, 4
        %v2967 = vrot.slane %v2382, 5
        %v2968 = vsel %vm1766, %v2966, %v2967
        %v2969 = vrot.slane %v2967, 4
        %v2970 = vrot.slane %v2383, 5
        %v2971 = vsel %vm1766, %v2969, %v2970
        %s2972 = scalar_lea.vmem [#allocation10], 320
        %v2973 = vld [vmem:[%s2972] sm:$0xf]
        %v2974 = vld [vmem:[%s2972 + $0x4] sm:$0xf]
        %v2975 = vld [vmem:[%s2972 + $0x8] sm:$0xf]
        %v2976 = vld [vmem:[%s2972 + $0xc] sm:$0xf]
        %v2977 = vld [vmem:[%s2972 + $0x10] sm:$0xf]
        %v2978 = vld [vmem:[%s2972 + $0x14] sm:$0xf]
        %v2979 = vld [vmem:[%s2972 + $0x18] sm:$0xf]
        %v2980 = vld [vmem:[%s2972 + $0x1c] sm:$0xf]
        %v2981 = vld [vmem:[%s2972 + $0x20] sm:$0xf]
        %v2982 = vld [vmem:[%s2972 + $0x24] sm:$0xf]
        %v2983 = vld [vmem:[%s2972 + $0x28] sm:$0xf]
        %v2984 = vld [vmem:[%s2972 + $0x2c] sm:$0xf]
        %v2985 = vld [vmem:[%s2972 + $0x30] sm:$0xf]
        %v2986 = vld [vmem:[%s2972 + $0x34] sm:$0xf]
        %v2987 = vld [vmem:[%s2972 + $0x38] sm:$0xf]
        %v2988 = vld [vmem:[%s2972 + $0x3c] sm:$0xf]
        %v2989 = vunpack.c.l.b16 %v2905
        %v2990 = vunpack.c.l.b16 %v2908
        %v2991 = vunpack.c.l.b16 %v2912
        %v2992 = vunpack.c.l.b16 %v2915
        %v2993 = vunpack.c.l.b16 %v2919
        %v2994 = vunpack.c.l.b16 %v2922
        %v2995 = vunpack.c.l.b16 %v2926
        %v2996 = vunpack.c.l.b16 %v2929
        %v2997 = vunpack.c.l.b16 %v2933
        %v2998 = vunpack.c.l.b16 %v2936
        %v2999 = vunpack.c.l.b16 %v2940
        %v3000 = vunpack.c.l.b16 %v2943
        %v3001 = vunpack.c.l.b16 %v2947
        %v3002 = vunpack.c.l.b16 %v2950
        %v3003 = vunpack.c.l.b16 %v2954
        %v3004 = vunpack.c.l.b16 %v2957
        %v3005 = vunpack.c.l.b16 %v2961
        %v3006 = vunpack.c.l.b16 %v2964
        %v3007 = vunpack.c.l.b16 %v2968
        %v3008 = vunpack.c.l.b16 %v2971
        %v3009 = vpack.c.b16 %v2990, %v2989
        %v3010 = vpack.c.b16 %v2992, %v2991
        %v3011 = vpack.c.b16 %v2994, %v2993
        %v3012 = vpack.c.b16 %v2996, %v2995
        %v3013 = vpack.c.b16 %v2998, %v2997
        %v3014 = vpack.c.b16 %v3000, %v2999
        %v3015 = vpack.c.b16 %v3002, %v3001
        %v3016 = vpack.c.b16 %v3004, %v3003
        %v3017 = vpack.c.b16 %v3006, %v3005
        %v3018 = vpack.c.b16 %v3008, %v3007
        %v3045 = vunpack.c.l.b16 %v2973
        %v3046 = vunpack.c.l.b16 %v2974
        %v3047 = vunpack.c.l.b16 %v2975
        %v3048 = vunpack.c.l.b16 %v2976
        %v3049 = vunpack.c.l.b16 %v2977
        %v3050 = vunpack.c.l.b16 %v2978
        %v3051 = vunpack.c.l.b16 %v2979
        %v3052 = vunpack.c.l.b16 %v2980
        %v3053 = vunpack.c.l.b16 %v2981
        %v3054 = vunpack.c.l.b16 %v2982
        %v3055 = vunpack.c.l.b16 %v2983
        %v3056 = vunpack.c.l.b16 %v2984
        %v3057 = vunpack.c.l.b16 %v2985
        %v3058 = vunpack.c.l.b16 %v2986
        %v3059 = vunpack.c.l.b16 %v2987
        %v3060 = vunpack.c.l.b16 %v2988
        %v3061 = vpack.c.b16 %v3046, %v3045
        %v3062 = vpack.c.b16 %v3048, %v3047
        %v3063 = vpack.c.b16 %v3050, %v3049
        %v3064 = vpack.c.b16 %v3052, %v3051
        %v3065 = vpack.c.b16 %v3054, %v3053
        %v3066 = vpack.c.b16 %v3056, %v3055
        %v3067 = vpack.c.b16 %v3058, %v3057
        %v3068 = vpack.c.b16 %v3060, %v3059
        %3077 = vmatprep.subr.bf16.mxu0 0
        %3078 = vmatpush1.bf16.msra.mxu0 %v3061
        %3079 = vmatprep.subr.bf16.mxu0 0
        %3080 = vmatpush1.bf16.msra.mxu0 %v3062
        %3081 = vmatprep.subr.bf16.mxu0 0
        %3082 = vmatpush1.bf16.msra.mxu0 %v3063
        %3083 = vmatprep.subr.bf16.mxu0 0
        %3084 = vmatpush1.bf16.msra.mxu0 %v3064
        %3085 = vmatprep.subr.bf16.mxu0 0
        %3086 = vmatpush1.bf16.msra.mxu0 %v3065
        %3087 = vmatprep.subr.bf16.mxu0 0
        %3088 = vmatpush1.bf16.msra.mxu0 %v3066
        %3089 = vmatprep.subr.bf16.mxu0 0
        %3090 = vmatpush1.bf16.msra.mxu0 %v3067
        %3091 = vmatprep.subr.bf16.mxu0 0
        %3092 = vmatpush1.bf16.msra.mxu0 %v3068
        %3093 = vmatprep.subr.bf16.mxu0 0
        %3094 = vmatpush1.bf16.msra.mxu0 0
        %3095 = vmatprep.subr.bf16.mxu0 0
        %3096 = vmatpush1.bf16.msra.mxu0 0
        %3097 = vmatprep.subr.bf16.mxu0 0
        %3098 = vmatpush1.bf16.msra.mxu0 0
        %3099 = vmatprep.subr.bf16.mxu0 0
        %3100 = vmatpush1.bf16.msra.mxu0 0
        %3101 = vmatprep.subr.bf16.mxu0 0
        %3102 = vmatpush1.bf16.msra.mxu0 0
        %3103 = vmatprep.subr.bf16.mxu0 0
        %3104 = vmatpush1.bf16.msra.mxu0 0
        %3105 = vmatprep.subr.bf16.mxu0 0
        %3106 = vmatpush1.bf16.msra.mxu0 0
        %3107 = vmatprep.subr.bf16.mxu0 0
        %3108 = vmatpush1.bf16.msra.mxu0 0
        %3109 = vmatprep.mubr.bf16.mxu0 0
        %3110 = vmatmul.mubr.bf16.gmra.mrb[0].mxu0 %v3009
        %v3111 = vpop.f32.mrb[0].mxu0
        %v3112 = vadd.f32 0.0, %v3111
        %v3113 = vpop.f32.mrb[0].mxu0
        %v3114 = vpop.f32.mrb[0].mxu0
        %v3115 = vadd.f32 0.0, %v3114
        %v3116 = vpop.f32.mrb[0].mxu0
        %3117 = vmatprep.mubr.bf16.mxu0 0
        %3118 = vmatmul.mubr.bf16.gmra.mrb[0].mxu0 %v3010
        %v3119 = vpop.f32.mrb[0].mxu0
        %v3120 = vadd.f32 0.0, %v3119
        %v3121 = vpop.f32.mrb[0].mxu0
        %v3122 = vpop.f32.mrb[0].mxu0
        %v3123 = vadd.f32 0.0, %v3122
        %v3124 = vpop.f32.mrb[0].mxu0
        %3125 = vmatprep.mubr.bf16.mxu0 0
        %3126 = vmatmul.mubr.bf16.gmra.mrb[0].mxu0 %v3011
        %v3127 = vpop.f32.mrb[0].mxu0
        %v3128 = vadd.f32 0.0, %v3127
        %v3129 = vpop.f32.mrb[0].mxu0
        %v3130 = vpop.f32.mrb[0].mxu0
        %v3131 = vadd.f32 0.0, %v3130
        %v3132 = vpop.f32.mrb[0].mxu0
        %3133 = vmatprep.mubr.bf16.mxu0 0
        %3134 = vmatmul.mubr.bf16.gmra.mrb[0].mxu0 %v3012
        %v3135 = vpop.f32.mrb[0].mxu0
        %v3136 = vadd.f32 0.0, %v3135
        %v3137 = vpop.f32.mrb[0].mxu0
        %v3138 = vpop.f32.mrb[0].mxu0
        %v3139 = vadd.f32 0.0, %v3138
        %v3140 = vpop.f32.mrb[0].mxu0
        %3141 = vmatprep.mubr.bf16.mxu0 0
        %3142 = vmatmul.mubr.bf16.gmra.mrb[0].mxu0 %v3013
        %v3143 = vpop.f32.mrb[0].mxu0
        %v3144 = vadd.f32 0.0, %v3143
        %v3145 = vpop.f32.mrb[0].mxu0
        %v3146 = vpop.f32.mrb[0].mxu0
        %v3147 = vadd.f32 0.0, %v3146
        %v3148 = vpop.f32.mrb[0].mxu0
        %3149 = vmatprep.mubr.bf16.mxu0 0
        %3150 = vmatmul.mubr.bf16.gmra.mrb[0].mxu0 %v3014
        %v3151 = vpop.f32.mrb[0].mxu0
        %v3152 = vadd.f32 0.0, %v3151
        %v3153 = vpop.f32.mrb[0].mxu0
        %v3154 = vpop.f32.mrb[0].mxu0
        %v3155 = vadd.f32 0.0, %v3154
        %v3156 = vpop.f32.mrb[0].mxu0
        %3157 = vmatprep.mubr.bf16.mxu0 0
        %3158 = vmatmul.mubr.bf16.gmra.mrb[0].mxu0 %v3015
        %v3159 = vpop.f32.mrb[0].mxu0
        %v3160 = vadd.f32 0.0, %v3159
        %v3161 = vpop.f32.mrb[0].mxu0
        %v3162 = vpop.f32.mrb[0].mxu0
        %v3163 = vadd.f32 0.0, %v3162
        %v3164 = vpop.f32.mrb[0].mxu0
        %3165 = vmatprep.mubr.bf16.mxu0 0
        %3166 = vmatmul.mubr.bf16.gmra.mrb[0].mxu0 %v3016
        %v3167 = vpop.f32.mrb[0].mxu0
        %v3168 = vadd.f32 0.0, %v3167
        %v3169 = vpop.f32.mrb[0].mxu0
        %v3170 = vpop.f32.mrb[0].mxu0
        %v3171 = vadd.f32 0.0, %v3170
        %v3172 = vpop.f32.mrb[0].mxu0
        %3173 = vmatprep.mubr.bf16.mxu0 0
        %3174 = vmatmul.mubr.bf16.gmra.mrb[0].mxu0 %v3017
        %v3175 = vpop.f32.mrb[0].mxu0
        %v3176 = vadd.f32 0.0, %v3175
        %v3177 = vpop.f32.mrb[0].mxu0
        %v3178 = vpop.f32.mrb[0].mxu0
        %v3179 = vadd.f32 0.0, %v3178
        %v3180 = vpop.f32.mrb[0].mxu0
        %3181 = vmatprep.mubr.bf16.mxu0 0
        %3182 = vmatmul.mubr.bf16.gmra.mrb[0].mxu0 %v3018
        %v3183 = vpop.f32.mrb[0].mxu0
        %v3184 = vadd.f32 0.0, %v3183
        %v3185 = vpop.f32.mrb[0].mxu0
        %v3186 = vpop.f32.mrb[0].mxu0
        %v3187 = vadd.f32 0.0, %v3186
        %v3188 = vpop.f32.mrb[0].mxu0
        %3189 = vdwg.mxu0
        %v3190 = vadd.f32 %v2842, %v3112
        %v3191 = vadd.f32 %v2843, %v3115
        %v3192 = vadd.f32 %v2844, %v3120
        %v3193 = vadd.f32 %v2845, %v3123
        %v3194 = vadd.f32 %v2846, %v3128
        %v3195 = vadd.f32 %v2847, %v3131
        %v3196 = vadd.f32 %v2848, %v3136
        %v3197 = vadd.f32 %v2849, %v3139
        %v3198 = vadd.f32 %v2850, %v3144
        %v3199 = vadd.f32 %v2851, %v3147
        %v3200 = vadd.f32 %v2852, %v3152
        %v3201 = vadd.f32 %v2853, %v3155
        %v3202 = vadd.f32 %v2854, %v3160
        %v3203 = vadd.f32 %v2855, %v3163
        %v3204 = vadd.f32 %v2856, %v3168
        %v3205 = vadd.f32 %v2857, %v3171
        %v3206 = vadd.f32 %v2858, %v3176
        %v3207 = vadd.f32 %v2859, %v3179
        %v3208 = vadd.f32 %v2860, %v3184
        %v3209 = vadd.f32 %v2861, %v3187
        %v3210 = vld [vmem:[%s648] sm:$0xf]
        %v3211 = vld [vmem:[%s648 + $0x4] sm:$0xf]
        %v3212 = vld [vmem:[%s648 + $0xc] sm:$0xf]
        %v3213 = vld [vmem:[%s648 + $0x10] sm:$0xf]
        %v3214 = vld [vmem:[%s648 + $0x18] sm:$0xf]
        %v3215 = vld [vmem:[%s648 + $0x1c] sm:$0xf]
        %v3216 = vld [vmem:[%s648 + $0x24] sm:$0xf]
        %v3217 = vld [vmem:[%s648 + $0x28] sm:$0xf]
        %v3218 = vld [vmem:[%s648 + $0x30] sm:$0xf]
        %v3219 = vld [vmem:[%s648 + $0x34] sm:$0xf]
        %v3220 = vld [vmem:[%s648 + $0x3c] sm:$0xf]
        %v3221 = vld [vmem:[%s648 + $0x40] sm:$0xf]
        %v3222 = vld [vmem:[%s648 + $0x48] sm:$0xf]
        %v3223 = vld [vmem:[%s648 + $0x4c] sm:$0xf]
        %v3224 = vld [vmem:[%s648 + $0x54] sm:$0xf]
        %v3225 = vld [vmem:[%s648 + $0x58] sm:$0xf]
        %v3226 = vld [vmem:[%s648 + $0x60] sm:$0xf]
        %v3227 = vld [vmem:[%s648 + $0x64] sm:$0xf]
        %v3228 = vld [vmem:[%s648 + $0x6c] sm:$0xf]
        %v3229 = vld [vmem:[%s648 + $0x70] sm:$0xf]
        %s3230 = scalar_lea.vmem [#allocation10], 384
        %v3231 = vld [vmem:[%s3230] sm:$0xf]
        %v3232 = vld [vmem:[%s3230 + $0x4] sm:$0xf]
        %v3233 = vld [vmem:[%s3230 + $0x8] sm:$0xf]
        %v3234 = vld [vmem:[%s3230 + $0xc] sm:$0xf]
        %v3235 = vld [vmem:[%s3230 + $0x10] sm:$0xf]
        %v3236 = vld [vmem:[%s3230 + $0x14] sm:$0xf]
        %v3237 = vld [vmem:[%s3230 + $0x18] sm:$0xf]
        %v3238 = vld [vmem:[%s3230 + $0x1c] sm:$0xf]
        %v3239 = vld [vmem:[%s3230 + $0x20] sm:$0xf]
        %v3240 = vld [vmem:[%s3230 + $0x24] sm:$0xf]
        %v3241 = vld [vmem:[%s3230 + $0x28] sm:$0xf]
        %v3242 = vld [vmem:[%s3230 + $0x2c] sm:$0xf]
        %v3243 = vld [vmem:[%s3230 + $0x30] sm:$0xf]
        %v3244 = vld [vmem:[%s3230 + $0x34] sm:$0xf]
        %v3245 = vld [vmem:[%s3230 + $0x38] sm:$0xf]
        %v3246 = vld [vmem:[%s3230 + $0x3c] sm:$0xf]
        %v3267 = vunpack.c.l.b16 %v3210
        %v3268 = vunpack.c.l.b16 %v3211
        %v3269 = vunpack.c.l.b16 %v3212
        %v3270 = vunpack.c.l.b16 %v3213
        %v3271 = vunpack.c.l.b16 %v3214
        %v3272 = vunpack.c.l.b16 %v3215
        %v3273 = vunpack.c.l.b16 %v3216
        %v3274 = vunpack.c.l.b16 %v3217
        %v3275 = vunpack.c.l.b16 %v3218
        %v3276 = vunpack.c.l.b16 %v3219
        %v3277 = vunpack.c.l.b16 %v3220
        %v3278 = vunpack.c.l.b16 %v3221
        %v3279 = vunpack.c.l.b16 %v3222
        %v3280 = vunpack.c.l.b16 %v3223
        %v3281 = vunpack.c.l.b16 %v3224
        %v3282 = vunpack.c.l.b16 %v3225
        %v3283 = vunpack.c.l.b16 %v3226
        %v3284 = vunpack.c.l.b16 %v3227
        %v3285 = vunpack.c.l.b16 %v3228
        %v3286 = vunpack.c.l.b16 %v3229
        %v3287 = vpack.c.b16 %v3268, %v3267
        %v3288 = vpack.c.b16 %v3270, %v3269
        %v3289 = vpack.c.b16 %v3272, %v3271
        %v3290 = vpack.c.b16 %v3274, %v3273
        %v3291 = vpack.c.b16 %v3276, %v3275
        %v3292 = vpack.c.b16 %v3278, %v3277
        %v3293 = vpack.c.b16 %v3280, %v3279
        %v3294 = vpack.c.b16 %v3282, %v3281
        %v3295 = vpack.c.b16 %v3284, %v3283
        %v3296 = vpack.c.b16 %v3286, %v3285
        %v3323 = vunpack.c.l.b16 %v3231
        %v3324 = vunpack.c.l.b16 %v3232
        %v3325 = vunpack.c.l.b16 %v3233
        %v3326 = vunpack.c.l.b16 %v3234
        %v3327 = vunpack.c.l.b16 %v3235
        %v3328 = vunpack.c.l.b16 %v3236
        %v3329 = vunpack.c.l.b16 %v3237
        %v3330 = vunpack.c.l.b16 %v3238
        %v3331 = vunpack.c.l.b16 %v3239
        %v3332 = vunpack.c.l.b16 %v3240
        %v3333 = vunpack.c.l.b16 %v3241
        %v3334 = vunpack.c.l.b16 %v3242
        %v3335 = vunpack.c.l.b16 %v3243
        %v3336 = vunpack.c.l.b16 %v3244
        %v3337 = vunpack.c.l.b16 %v3245
        %v3338 = vunpack.c.l.b16 %v3246
        %v3339 = vpack.c.b16 %v3324, %v3323
        %v3340 = vpack.c.b16 %v3326, %v3325
        %v3341 = vpack.c.b16 %v3328, %v3327
        %v3342 = vpack.c.b16 %v3330, %v3329
        %v3343 = vpack.c.b16 %v3332, %v3331
        %v3344 = vpack.c.b16 %v3334, %v3333
        %v3345 = vpack.c.b16 %v3336, %v3335
        %v3346 = vpack.c.b16 %v3338, %v3337
        %3355 = vmatprep.subr.bf16.mxu0 0
        %3356 = vmatpush1.bf16.msra.mxu0 %v3339
        %3357 = vmatprep.subr.bf16.mxu0 0
        %3358 = vmatpush1.bf16.msra.mxu0 %v3340
        %3359 = vmatprep.subr.bf16.mxu0 0
        %3360 = vmatpush1.bf16.msra.mxu0 %v3341
        %3361 = vmatprep.subr.bf16.mxu0 0
        %3362 = vmatpush1.bf16.msra.mxu0 %v3342
        %3363 = vmatprep.subr.bf16.mxu0 0
        %3364 = vmatpush1.bf16.msra.mxu0 %v3343
        %3365 = vmatprep.subr.bf16.mxu0 0
        %3366 = vmatpush1.bf16.msra.mxu0 %v3344
        %3367 = vmatprep.subr.bf16.mxu0 0
        %3368 = vmatpush1.bf16.msra.mxu0 %v3345
        %3369 = vmatprep.subr.bf16.mxu0 0
        %3370 = vmatpush1.bf16.msra.mxu0 %v3346
        %3371 = vmatprep.subr.bf16.mxu0 0
        %3372 = vmatpush1.bf16.msra.mxu0 0
        %3373 = vmatprep.subr.bf16.mxu0 0
        %3374 = vmatpush1.bf16.msra.mxu0 0
        %3375 = vmatprep.subr.bf16.mxu0 0
        %3376 = vmatpush1.bf16.msra.mxu0 0
        %3377 = vmatprep.subr.bf16.mxu0 0
        %3378 = vmatpush1.bf16.msra.mxu0 0
        %3379 = vmatprep.subr.bf16.mxu0 0
        %3380 = vmatpush1.bf16.msra.mxu0 0
        %3381 = vmatprep.subr.bf16.mxu0 0
        %3382 = vmatpush1.bf16.msra.mxu0 0
        %3383 = vmatprep.subr.bf16.mxu0 0
        %3384 = vmatpush1.bf16.msra.mxu0 0
        %3385 = vmatprep.subr.bf16.mxu0 0
        %3386 = vmatpush1.bf16.msra.mxu0 0
        %3387 = vmatprep.mubr.bf16.mxu0 0
        %3388 = vmatmul.mubr.bf16.gmra.mrb[0].mxu0 %v3287
        %v3389 = vpop.f32.mrb[0].mxu0
        %v3390 = vadd.f32 0.0, %v3389
        %v3391 = vpop.f32.mrb[0].mxu0
        %v3392 = vpop.f32.mrb[0].mxu0
        %v3393 = vadd.f32 0.0, %v3392
        %v3394 = vpop.f32.mrb[0].mxu0
        %3395 = vmatprep.mubr.bf16.mxu0 0
        %3396 = vmatmul.mubr.bf16.gmra.mrb[0].mxu0 %v3288
        %v3397 = vpop.f32.mrb[0].mxu0
        %v3398 = vadd.f32 0.0, %v3397
        %v3399 = vpop.f32.mrb[0].mxu0
        %v3400 = vpop.f32.mrb[0].mxu0
        %v3401 = vadd.f32 0.0, %v3400
        %v3402 = vpop.f32.mrb[0].mxu0
        %3403 = vmatprep.mubr.bf16.mxu0 0
        %3404 = vmatmul.mubr.bf16.gmra.mrb[0].mxu0 %v3289
        %v3405 = vpop.f32.mrb[0].mxu0
        %v3406 = vadd.f32 0.0, %v3405
        %v3407 = vpop.f32.mrb[0].mxu0
        %v3408 = vpop.f32.mrb[0].mxu0
        %v3409 = vadd.f32 0.0, %v3408
        %v3410 = vpop.f32.mrb[0].mxu0
        %3411 = vmatprep.mubr.bf16.mxu0 0
        %3412 = vmatmul.mubr.bf16.gmra.mrb[0].mxu0 %v3290
        %v3413 = vpop.f32.mrb[0].mxu0
        %v3414 = vadd.f32 0.0, %v3413
        %v3415 = vpop.f32.mrb[0].mxu0
        %v3416 = vpop.f32.mrb[0].mxu0
        %v3417 = vadd.f32 0.0, %v3416
        %v3418 = vpop.f32.mrb[0].mxu0
        %3419 = vmatprep.mubr.bf16.mxu0 0
        %3420 = vmatmul.mubr.bf16.gmra.mrb[0].mxu0 %v3291
        %v3421 = vpop.f32.mrb[0].mxu0
        %v3422 = vadd.f32 0.0, %v3421
        %v3423 = vpop.f32.mrb[0].mxu0
        %v3424 = vpop.f32.mrb[0].mxu0
        %v3425 = vadd.f32 0.0, %v3424
        %v3426 = vpop.f32.mrb[0].mxu0
        %3427 = vmatprep.mubr.bf16.mxu0 0
        %3428 = vmatmul.mubr.bf16.gmra.mrb[0].mxu0 %v3292
        %v3429 = vpop.f32.mrb[0].mxu0
        %v3430 = vadd.f32 0.0, %v3429
        %v3431 = vpop.f32.mrb[0].mxu0
        %v3432 = vpop.f32.mrb[0].mxu0
        %v3433 = vadd.f32 0.0, %v3432
        %v3434 = vpop.f32.mrb[0].mxu0
        %3435 = vmatprep.mubr.bf16.mxu0 0
        %3436 = vmatmul.mubr.bf16.gmra.mrb[0].mxu0 %v3293
        %v3437 = vpop.f32.mrb[0].mxu0
        %v3438 = vadd.f32 0.0, %v3437
        %v3439 = vpop.f32.mrb[0].mxu0
        %v3440 = vpop.f32.mrb[0].mxu0
        %v3441 = vadd.f32 0.0, %v3440
        %v3442 = vpop.f32.mrb[0].mxu0
        %3443 = vmatprep.mubr.bf16.mxu0 0
        %3444 = vmatmul.mubr.bf16.gmra.mrb[0].mxu0 %v3294
        %v3445 = vpop.f32.mrb[0].mxu0
        %v3446 = vadd.f32 0.0, %v3445
        %v3447 = vpop.f32.mrb[0].mxu0
        %v3448 = vpop.f32.mrb[0].mxu0
        %v3449 = vadd.f32 0.0, %v3448
        %v3450 = vpop.f32.mrb[0].mxu0
        %3451 = vmatprep.mubr.bf16.mxu0 0
        %3452 = vmatmul.mubr.bf16.gmra.mrb[0].mxu0 %v3295
        %v3453 = vpop.f32.mrb[0].mxu0
        %v3454 = vadd.f32 0.0, %v3453
        %v3455 = vpop.f32.mrb[0].mxu0
        %v3456 = vpop.f32.mrb[0].mxu0
        %v3457 = vadd.f32 0.0, %v3456
        %v3458 = vpop.f32.mrb[0].mxu0
        %3459 = vmatprep.mubr.bf16.mxu0 0
        %3460 = vmatmul.mubr.bf16.gmra.mrb[0].mxu0 %v3296
        %v3461 = vpop.f32.mrb[0].mxu0
        %v3462 = vadd.f32 0.0, %v3461
        %v3463 = vpop.f32.mrb[0].mxu0
        %v3464 = vpop.f32.mrb[0].mxu0
        %v3465 = vadd.f32 0.0, %v3464
        %v3466 = vpop.f32.mrb[0].mxu0
        %3467 = vdwg.mxu0
        %v3468 = vadd.f32 %v3190, %v3390
        %v3469 = vadd.f32 %v3191, %v3393
        %v3470 = vadd.f32 %v3192, %v3398
        %v3471 = vadd.f32 %v3193, %v3401
        %v3472 = vadd.f32 %v3194, %v3406
        %v3473 = vadd.f32 %v3195, %v3409
        %v3474 = vadd.f32 %v3196, %v3414
        %v3475 = vadd.f32 %v3197, %v3417
        %v3476 = vadd.f32 %v3198, %v3422
        %v3477 = vadd.f32 %v3199, %v3425
        %v3478 = vadd.f32 %v3200, %v3430
        %v3479 = vadd.f32 %v3201, %v3433
        %v3480 = vadd.f32 %v3202, %v3438
        %v3481 = vadd.f32 %v3203, %v3441
        %v3482 = vadd.f32 %v3204, %v3446
        %v3483 = vadd.f32 %v3205, %v3449
        %v3484 = vadd.f32 %v3206, %v3454
        %v3485 = vadd.f32 %v3207, %v3457
        %v3486 = vadd.f32 %v3208, %v3462
        %v3487 = vadd.f32 %v3209, %v3465
        %v3488 = vld [vmem:[%s648] sm:$0xf]
        %v3489 = vld [vmem:[%s648 + $0x4] sm:$0xf]
        %v3490 = vld [vmem:[%s648 + $0x8] sm:$0x1]
        %v3491 = vld [vmem:[%s648 + $0xc] sm:$0xf]
        %v3492 = vld [vmem:[%s648 + $0x10] sm:$0xf]
        %v3493 = vld [vmem:[%s648 + $0x14] sm:$0x1]
        %v3494 = vld [vmem:[%s648 + $0x18] sm:$0xf]
        %v3495 = vld [vmem:[%s648 + $0x1c] sm:$0xf]
        %v3496 = vld [vmem:[%s648 + $0x20] sm:$0x1]
        %v3497 = vld [vmem:[%s648 + $0x24] sm:$0xf]
        %v3498 = vld [vmem:[%s648 + $0x28] sm:$0xf]
        %v3499 = vld [vmem:[%s648 + $0x2c] sm:$0x1]
        %v3500 = vld [vmem:[%s648 + $0x30] sm:$0xf]
        %v3501 = vld [vmem:[%s648 + $0x34] sm:$0xf]
        %v3502 = vld [vmem:[%s648 + $0x38] sm:$0x1]
        %v3503 = vld [vmem:[%s648 + $0x3c] sm:$0xf]
        %v3504 = vld [vmem:[%s648 + $0x40] sm:$0xf]
        %v3505 = vld [vmem:[%s648 + $0x44] sm:$0x1]
        %v3506 = vld [vmem:[%s648 + $0x48] sm:$0xf]
        %v3507 = vld [vmem:[%s648 + $0x4c] sm:$0xf]
        %v3508 = vld [vmem:[%s648 + $0x50] sm:$0x1]
        %v3509 = vld [vmem:[%s648 + $0x54] sm:$0xf]
        %v3510 = vld [vmem:[%s648 + $0x58] sm:$0xf]
        %v3511 = vld [vmem:[%s648 + $0x5c] sm:$0x1]
        %v3512 = vld [vmem:[%s648 + $0x60] sm:$0xf]
        %v3513 = vld [vmem:[%s648 + $0x64] sm:$0xf]
        %v3514 = vld [vmem:[%s648 + $0x68] sm:$0x1]
        %v3515 = vld [vmem:[%s648 + $0x6c] sm:$0xf]
        %v3516 = vld [vmem:[%s648 + $0x70] sm:$0xf]
        %v3517 = vld [vmem:[%s648 + $0x74] sm:$0x1]
        %v3519 = vshrl.u32 %v3488, 16
        %v3521 = vrot.slane %v3519, 4
        %v3522 = vshll.u32 %v3488, 16
        %v3524 = vrot.slane %v3522, 5
        %v3525 = vor.u32 %v3521, %v3524
        %v3526 = vrot.slane %v3525, 4
        %v3528 = vshll.u32 %v3489, 16
        %v3530 = vrot.slane %v3528, 5
        %v3531 = vsel %vm1245, %v3526, %v3530
        %v3532 = vshrl.u32 %v3489, 16
        %v3534 = vrot.slane %v3532, 4
        %v3535 = vor.u32 %v3534, %v3530
        %v3536 = vrot.slane %v3535, 4
        %v3538 = vshll.u32 %v3490, 16
        %v3540 = vrot.slane %v3538, 5
        %v3541 = vsel %vm1245, %v3536, %v3540
        %v3543 = vshrl.u32 %v3491, 16
        %v3545 = vrot.slane %v3543, 4
        %v3546 = vshll.u32 %v3491, 16
        %v3548 = vrot.slane %v3546, 5
        %v3549 = vor.u32 %v3545, %v3548
        %v3550 = vrot.slane %v3549, 4
        %v3552 = vshll.u32 %v3492, 16
        %v3554 = vrot.slane %v3552, 5
        %v3555 = vsel %vm1245, %v3550, %v3554
        %v3556 = vshrl.u32 %v3492, 16
        %v3558 = vrot.slane %v3556, 4
        %v3559 = vor.u32 %v3558, %v3554
        %v3560 = vrot.slane %v3559, 4
        %v3562 = vshll.u32 %v3493, 16
        %v3564 = vrot.slane %v3562, 5
        %v3565 = vsel %vm1245, %v3560, %v3564
        %v3567 = vshrl.u32 %v3494, 16
        %v3569 = vrot.slane %v3567, 4
        %v3570 = vshll.u32 %v3494, 16
        %v3572 = vrot.slane %v3570, 5
        %v3573 = vor.u32 %v3569, %v3572
        %v3574 = vrot.slane %v3573, 4
        %v3576 = vshll.u32 %v3495, 16
        %v3578 = vrot.slane %v3576, 5
        %v3579 = vsel %vm1245, %v3574, %v3578
        %v3580 = vshrl.u32 %v3495, 16
        %v3582 = vrot.slane %v3580, 4
        %v3583 = vor.u32 %v3582, %v3578
        %v3584 = vrot.slane %v3583, 4
        %v3586 = vshll.u32 %v3496, 16
        %v3588 = vrot.slane %v3586, 5
        %v3589 = vsel %vm1245, %v3584, %v3588
        %v3591 = vshrl.u32 %v3497, 16
        %v3593 = vrot.slane %v3591, 4
        %v3594 = vshll.u32 %v3497, 16
        %v3596 = vrot.slane %v3594, 5
        %v3597 = vor.u32 %v3593, %v3596
        %v3598 = vrot.slane %v3597, 4
        %v3600 = vshll.u32 %v3498, 16
        %v3602 = vrot.slane %v3600, 5
        %v3603 = vsel %vm1245, %v3598, %v3602
        %v3604 = vshrl.u32 %v3498, 16
        %v3606 = vrot.slane %v3604, 4
        %v3607 = vor.u32 %v3606, %v3602
        %v3608 = vrot.slane %v3607, 4
        %v3610 = vshll.u32 %v3499, 16
        %v3612 = vrot.slane %v3610, 5
        %v3613 = vsel %vm1245, %v3608, %v3612
        %v3615 = vshrl.u32 %v3500, 16
        %v3617 = vrot.slane %v3615, 4
        %v3618 = vshll.u32 %v3500, 16
        %v3620 = vrot.slane %v3618, 5
        %v3621 = vor.u32 %v3617, %v3620
        %v3622 = vrot.slane %v3621, 4
        %v3624 = vshll.u32 %v3501, 16
        %v3626 = vrot.slane %v3624, 5
        %v3627 = vsel %vm1245, %v3622, %v3626
        %v3628 = vshrl.u32 %v3501, 16
        %v3630 = vrot.slane %v3628, 4
        %v3631 = vor.u32 %v3630, %v3626
        %v3632 = vrot.slane %v3631, 4
        %v3634 = vshll.u32 %v3502, 16
        %v3636 = vrot.slane %v3634, 5
        %v3637 = vsel %vm1245, %v3632, %v3636
        %v3639 = vshrl.u32 %v3503, 16
        %v3641 = vrot.slane %v3639, 4
        %v3642 = vshll.u32 %v3503, 16
        %v3644 = vrot.slane %v3642, 5
        %v3645 = vor.u32 %v3641, %v3644
        %v3646 = vrot.slane %v3645, 4
        %v3648 = vshll.u32 %v3504, 16
        %v3650 = vrot.slane %v3648, 5
        %v3651 = vsel %vm1245, %v3646, %v3650
        %v3652 = vshrl.u32 %v3504, 16
        %v3654 = vrot.slane %v3652, 4
        %v3655 = vor.u32 %v3654, %v3650
        %v3656 = vrot.slane %v3655, 4
        %v3658 = vshll.u32 %v3505, 16
        %v3660 = vrot.slane %v3658, 5
        %v3661 = vsel %vm1245, %v3656, %v3660
        %v3663 = vshrl.u32 %v3506, 16
        %v3665 = vrot.slane %v3663, 4
        %v3666 = vshll.u32 %v3506, 16
        %v3668 = vrot.slane %v3666, 5
        %v3669 = vor.u32 %v3665, %v3668
        %v3670 = vrot.slane %v3669, 4
        %v3672 = vshll.u32 %v3507, 16
        %v3674 = vrot.slane %v3672, 5
        %v3675 = vsel %vm1245, %v3670, %v3674
        %v3676 = vshrl.u32 %v3507, 16
        %v3678 = vrot.slane %v3676, 4
        %v3679 = vor.u32 %v3678, %v3674
        %v3680 = vrot.slane %v3679, 4
        %v3682 = vshll.u32 %v3508, 16
        %v3684 = vrot.slane %v3682, 5
        %v3685 = vsel %vm1245, %v3680, %v3684
        %v3687 = vshrl.u32 %v3509, 16
        %v3689 = vrot.slane %v3687, 4
        %v3690 = vshll.u32 %v3509, 16
        %v3692 = vrot.slane %v3690, 5
        %v3693 = vor.u32 %v3689, %v3692
        %v3694 = vrot.slane %v3693, 4
        %v3696 = vshll.u32 %v3510, 16
        %v3698 = vrot.slane %v3696, 5
        %v3699 = vsel %vm1245, %v3694, %v3698
        %v3700 = vshrl.u32 %v3510, 16
        %v3702 = vrot.slane %v3700, 4
        %v3703 = vor.u32 %v3702, %v3698
        %v3704 = vrot.slane %v3703, 4
        %v3706 = vshll.u32 %v3511, 16
        %v3708 = vrot.slane %v3706, 5
        %v3709 = vsel %vm1245, %v3704, %v3708
        %v3711 = vshrl.u32 %v3512, 16
        %v3713 = vrot.slane %v3711, 4
        %v3714 = vshll.u32 %v3512, 16
        %v3716 = vrot.slane %v3714, 5
        %v3717 = vor.u32 %v3713, %v3716
        %v3718 = vrot.slane %v3717, 4
        %v3720 = vshll.u32 %v3513, 16
        %v3722 = vrot.slane %v3720, 5
        %v3723 = vsel %vm1245, %v3718, %v3722
        %v3724 = vshrl.u32 %v3513, 16
        %v3726 = vrot.slane %v3724, 4
        %v3727 = vor.u32 %v3726, %v3722
        %v3728 = vrot.slane %v3727, 4
        %v3730 = vshll.u32 %v3514, 16
        %v3732 = vrot.slane %v3730, 5
        %v3733 = vsel %vm1245, %v3728, %v3732
        %v3735 = vshrl.u32 %v3515, 16
        %v3737 = vrot.slane %v3735, 4
        %v3738 = vshll.u32 %v3515, 16
        %v3740 = vrot.slane %v3738, 5
        %v3741 = vor.u32 %v3737, %v3740
        %v3742 = vrot.slane %v3741, 4
        %v3744 = vshll.u32 %v3516, 16
        %v3746 = vrot.slane %v3744, 5
        %v3747 = vsel %vm1245, %v3742, %v3746
        %v3748 = vshrl.u32 %v3516, 16
        %v3750 = vrot.slane %v3748, 4
        %v3751 = vor.u32 %v3750, %v3746
        %v3752 = vrot.slane %v3751, 4
        %v3754 = vshll.u32 %v3517, 16
        %v3756 = vrot.slane %v3754, 5
        %v3757 = vsel %vm1245, %v3752, %v3756
        %s3758 = scalar_lea.vmem [#allocation10], 448
        %v3759 = vld [vmem:[%s3758] sm:$0xf]
        %v3760 = vld [vmem:[%s3758 + $0x4] sm:$0xf]
        %v3761 = vld [vmem:[%s3758 + $0x8] sm:$0xf]
        %v3762 = vld [vmem:[%s3758 + $0xc] sm:$0xf]
        %v3763 = vld [vmem:[%s3758 + $0x10] sm:$0xf]
        %v3764 = vld [vmem:[%s3758 + $0x14] sm:$0xf]
        %v3765 = vld [vmem:[%s3758 + $0x18] sm:$0xf]
        %v3766 = vld [vmem:[%s3758 + $0x1c] sm:$0xf]
        %v3767 = vld [vmem:[%s3758 + $0x20] sm:$0xf]
        %v3768 = vld [vmem:[%s3758 + $0x24] sm:$0xf]
        %v3769 = vld [vmem:[%s3758 + $0x28] sm:$0xf]
        %v3770 = vld [vmem:[%s3758 + $0x2c] sm:$0xf]
        %v3771 = vld [vmem:[%s3758 + $0x30] sm:$0xf]
        %v3772 = vld [vmem:[%s3758 + $0x34] sm:$0xf]
        %v3773 = vld [vmem:[%s3758 + $0x38] sm:$0xf]
        %v3774 = vld [vmem:[%s3758 + $0x3c] sm:$0xf]
        %v3775 = vunpack.c.l.b16 %v3531
        %v3776 = vunpack.c.l.b16 %v3541
        %v3777 = vunpack.c.l.b16 %v3555
        %v3778 = vunpack.c.l.b16 %v3565
        %v3779 = vunpack.c.l.b16 %v3579
        %v3780 = vunpack.c.l.b16 %v3589
        %v3781 = vunpack.c.l.b16 %v3603
        %v3782 = vunpack.c.l.b16 %v3613
        %v3783 = vunpack.c.l.b16 %v3627
        %v3784 = vunpack.c.l.b16 %v3637
        %v3785 = vunpack.c.l.b16 %v3651
        %v3786 = vunpack.c.l.b16 %v3661
        %v3787 = vunpack.c.l.b16 %v3675
        %v3788 = vunpack.c.l.b16 %v3685
        %v3789 = vunpack.c.l.b16 %v3699
        %v3790 = vunpack.c.l.b16 %v3709
        %v3791 = vunpack.c.l.b16 %v3723
        %v3792 = vunpack.c.l.b16 %v3733
        %v3793 = vunpack.c.l.b16 %v3747
        %v3794 = vunpack.c.l.b16 %v3757
        %v3795 = vpack.c.b16 %v3776, %v3775
        %v3796 = vpack.c.b16 %v3778, %v3777
        %v3797 = vpack.c.b16 %v3780, %v3779
        %v3798 = vpack.c.b16 %v3782, %v3781
        %v3799 = vpack.c.b16 %v3784, %v3783
        %v3800 = vpack.c.b16 %v3786, %v3785
        %v3801 = vpack.c.b16 %v3788, %v3787
        %v3802 = vpack.c.b16 %v3790, %v3789
        %v3803 = vpack.c.b16 %v3792, %v3791
        %v3804 = vpack.c.b16 %v3794, %v3793
        %v3831 = vunpack.c.l.b16 %v3759
        %v3832 = vunpack.c.l.b16 %v3760
        %v3833 = vunpack.c.l.b16 %v3761
        %v3834 = vunpack.c.l.b16 %v3762
        %v3835 = vunpack.c.l.b16 %v3763
        %v3836 = vunpack.c.l.b16 %v3764
        %v3837 = vunpack.c.l.b16 %v3765
        %v3838 = vunpack.c.l.b16 %v3766
        %v3839 = vunpack.c.l.b16 %v3767
        %v3840 = vunpack.c.l.b16 %v3768
        %v3841 = vunpack.c.l.b16 %v3769
        %v3842 = vunpack.c.l.b16 %v3770
        %v3843 = vunpack.c.l.b16 %v3771
        %v3844 = vunpack.c.l.b16 %v3772
        %v3845 = vunpack.c.l.b16 %v3773
        %v3846 = vunpack.c.l.b16 %v3774
        %v3847 = vpack.c.b16 %v3832, %v3831
        %v3848 = vpack.c.b16 %v3834, %v3833
        %v3849 = vpack.c.b16 %v3836, %v3835
        %v3850 = vpack.c.b16 %v3838, %v3837
        %v3851 = vpack.c.b16 %v3840, %v3839
        %v3852 = vpack.c.b16 %v3842, %v3841
        %v3853 = vpack.c.b16 %v3844, %v3843
        %v3854 = vpack.c.b16 %v3846, %v3845
        %3863 = vmatprep.subr.bf16.mxu0 0
        %3864 = vmatpush1.bf16.msra.mxu0 %v3847
        %3865 = vmatprep.subr.bf16.mxu0 0
        %3866 = vmatpush1.bf16.msra.mxu0 %v3848
        %3867 = vmatprep.subr.bf16.mxu0 0
        %3868 = vmatpush1.bf16.msra.mxu0 %v3849
        %3869 = vmatprep.subr.bf16.mxu0 0
        %3870 = vmatpush1.bf16.msra.mxu0 %v3850
        %3871 = vmatprep.subr.bf16.mxu0 0
        %3872 = vmatpush1.bf16.msra.mxu0 %v3851
        %3873 = vmatprep.subr.bf16.mxu0 0
        %3874 = vmatpush1.bf16.msra.mxu0 %v3852
        %3875 = vmatprep.subr.bf16.mxu0 0
        %3876 = vmatpush1.bf16.msra.mxu0 %v3853
        %3877 = vmatprep.subr.bf16.mxu0 0
        %3878 = vmatpush1.bf16.msra.mxu0 %v3854
        %3879 = vmatprep.subr.bf16.mxu0 0
        %3880 = vmatpush1.bf16.msra.mxu0 0
        %3881 = vmatprep.subr.bf16.mxu0 0
        %3882 = vmatpush1.bf16.msra.mxu0 0
        %3883 = vmatprep.subr.bf16.mxu0 0
        %3884 = vmatpush1.bf16.msra.mxu0 0
        %3885 = vmatprep.subr.bf16.mxu0 0
        %3886 = vmatpush1.bf16.msra.mxu0 0
        %3887 = vmatprep.subr.bf16.mxu0 0
        %3888 = vmatpush1.bf16.msra.mxu0 0
        %3889 = vmatprep.subr.bf16.mxu0 0
        %3890 = vmatpush1.bf16.msra.mxu0 0
        %3891 = vmatprep.subr.bf16.mxu0 0
        %3892 = vmatpush1.bf16.msra.mxu0 0
        %3893 = vmatprep.subr.bf16.mxu0 0
        %3894 = vmatpush1.bf16.msra.mxu0 0
        %3895 = vmatprep.mubr.bf16.mxu0 0
        %3896 = vmatmul.mubr.bf16.gmra.mrb[0].mxu0 %v3795
        %v3897 = vpop.f32.mrb[0].mxu0
        %v3898 = vadd.f32 0.0, %v3897
        %v3899 = vpop.f32.mrb[0].mxu0
        %v3900 = vpop.f32.mrb[0].mxu0
        %v3901 = vadd.f32 0.0, %v3900
        %v3902 = vpop.f32.mrb[0].mxu0
        %3903 = vmatprep.mubr.bf16.mxu0 0
        %3904 = vmatmul.mubr.bf16.gmra.mrb[0].mxu0 %v3796
        %v3905 = vpop.f32.mrb[0].mxu0
        %v3906 = vadd.f32 0.0, %v3905
        %v3907 = vpop.f32.mrb[0].mxu0
        %v3908 = vpop.f32.mrb[0].mxu0
        %v3909 = vadd.f32 0.0, %v3908
        %v3910 = vpop.f32.mrb[0].mxu0
        %3911 = vmatprep.mubr.bf16.mxu0 0
        %3912 = vmatmul.mubr.bf16.gmra.mrb[0].mxu0 %v3797
        %v3913 = vpop.f32.mrb[0].mxu0
        %v3914 = vadd.f32 0.0, %v3913
        %v3915 = vpop.f32.mrb[0].mxu0
        %v3916 = vpop.f32.mrb[0].mxu0
        %v3917 = vadd.f32 0.0, %v3916
        %v3918 = vpop.f32.mrb[0].mxu0
        %3919 = vmatprep.mubr.bf16.mxu0 0
        %3920 = vmatmul.mubr.bf16.gmra.mrb[0].mxu0 %v3798
        %v3921 = vpop.f32.mrb[0].mxu0
        %v3922 = vadd.f32 0.0, %v3921
        %v3923 = vpop.f32.mrb[0].mxu0
        %v3924 = vpop.f32.mrb[0].mxu0
        %v3925 = vadd.f32 0.0, %v3924
        %v3926 = vpop.f32.mrb[0].mxu0
        %3927 = vmatprep.mubr.bf16.mxu0 0
        %3928 = vmatmul.mubr.bf16.gmra.mrb[0].mxu0 %v3799
        %v3929 = vpop.f32.mrb[0].mxu0
        %v3930 = vadd.f32 0.0, %v3929
        %v3931 = vpop.f32.mrb[0].mxu0
        %v3932 = vpop.f32.mrb[0].mxu0
        %v3933 = vadd.f32 0.0, %v3932
        %v3934 = vpop.f32.mrb[0].mxu0
        %3935 = vmatprep.mubr.bf16.mxu0 0
        %3936 = vmatmul.mubr.bf16.gmra.mrb[0].mxu0 %v3800
        %v3937 = vpop.f32.mrb[0].mxu0
        %v3938 = vadd.f32 0.0, %v3937
        %v3939 = vpop.f32.mrb[0].mxu0
        %v3940 = vpop.f32.mrb[0].mxu0
        %v3941 = vadd.f32 0.0, %v3940
        %v3942 = vpop.f32.mrb[0].mxu0
        %3943 = vmatprep.mubr.bf16.mxu0 0
        %3944 = vmatmul.mubr.bf16.gmra.mrb[0].mxu0 %v3801
        %v3945 = vpop.f32.mrb[0].mxu0
        %v3946 = vadd.f32 0.0, %v3945
        %v3947 = vpop.f32.mrb[0].mxu0
        %v3948 = vpop.f32.mrb[0].mxu0
        %v3949 = vadd.f32 0.0, %v3948
        %v3950 = vpop.f32.mrb[0].mxu0
        %3951 = vmatprep.mubr.bf16.mxu0 0
        %3952 = vmatmul.mubr.bf16.gmra.mrb[0].mxu0 %v3802
        %v3953 = vpop.f32.mrb[0].mxu0
        %v3954 = vadd.f32 0.0, %v3953
        %v3955 = vpop.f32.mrb[0].mxu0
        %v3956 = vpop.f32.mrb[0].mxu0
        %v3957 = vadd.f32 0.0, %v3956
        %v3958 = vpop.f32.mrb[0].mxu0
        %3959 = vmatprep.mubr.bf16.mxu0 0
        %3960 = vmatmul.mubr.bf16.gmra.mrb[0].mxu0 %v3803
        %v3961 = vpop.f32.mrb[0].mxu0
        %v3962 = vadd.f32 0.0, %v3961
        %v3963 = vpop.f32.mrb[0].mxu0
        %v3964 = vpop.f32.mrb[0].mxu0
        %v3965 = vadd.f32 0.0, %v3964
        %v3966 = vpop.f32.mrb[0].mxu0
        %3967 = vmatprep.mubr.bf16.mxu0 0
        %3968 = vmatmul.mubr.bf16.gmra.mrb[0].mxu0 %v3804
        %v3969 = vpop.f32.mrb[0].mxu0
        %v3970 = vadd.f32 0.0, %v3969
        %v3971 = vpop.f32.mrb[0].mxu0
        %v3972 = vpop.f32.mrb[0].mxu0
        %v3973 = vadd.f32 0.0, %v3972
        %v3974 = vpop.f32.mrb[0].mxu0
        %3975 = vdwg.mxu0
        %v3976 = vadd.f32 %v3468, %v3898
        %v3977 = vadd.f32 %v3469, %v3901
        %v3978 = vadd.f32 %v3470, %v3906
        %v3979 = vadd.f32 %v3471, %v3909
        %v3980 = vadd.f32 %v3472, %v3914
        %v3981 = vadd.f32 %v3473, %v3917
        %v3982 = vadd.f32 %v3474, %v3922
        %v3983 = vadd.f32 %v3475, %v3925
        %v3984 = vadd.f32 %v3476, %v3930
        %v3985 = vadd.f32 %v3477, %v3933
        %v3986 = vadd.f32 %v3478, %v3938
        %v3987 = vadd.f32 %v3479, %v3941
        %v3988 = vadd.f32 %v3480, %v3946
        %v3989 = vadd.f32 %v3481, %v3949
        %v3990 = vadd.f32 %v3482, %v3954
        %v3991 = vadd.f32 %v3483, %v3957
        %v3992 = vadd.f32 %v3484, %v3962
        %v3993 = vadd.f32 %v3485, %v3965
        %v3994 = vadd.f32 %v3486, %v3970
        %v3995 = vadd.f32 %v3487, %v3973
        %v3996 = vld [vmem:[%s648] sm:$0xe]
        %v3997 = vld [vmem:[%s648 + $0xc] sm:$0xe]
        %v3998 = vld [vmem:[%s648 + $0x18] sm:$0xe]
        %v3999 = vld [vmem:[%s648 + $0x24] sm:$0xe]
        %v4000 = vld [vmem:[%s648 + $0x30] sm:$0xe]
        %v4001 = vld [vmem:[%s648 + $0x3c] sm:$0xe]
        %v4002 = vld [vmem:[%s648 + $0x48] sm:$0xe]
        %v4003 = vld [vmem:[%s648 + $0x54] sm:$0xe]
        %v4004 = vld [vmem:[%s648 + $0x60] sm:$0xe]
        %v4005 = vld [vmem:[%s648 + $0x6c] sm:$0xe]
        %v4036 = vrot.slane %v3996, 5
        %v4037 = vrot.slane %v4036, 4
        %v4038 = vrot.slane %v3489, 5
        %v4039 = vsel %vm1766, %v4037, %v4038
        %v4040 = vrot.slane %v4038, 4
        %v4041 = vrot.slane %v3490, 5
        %v4042 = vsel %vm1766, %v4040, %v4041
        %v4043 = vrot.slane %v3997, 5
        %v4044 = vrot.slane %v4043, 4
        %v4045 = vrot.slane %v3492, 5
        %v4046 = vsel %vm1766, %v4044, %v4045
        %v4047 = vrot.slane %v4045, 4
        %v4048 = vrot.slane %v3493, 5
        %v4049 = vsel %vm1766, %v4047, %v4048
        %v4050 = vrot.slane %v3998, 5
        %v4051 = vrot.slane %v4050, 4
        %v4052 = vrot.slane %v3495, 5
        %v4053 = vsel %vm1766, %v4051, %v4052
        %v4054 = vrot.slane %v4052, 4
        %v4055 = vrot.slane %v3496, 5
        %v4056 = vsel %vm1766, %v4054, %v4055
        %v4057 = vrot.slane %v3999, 5
        %v4058 = vrot.slane %v4057, 4
        %v4059 = vrot.slane %v3498, 5
        %v4060 = vsel %vm1766, %v4058, %v4059
        %v4061 = vrot.slane %v4059, 4
        %v4062 = vrot.slane %v3499, 5
        %v4063 = vsel %vm1766, %v4061, %v4062
        %v4064 = vrot.slane %v4000, 5
        %v4065 = vrot.slane %v4064, 4
        %v4066 = vrot.slane %v3501, 5
        %v4067 = vsel %vm1766, %v4065, %v4066
        %v4068 = vrot.slane %v4066, 4
        %v4069 = vrot.slane %v3502, 5
        %v4070 = vsel %vm1766, %v4068, %v4069
        %v4071 = vrot.slane %v4001, 5
        %v4072 = vrot.slane %v4071, 4
        %v4073 = vrot.slane %v3504, 5
        %v4074 = vsel %vm1766, %v4072, %v4073
        %v4075 = vrot.slane %v4073, 4
        %v4076 = vrot.slane %v3505, 5
        %v4077 = vsel %vm1766, %v4075, %v4076
        %v4078 = vrot.slane %v4002, 5
        %v4079 = vrot.slane %v4078, 4
        %v4080 = vrot.slane %v3507, 5
        %v4081 = vsel %vm1766, %v4079, %v4080
        %v4082 = vrot.slane %v4080, 4
        %v4083 = vrot.slane %v3508, 5
        %v4084 = vsel %vm1766, %v4082, %v4083
        %v4085 = vrot.slane %v4003, 5
        %v4086 = vrot.slane %v4085, 4
        %v4087 = vrot.slane %v3510, 5
        %v4088 = vsel %vm1766, %v4086, %v4087
        %v4089 = vrot.slane %v4087, 4
        %v4090 = vrot.slane %v3511, 5
        %v4091 = vsel %vm1766, %v4089, %v4090
        %v4092 = vrot.slane %v4004, 5
        %v4093 = vrot.slane %v4092, 4
        %v4094 = vrot.slane %v3513, 5
        %v4095 = vsel %vm1766, %v4093, %v4094
        %v4096 = vrot.slane %v4094, 4
        %v4097 = vrot.slane %v3514, 5
        %v4098 = vsel %vm1766, %v4096, %v4097
        %v4099 = vrot.slane %v4005, 5
        %v4100 = vrot.slane %v4099, 4
        %v4101 = vrot.slane %v3516, 5
        %v4102 = vsel %vm1766, %v4100, %v4101
        %v4103 = vrot.slane %v4101, 4
        %v4104 = vrot.slane %v3517, 5
        %v4105 = vsel %vm1766, %v4103, %v4104
        %s4106 = scalar_lea.vmem [#allocation10], 512
        %v4107 = vld [vmem:[%s4106] sm:$0xf]
        %v4108 = vld [vmem:[%s4106 + $0x4] sm:$0xf]
        %v4109 = vld [vmem:[%s4106 + $0x8] sm:$0xf]
        %v4110 = vld [vmem:[%s4106 + $0xc] sm:$0xf]
        %v4111 = vld [vmem:[%s4106 + $0x10] sm:$0xf]
        %v4112 = vld [vmem:[%s4106 + $0x14] sm:$0xf]
        %v4113 = vld [vmem:[%s4106 + $0x18] sm:$0xf]
        %v4114 = vld [vmem:[%s4106 + $0x1c] sm:$0xf]
        %v4115 = vld [vmem:[%s4106 + $0x20] sm:$0xf]
        %v4116 = vld [vmem:[%s4106 + $0x24] sm:$0xf]
        %v4117 = vld [vmem:[%s4106 + $0x28] sm:$0xf]
        %v4118 = vld [vmem:[%s4106 + $0x2c] sm:$0xf]
        %v4119 = vld [vmem:[%s4106 + $0x30] sm:$0xf]
        %v4120 = vld [vmem:[%s4106 + $0x34] sm:$0xf]
        %v4121 = vld [vmem:[%s4106 + $0x38] sm:$0xf]
        %v4122 = vld [vmem:[%s4106 + $0x3c] sm:$0xf]
        %v4123 = vunpack.c.l.b16 %v4039
        %v4124 = vunpack.c.l.b16 %v4042
        %v4125 = vunpack.c.l.b16 %v4046
        %v4126 = vunpack.c.l.b16 %v4049
        %v4127 = vunpack.c.l.b16 %v4053
        %v4128 = vunpack.c.l.b16 %v4056
        %v4129 = vunpack.c.l.b16 %v4060
        %v4130 = vunpack.c.l.b16 %v4063
        %v4131 = vunpack.c.l.b16 %v4067
        %v4132 = vunpack.c.l.b16 %v4070
        %v4133 = vunpack.c.l.b16 %v4074
        %v4134 = vunpack.c.l.b16 %v4077
        %v4135 = vunpack.c.l.b16 %v4081
        %v4136 = vunpack.c.l.b16 %v4084
        %v4137 = vunpack.c.l.b16 %v4088
        %v4138 = vunpack.c.l.b16 %v4091
        %v4139 = vunpack.c.l.b16 %v4095
        %v4140 = vunpack.c.l.b16 %v4098
        %v4141 = vunpack.c.l.b16 %v4102
        %v4142 = vunpack.c.l.b16 %v4105
        %v4143 = vpack.c.b16 %v4124, %v4123
        %v4144 = vpack.c.b16 %v4126, %v4125
        %v4145 = vpack.c.b16 %v4128, %v4127
        %v4146 = vpack.c.b16 %v4130, %v4129
        %v4147 = vpack.c.b16 %v4132, %v4131
        %v4148 = vpack.c.b16 %v4134, %v4133
        %v4149 = vpack.c.b16 %v4136, %v4135
        %v4150 = vpack.c.b16 %v4138, %v4137
        %v4151 = vpack.c.b16 %v4140, %v4139
        %v4152 = vpack.c.b16 %v4142, %v4141
        %v4179 = vunpack.c.l.b16 %v4107
        %v4180 = vunpack.c.l.b16 %v4108
        %v4181 = vunpack.c.l.b16 %v4109
        %v4182 = vunpack.c.l.b16 %v4110
        %v4183 = vunpack.c.l.b16 %v4111
        %v4184 = vunpack.c.l.b16 %v4112
        %v4185 = vunpack.c.l.b16 %v4113
        %v4186 = vunpack.c.l.b16 %v4114
        %v4187 = vunpack.c.l.b16 %v4115
        %v4188 = vunpack.c.l.b16 %v4116
        %v4189 = vunpack.c.l.b16 %v4117
        %v4190 = vunpack.c.l.b16 %v4118
        %v4191 = vunpack.c.l.b16 %v4119
        %v4192 = vunpack.c.l.b16 %v4120
        %v4193 = vunpack.c.l.b16 %v4121
        %v4194 = vunpack.c.l.b16 %v4122
        %v4195 = vpack.c.b16 %v4180, %v4179
        %v4196 = vpack.c.b16 %v4182, %v4181
        %v4197 = vpack.c.b16 %v4184, %v4183
        %v4198 = vpack.c.b16 %v4186, %v4185
        %v4199 = vpack.c.b16 %v4188, %v4187
        %v4200 = vpack.c.b16 %v4190, %v4189
        %v4201 = vpack.c.b16 %v4192, %v4191
        %v4202 = vpack.c.b16 %v4194, %v4193
        %4211 = vmatprep.subr.bf16.mxu0 0
        %4212 = vmatpush1.bf16.msra.mxu0 %v4195
        %4213 = vmatprep.subr.bf16.mxu0 0
        %4214 = vmatpush1.bf16.msra.mxu0 %v4196
        %4215 = vmatprep.subr.bf16.mxu0 0
        %4216 = vmatpush1.bf16.msra.mxu0 %v4197
        %4217 = vmatprep.subr.bf16.mxu0 0
        %4218 = vmatpush1.bf16.msra.mxu0 %v4198
        %4219 = vmatprep.subr.bf16.mxu0 0
        %4220 = vmatpush1.bf16.msra.mxu0 %v4199
        %4221 = vmatprep.subr.bf16.mxu0 0
        %4222 = vmatpush1.bf16.msra.mxu0 %v4200
        %4223 = vmatprep.subr.bf16.mxu0 0
        %4224 = vmatpush1.bf16.msra.mxu0 %v4201
        %4225 = vmatprep.subr.bf16.mxu0 0
        %4226 = vmatpush1.bf16.msra.mxu0 %v4202
        %4227 = vmatprep.subr.bf16.mxu0 0
        %4228 = vmatpush1.bf16.msra.mxu0 0
        %4229 = vmatprep.subr.bf16.mxu0 0
        %4230 = vmatpush1.bf16.msra.mxu0 0
        %4231 = vmatprep.subr.bf16.mxu0 0
        %4232 = vmatpush1.bf16.msra.mxu0 0
        %4233 = vmatprep.subr.bf16.mxu0 0
        %4234 = vmatpush1.bf16.msra.mxu0 0
        %4235 = vmatprep.subr.bf16.mxu0 0
        %4236 = vmatpush1.bf16.msra.mxu0 0
        %4237 = vmatprep.subr.bf16.mxu0 0
        %4238 = vmatpush1.bf16.msra.mxu0 0
        %4239 = vmatprep.subr.bf16.mxu0 0
        %4240 = vmatpush1.bf16.msra.mxu0 0
        %4241 = vmatprep.subr.bf16.mxu0 0
        %4242 = vmatpush1.bf16.msra.mxu0 0
        %4243 = vmatprep.mubr.bf16.mxu0 0
        %4244 = vmatmul.mubr.bf16.gmra.mrb[0].mxu0 %v4143
        %v4245 = vpop.f32.mrb[0].mxu0
        %v4246 = vadd.f32 0.0, %v4245
        %v4247 = vpop.f32.mrb[0].mxu0
        %v4248 = vpop.f32.mrb[0].mxu0
        %v4249 = vadd.f32 0.0, %v4248
        %v4250 = vpop.f32.mrb[0].mxu0
        %4251 = vmatprep.mubr.bf16.mxu0 0
        %4252 = vmatmul.mubr.bf16.gmra.mrb[0].mxu0 %v4144
        %v4253 = vpop.f32.mrb[0].mxu0
        %v4254 = vadd.f32 0.0, %v4253
        %v4255 = vpop.f32.mrb[0].mxu0
        %v4256 = vpop.f32.mrb[0].mxu0
        %v4257 = vadd.f32 0.0, %v4256
        %v4258 = vpop.f32.mrb[0].mxu0
        %4259 = vmatprep.mubr.bf16.mxu0 0
        %4260 = vmatmul.mubr.bf16.gmra.mrb[0].mxu0 %v4145
        %v4261 = vpop.f32.mrb[0].mxu0
        %v4262 = vadd.f32 0.0, %v4261
        %v4263 = vpop.f32.mrb[0].mxu0
        %v4264 = vpop.f32.mrb[0].mxu0
        %v4265 = vadd.f32 0.0, %v4264
        %v4266 = vpop.f32.mrb[0].mxu0
        %4267 = vmatprep.mubr.bf16.mxu0 0
        %4268 = vmatmul.mubr.bf16.gmra.mrb[0].mxu0 %v4146
        %v4269 = vpop.f32.mrb[0].mxu0
        %v4270 = vadd.f32 0.0, %v4269
        %v4271 = vpop.f32.mrb[0].mxu0
        %v4272 = vpop.f32.mrb[0].mxu0
        %v4273 = vadd.f32 0.0, %v4272
        %v4274 = vpop.f32.mrb[0].mxu0
        %4275 = vmatprep.mubr.bf16.mxu0 0
        %4276 = vmatmul.mubr.bf16.gmra.mrb[0].mxu0 %v4147
        %v4277 = vpop.f32.mrb[0].mxu0
        %v4278 = vadd.f32 0.0, %v4277
        %v4279 = vpop.f32.mrb[0].mxu0
        %v4280 = vpop.f32.mrb[0].mxu0
        %v4281 = vadd.f32 0.0, %v4280
        %v4282 = vpop.f32.mrb[0].mxu0
        %4283 = vmatprep.mubr.bf16.mxu0 0
        %4284 = vmatmul.mubr.bf16.gmra.mrb[0].mxu0 %v4148
        %v4285 = vpop.f32.mrb[0].mxu0
        %v4286 = vadd.f32 0.0, %v4285
        %v4287 = vpop.f32.mrb[0].mxu0
        %v4288 = vpop.f32.mrb[0].mxu0
        %v4289 = vadd.f32 0.0, %v4288
        %v4290 = vpop.f32.mrb[0].mxu0
        %4291 = vmatprep.mubr.bf16.mxu0 0
        %4292 = vmatmul.mubr.bf16.gmra.mrb[0].mxu0 %v4149
        %v4293 = vpop.f32.mrb[0].mxu0
        %v4294 = vadd.f32 0.0, %v4293
        %v4295 = vpop.f32.mrb[0].mxu0
        %v4296 = vpop.f32.mrb[0].mxu0
        %v4297 = vadd.f32 0.0, %v4296
        %v4298 = vpop.f32.mrb[0].mxu0
        %4299 = vmatprep.mubr.bf16.mxu0 0
        %4300 = vmatmul.mubr.bf16.gmra.mrb[0].mxu0 %v4150
        %v4301 = vpop.f32.mrb[0].mxu0
        %v4302 = vadd.f32 0.0, %v4301
        %v4303 = vpop.f32.mrb[0].mxu0
        %v4304 = vpop.f32.mrb[0].mxu0
        %v4305 = vadd.f32 0.0, %v4304
        %v4306 = vpop.f32.mrb[0].mxu0
        %4307 = vmatprep.mubr.bf16.mxu0 0
        %4308 = vmatmul.mubr.bf16.gmra.mrb[0].mxu0 %v4151
        %v4309 = vpop.f32.mrb[0].mxu0
        %v4310 = vadd.f32 0.0, %v4309
        %v4311 = vpop.f32.mrb[0].mxu0
        %v4312 = vpop.f32.mrb[0].mxu0
        %v4313 = vadd.f32 0.0, %v4312
        %v4314 = vpop.f32.mrb[0].mxu0
        %4315 = vmatprep.mubr.bf16.mxu0 0
        %4316 = vmatmul.mubr.bf16.gmra.mrb[0].mxu0 %v4152
        %v4317 = vpop.f32.mrb[0].mxu0
        %v4318 = vadd.f32 0.0, %v4317
        %v4319 = vpop.f32.mrb[0].mxu0
        %v4320 = vpop.f32.mrb[0].mxu0
        %v4321 = vadd.f32 0.0, %v4320
        %v4322 = vpop.f32.mrb[0].mxu0
        %4323 = vdwg.mxu0
        %v4324 = vadd.f32 %v3976, %v4246
        %v4325 = vadd.f32 %v3977, %v4249
        %v4326 = vadd.f32 %v3978, %v4254
        %v4327 = vadd.f32 %v3979, %v4257
        %v4328 = vadd.f32 %v3980, %v4262
        %v4329 = vadd.f32 %v3981, %v4265
        %v4330 = vadd.f32 %v3982, %v4270
        %v4331 = vadd.f32 %v3983, %v4273
        %v4332 = vadd.f32 %v3984, %v4278
        %v4333 = vadd.f32 %v3985, %v4281
        %v4334 = vadd.f32 %v3986, %v4286
        %v4335 = vadd.f32 %v3987, %v4289
        %v4336 = vadd.f32 %v3988, %v4294
        %v4337 = vadd.f32 %v3989, %v4297
        %v4338 = vadd.f32 %v3990, %v4302
        %v4339 = vadd.f32 %v3991, %v4305
        %v4340 = vadd.f32 %v3992, %v4310
        %v4341 = vadd.f32 %v3993, %v4313
        %v4342 = vadd.f32 %v3994, %v4318
        %v4343 = vadd.f32 %v3995, %v4321
        %vm4344 = vcmp.ge.f32.partialorder %v4324, 0.0
        %vm4345 = vcmp.ge.f32.partialorder %v4325, 0.0
        %vm4346 = vcmp.ge.f32.partialorder %v4326, 0.0
        %vm4347 = vcmp.ge.f32.partialorder %v4327, 0.0
        %vm4348 = vcmp.ge.f32.partialorder %v4328, 0.0
        %vm4349 = vcmp.ge.f32.partialorder %v4329, 0.0
        %vm4350 = vcmp.ge.f32.partialorder %v4330, 0.0
        %vm4351 = vcmp.ge.f32.partialorder %v4331, 0.0
        %vm4352 = vcmp.ge.f32.partialorder %v4332, 0.0
        %vm4353 = vcmp.ge.f32.partialorder %v4333, 0.0
        %vm4354 = vcmp.ge.f32.partialorder %v4334, 0.0
        %vm4355 = vcmp.ge.f32.partialorder %v4335, 0.0
        %vm4356 = vcmp.ge.f32.partialorder %v4336, 0.0
        %vm4357 = vcmp.ge.f32.partialorder %v4337, 0.0
        %vm4358 = vcmp.ge.f32.partialorder %v4338, 0.0
        %vm4359 = vcmp.ge.f32.partialorder %v4339, 0.0
        %vm4360 = vcmp.ge.f32.partialorder %v4340, 0.0
        %vm4361 = vcmp.ge.f32.partialorder %v4341, 0.0
        %vm4362 = vcmp.ge.f32.partialorder %v4342, 0.0
        %vm4363 = vcmp.ge.f32.partialorder %v4343, 0.0
        %v4364 = vmul.f32 %v4324, 0.2
        %v4365 = vmul.f32 %v4325, 0.2
        %v4366 = vmul.f32 %v4326, 0.2
        %v4367 = vmul.f32 %v4327, 0.2
        %v4368 = vmul.f32 %v4328, 0.2
        %v4369 = vmul.f32 %v4329, 0.2
        %v4370 = vmul.f32 %v4330, 0.2
        %v4371 = vmul.f32 %v4331, 0.2
        %v4372 = vmul.f32 %v4332, 0.2
        %v4373 = vmul.f32 %v4333, 0.2
        %v4374 = vmul.f32 %v4334, 0.2
        %v4375 = vmul.f32 %v4335, 0.2
        %v4376 = vmul.f32 %v4336, 0.2
        %v4377 = vmul.f32 %v4337, 0.2
        %v4378 = vmul.f32 %v4338, 0.2
        %v4379 = vmul.f32 %v4339, 0.2
        %v4380 = vmul.f32 %v4340, 0.2
        %v4381 = vmul.f32 %v4341, 0.2
        %v4382 = vmul.f32 %v4342, 0.2
        %v4383 = vmul.f32 %v4343, 0.2
        %v4384 = vsel %vm4344, %v4324, %v4364
        %v4385 = vsel %vm4345, %v4325, %v4365
        %v4386 = vsel %vm4346, %v4326, %v4366
        %v4387 = vsel %vm4347, %v4327, %v4367
        %v4388 = vsel %vm4348, %v4328, %v4368
        %v4389 = vsel %vm4349, %v4329, %v4369
        %v4390 = vsel %vm4350, %v4330, %v4370
        %v4391 = vsel %vm4351, %v4331, %v4371
        %v4392 = vsel %vm4352, %v4332, %v4372
        %v4393 = vsel %vm4353, %v4333, %v4373
        %v4394 = vsel %vm4354, %v4334, %v4374
        %v4395 = vsel %vm4355, %v4335, %v4375
        %v4396 = vsel %vm4356, %v4336, %v4376
        %v4397 = vsel %vm4357, %v4337, %v4377
        %v4398 = vsel %vm4358, %v4338, %v4378
        %v4399 = vsel %vm4359, %v4339, %v4379
        %v4400 = vsel %vm4360, %v4340, %v4380
        %v4401 = vsel %vm4361, %v4341, %v4381
        %v4402 = vsel %vm4362, %v4342, %v4382
        %v4403 = vsel %vm4363, %v4343, %v4383
        %v4404 = vpack.c.bf16 %v4385, %v4384
        %v4405 = vpack.c.bf16 %v4387, %v4386
        %v4406 = vpack.c.bf16 %v4389, %v4388
        %v4407 = vpack.c.bf16 %v4391, %v4390
        %v4408 = vpack.c.bf16 %v4393, %v4392
        %v4409 = vpack.c.bf16 %v4395, %v4394
        %v4410 = vpack.c.bf16 %v4397, %v4396
        %v4411 = vpack.c.bf16 %v4399, %v4398
        %v4412 = vpack.c.bf16 %v4401, %v4400
        %v4413 = vpack.c.bf16 %v4403, %v4402
        %v4424 = vunpack.c.l.b16 %v4404
        %v4425 = vunpack.c.h.b16 %v4404
        %v4426 = vunpack.c.l.b16 %v4405
        %v4427 = vunpack.c.h.b16 %v4405
        %v4428 = vunpack.c.l.b16 %v4406
        %v4429 = vunpack.c.h.b16 %v4406
        %v4430 = vunpack.c.l.b16 %v4407
        %v4431 = vunpack.c.h.b16 %v4407
        %v4432 = vunpack.c.l.b16 %v4408
        %v4433 = vunpack.c.h.b16 %v4408
        %v4434 = vunpack.c.l.b16 %v4409
        %v4435 = vunpack.c.h.b16 %v4409
        %v4436 = vunpack.c.l.b16 %v4410
        %v4437 = vunpack.c.h.b16 %v4410
        %v4438 = vunpack.c.l.b16 %v4411
        %v4439 = vunpack.c.h.b16 %v4411
        %v4440 = vunpack.c.l.b16 %v4412
        %v4441 = vunpack.c.h.b16 %v4412
        %v4442 = vunpack.c.l.b16 %v4413
        %v4443 = vunpack.c.h.b16 %v4413
        %v4444 = vpack.c.b16 %v4424, %v4424
        %v4445 = vpack.c.b16 %v4425, %v4425
        %v4446 = vpack.c.b16 %v4426, %v4426
        %v4447 = vpack.c.b16 %v4427, %v4427
        %v4448 = vpack.c.b16 %v4428, %v4428
        %v4449 = vpack.c.b16 %v4429, %v4429
        %v4450 = vpack.c.b16 %v4430, %v4430
        %v4451 = vpack.c.b16 %v4431, %v4431
        %v4452 = vpack.c.b16 %v4432, %v4432
        %v4453 = vpack.c.b16 %v4433, %v4433
        %v4454 = vpack.c.b16 %v4434, %v4434
        %v4455 = vpack.c.b16 %v4435, %v4435
        %v4456 = vpack.c.b16 %v4436, %v4436
        %v4457 = vpack.c.b16 %v4437, %v4437
        %v4458 = vpack.c.b16 %v4438, %v4438
        %v4459 = vpack.c.b16 %v4439, %v4439
        %v4460 = vpack.c.b16 %v4440, %v4440
        %v4461 = vpack.c.b16 %v4441, %v4441
        %v4462 = vpack.c.b16 %v4442, %v4442
        %v4463 = vpack.c.b16 %v4443, %v4443
        %v4465 = vshrl.u32 %v4444, 16
        %v4467 = vrot.slane %v4465, 7
        %v4468 = vshll.u32 %v4444, 16
        %v4470 = vor.u32 %v4467, %v4468
        %v4471 = vrot.slane %v4467, 4
        %v4473 = vshrl.u32 %v4445, 16
        %v4475 = vrot.slane %v4473, 7
        %v4476 = vshll.u32 %v4445, 16
        %v4478 = vor.u32 %v4475, %v4476
        %v4479 = vsel %vm487, %v4471, %v4478
        %v4480 = vrot.slane %v4475, 4
        %v4482 = vshrl.u32 %v4446, 16
        %v4484 = vrot.slane %v4482, 7
        %v4485 = vshll.u32 %v4446, 16
        %v4487 = vor.u32 %v4484, %v4485
        %v4488 = vrot.slane %v4484, 4
        %v4490 = vshrl.u32 %v4447, 16
        %v4492 = vrot.slane %v4490, 7
        %v4493 = vshll.u32 %v4447, 16
        %v4495 = vor.u32 %v4492, %v4493
        %v4496 = vsel %vm487, %v4488, %v4495
        %v4497 = vrot.slane %v4492, 4
        %v4499 = vshrl.u32 %v4448, 16
        %v4501 = vrot.slane %v4499, 7
        %v4502 = vshll.u32 %v4448, 16
        %v4504 = vor.u32 %v4501, %v4502
        %v4505 = vrot.slane %v4501, 4
        %v4507 = vshrl.u32 %v4449, 16
        %v4509 = vrot.slane %v4507, 7
        %v4510 = vshll.u32 %v4449, 16
        %v4512 = vor.u32 %v4509, %v4510
        %v4513 = vsel %vm487, %v4505, %v4512
        %v4514 = vrot.slane %v4509, 4
        %v4516 = vshrl.u32 %v4450, 16
        %v4518 = vrot.slane %v4516, 7
        %v4519 = vshll.u32 %v4450, 16
        %v4521 = vor.u32 %v4518, %v4519
        %v4522 = vrot.slane %v4518, 4
        %v4524 = vshrl.u32 %v4451, 16
        %v4526 = vrot.slane %v4524, 7
        %v4527 = vshll.u32 %v4451, 16
        %v4529 = vor.u32 %v4526, %v4527
        %v4530 = vsel %vm487, %v4522, %v4529
        %v4531 = vrot.slane %v4526, 4
        %v4533 = vshrl.u32 %v4452, 16
        %v4535 = vrot.slane %v4533, 7
        %v4536 = vshll.u32 %v4452, 16
        %v4538 = vor.u32 %v4535, %v4536
        %v4539 = vrot.slane %v4535, 4
        %v4541 = vshrl.u32 %v4453, 16
        %v4543 = vrot.slane %v4541, 7
        %v4544 = vshll.u32 %v4453, 16
        %v4546 = vor.u32 %v4543, %v4544
        %v4547 = vsel %vm487, %v4539, %v4546
        %v4548 = vrot.slane %v4543, 4
        %v4550 = vshrl.u32 %v4454, 16
        %v4552 = vrot.slane %v4550, 7
        %v4553 = vshll.u32 %v4454, 16
        %v4555 = vor.u32 %v4552, %v4553
        %v4556 = vrot.slane %v4552, 4
        %v4558 = vshrl.u32 %v4455, 16
        %v4560 = vrot.slane %v4558, 7
        %v4561 = vshll.u32 %v4455, 16
        %v4563 = vor.u32 %v4560, %v4561
        %v4564 = vsel %vm487, %v4556, %v4563
        %v4565 = vrot.slane %v4560, 4
        %v4567 = vshrl.u32 %v4456, 16
        %v4569 = vrot.slane %v4567, 7
        %v4570 = vshll.u32 %v4456, 16
        %v4572 = vor.u32 %v4569, %v4570
        %v4573 = vrot.slane %v4569, 4
        %v4575 = vshrl.u32 %v4457, 16
        %v4577 = vrot.slane %v4575, 7
        %v4578 = vshll.u32 %v4457, 16
        %v4580 = vor.u32 %v4577, %v4578
        %v4581 = vsel %vm487, %v4573, %v4580
        %v4582 = vrot.slane %v4577, 4
        %v4584 = vshrl.u32 %v4458, 16
        %v4586 = vrot.slane %v4584, 7
        %v4587 = vshll.u32 %v4458, 16
        %v4589 = vor.u32 %v4586, %v4587
        %v4590 = vrot.slane %v4586, 4
        %v4592 = vshrl.u32 %v4459, 16
        %v4594 = vrot.slane %v4592, 7
        %v4595 = vshll.u32 %v4459, 16
        %v4597 = vor.u32 %v4594, %v4595
        %v4598 = vsel %vm487, %v4590, %v4597
        %v4599 = vrot.slane %v4594, 4
        %v4601 = vshrl.u32 %v4460, 16
        %v4603 = vrot.slane %v4601, 7
        %v4604 = vshll.u32 %v4460, 16
        %v4606 = vor.u32 %v4603, %v4604
        %v4607 = vrot.slane %v4603, 4
        %v4609 = vshrl.u32 %v4461, 16
        %v4611 = vrot.slane %v4609, 7
        %v4612 = vshll.u32 %v4461, 16
        %v4614 = vor.u32 %v4611, %v4612
        %v4615 = vsel %vm487, %v4607, %v4614
        %v4616 = vrot.slane %v4611, 4
        %v4618 = vshrl.u32 %v4462, 16
        %v4620 = vrot.slane %v4618, 7
        %v4621 = vshll.u32 %v4462, 16
        %v4623 = vor.u32 %v4620, %v4621
        %v4624 = vrot.slane %v4620, 4
        %v4626 = vshrl.u32 %v4463, 16
        %v4628 = vrot.slane %v4626, 7
        %v4629 = vshll.u32 %v4463, 16
        %v4631 = vor.u32 %v4628, %v4629
        %v4632 = vsel %vm487, %v4624, %v4631
        %v4633 = vrot.slane %v4628, 4
        %v4664 = vld [vmem:[#allocation3] sm:$0xf]
        %v4665 = vsel %vm651, %v4470, %v4664
        %4666 = vst [vmem:[#allocation3] sm:$0xf] %v4665
        %4667 = vst [vmem:[#allocation3 + $0x4] sm:$0xf] %v4479
        %v4668 = vld [vmem:[#allocation3 + $0x8] sm:$0x1]
        %v4669 = vsel %vm657, %v4480, %v4668
        %4670 = vst [vmem:[#allocation3 + $0x8] sm:$0x1] %v4669
        %v4671 = vld [vmem:[#allocation3 + $0xc] sm:$0xf]
        %v4672 = vsel %vm651, %v4487, %v4671
        %4673 = vst [vmem:[#allocation3 + $0xc] sm:$0xf] %v4672
        %4674 = vst [vmem:[#allocation3 + $0x10] sm:$0xf] %v4496
        %v4675 = vld [vmem:[#allocation3 + $0x14] sm:$0x1]
        %v4676 = vsel %vm657, %v4497, %v4675
        %4677 = vst [vmem:[#allocation3 + $0x14] sm:$0x1] %v4676
        %v4678 = vld [vmem:[#allocation3 + $0x18] sm:$0xf]
        %v4679 = vsel %vm651, %v4504, %v4678
        %4680 = vst [vmem:[#allocation3 + $0x18] sm:$0xf] %v4679
        %4681 = vst [vmem:[#allocation3 + $0x1c] sm:$0xf] %v4513
        %v4682 = vld [vmem:[#allocation3 + $0x20] sm:$0x1]
        %v4683 = vsel %vm657, %v4514, %v4682
        %4684 = vst [vmem:[#allocation3 + $0x20] sm:$0x1] %v4683
        %v4685 = vld [vmem:[#allocation3 + $0x24] sm:$0xf]
        %v4686 = vsel %vm651, %v4521, %v4685
        %4687 = vst [vmem:[#allocation3 + $0x24] sm:$0xf] %v4686
        %4688 = vst [vmem:[#allocation3 + $0x28] sm:$0xf] %v4530
        %v4689 = vld [vmem:[#allocation3 + $0x2c] sm:$0x1]
        %v4690 = vsel %vm657, %v4531, %v4689
        %4691 = vst [vmem:[#allocation3 + $0x2c] sm:$0x1] %v4690
        %v4692 = vld [vmem:[#allocation3 + $0x30] sm:$0xf]
        %v4693 = vsel %vm651, %v4538, %v4692
        %4694 = vst [vmem:[#allocation3 + $0x30] sm:$0xf] %v4693
        %4695 = vst [vmem:[#allocation3 + $0x34] sm:$0xf] %v4547
        %v4696 = vld [vmem:[#allocation3 + $0x38] sm:$0x1]
        %v4697 = vsel %vm657, %v4548, %v4696
        %4698 = vst [vmem:[#allocation3 + $0x38] sm:$0x1] %v4697
        %v4699 = vld [vmem:[#allocation3 + $0x3c] sm:$0xf]
        %v4700 = vsel %vm651, %v4555, %v4699
        %4701 = vst [vmem:[#allocation3 + $0x3c] sm:$0xf] %v4700
        %4702 = vst [vmem:[#allocation3 + $0x40] sm:$0xf] %v4564
        %v4703 = vld [vmem:[#allocation3 + $0x44] sm:$0x1]
        %v4704 = vsel %vm657, %v4565, %v4703
        %4705 = vst [vmem:[#allocation3 + $0x44] sm:$0x1] %v4704
        %v4706 = vld [vmem:[#allocation3 + $0x48] sm:$0xf]
        %v4707 = vsel %vm651, %v4572, %v4706
        %4708 = vst [vmem:[#allocation3 + $0x48] sm:$0xf] %v4707
        %4709 = vst [vmem:[#allocation3 + $0x4c] sm:$0xf] %v4581
        %v4710 = vld [vmem:[#allocation3 + $0x50] sm:$0x1]
        %v4711 = vsel %vm657, %v4582, %v4710
        %4712 = vst [vmem:[#allocation3 + $0x50] sm:$0x1] %v4711
        %v4713 = vld [vmem:[#allocation3 + $0x54] sm:$0xf]
        %v4714 = vsel %vm651, %v4589, %v4713
        %4715 = vst [vmem:[#allocation3 + $0x54] sm:$0xf] %v4714
        %4716 = vst [vmem:[#allocation3 + $0x58] sm:$0xf] %v4598
        %v4717 = vld [vmem:[#allocation3 + $0x5c] sm:$0x1]
        %v4718 = vsel %vm657, %v4599, %v4717
        %4719 = vst [vmem:[#allocation3 + $0x5c] sm:$0x1] %v4718
        %v4720 = vld [vmem:[#allocation3 + $0x60] sm:$0xf]
        %v4721 = vsel %vm651, %v4606, %v4720
        %4722 = vst [vmem:[#allocation3 + $0x60] sm:$0xf] %v4721
        %4723 = vst [vmem:[#allocation3 + $0x64] sm:$0xf] %v4615
        %v4724 = vld [vmem:[#allocation3 + $0x68] sm:$0x1]
        %v4725 = vsel %vm657, %v4616, %v4724
        %4726 = vst [vmem:[#allocation3 + $0x68] sm:$0x1] %v4725
        %v4727 = vld [vmem:[#allocation3 + $0x6c] sm:$0xf]
        %v4728 = vsel %vm651, %v4623, %v4727
        %4729 = vst [vmem:[#allocation3 + $0x6c] sm:$0xf] %v4728
        %4730 = vst [vmem:[#allocation3 + $0x70] sm:$0xf] %v4632
        %v4731 = vld [vmem:[#allocation3 + $0x74] sm:$0x1]
        %v4732 = vsel %vm657, %v4633, %v4731
        %4733 = vst [vmem:[#allocation3 + $0x74] sm:$0x1] %v4732
        // Predicated region
        $region85: #{tpu_custom_call.1} parent=47 // pred_check
          %p4734 = pneg %p772
        $region86: #{tpu_custom_call.1} parent=47 // pred_check_branch
          %4736 = sbr.rel (%p4734) target = $region88
        $region87: #{tpu_custom_call.1} parent=47 // pred_region
          %4737 = vst [vmem:[#allocation3] sm:$0xf] 0
          %4738 = vst [vmem:[#allocation3 + $0x4] sm:$0xf] 0
          %4739 = vst [vmem:[#allocation3 + $0x8] sm:$0x1] 0
        $region88: #{tpu_custom_call.1} parent=47 // pred_fallthru
          _
        // Predicated region
        $region89: #{tpu_custom_call.1} parent=47 // pred_check
          %p4740 = pneg %p845
        $region90: #{tpu_custom_call.1} parent=47 // pred_check_branch
          %4742 = sbr.rel (%p4740) target = $region92
        $region91: #{tpu_custom_call.1} parent=47 // pred_region
          %s4743 = scalar_lea.vmem [#allocation3], 108
          %4744 = vst [vmem:[%s4743] sm:$0xf] 0
          %4745 = vst [vmem:[%s4743 + $0x4] sm:$0xf] 0
          %4746 = vst [vmem:[%s4743 + $0x8] sm:$0x1] 0
        $region92: #{tpu_custom_call.1} parent=47 // pred_fallthru
          _
        %v4747 = vld [vmem:[#allocation3] sm:$0x1]
        %v4748 = vsel %vm657, 0, %v4747
        %4749 = vst [vmem:[#allocation3] sm:$0x1] %v4748
        %v4750 = vld [vmem:[#allocation3 + $0xc] sm:$0x1]
        %v4751 = vsel %vm657, 0, %v4750
        %4752 = vst [vmem:[#allocation3 + $0xc] sm:$0x1] %v4751
        %v4753 = vld [vmem:[#allocation3 + $0x18] sm:$0x1]
        %v4754 = vsel %vm657, 0, %v4753
        %4755 = vst [vmem:[#allocation3 + $0x18] sm:$0x1] %v4754
        %v4756 = vld [vmem:[#allocation3 + $0x24] sm:$0x1]
        %v4757 = vsel %vm657, 0, %v4756
        %4758 = vst [vmem:[#allocation3 + $0x24] sm:$0x1] %v4757
        %v4759 = vld [vmem:[#allocation3 + $0x30] sm:$0x1]
        %v4760 = vsel %vm657, 0, %v4759
        %4761 = vst [vmem:[#allocation3 + $0x30] sm:$0x1] %v4760
        %v4762 = vld [vmem:[#allocation3 + $0x3c] sm:$0x1]
        %v4763 = vsel %vm657, 0, %v4762
        %4764 = vst [vmem:[#allocation3 + $0x3c] sm:$0x1] %v4763
        %v4765 = vld [vmem:[#allocation3 + $0x48] sm:$0x1]
        %v4766 = vsel %vm657, 0, %v4765
        %4767 = vst [vmem:[#allocation3 + $0x48] sm:$0x1] %v4766
        %v4768 = vld [vmem:[#allocation3 + $0x54] sm:$0x1]
        %v4769 = vsel %vm657, 0, %v4768
        %4770 = vst [vmem:[#allocation3 + $0x54] sm:$0x1] %v4769
        %v4771 = vld [vmem:[#allocation3 + $0x60] sm:$0x1]
        %v4772 = vsel %vm657, 0, %v4771
        %4773 = vst [vmem:[#allocation3 + $0x60] sm:$0x1] %v4772
        %v4774 = vld [vmem:[#allocation3 + $0x6c] sm:$0x1]
        %v4775 = vsel %vm657, 0, %v4774
        %4776 = vst [vmem:[#allocation3 + $0x6c] sm:$0x1] %v4775
        %v4777 = vld [vmem:[#allocation3 + $0x8] sm:$0x1]
        %v4778 = vsel %vm892, 0, %v4777
        %4779 = vst [vmem:[#allocation3 + $0x8] sm:$0x1] %v4778
        %v4780 = vld [vmem:[#allocation3 + $0x14] sm:$0x1]
        %v4781 = vsel %vm892, 0, %v4780
        %4782 = vst [vmem:[#allocation3 + $0x14] sm:$0x1] %v4781
        %v4783 = vld [vmem:[#allocation3 + $0x20] sm:$0x1]
        %v4784 = vsel %vm892, 0, %v4783
        %4785 = vst [vmem:[#allocation3 + $0x20] sm:$0x1] %v4784
        %v4786 = vld [vmem:[#allocation3 + $0x2c] sm:$0x1]
        %v4787 = vsel %vm892, 0, %v4786
        %4788 = vst [vmem:[#allocation3 + $0x2c] sm:$0x1] %v4787
        %v4789 = vld [vmem:[#allocation3 + $0x38] sm:$0x1]
        %v4790 = vsel %vm892, 0, %v4789
        %4791 = vst [vmem:[#allocation3 + $0x38] sm:$0x1] %v4790
        %v4792 = vld [vmem:[#allocation3 + $0x44] sm:$0x1]
        %v4793 = vsel %vm892, 0, %v4792
        %4794 = vst [vmem:[#allocation3 + $0x44] sm:$0x1] %v4793
        %v4795 = vld [vmem:[#allocation3 + $0x50] sm:$0x1]
        %v4796 = vsel %vm892, 0, %v4795
        %4797 = vst [vmem:[#allocation3 + $0x50] sm:$0x1] %v4796
        %v4798 = vld [vmem:[#allocation3 + $0x5c] sm:$0x1]
        %v4799 = vsel %vm892, 0, %v4798
        %4800 = vst [vmem:[#allocation3 + $0x5c] sm:$0x1] %v4799
        %v4801 = vld [vmem:[#allocation3 + $0x68] sm:$0x1]
        %v4802 = vsel %vm892, 0, %v4801
        %4803 = vst [vmem:[#allocation3 + $0x68] sm:$0x1] %v4802
        %v4804 = vld [vmem:[#allocation3 + $0x74] sm:$0x1]
        %v4805 = vsel %vm892, 0, %v4804
        %4806 = vst [vmem:[#allocation3 + $0x74] sm:$0x1] %v4805
        %v4807 = vld [vmem:[%s6] sm:$0x1]
        %v4809 = vlaneseq
        %v4810 = vshrl.u32 %v4809, 7
        %v4811 = vsub.s32 0, %v4810
        %v4812 = vrot.slane %v4807, %v4811
        %v4814 = vld [vmem:[#allocation3] sm:$0xf]
        %v4815 = vld [vmem:[#allocation3 + $0x4] sm:$0xf]
        %v4816 = vld [vmem:[#allocation3 + $0xc] sm:$0xf]
        %v4817 = vld [vmem:[#allocation3 + $0x10] sm:$0xf]
        %v4818 = vld [vmem:[#allocation3 + $0x18] sm:$0xf]
        %v4819 = vld [vmem:[#allocation3 + $0x1c] sm:$0xf]
        %v4820 = vld [vmem:[#allocation3 + $0x24] sm:$0xf]
        %v4821 = vld [vmem:[#allocation3 + $0x28] sm:$0xf]
        %v4822 = vld [vmem:[#allocation3 + $0x30] sm:$0xf]
        %v4823 = vld [vmem:[#allocation3 + $0x34] sm:$0xf]
        %v4824 = vld [vmem:[#allocation3 + $0x3c] sm:$0xf]
        %v4825 = vld [vmem:[#allocation3 + $0x40] sm:$0xf]
        %v4826 = vld [vmem:[#allocation3 + $0x48] sm:$0xf]
        %v4827 = vld [vmem:[#allocation3 + $0x4c] sm:$0xf]
        %v4828 = vld [vmem:[#allocation3 + $0x54] sm:$0xf]
        %v4829 = vld [vmem:[#allocation3 + $0x58] sm:$0xf]
        %v4830 = vld [vmem:[#allocation12] sm:$0xf]
        %v4831 = vld [vmem:[#allocation12 + $0x4] sm:$0xf]
        %v4832 = vld [vmem:[#allocation12 + $0x8] sm:$0xf]
        %v4833 = vld [vmem:[#allocation12 + $0xc] sm:$0xf]
        %v4834 = vld [vmem:[#allocation12 + $0x10] sm:$0xf]
        %v4835 = vld [vmem:[#allocation12 + $0x14] sm:$0xf]
        %v4836 = vld [vmem:[#allocation12 + $0x18] sm:$0xf]
        %v4837 = vld [vmem:[#allocation12 + $0x1c] sm:$0xf]
        %v4838 = vld [vmem:[#allocation12 + $0x20] sm:$0xf]
        %v4839 = vld [vmem:[#allocation12 + $0x24] sm:$0xf]
        %v4840 = vld [vmem:[#allocation12 + $0x28] sm:$0xf]
        %v4841 = vld [vmem:[#allocation12 + $0x2c] sm:$0xf]
        %v4842 = vld [vmem:[#allocation12 + $0x30] sm:$0xf]
        %v4843 = vld [vmem:[#allocation12 + $0x34] sm:$0xf]
        %v4844 = vld [vmem:[#allocation12 + $0x38] sm:$0xf]
        %v4845 = vld [vmem:[#allocation12 + $0x3c] sm:$0xf]
        %v4862 = vunpack.c.l.b16 %v4814
        %v4863 = vunpack.c.l.b16 %v4815
        %v4864 = vunpack.c.l.b16 %v4816
        %v4865 = vunpack.c.l.b16 %v4817
        %v4866 = vunpack.c.l.b16 %v4818
        %v4867 = vunpack.c.l.b16 %v4819
        %v4868 = vunpack.c.l.b16 %v4820
        %v4869 = vunpack.c.l.b16 %v4821
        %v4870 = vunpack.c.l.b16 %v4822
        %v4871 = vunpack.c.l.b16 %v4823
        %v4872 = vunpack.c.l.b16 %v4824
        %v4873 = vunpack.c.l.b16 %v4825
        %v4874 = vunpack.c.l.b16 %v4826
        %v4875 = vunpack.c.l.b16 %v4827
        %v4876 = vunpack.c.l.b16 %v4828
        %v4877 = vunpack.c.l.b16 %v4829
        %v4878 = vpack.c.b16 %v4863, %v4862
        %v4879 = vpack.c.b16 %v4865, %v4864
        %v4880 = vpack.c.b16 %v4867, %v4866
        %v4881 = vpack.c.b16 %v4869, %v4868
        %v4882 = vpack.c.b16 %v4871, %v4870
        %v4883 = vpack.c.b16 %v4873, %v4872
        %v4884 = vpack.c.b16 %v4875, %v4874
        %v4885 = vpack.c.b16 %v4877, %v4876
        %v4910 = vunpack.c.l.b16 %v4830
        %v4911 = vunpack.c.l.b16 %v4831
        %v4912 = vunpack.c.l.b16 %v4832
        %v4913 = vunpack.c.l.b16 %v4833
        %v4914 = vunpack.c.l.b16 %v4834
        %v4915 = vunpack.c.l.b16 %v4835
        %v4916 = vunpack.c.l.b16 %v4836
        %v4917 = vunpack.c.l.b16 %v4837
        %v4918 = vunpack.c.l.b16 %v4838
        %v4919 = vunpack.c.l.b16 %v4839
        %v4920 = vunpack.c.l.b16 %v4840
        %v4921 = vunpack.c.l.b16 %v4841
        %v4922 = vunpack.c.l.b16 %v4842
        %v4923 = vunpack.c.l.b16 %v4843
        %v4924 = vunpack.c.l.b16 %v4844
        %v4925 = vunpack.c.l.b16 %v4845
        %v4926 = vpack.c.b16 %v4911, %v4910
        %v4927 = vpack.c.b16 %v4913, %v4912
        %v4928 = vpack.c.b16 %v4915, %v4914
        %v4929 = vpack.c.b16 %v4917, %v4916
        %v4930 = vpack.c.b16 %v4919, %v4918
        %v4931 = vpack.c.b16 %v4921, %v4920
        %v4932 = vpack.c.b16 %v4923, %v4922
        %v4933 = vpack.c.b16 %v4925, %v4924
        %4942 = vmatprep.subr.bf16.mxu0 0
        %4943 = vmatpush1.bf16.msra.mxu0 %v4926
        %4944 = vmatprep.subr.bf16.mxu0 0
        %4945 = vmatpush1.bf16.msra.mxu0 %v4927
        %4946 = vmatprep.subr.bf16.mxu0 0
        %4947 = vmatpush1.bf16.msra.mxu0 %v4928
        %4948 = vmatprep.subr.bf16.mxu0 0
        %4949 = vmatpush1.bf16.msra.mxu0 %v4929
        %4950 = vmatprep.subr.bf16.mxu0 0
        %4951 = vmatpush1.bf16.msra.mxu0 %v4930
        %4952 = vmatprep.subr.bf16.mxu0 0
        %4953 = vmatpush1.bf16.msra.mxu0 %v4931
        %4954 = vmatprep.subr.bf16.mxu0 0
        %4955 = vmatpush1.bf16.msra.mxu0 %v4932
        %4956 = vmatprep.subr.bf16.mxu0 0
        %4957 = vmatpush1.bf16.msra.mxu0 %v4933
        %4958 = vmatprep.subr.bf16.mxu0 0
        %4959 = vmatpush1.bf16.msra.mxu0 0
        %4960 = vmatprep.subr.bf16.mxu0 0
        %4961 = vmatpush1.bf16.msra.mxu0 0
        %4962 = vmatprep.subr.bf16.mxu0 0
        %4963 = vmatpush1.bf16.msra.mxu0 0
        %4964 = vmatprep.subr.bf16.mxu0 0
        %4965 = vmatpush1.bf16.msra.mxu0 0
        %4966 = vmatprep.subr.bf16.mxu0 0
        %4967 = vmatpush1.bf16.msra.mxu0 0
        %4968 = vmatprep.subr.bf16.mxu0 0
        %4969 = vmatpush1.bf16.msra.mxu0 0
        %4970 = vmatprep.subr.bf16.mxu0 0
        %4971 = vmatpush1.bf16.msra.mxu0 0
        %4972 = vmatprep.subr.bf16.mxu0 0
        %4973 = vmatpush1.bf16.msra.mxu0 0
        %4974 = vmatprep.mubr.bf16.mxu0 0
        %4975 = vmatmul.mubr.bf16.gmra.mrb[0].mxu0 %v4878
        %v4976 = vpop.f32.mrb[0].mxu0
        %v4977 = vadd.f32 0.0, %v4976
        %v4978 = vpop.f32.mrb[0].mxu0
        %v4979 = vpop.f32.mrb[0].mxu0
        %v4980 = vadd.f32 0.0, %v4979
        %v4981 = vpop.f32.mrb[0].mxu0
        %4982 = vmatprep.mubr.bf16.mxu0 0
        %4983 = vmatmul.mubr.bf16.gmra.mrb[0].mxu0 %v4879
        %v4984 = vpop.f32.mrb[0].mxu0
        %v4985 = vadd.f32 0.0, %v4984
        %v4986 = vpop.f32.mrb[0].mxu0
        %v4987 = vpop.f32.mrb[0].mxu0
        %v4988 = vadd.f32 0.0, %v4987
        %v4989 = vpop.f32.mrb[0].mxu0
        %4990 = vmatprep.mubr.bf16.mxu0 0
        %4991 = vmatmul.mubr.bf16.gmra.mrb[0].mxu0 %v4880
        %v4992 = vpop.f32.mrb[0].mxu0
        %v4993 = vadd.f32 0.0, %v4992
        %v4994 = vpop.f32.mrb[0].mxu0
        %v4995 = vpop.f32.mrb[0].mxu0
        %v4996 = vadd.f32 0.0, %v4995
        %v4997 = vpop.f32.mrb[0].mxu0
        %4998 = vmatprep.mubr.bf16.mxu0 0
        %4999 = vmatmul.mubr.bf16.gmra.mrb[0].mxu0 %v4881
        %v5000 = vpop.f32.mrb[0].mxu0
        %v5001 = vadd.f32 0.0, %v5000
        %v5002 = vpop.f32.mrb[0].mxu0
        %v5003 = vpop.f32.mrb[0].mxu0
        %v5004 = vadd.f32 0.0, %v5003
        %v5005 = vpop.f32.mrb[0].mxu0
        %5006 = vmatprep.mubr.bf16.mxu0 0
        %5007 = vmatmul.mubr.bf16.gmra.mrb[0].mxu0 %v4882
        %v5008 = vpop.f32.mrb[0].mxu0
        %v5009 = vadd.f32 0.0, %v5008
        %v5010 = vpop.f32.mrb[0].mxu0
        %v5011 = vpop.f32.mrb[0].mxu0
        %v5012 = vadd.f32 0.0, %v5011
        %v5013 = vpop.f32.mrb[0].mxu0
        %5014 = vmatprep.mubr.bf16.mxu0 0
        %5015 = vmatmul.mubr.bf16.gmra.mrb[0].mxu0 %v4883
        %v5016 = vpop.f32.mrb[0].mxu0
        %v5017 = vadd.f32 0.0, %v5016
        %v5018 = vpop.f32.mrb[0].mxu0
        %v5019 = vpop.f32.mrb[0].mxu0
        %v5020 = vadd.f32 0.0, %v5019
        %v5021 = vpop.f32.mrb[0].mxu0
        %5022 = vmatprep.mubr.bf16.mxu0 0
        %5023 = vmatmul.mubr.bf16.gmra.mrb[0].mxu0 %v4884
        %v5024 = vpop.f32.mrb[0].mxu0
        %v5025 = vadd.f32 0.0, %v5024
        %v5026 = vpop.f32.mrb[0].mxu0
        %v5027 = vpop.f32.mrb[0].mxu0
        %v5028 = vadd.f32 0.0, %v5027
        %v5029 = vpop.f32.mrb[0].mxu0
        %5030 = vmatprep.mubr.bf16.mxu0 0
        %5031 = vmatmul.mubr.bf16.gmra.mrb[0].mxu0 %v4885
        %v5032 = vpop.f32.mrb[0].mxu0
        %v5033 = vadd.f32 0.0, %v5032
        %v5034 = vpop.f32.mrb[0].mxu0
        %v5035 = vpop.f32.mrb[0].mxu0
        %v5036 = vadd.f32 0.0, %v5035
        %v5037 = vpop.f32.mrb[0].mxu0
        %5038 = vdwg.mxu0
        %v5039 = vadd.f32 %v4812, %v4977
        %v5040 = vadd.f32 %v4812, %v4980
        %v5041 = vadd.f32 %v4812, %v4985
        %v5042 = vadd.f32 %v4812, %v4988
        %v5043 = vadd.f32 %v4812, %v4993
        %v5044 = vadd.f32 %v4812, %v4996
        %v5045 = vadd.f32 %v4812, %v5001
        %v5046 = vadd.f32 %v4812, %v5004
        %v5047 = vadd.f32 %v4812, %v5009
        %v5048 = vadd.f32 %v4812, %v5012
        %v5049 = vadd.f32 %v4812, %v5017
        %v5050 = vadd.f32 %v4812, %v5020
        %v5051 = vadd.f32 %v4812, %v5025
        %v5052 = vadd.f32 %v4812, %v5028
        %v5053 = vadd.f32 %v4812, %v5033
        %v5054 = vadd.f32 %v4812, %v5036
        %v5055 = vld [vmem:[#allocation3] sm:$0xf]
        %v5056 = vld [vmem:[#allocation3 + $0x4] sm:$0xf]
        %v5057 = vld [vmem:[#allocation3 + $0x8] sm:$0x1]
        %v5058 = vld [vmem:[#allocation3 + $0xc] sm:$0xf]
        %v5059 = vld [vmem:[#allocation3 + $0x10] sm:$0xf]
        %v5060 = vld [vmem:[#allocation3 + $0x14] sm:$0x1]
        %v5061 = vld [vmem:[#allocation3 + $0x18] sm:$0xf]
        %v5062 = vld [vmem:[#allocation3 + $0x1c] sm:$0xf]
        %v5063 = vld [vmem:[#allocation3 + $0x20] sm:$0x1]
        %v5064 = vld [vmem:[#allocation3 + $0x24] sm:$0xf]
        %v5065 = vld [vmem:[#allocation3 + $0x28] sm:$0xf]
        %v5066 = vld [vmem:[#allocation3 + $0x2c] sm:$0x1]
        %v5067 = vld [vmem:[#allocation3 + $0x30] sm:$0xf]
        %v5068 = vld [vmem:[#allocation3 + $0x34] sm:$0xf]
        %v5069 = vld [vmem:[#allocation3 + $0x38] sm:$0x1]
        %v5070 = vld [vmem:[#allocation3 + $0x3c] sm:$0xf]
        %v5071 = vld [vmem:[#allocation3 + $0x40] sm:$0xf]
        %v5072 = vld [vmem:[#allocation3 + $0x44] sm:$0x1]
        %v5073 = vld [vmem:[#allocation3 + $0x48] sm:$0xf]
        %v5074 = vld [vmem:[#allocation3 + $0x4c] sm:$0xf]
        %v5075 = vld [vmem:[#allocation3 + $0x50] sm:$0x1]
        %v5076 = vld [vmem:[#allocation3 + $0x54] sm:$0xf]
        %v5077 = vld [vmem:[#allocation3 + $0x58] sm:$0xf]
        %v5078 = vld [vmem:[#allocation3 + $0x5c] sm:$0x1]
        %v5080 = vshrl.u32 %v5055, 16
        %v5082 = vrot.slane %v5080, 4
        %v5083 = vshll.u32 %v5055, 16
        %v5085 = vrot.slane %v5083, 5
        %v5086 = vor.u32 %v5082, %v5085
        %v5087 = vrot.slane %v5086, 4
        %v5089 = vshll.u32 %v5056, 16
        %v5091 = vrot.slane %v5089, 5
        %v5092 = vsel %vm1245, %v5087, %v5091
        %v5093 = vshrl.u32 %v5056, 16
        %v5095 = vrot.slane %v5093, 4
        %v5096 = vor.u32 %v5095, %v5091
        %v5097 = vrot.slane %v5096, 4
        %v5099 = vshll.u32 %v5057, 16
        %v5101 = vrot.slane %v5099, 5
        %v5102 = vsel %vm1245, %v5097, %v5101
        %v5104 = vshrl.u32 %v5058, 16
        %v5106 = vrot.slane %v5104, 4
        %v5107 = vshll.u32 %v5058, 16
        %v5109 = vrot.slane %v5107, 5
        %v5110 = vor.u32 %v5106, %v5109
        %v5111 = vrot.slane %v5110, 4
        %v5113 = vshll.u32 %v5059, 16
        %v5115 = vrot.slane %v5113, 5
        %v5116 = vsel %vm1245, %v5111, %v5115
        %v5117 = vshrl.u32 %v5059, 16
        %v5119 = vrot.slane %v5117, 4
        %v5120 = vor.u32 %v5119, %v5115
        %v5121 = vrot.slane %v5120, 4
        %v5123 = vshll.u32 %v5060, 16
        %v5125 = vrot.slane %v5123, 5
        %v5126 = vsel %vm1245, %v5121, %v5125
        %v5128 = vshrl.u32 %v5061, 16
        %v5130 = vrot.slane %v5128, 4
        %v5131 = vshll.u32 %v5061, 16
        %v5133 = vrot.slane %v5131, 5
        %v5134 = vor.u32 %v5130, %v5133
        %v5135 = vrot.slane %v5134, 4
        %v5137 = vshll.u32 %v5062, 16
        %v5139 = vrot.slane %v5137, 5
        %v5140 = vsel %vm1245, %v5135, %v5139
        %v5141 = vshrl.u32 %v5062, 16
        %v5143 = vrot.slane %v5141, 4
        %v5144 = vor.u32 %v5143, %v5139
        %v5145 = vrot.slane %v5144, 4
        %v5147 = vshll.u32 %v5063, 16
        %v5149 = vrot.slane %v5147, 5
        %v5150 = vsel %vm1245, %v5145, %v5149
        %v5152 = vshrl.u32 %v5064, 16
        %v5154 = vrot.slane %v5152, 4
        %v5155 = vshll.u32 %v5064, 16
        %v5157 = vrot.slane %v5155, 5
        %v5158 = vor.u32 %v5154, %v5157
        %v5159 = vrot.slane %v5158, 4
        %v5161 = vshll.u32 %v5065, 16
        %v5163 = vrot.slane %v5161, 5
        %v5164 = vsel %vm1245, %v5159, %v5163
        %v5165 = vshrl.u32 %v5065, 16
        %v5167 = vrot.slane %v5165, 4
        %v5168 = vor.u32 %v5167, %v5163
        %v5169 = vrot.slane %v5168, 4
        %v5171 = vshll.u32 %v5066, 16
        %v5173 = vrot.slane %v5171, 5
        %v5174 = vsel %vm1245, %v5169, %v5173
        %v5176 = vshrl.u32 %v5067, 16
        %v5178 = vrot.slane %v5176, 4
        %v5179 = vshll.u32 %v5067, 16
        %v5181 = vrot.slane %v5179, 5
        %v5182 = vor.u32 %v5178, %v5181
        %v5183 = vrot.slane %v5182, 4
        %v5185 = vshll.u32 %v5068, 16
        %v5187 = vrot.slane %v5185, 5
        %v5188 = vsel %vm1245, %v5183, %v5187
        %v5189 = vshrl.u32 %v5068, 16
        %v5191 = vrot.slane %v5189, 4
        %v5192 = vor.u32 %v5191, %v5187
        %v5193 = vrot.slane %v5192, 4
        %v5195 = vshll.u32 %v5069, 16
        %v5197 = vrot.slane %v5195, 5
        %v5198 = vsel %vm1245, %v5193, %v5197
        %v5200 = vshrl.u32 %v5070, 16
        %v5202 = vrot.slane %v5200, 4
        %v5203 = vshll.u32 %v5070, 16
        %v5205 = vrot.slane %v5203, 5
        %v5206 = vor.u32 %v5202, %v5205
        %v5207 = vrot.slane %v5206, 4
        %v5209 = vshll.u32 %v5071, 16
        %v5211 = vrot.slane %v5209, 5
        %v5212 = vsel %vm1245, %v5207, %v5211
        %v5213 = vshrl.u32 %v5071, 16
        %v5215 = vrot.slane %v5213, 4
        %v5216 = vor.u32 %v5215, %v5211
        %v5217 = vrot.slane %v5216, 4
        %v5219 = vshll.u32 %v5072, 16
        %v5221 = vrot.slane %v5219, 5
        %v5222 = vsel %vm1245, %v5217, %v5221
        %v5224 = vshrl.u32 %v5073, 16
        %v5226 = vrot.slane %v5224, 4
        %v5227 = vshll.u32 %v5073, 16
        %v5229 = vrot.slane %v5227, 5
        %v5230 = vor.u32 %v5226, %v5229
        %v5231 = vrot.slane %v5230, 4
        %v5233 = vshll.u32 %v5074, 16
        %v5235 = vrot.slane %v5233, 5
        %v5236 = vsel %vm1245, %v5231, %v5235
        %v5237 = vshrl.u32 %v5074, 16
        %v5239 = vrot.slane %v5237, 4
        %v5240 = vor.u32 %v5239, %v5235
        %v5241 = vrot.slane %v5240, 4
        %v5243 = vshll.u32 %v5075, 16
        %v5245 = vrot.slane %v5243, 5
        %v5246 = vsel %vm1245, %v5241, %v5245
        %v5248 = vshrl.u32 %v5076, 16
        %v5250 = vrot.slane %v5248, 4
        %v5251 = vshll.u32 %v5076, 16
        %v5253 = vrot.slane %v5251, 5
        %v5254 = vor.u32 %v5250, %v5253
        %v5255 = vrot.slane %v5254, 4
        %v5257 = vshll.u32 %v5077, 16
        %v5259 = vrot.slane %v5257, 5
        %v5260 = vsel %vm1245, %v5255, %v5259
        %v5261 = vshrl.u32 %v5077, 16
        %v5263 = vrot.slane %v5261, 4
        %v5264 = vor.u32 %v5263, %v5259
        %v5265 = vrot.slane %v5264, 4
        %v5267 = vshll.u32 %v5078, 16
        %v5269 = vrot.slane %v5267, 5
        %v5270 = vsel %vm1245, %v5265, %v5269
        %s5271 = scalar_lea.vmem [#allocation12], 64
        %v5272 = vld [vmem:[%s5271] sm:$0xf]
        %v5273 = vld [vmem:[%s5271 + $0x4] sm:$0xf]
        %v5274 = vld [vmem:[%s5271 + $0x8] sm:$0xf]
        %v5275 = vld [vmem:[%s5271 + $0xc] sm:$0xf]
        %v5276 = vld [vmem:[%s5271 + $0x10] sm:$0xf]
        %v5277 = vld [vmem:[%s5271 + $0x14] sm:$0xf]
        %v5278 = vld [vmem:[%s5271 + $0x18] sm:$0xf]
        %v5279 = vld [vmem:[%s5271 + $0x1c] sm:$0xf]
        %v5280 = vld [vmem:[%s5271 + $0x20] sm:$0xf]
        %v5281 = vld [vmem:[%s5271 + $0x24] sm:$0xf]
        %v5282 = vld [vmem:[%s5271 + $0x28] sm:$0xf]
        %v5283 = vld [vmem:[%s5271 + $0x2c] sm:$0xf]
        %v5284 = vld [vmem:[%s5271 + $0x30] sm:$0xf]
        %v5285 = vld [vmem:[%s5271 + $0x34] sm:$0xf]
        %v5286 = vld [vmem:[%s5271 + $0x38] sm:$0xf]
        %v5287 = vld [vmem:[%s5271 + $0x3c] sm:$0xf]
        %v5288 = vunpack.c.l.b16 %v5092
        %v5289 = vunpack.c.l.b16 %v5102
        %v5290 = vunpack.c.l.b16 %v5116
        %v5291 = vunpack.c.l.b16 %v5126
        %v5292 = vunpack.c.l.b16 %v5140
        %v5293 = vunpack.c.l.b16 %v5150
        %v5294 = vunpack.c.l.b16 %v5164
        %v5295 = vunpack.c.l.b16 %v5174
        %v5296 = vunpack.c.l.b16 %v5188
        %v5297 = vunpack.c.l.b16 %v5198
        %v5298 = vunpack.c.l.b16 %v5212
        %v5299 = vunpack.c.l.b16 %v5222
        %v5300 = vunpack.c.l.b16 %v5236
        %v5301 = vunpack.c.l.b16 %v5246
        %v5302 = vunpack.c.l.b16 %v5260
        %v5303 = vunpack.c.l.b16 %v5270
        %v5304 = vpack.c.b16 %v5289, %v5288
        %v5305 = vpack.c.b16 %v5291, %v5290
        %v5306 = vpack.c.b16 %v5293, %v5292
        %v5307 = vpack.c.b16 %v5295, %v5294
        %v5308 = vpack.c.b16 %v5297, %v5296
        %v5309 = vpack.c.b16 %v5299, %v5298
        %v5310 = vpack.c.b16 %v5301, %v5300
        %v5311 = vpack.c.b16 %v5303, %v5302
        %v5336 = vunpack.c.l.b16 %v5272
        %v5337 = vunpack.c.l.b16 %v5273
        %v5338 = vunpack.c.l.b16 %v5274
        %v5339 = vunpack.c.l.b16 %v5275
        %v5340 = vunpack.c.l.b16 %v5276
        %v5341 = vunpack.c.l.b16 %v5277
        %v5342 = vunpack.c.l.b16 %v5278
        %v5343 = vunpack.c.l.b16 %v5279
        %v5344 = vunpack.c.l.b16 %v5280
        %v5345 = vunpack.c.l.b16 %v5281
        %v5346 = vunpack.c.l.b16 %v5282
        %v5347 = vunpack.c.l.b16 %v5283
        %v5348 = vunpack.c.l.b16 %v5284
        %v5349 = vunpack.c.l.b16 %v5285
        %v5350 = vunpack.c.l.b16 %v5286
        %v5351 = vunpack.c.l.b16 %v5287
        %v5352 = vpack.c.b16 %v5337, %v5336
        %v5353 = vpack.c.b16 %v5339, %v5338
        %v5354 = vpack.c.b16 %v5341, %v5340
        %v5355 = vpack.c.b16 %v5343, %v5342
        %v5356 = vpack.c.b16 %v5345, %v5344
        %v5357 = vpack.c.b16 %v5347, %v5346
        %v5358 = vpack.c.b16 %v5349, %v5348
        %v5359 = vpack.c.b16 %v5351, %v5350
        %5368 = vmatprep.subr.bf16.mxu0 0
        %5369 = vmatpush1.bf16.msra.mxu0 %v5352
        %5370 = vmatprep.subr.bf16.mxu0 0
        %5371 = vmatpush1.bf16.msra.mxu0 %v5353
        %5372 = vmatprep.subr.bf16.mxu0 0
        %5373 = vmatpush1.bf16.msra.mxu0 %v5354
        %5374 = vmatprep.subr.bf16.mxu0 0
        %5375 = vmatpush1.bf16.msra.mxu0 %v5355
        %5376 = vmatprep.subr.bf16.mxu0 0
        %5377 = vmatpush1.bf16.msra.mxu0 %v5356
        %5378 = vmatprep.subr.bf16.mxu0 0
        %5379 = vmatpush1.bf16.msra.mxu0 %v5357
        %5380 = vmatprep.subr.bf16.mxu0 0
        %5381 = vmatpush1.bf16.msra.mxu0 %v5358
        %5382 = vmatprep.subr.bf16.mxu0 0
        %5383 = vmatpush1.bf16.msra.mxu0 %v5359
        %5384 = vmatprep.subr.bf16.mxu0 0
        %5385 = vmatpush1.bf16.msra.mxu0 0
        %5386 = vmatprep.subr.bf16.mxu0 0
        %5387 = vmatpush1.bf16.msra.mxu0 0
        %5388 = vmatprep.subr.bf16.mxu0 0
        %5389 = vmatpush1.bf16.msra.mxu0 0
        %5390 = vmatprep.subr.bf16.mxu0 0
        %5391 = vmatpush1.bf16.msra.mxu0 0
        %5392 = vmatprep.subr.bf16.mxu0 0
        %5393 = vmatpush1.bf16.msra.mxu0 0
        %5394 = vmatprep.subr.bf16.mxu0 0
        %5395 = vmatpush1.bf16.msra.mxu0 0
        %5396 = vmatprep.subr.bf16.mxu0 0
        %5397 = vmatpush1.bf16.msra.mxu0 0
        %5398 = vmatprep.subr.bf16.mxu0 0
        %5399 = vmatpush1.bf16.msra.mxu0 0
        %5400 = vmatprep.mubr.bf16.mxu0 0
        %5401 = vmatmul.mubr.bf16.gmra.mrb[0].mxu0 %v5304
        %v5402 = vpop.f32.mrb[0].mxu0
        %v5403 = vadd.f32 0.0, %v5402
        %v5404 = vpop.f32.mrb[0].mxu0
        %v5405 = vpop.f32.mrb[0].mxu0
        %v5406 = vadd.f32 0.0, %v5405
        %v5407 = vpop.f32.mrb[0].mxu0
        %5408 = vmatprep.mubr.bf16.mxu0 0
        %5409 = vmatmul.mubr.bf16.gmra.mrb[0].mxu0 %v5305
        %v5410 = vpop.f32.mrb[0].mxu0
        %v5411 = vadd.f32 0.0, %v5410
        %v5412 = vpop.f32.mrb[0].mxu0
        %v5413 = vpop.f32.mrb[0].mxu0
        %v5414 = vadd.f32 0.0, %v5413
        %v5415 = vpop.f32.mrb[0].mxu0
        %5416 = vmatprep.mubr.bf16.mxu0 0
        %5417 = vmatmul.mubr.bf16.gmra.mrb[0].mxu0 %v5306
        %v5418 = vpop.f32.mrb[0].mxu0
        %v5419 = vadd.f32 0.0, %v5418
        %v5420 = vpop.f32.mrb[0].mxu0
        %v5421 = vpop.f32.mrb[0].mxu0
        %v5422 = vadd.f32 0.0, %v5421
        %v5423 = vpop.f32.mrb[0].mxu0
        %5424 = vmatprep.mubr.bf16.mxu0 0
        %5425 = vmatmul.mubr.bf16.gmra.mrb[0].mxu0 %v5307
        %v5426 = vpop.f32.mrb[0].mxu0
        %v5427 = vadd.f32 0.0, %v5426
        %v5428 = vpop.f32.mrb[0].mxu0
        %v5429 = vpop.f32.mrb[0].mxu0
        %v5430 = vadd.f32 0.0, %v5429
        %v5431 = vpop.f32.mrb[0].mxu0
        %5432 = vmatprep.mubr.bf16.mxu0 0
        %5433 = vmatmul.mubr.bf16.gmra.mrb[0].mxu0 %v5308
        %v5434 = vpop.f32.mrb[0].mxu0
        %v5435 = vadd.f32 0.0, %v5434
        %v5436 = vpop.f32.mrb[0].mxu0
        %v5437 = vpop.f32.mrb[0].mxu0
        %v5438 = vadd.f32 0.0, %v5437
        %v5439 = vpop.f32.mrb[0].mxu0
        %5440 = vmatprep.mubr.bf16.mxu0 0
        %5441 = vmatmul.mubr.bf16.gmra.mrb[0].mxu0 %v5309
        %v5442 = vpop.f32.mrb[0].mxu0
        %v5443 = vadd.f32 0.0, %v5442
        %v5444 = vpop.f32.mrb[0].mxu0
        %v5445 = vpop.f32.mrb[0].mxu0
        %v5446 = vadd.f32 0.0, %v5445
        %v5447 = vpop.f32.mrb[0].mxu0
        %5448 = vmatprep.mubr.bf16.mxu0 0
        %5449 = vmatmul.mubr.bf16.gmra.mrb[0].mxu0 %v5310
        %v5450 = vpop.f32.mrb[0].mxu0
        %v5451 = vadd.f32 0.0, %v5450
        %v5452 = vpop.f32.mrb[0].mxu0
        %v5453 = vpop.f32.mrb[0].mxu0
        %v5454 = vadd.f32 0.0, %v5453
        %v5455 = vpop.f32.mrb[0].mxu0
        %5456 = vmatprep.mubr.bf16.mxu0 0
        %5457 = vmatmul.mubr.bf16.gmra.mrb[0].mxu0 %v5311
        %v5458 = vpop.f32.mrb[0].mxu0
        %v5459 = vadd.f32 0.0, %v5458
        %v5460 = vpop.f32.mrb[0].mxu0
        %v5461 = vpop.f32.mrb[0].mxu0
        %v5462 = vadd.f32 0.0, %v5461
        %v5463 = vpop.f32.mrb[0].mxu0
        %5464 = vdwg.mxu0
        %v5465 = vadd.f32 %v5039, %v5403
        %v5466 = vadd.f32 %v5040, %v5406
        %v5467 = vadd.f32 %v5041, %v5411
        %v5468 = vadd.f32 %v5042, %v5414
        %v5469 = vadd.f32 %v5043, %v5419
        %v5470 = vadd.f32 %v5044, %v5422
        %v5471 = vadd.f32 %v5045, %v5427
        %v5472 = vadd.f32 %v5046, %v5430
        %v5473 = vadd.f32 %v5047, %v5435
        %v5474 = vadd.f32 %v5048, %v5438
        %v5475 = vadd.f32 %v5049, %v5443
        %v5476 = vadd.f32 %v5050, %v5446
        %v5477 = vadd.f32 %v5051, %v5451
        %v5478 = vadd.f32 %v5052, %v5454
        %v5479 = vadd.f32 %v5053, %v5459
        %v5480 = vadd.f32 %v5054, %v5462
        %v5481 = vld [vmem:[#allocation3] sm:$0xe]
        %v5482 = vld [vmem:[#allocation3 + $0xc] sm:$0xe]
        %v5483 = vld [vmem:[#allocation3 + $0x18] sm:$0xe]
        %v5484 = vld [vmem:[#allocation3 + $0x24] sm:$0xe]
        %v5485 = vld [vmem:[#allocation3 + $0x30] sm:$0xe]
        %v5486 = vld [vmem:[#allocation3 + $0x3c] sm:$0xe]
        %v5487 = vld [vmem:[#allocation3 + $0x48] sm:$0xe]
        %v5488 = vld [vmem:[#allocation3 + $0x54] sm:$0xe]
        %v5513 = vrot.slane %v5481, 5
        %v5514 = vrot.slane %v5513, 4
        %v5515 = vrot.slane %v5056, 5
        %v5516 = vsel %vm1766, %v5514, %v5515
        %v5517 = vrot.slane %v5515, 4
        %v5518 = vrot.slane %v5057, 5
        %v5519 = vsel %vm1766, %v5517, %v5518
        %v5520 = vrot.slane %v5482, 5
        %v5521 = vrot.slane %v5520, 4
        %v5522 = vrot.slane %v5059, 5
        %v5523 = vsel %vm1766, %v5521, %v5522
        %v5524 = vrot.slane %v5522, 4
        %v5525 = vrot.slane %v5060, 5
        %v5526 = vsel %vm1766, %v5524, %v5525
        %v5527 = vrot.slane %v5483, 5
        %v5528 = vrot.slane %v5527, 4
        %v5529 = vrot.slane %v5062, 5
        %v5530 = vsel %vm1766, %v5528, %v5529
        %v5531 = vrot.slane %v5529, 4
        %v5532 = vrot.slane %v5063, 5
        %v5533 = vsel %vm1766, %v5531, %v5532
        %v5534 = vrot.slane %v5484, 5
        %v5535 = vrot.slane %v5534, 4
        %v5536 = vrot.slane %v5065, 5
        %v5537 = vsel %vm1766, %v5535, %v5536
        %v5538 = vrot.slane %v5536, 4
        %v5539 = vrot.slane %v5066, 5
        %v5540 = vsel %vm1766, %v5538, %v5539
        %v5541 = vrot.slane %v5485, 5
        %v5542 = vrot.slane %v5541, 4
        %v5543 = vrot.slane %v5068, 5
        %v5544 = vsel %vm1766, %v5542, %v5543
        %v5545 = vrot.slane %v5543, 4
        %v5546 = vrot.slane %v5069, 5
        %v5547 = vsel %vm1766, %v5545, %v5546
        %v5548 = vrot.slane %v5486, 5
        %v5549 = vrot.slane %v5548, 4
        %v5550 = vrot.slane %v5071, 5
        %v5551 = vsel %vm1766, %v5549, %v5550
        %v5552 = vrot.slane %v5550, 4
        %v5553 = vrot.slane %v5072, 5
        %v5554 = vsel %vm1766, %v5552, %v5553
        %v5555 = vrot.slane %v5487, 5
        %v5556 = vrot.slane %v5555, 4
        %v5557 = vrot.slane %v5074, 5
        %v5558 = vsel %vm1766, %v5556, %v5557
        %v5559 = vrot.slane %v5557, 4
        %v5560 = vrot.slane %v5075, 5
        %v5561 = vsel %vm1766, %v5559, %v5560
        %v5562 = vrot.slane %v5488, 5
        %v5563 = vrot.slane %v5562, 4
        %v5564 = vrot.slane %v5077, 5
        %v5565 = vsel %vm1766, %v5563, %v5564
        %v5566 = vrot.slane %v5564, 4
        %v5567 = vrot.slane %v5078, 5
        %v5568 = vsel %vm1766, %v5566, %v5567
        %s5569 = scalar_lea.vmem [#allocation12], 128
        %v5570 = vld [vmem:[%s5569] sm:$0xf]
        %v5571 = vld [vmem:[%s5569 + $0x4] sm:$0xf]
        %v5572 = vld [vmem:[%s5569 + $0x8] sm:$0xf]
        %v5573 = vld [vmem:[%s5569 + $0xc] sm:$0xf]
        %v5574 = vld [vmem:[%s5569 + $0x10] sm:$0xf]
        %v5575 = vld [vmem:[%s5569 + $0x14] sm:$0xf]
        %v5576 = vld [vmem:[%s5569 + $0x18] sm:$0xf]
        %v5577 = vld [vmem:[%s5569 + $0x1c] sm:$0xf]
        %v5578 = vld [vmem:[%s5569 + $0x20] sm:$0xf]
        %v5579 = vld [vmem:[%s5569 + $0x24] sm:$0xf]
        %v5580 = vld [vmem:[%s5569 + $0x28] sm:$0xf]
        %v5581 = vld [vmem:[%s5569 + $0x2c] sm:$0xf]
        %v5582 = vld [vmem:[%s5569 + $0x30] sm:$0xf]
        %v5583 = vld [vmem:[%s5569 + $0x34] sm:$0xf]
        %v5584 = vld [vmem:[%s5569 + $0x38] sm:$0xf]
        %v5585 = vld [vmem:[%s5569 + $0x3c] sm:$0xf]
        %v5586 = vunpack.c.l.b16 %v5516
        %v5587 = vunpack.c.l.b16 %v5519
        %v5588 = vunpack.c.l.b16 %v5523
        %v5589 = vunpack.c.l.b16 %v5526
        %v5590 = vunpack.c.l.b16 %v5530
        %v5591 = vunpack.c.l.b16 %v5533
        %v5592 = vunpack.c.l.b16 %v5537
        %v5593 = vunpack.c.l.b16 %v5540
        %v5594 = vunpack.c.l.b16 %v5544
        %v5595 = vunpack.c.l.b16 %v5547
        %v5596 = vunpack.c.l.b16 %v5551
        %v5597 = vunpack.c.l.b16 %v5554
        %v5598 = vunpack.c.l.b16 %v5558
        %v5599 = vunpack.c.l.b16 %v5561
        %v5600 = vunpack.c.l.b16 %v5565
        %v5601 = vunpack.c.l.b16 %v5568
        %v5602 = vpack.c.b16 %v5587, %v5586
        %v5603 = vpack.c.b16 %v5589, %v5588
        %v5604 = vpack.c.b16 %v5591, %v5590
        %v5605 = vpack.c.b16 %v5593, %v5592
        %v5606 = vpack.c.b16 %v5595, %v5594
        %v5607 = vpack.c.b16 %v5597, %v5596
        %v5608 = vpack.c.b16 %v5599, %v5598
        %v5609 = vpack.c.b16 %v5601, %v5600
        %v5634 = vunpack.c.l.b16 %v5570
        %v5635 = vunpack.c.l.b16 %v5571
        %v5636 = vunpack.c.l.b16 %v5572
        %v5637 = vunpack.c.l.b16 %v5573
        %v5638 = vunpack.c.l.b16 %v5574
        %v5639 = vunpack.c.l.b16 %v5575
        %v5640 = vunpack.c.l.b16 %v5576
        %v5641 = vunpack.c.l.b16 %v5577
        %v5642 = vunpack.c.l.b16 %v5578
        %v5643 = vunpack.c.l.b16 %v5579
        %v5644 = vunpack.c.l.b16 %v5580
        %v5645 = vunpack.c.l.b16 %v5581
        %v5646 = vunpack.c.l.b16 %v5582
        %v5647 = vunpack.c.l.b16 %v5583
        %v5648 = vunpack.c.l.b16 %v5584
        %v5649 = vunpack.c.l.b16 %v5585
        %v5650 = vpack.c.b16 %v5635, %v5634
        %v5651 = vpack.c.b16 %v5637, %v5636
        %v5652 = vpack.c.b16 %v5639, %v5638
        %v5653 = vpack.c.b16 %v5641, %v5640
        %v5654 = vpack.c.b16 %v5643, %v5642
        %v5655 = vpack.c.b16 %v5645, %v5644
        %v5656 = vpack.c.b16 %v5647, %v5646
        %v5657 = vpack.c.b16 %v5649, %v5648
        %5666 = vmatprep.subr.bf16.mxu0 0
        %5667 = vmatpush1.bf16.msra.mxu0 %v5650
        %5668 = vmatprep.subr.bf16.mxu0 0
        %5669 = vmatpush1.bf16.msra.mxu0 %v5651
        %5670 = vmatprep.subr.bf16.mxu0 0
        %5671 = vmatpush1.bf16.msra.mxu0 %v5652
        %5672 = vmatprep.subr.bf16.mxu0 0
        %5673 = vmatpush1.bf16.msra.mxu0 %v5653
        %5674 = vmatprep.subr.bf16.mxu0 0
        %5675 = vmatpush1.bf16.msra.mxu0 %v5654
        %5676 = vmatprep.subr.bf16.mxu0 0
        %5677 = vmatpush1.bf16.msra.mxu0 %v5655
        %5678 = vmatprep.subr.bf16.mxu0 0
        %5679 = vmatpush1.bf16.msra.mxu0 %v5656
        %5680 = vmatprep.subr.bf16.mxu0 0
        %5681 = vmatpush1.bf16.msra.mxu0 %v5657
        %5682 = vmatprep.subr.bf16.mxu0 0
        %5683 = vmatpush1.bf16.msra.mxu0 0
        %5684 = vmatprep.subr.bf16.mxu0 0
        %5685 = vmatpush1.bf16.msra.mxu0 0
        %5686 = vmatprep.subr.bf16.mxu0 0
        %5687 = vmatpush1.bf16.msra.mxu0 0
        %5688 = vmatprep.subr.bf16.mxu0 0
        %5689 = vmatpush1.bf16.msra.mxu0 0
        %5690 = vmatprep.subr.bf16.mxu0 0
        %5691 = vmatpush1.bf16.msra.mxu0 0
        %5692 = vmatprep.subr.bf16.mxu0 0
        %5693 = vmatpush1.bf16.msra.mxu0 0
        %5694 = vmatprep.subr.bf16.mxu0 0
        %5695 = vmatpush1.bf16.msra.mxu0 0
        %5696 = vmatprep.subr.bf16.mxu0 0
        %5697 = vmatpush1.bf16.msra.mxu0 0
        %5698 = vmatprep.mubr.bf16.mxu0 0
        %5699 = vmatmul.mubr.bf16.gmra.mrb[0].mxu0 %v5602
        %v5700 = vpop.f32.mrb[0].mxu0
        %v5701 = vadd.f32 0.0, %v5700
        %v5702 = vpop.f32.mrb[0].mxu0
        %v5703 = vpop.f32.mrb[0].mxu0
        %v5704 = vadd.f32 0.0, %v5703
        %v5705 = vpop.f32.mrb[0].mxu0
        %5706 = vmatprep.mubr.bf16.mxu0 0
        %5707 = vmatmul.mubr.bf16.gmra.mrb[0].mxu0 %v5603
        %v5708 = vpop.f32.mrb[0].mxu0
        %v5709 = vadd.f32 0.0, %v5708
        %v5710 = vpop.f32.mrb[0].mxu0
        %v5711 = vpop.f32.mrb[0].mxu0
        %v5712 = vadd.f32 0.0, %v5711
        %v5713 = vpop.f32.mrb[0].mxu0
        %5714 = vmatprep.mubr.bf16.mxu0 0
        %5715 = vmatmul.mubr.bf16.gmra.mrb[0].mxu0 %v5604
        %v5716 = vpop.f32.mrb[0].mxu0
        %v5717 = vadd.f32 0.0, %v5716
        %v5718 = vpop.f32.mrb[0].mxu0
        %v5719 = vpop.f32.mrb[0].mxu0
        %v5720 = vadd.f32 0.0, %v5719
        %v5721 = vpop.f32.mrb[0].mxu0
        %5722 = vmatprep.mubr.bf16.mxu0 0
        %5723 = vmatmul.mubr.bf16.gmra.mrb[0].mxu0 %v5605
        %v5724 = vpop.f32.mrb[0].mxu0
        %v5725 = vadd.f32 0.0, %v5724
        %v5726 = vpop.f32.mrb[0].mxu0
        %v5727 = vpop.f32.mrb[0].mxu0
        %v5728 = vadd.f32 0.0, %v5727
        %v5729 = vpop.f32.mrb[0].mxu0
        %5730 = vmatprep.mubr.bf16.mxu0 0
        %5731 = vmatmul.mubr.bf16.gmra.mrb[0].mxu0 %v5606
        %v5732 = vpop.f32.mrb[0].mxu0
        %v5733 = vadd.f32 0.0, %v5732
        %v5734 = vpop.f32.mrb[0].mxu0
        %v5735 = vpop.f32.mrb[0].mxu0
        %v5736 = vadd.f32 0.0, %v5735
        %v5737 = vpop.f32.mrb[0].mxu0
        %5738 = vmatprep.mubr.bf16.mxu0 0
        %5739 = vmatmul.mubr.bf16.gmra.mrb[0].mxu0 %v5607
        %v5740 = vpop.f32.mrb[0].mxu0
        %v5741 = vadd.f32 0.0, %v5740
        %v5742 = vpop.f32.mrb[0].mxu0
        %v5743 = vpop.f32.mrb[0].mxu0
        %v5744 = vadd.f32 0.0, %v5743
        %v5745 = vpop.f32.mrb[0].mxu0
        %5746 = vmatprep.mubr.bf16.mxu0 0
        %5747 = vmatmul.mubr.bf16.gmra.mrb[0].mxu0 %v5608
        %v5748 = vpop.f32.mrb[0].mxu0
        %v5749 = vadd.f32 0.0, %v5748
        %v5750 = vpop.f32.mrb[0].mxu0
        %v5751 = vpop.f32.mrb[0].mxu0
        %v5752 = vadd.f32 0.0, %v5751
        %v5753 = vpop.f32.mrb[0].mxu0
        %5754 = vmatprep.mubr.bf16.mxu0 0
        %5755 = vmatmul.mubr.bf16.gmra.mrb[0].mxu0 %v5609
        %v5756 = vpop.f32.mrb[0].mxu0
        %v5757 = vadd.f32 0.0, %v5756
        %v5758 = vpop.f32.mrb[0].mxu0
        %v5759 = vpop.f32.mrb[0].mxu0
        %v5760 = vadd.f32 0.0, %v5759
        %v5761 = vpop.f32.mrb[0].mxu0
        %5762 = vdwg.mxu0
        %v5763 = vadd.f32 %v5465, %v5701
        %v5764 = vadd.f32 %v5466, %v5704
        %v5765 = vadd.f32 %v5467, %v5709
        %v5766 = vadd.f32 %v5468, %v5712
        %v5767 = vadd.f32 %v5469, %v5717
        %v5768 = vadd.f32 %v5470, %v5720
        %v5769 = vadd.f32 %v5471, %v5725
        %v5770 = vadd.f32 %v5472, %v5728
        %v5771 = vadd.f32 %v5473, %v5733
        %v5772 = vadd.f32 %v5474, %v5736
        %v5773 = vadd.f32 %v5475, %v5741
        %v5774 = vadd.f32 %v5476, %v5744
        %v5775 = vadd.f32 %v5477, %v5749
        %v5776 = vadd.f32 %v5478, %v5752
        %v5777 = vadd.f32 %v5479, %v5757
        %v5778 = vadd.f32 %v5480, %v5760
        %s5779 = scalar_lea.vmem [#allocation3], 12
        %v5780 = vld [vmem:[%s5779] sm:$0xf]
        %v5781 = vld [vmem:[%s5779 + $0x4] sm:$0xf]
        %v5782 = vld [vmem:[%s5779 + $0xc] sm:$0xf]
        %v5783 = vld [vmem:[%s5779 + $0x10] sm:$0xf]
        %v5784 = vld [vmem:[%s5779 + $0x18] sm:$0xf]
        %v5785 = vld [vmem:[%s5779 + $0x1c] sm:$0xf]
        %v5786 = vld [vmem:[%s5779 + $0x24] sm:$0xf]
        %v5787 = vld [vmem:[%s5779 + $0x28] sm:$0xf]
        %v5788 = vld [vmem:[%s5779 + $0x30] sm:$0xf]
        %v5789 = vld [vmem:[%s5779 + $0x34] sm:$0xf]
        %v5790 = vld [vmem:[%s5779 + $0x3c] sm:$0xf]
        %v5791 = vld [vmem:[%s5779 + $0x40] sm:$0xf]
        %v5792 = vld [vmem:[%s5779 + $0x48] sm:$0xf]
        %v5793 = vld [vmem:[%s5779 + $0x4c] sm:$0xf]
        %v5794 = vld [vmem:[%s5779 + $0x54] sm:$0xf]
        %v5795 = vld [vmem:[%s5779 + $0x58] sm:$0xf]
        %s5796 = scalar_lea.vmem [#allocation12], 192
        %v5797 = vld [vmem:[%s5796] sm:$0xf]
        %v5798 = vld [vmem:[%s5796 + $0x4] sm:$0xf]
        %v5799 = vld [vmem:[%s5796 + $0x8] sm:$0xf]
        %v5800 = vld [vmem:[%s5796 + $0xc] sm:$0xf]
        %v5801 = vld [vmem:[%s5796 + $0x10] sm:$0xf]
        %v5802 = vld [vmem:[%s5796 + $0x14] sm:$0xf]
        %v5803 = vld [vmem:[%s5796 + $0x18] sm:$0xf]
        %v5804 = vld [vmem:[%s5796 + $0x1c] sm:$0xf]
        %v5805 = vld [vmem:[%s5796 + $0x20] sm:$0xf]
        %v5806 = vld [vmem:[%s5796 + $0x24] sm:$0xf]
        %v5807 = vld [vmem:[%s5796 + $0x28] sm:$0xf]
        %v5808 = vld [vmem:[%s5796 + $0x2c] sm:$0xf]
        %v5809 = vld [vmem:[%s5796 + $0x30] sm:$0xf]
        %v5810 = vld [vmem:[%s5796 + $0x34] sm:$0xf]
        %v5811 = vld [vmem:[%s5796 + $0x38] sm:$0xf]
        %v5812 = vld [vmem:[%s5796 + $0x3c] sm:$0xf]
        %v5829 = vunpack.c.l.b16 %v5780
        %v5830 = vunpack.c.l.b16 %v5781
        %v5831 = vunpack.c.l.b16 %v5782
        %v5832 = vunpack.c.l.b16 %v5783
        %v5833 = vunpack.c.l.b16 %v5784
        %v5834 = vunpack.c.l.b16 %v5785
        %v5835 = vunpack.c.l.b16 %v5786
        %v5836 = vunpack.c.l.b16 %v5787
        %v5837 = vunpack.c.l.b16 %v5788
        %v5838 = vunpack.c.l.b16 %v5789
        %v5839 = vunpack.c.l.b16 %v5790
        %v5840 = vunpack.c.l.b16 %v5791
        %v5841 = vunpack.c.l.b16 %v5792
        %v5842 = vunpack.c.l.b16 %v5793
        %v5843 = vunpack.c.l.b16 %v5794
        %v5844 = vunpack.c.l.b16 %v5795
        %v5845 = vpack.c.b16 %v5830, %v5829
        %v5846 = vpack.c.b16 %v5832, %v5831
        %v5847 = vpack.c.b16 %v5834, %v5833
        %v5848 = vpack.c.b16 %v5836, %v5835
        %v5849 = vpack.c.b16 %v5838, %v5837
        %v5850 = vpack.c.b16 %v5840, %v5839
        %v5851 = vpack.c.b16 %v5842, %v5841
        %v5852 = vpack.c.b16 %v5844, %v5843
        %v5877 = vunpack.c.l.b16 %v5797
        %v5878 = vunpack.c.l.b16 %v5798
        %v5879 = vunpack.c.l.b16 %v5799
        %v5880 = vunpack.c.l.b16 %v5800
        %v5881 = vunpack.c.l.b16 %v5801
        %v5882 = vunpack.c.l.b16 %v5802
        %v5883 = vunpack.c.l.b16 %v5803
        %v5884 = vunpack.c.l.b16 %v5804
        %v5885 = vunpack.c.l.b16 %v5805
        %v5886 = vunpack.c.l.b16 %v5806
        %v5887 = vunpack.c.l.b16 %v5807
        %v5888 = vunpack.c.l.b16 %v5808
        %v5889 = vunpack.c.l.b16 %v5809
        %v5890 = vunpack.c.l.b16 %v5810
        %v5891 = vunpack.c.l.b16 %v5811
        %v5892 = vunpack.c.l.b16 %v5812
        %v5893 = vpack.c.b16 %v5878, %v5877
        %v5894 = vpack.c.b16 %v5880, %v5879
        %v5895 = vpack.c.b16 %v5882, %v5881
        %v5896 = vpack.c.b16 %v5884, %v5883
        %v5897 = vpack.c.b16 %v5886, %v5885
        %v5898 = vpack.c.b16 %v5888, %v5887
        %v5899 = vpack.c.b16 %v5890, %v5889
        %v5900 = vpack.c.b16 %v5892, %v5891
        %5909 = vmatprep.subr.bf16.mxu0 0
        %5910 = vmatpush1.bf16.msra.mxu0 %v5893
        %5911 = vmatprep.subr.bf16.mxu0 0
        %5912 = vmatpush1.bf16.msra.mxu0 %v5894
        %5913 = vmatprep.subr.bf16.mxu0 0
        %5914 = vmatpush1.bf16.msra.mxu0 %v5895
        %5915 = vmatprep.subr.bf16.mxu0 0
        %5916 = vmatpush1.bf16.msra.mxu0 %v5896
        %5917 = vmatprep.subr.bf16.mxu0 0
        %5918 = vmatpush1.bf16.msra.mxu0 %v5897
        %5919 = vmatprep.subr.bf16.mxu0 0
        %5920 = vmatpush1.bf16.msra.mxu0 %v5898
        %5921 = vmatprep.subr.bf16.mxu0 0
        %5922 = vmatpush1.bf16.msra.mxu0 %v5899
        %5923 = vmatprep.subr.bf16.mxu0 0
        %5924 = vmatpush1.bf16.msra.mxu0 %v5900
        %5925 = vmatprep.subr.bf16.mxu0 0
        %5926 = vmatpush1.bf16.msra.mxu0 0
        %5927 = vmatprep.subr.bf16.mxu0 0
        %5928 = vmatpush1.bf16.msra.mxu0 0
        %5929 = vmatprep.subr.bf16.mxu0 0
        %5930 = vmatpush1.bf16.msra.mxu0 0
        %5931 = vmatprep.subr.bf16.mxu0 0
        %5932 = vmatpush1.bf16.msra.mxu0 0
        %5933 = vmatprep.subr.bf16.mxu0 0
        %5934 = vmatpush1.bf16.msra.mxu0 0
        %5935 = vmatprep.subr.bf16.mxu0 0
        %5936 = vmatpush1.bf16.msra.mxu0 0
        %5937 = vmatprep.subr.bf16.mxu0 0
        %5938 = vmatpush1.bf16.msra.mxu0 0
        %5939 = vmatprep.subr.bf16.mxu0 0
        %5940 = vmatpush1.bf16.msra.mxu0 0
        %5941 = vmatprep.mubr.bf16.mxu0 0
        %5942 = vmatmul.mubr.bf16.gmra.mrb[0].mxu0 %v5845
        %v5943 = vpop.f32.mrb[0].mxu0
        %v5944 = vadd.f32 0.0, %v5943
        %v5945 = vpop.f32.mrb[0].mxu0
        %v5946 = vpop.f32.mrb[0].mxu0
        %v5947 = vadd.f32 0.0, %v5946
        %v5948 = vpop.f32.mrb[0].mxu0
        %5949 = vmatprep.mubr.bf16.mxu0 0
        %5950 = vmatmul.mubr.bf16.gmra.mrb[0].mxu0 %v5846
        %v5951 = vpop.f32.mrb[0].mxu0
        %v5952 = vadd.f32 0.0, %v5951
        %v5953 = vpop.f32.mrb[0].mxu0
        %v5954 = vpop.f32.mrb[0].mxu0
        %v5955 = vadd.f32 0.0, %v5954
        %v5956 = vpop.f32.mrb[0].mxu0
        %5957 = vmatprep.mubr.bf16.mxu0 0
        %5958 = vmatmul.mubr.bf16.gmra.mrb[0].mxu0 %v5847
        %v5959 = vpop.f32.mrb[0].mxu0
        %v5960 = vadd.f32 0.0, %v5959
        %v5961 = vpop.f32.mrb[0].mxu0
        %v5962 = vpop.f32.mrb[0].mxu0
        %v5963 = vadd.f32 0.0, %v5962
        %v5964 = vpop.f32.mrb[0].mxu0
        %5965 = vmatprep.mubr.bf16.mxu0 0
        %5966 = vmatmul.mubr.bf16.gmra.mrb[0].mxu0 %v5848
        %v5967 = vpop.f32.mrb[0].mxu0
        %v5968 = vadd.f32 0.0, %v5967
        %v5969 = vpop.f32.mrb[0].mxu0
        %v5970 = vpop.f32.mrb[0].mxu0
        %v5971 = vadd.f32 0.0, %v5970
        %v5972 = vpop.f32.mrb[0].mxu0
        %5973 = vmatprep.mubr.bf16.mxu0 0
        %5974 = vmatmul.mubr.bf16.gmra.mrb[0].mxu0 %v5849
        %v5975 = vpop.f32.mrb[0].mxu0
        %v5976 = vadd.f32 0.0, %v5975
        %v5977 = vpop.f32.mrb[0].mxu0
        %v5978 = vpop.f32.mrb[0].mxu0
        %v5979 = vadd.f32 0.0, %v5978
        %v5980 = vpop.f32.mrb[0].mxu0
        %5981 = vmatprep.mubr.bf16.mxu0 0
        %5982 = vmatmul.mubr.bf16.gmra.mrb[0].mxu0 %v5850
        %v5983 = vpop.f32.mrb[0].mxu0
        %v5984 = vadd.f32 0.0, %v5983
        %v5985 = vpop.f32.mrb[0].mxu0
        %v5986 = vpop.f32.mrb[0].mxu0
        %v5987 = vadd.f32 0.0, %v5986
        %v5988 = vpop.f32.mrb[0].mxu0
        %5989 = vmatprep.mubr.bf16.mxu0 0
        %5990 = vmatmul.mubr.bf16.gmra.mrb[0].mxu0 %v5851
        %v5991 = vpop.f32.mrb[0].mxu0
        %v5992 = vadd.f32 0.0, %v5991
        %v5993 = vpop.f32.mrb[0].mxu0
        %v5994 = vpop.f32.mrb[0].mxu0
        %v5995 = vadd.f32 0.0, %v5994
        %v5996 = vpop.f32.mrb[0].mxu0
        %5997 = vmatprep.mubr.bf16.mxu0 0
        %5998 = vmatmul.mubr.bf16.gmra.mrb[0].mxu0 %v5852
        %v5999 = vpop.f32.mrb[0].mxu0
        %v6000 = vadd.f32 0.0, %v5999
        %v6001 = vpop.f32.mrb[0].mxu0
        %v6002 = vpop.f32.mrb[0].mxu0
        %v6003 = vadd.f32 0.0, %v6002
        %v6004 = vpop.f32.mrb[0].mxu0
        %6005 = vdwg.mxu0
        %v6006 = vadd.f32 %v5763, %v5944
        %v6007 = vadd.f32 %v5764, %v5947
        %v6008 = vadd.f32 %v5765, %v5952
        %v6009 = vadd.f32 %v5766, %v5955
        %v6010 = vadd.f32 %v5767, %v5960
        %v6011 = vadd.f32 %v5768, %v5963
        %v6012 = vadd.f32 %v5769, %v5968
        %v6013 = vadd.f32 %v5770, %v5971
        %v6014 = vadd.f32 %v5771, %v5976
        %v6015 = vadd.f32 %v5772, %v5979
        %v6016 = vadd.f32 %v5773, %v5984
        %v6017 = vadd.f32 %v5774, %v5987
        %v6018 = vadd.f32 %v5775, %v5992
        %v6019 = vadd.f32 %v5776, %v5995
        %v6020 = vadd.f32 %v5777, %v6000
        %v6021 = vadd.f32 %v5778, %v6003
        %v6022 = vld [vmem:[%s5779] sm:$0xf]
        %v6023 = vld [vmem:[%s5779 + $0x4] sm:$0xf]
        %v6024 = vld [vmem:[%s5779 + $0x8] sm:$0x1]
        %v6025 = vld [vmem:[%s5779 + $0xc] sm:$0xf]
        %v6026 = vld [vmem:[%s5779 + $0x10] sm:$0xf]
        %v6027 = vld [vmem:[%s5779 + $0x14] sm:$0x1]
        %v6028 = vld [vmem:[%s5779 + $0x18] sm:$0xf]
        %v6029 = vld [vmem:[%s5779 + $0x1c] sm:$0xf]
        %v6030 = vld [vmem:[%s5779 + $0x20] sm:$0x1]
        %v6031 = vld [vmem:[%s5779 + $0x24] sm:$0xf]
        %v6032 = vld [vmem:[%s5779 + $0x28] sm:$0xf]
        %v6033 = vld [vmem:[%s5779 + $0x2c] sm:$0x1]
        %v6034 = vld [vmem:[%s5779 + $0x30] sm:$0xf]
        %v6035 = vld [vmem:[%s5779 + $0x34] sm:$0xf]
        %v6036 = vld [vmem:[%s5779 + $0x38] sm:$0x1]
        %v6037 = vld [vmem:[%s5779 + $0x3c] sm:$0xf]
        %v6038 = vld [vmem:[%s5779 + $0x40] sm:$0xf]
        %v6039 = vld [vmem:[%s5779 + $0x44] sm:$0x1]
        %v6040 = vld [vmem:[%s5779 + $0x48] sm:$0xf]
        %v6041 = vld [vmem:[%s5779 + $0x4c] sm:$0xf]
        %v6042 = vld [vmem:[%s5779 + $0x50] sm:$0x1]
        %v6043 = vld [vmem:[%s5779 + $0x54] sm:$0xf]
        %v6044 = vld [vmem:[%s5779 + $0x58] sm:$0xf]
        %v6045 = vld [vmem:[%s5779 + $0x5c] sm:$0x1]
        %v6047 = vshrl.u32 %v6022, 16
        %v6049 = vrot.slane %v6047, 4
        %v6050 = vshll.u32 %v6022, 16
        %v6052 = vrot.slane %v6050, 5
        %v6053 = vor.u32 %v6049, %v6052
        %v6054 = vrot.slane %v6053, 4
        %v6056 = vshll.u32 %v6023, 16
        %v6058 = vrot.slane %v6056, 5
        %v6059 = vsel %vm1245, %v6054, %v6058
        %v6060 = vshrl.u32 %v6023, 16
        %v6062 = vrot.slane %v6060, 4
        %v6063 = vor.u32 %v6062, %v6058
        %v6064 = vrot.slane %v6063, 4
        %v6066 = vshll.u32 %v6024, 16
        %v6068 = vrot.slane %v6066, 5
        %v6069 = vsel %vm1245, %v6064, %v6068
        %v6071 = vshrl.u32 %v6025, 16
        %v6073 = vrot.slane %v6071, 4
        %v6074 = vshll.u32 %v6025, 16
        %v6076 = vrot.slane %v6074, 5
        %v6077 = vor.u32 %v6073, %v6076
        %v6078 = vrot.slane %v6077, 4
        %v6080 = vshll.u32 %v6026, 16
        %v6082 = vrot.slane %v6080, 5
        %v6083 = vsel %vm1245, %v6078, %v6082
        %v6084 = vshrl.u32 %v6026, 16
        %v6086 = vrot.slane %v6084, 4
        %v6087 = vor.u32 %v6086, %v6082
        %v6088 = vrot.slane %v6087, 4
        %v6090 = vshll.u32 %v6027, 16
        %v6092 = vrot.slane %v6090, 5
        %v6093 = vsel %vm1245, %v6088, %v6092
        %v6095 = vshrl.u32 %v6028, 16
        %v6097 = vrot.slane %v6095, 4
        %v6098 = vshll.u32 %v6028, 16
        %v6100 = vrot.slane %v6098, 5
        %v6101 = vor.u32 %v6097, %v6100
        %v6102 = vrot.slane %v6101, 4
        %v6104 = vshll.u32 %v6029, 16
        %v6106 = vrot.slane %v6104, 5
        %v6107 = vsel %vm1245, %v6102, %v6106
        %v6108 = vshrl.u32 %v6029, 16
        %v6110 = vrot.slane %v6108, 4
        %v6111 = vor.u32 %v6110, %v6106
        %v6112 = vrot.slane %v6111, 4
        %v6114 = vshll.u32 %v6030, 16
        %v6116 = vrot.slane %v6114, 5
        %v6117 = vsel %vm1245, %v6112, %v6116
        %v6119 = vshrl.u32 %v6031, 16
        %v6121 = vrot.slane %v6119, 4
        %v6122 = vshll.u32 %v6031, 16
        %v6124 = vrot.slane %v6122, 5
        %v6125 = vor.u32 %v6121, %v6124
        %v6126 = vrot.slane %v6125, 4
        %v6128 = vshll.u32 %v6032, 16
        %v6130 = vrot.slane %v6128, 5
        %v6131 = vsel %vm1245, %v6126, %v6130
        %v6132 = vshrl.u32 %v6032, 16
        %v6134 = vrot.slane %v6132, 4
        %v6135 = vor.u32 %v6134, %v6130
        %v6136 = vrot.slane %v6135, 4
        %v6138 = vshll.u32 %v6033, 16
        %v6140 = vrot.slane %v6138, 5
        %v6141 = vsel %vm1245, %v6136, %v6140
        %v6143 = vshrl.u32 %v6034, 16
        %v6145 = vrot.slane %v6143, 4
        %v6146 = vshll.u32 %v6034, 16
        %v6148 = vrot.slane %v6146, 5
        %v6149 = vor.u32 %v6145, %v6148
        %v6150 = vrot.slane %v6149, 4
        %v6152 = vshll.u32 %v6035, 16
        %v6154 = vrot.slane %v6152, 5
        %v6155 = vsel %vm1245, %v6150, %v6154
        %v6156 = vshrl.u32 %v6035, 16
        %v6158 = vrot.slane %v6156, 4
        %v6159 = vor.u32 %v6158, %v6154
        %v6160 = vrot.slane %v6159, 4
        %v6162 = vshll.u32 %v6036, 16
        %v6164 = vrot.slane %v6162, 5
        %v6165 = vsel %vm1245, %v6160, %v6164
        %v6167 = vshrl.u32 %v6037, 16
        %v6169 = vrot.slane %v6167, 4
        %v6170 = vshll.u32 %v6037, 16
        %v6172 = vrot.slane %v6170, 5
        %v6173 = vor.u32 %v6169, %v6172
        %v6174 = vrot.slane %v6173, 4
        %v6176 = vshll.u32 %v6038, 16
        %v6178 = vrot.slane %v6176, 5
        %v6179 = vsel %vm1245, %v6174, %v6178
        %v6180 = vshrl.u32 %v6038, 16
        %v6182 = vrot.slane %v6180, 4
        %v6183 = vor.u32 %v6182, %v6178
        %v6184 = vrot.slane %v6183, 4
        %v6186 = vshll.u32 %v6039, 16
        %v6188 = vrot.slane %v6186, 5
        %v6189 = vsel %vm1245, %v6184, %v6188
        %v6191 = vshrl.u32 %v6040, 16
        %v6193 = vrot.slane %v6191, 4
        %v6194 = vshll.u32 %v6040, 16
        %v6196 = vrot.slane %v6194, 5
        %v6197 = vor.u32 %v6193, %v6196
        %v6198 = vrot.slane %v6197, 4
        %v6200 = vshll.u32 %v6041, 16
        %v6202 = vrot.slane %v6200, 5
        %v6203 = vsel %vm1245, %v6198, %v6202
        %v6204 = vshrl.u32 %v6041, 16
        %v6206 = vrot.slane %v6204, 4
        %v6207 = vor.u32 %v6206, %v6202
        %v6208 = vrot.slane %v6207, 4
        %v6210 = vshll.u32 %v6042, 16
        %v6212 = vrot.slane %v6210, 5
        %v6213 = vsel %vm1245, %v6208, %v6212
        %v6215 = vshrl.u32 %v6043, 16
        %v6217 = vrot.slane %v6215, 4
        %v6218 = vshll.u32 %v6043, 16
        %v6220 = vrot.slane %v6218, 5
        %v6221 = vor.u32 %v6217, %v6220
        %v6222 = vrot.slane %v6221, 4
        %v6224 = vshll.u32 %v6044, 16
        %v6226 = vrot.slane %v6224, 5
        %v6227 = vsel %vm1245, %v6222, %v6226
        %v6228 = vshrl.u32 %v6044, 16
        %v6230 = vrot.slane %v6228, 4
        %v6231 = vor.u32 %v6230, %v6226
        %v6232 = vrot.slane %v6231, 4
        %v6234 = vshll.u32 %v6045, 16
        %v6236 = vrot.slane %v6234, 5
        %v6237 = vsel %vm1245, %v6232, %v6236
        %s6238 = scalar_lea.vmem [#allocation12], 256
        %v6239 = vld [vmem:[%s6238] sm:$0xf]
        %v6240 = vld [vmem:[%s6238 + $0x4] sm:$0xf]
        %v6241 = vld [vmem:[%s6238 + $0x8] sm:$0xf]
        %v6242 = vld [vmem:[%s6238 + $0xc] sm:$0xf]
        %v6243 = vld [vmem:[%s6238 + $0x10] sm:$0xf]
        %v6244 = vld [vmem:[%s6238 + $0x14] sm:$0xf]
        %v6245 = vld [vmem:[%s6238 + $0x18] sm:$0xf]
        %v6246 = vld [vmem:[%s6238 + $0x1c] sm:$0xf]
        %v6247 = vld [vmem:[%s6238 + $0x20] sm:$0xf]
        %v6248 = vld [vmem:[%s6238 + $0x24] sm:$0xf]
        %v6249 = vld [vmem:[%s6238 + $0x28] sm:$0xf]
        %v6250 = vld [vmem:[%s6238 + $0x2c] sm:$0xf]
        %v6251 = vld [vmem:[%s6238 + $0x30] sm:$0xf]
        %v6252 = vld [vmem:[%s6238 + $0x34] sm:$0xf]
        %v6253 = vld [vmem:[%s6238 + $0x38] sm:$0xf]
        %v6254 = vld [vmem:[%s6238 + $0x3c] sm:$0xf]
        %v6255 = vunpack.c.l.b16 %v6059
        %v6256 = vunpack.c.l.b16 %v6069
        %v6257 = vunpack.c.l.b16 %v6083
        %v6258 = vunpack.c.l.b16 %v6093
        %v6259 = vunpack.c.l.b16 %v6107
        %v6260 = vunpack.c.l.b16 %v6117
        %v6261 = vunpack.c.l.b16 %v6131
        %v6262 = vunpack.c.l.b16 %v6141
        %v6263 = vunpack.c.l.b16 %v6155
        %v6264 = vunpack.c.l.b16 %v6165
        %v6265 = vunpack.c.l.b16 %v6179
        %v6266 = vunpack.c.l.b16 %v6189
        %v6267 = vunpack.c.l.b16 %v6203
        %v6268 = vunpack.c.l.b16 %v6213
        %v6269 = vunpack.c.l.b16 %v6227
        %v6270 = vunpack.c.l.b16 %v6237
        %v6271 = vpack.c.b16 %v6256, %v6255
        %v6272 = vpack.c.b16 %v6258, %v6257
        %v6273 = vpack.c.b16 %v6260, %v6259
        %v6274 = vpack.c.b16 %v6262, %v6261
        %v6275 = vpack.c.b16 %v6264, %v6263
        %v6276 = vpack.c.b16 %v6266, %v6265
        %v6277 = vpack.c.b16 %v6268, %v6267
        %v6278 = vpack.c.b16 %v6270, %v6269
        %v6303 = vunpack.c.l.b16 %v6239
        %v6304 = vunpack.c.l.b16 %v6240
        %v6305 = vunpack.c.l.b16 %v6241
        %v6306 = vunpack.c.l.b16 %v6242
        %v6307 = vunpack.c.l.b16 %v6243
        %v6308 = vunpack.c.l.b16 %v6244
        %v6309 = vunpack.c.l.b16 %v6245
        %v6310 = vunpack.c.l.b16 %v6246
        %v6311 = vunpack.c.l.b16 %v6247
        %v6312 = vunpack.c.l.b16 %v6248
        %v6313 = vunpack.c.l.b16 %v6249
        %v6314 = vunpack.c.l.b16 %v6250
        %v6315 = vunpack.c.l.b16 %v6251
        %v6316 = vunpack.c.l.b16 %v6252
        %v6317 = vunpack.c.l.b16 %v6253
        %v6318 = vunpack.c.l.b16 %v6254
        %v6319 = vpack.c.b16 %v6304, %v6303
        %v6320 = vpack.c.b16 %v6306, %v6305
        %v6321 = vpack.c.b16 %v6308, %v6307
        %v6322 = vpack.c.b16 %v6310, %v6309
        %v6323 = vpack.c.b16 %v6312, %v6311
        %v6324 = vpack.c.b16 %v6314, %v6313
        %v6325 = vpack.c.b16 %v6316, %v6315
        %v6326 = vpack.c.b16 %v6318, %v6317
        %6335 = vmatprep.subr.bf16.mxu0 0
        %6336 = vmatpush1.bf16.msra.mxu0 %v6319
        %6337 = vmatprep.subr.bf16.mxu0 0
        %6338 = vmatpush1.bf16.msra.mxu0 %v6320
        %6339 = vmatprep.subr.bf16.mxu0 0
        %6340 = vmatpush1.bf16.msra.mxu0 %v6321
        %6341 = vmatprep.subr.bf16.mxu0 0
        %6342 = vmatpush1.bf16.msra.mxu0 %v6322
        %6343 = vmatprep.subr.bf16.mxu0 0
        %6344 = vmatpush1.bf16.msra.mxu0 %v6323
        %6345 = vmatprep.subr.bf16.mxu0 0
        %6346 = vmatpush1.bf16.msra.mxu0 %v6324
        %6347 = vmatprep.subr.bf16.mxu0 0
        %6348 = vmatpush1.bf16.msra.mxu0 %v6325
        %6349 = vmatprep.subr.bf16.mxu0 0
        %6350 = vmatpush1.bf16.msra.mxu0 %v6326
        %6351 = vmatprep.subr.bf16.mxu0 0
        %6352 = vmatpush1.bf16.msra.mxu0 0
        %6353 = vmatprep.subr.bf16.mxu0 0
        %6354 = vmatpush1.bf16.msra.mxu0 0
        %6355 = vmatprep.subr.bf16.mxu0 0
        %6356 = vmatpush1.bf16.msra.mxu0 0
        %6357 = vmatprep.subr.bf16.mxu0 0
        %6358 = vmatpush1.bf16.msra.mxu0 0
        %6359 = vmatprep.subr.bf16.mxu0 0
        %6360 = vmatpush1.bf16.msra.mxu0 0
        %6361 = vmatprep.subr.bf16.mxu0 0
        %6362 = vmatpush1.bf16.msra.mxu0 0
        %6363 = vmatprep.subr.bf16.mxu0 0
        %6364 = vmatpush1.bf16.msra.mxu0 0
        %6365 = vmatprep.subr.bf16.mxu0 0
        %6366 = vmatpush1.bf16.msra.mxu0 0
        %6367 = vmatprep.mubr.bf16.mxu0 0
        %6368 = vmatmul.mubr.bf16.gmra.mrb[0].mxu0 %v6271
        %v6369 = vpop.f32.mrb[0].mxu0
        %v6370 = vadd.f32 0.0, %v6369
        %v6371 = vpop.f32.mrb[0].mxu0
        %v6372 = vpop.f32.mrb[0].mxu0
        %v6373 = vadd.f32 0.0, %v6372
        %v6374 = vpop.f32.mrb[0].mxu0
        %6375 = vmatprep.mubr.bf16.mxu0 0
        %6376 = vmatmul.mubr.bf16.gmra.mrb[0].mxu0 %v6272
        %v6377 = vpop.f32.mrb[0].mxu0
        %v6378 = vadd.f32 0.0, %v6377
        %v6379 = vpop.f32.mrb[0].mxu0
        %v6380 = vpop.f32.mrb[0].mxu0
        %v6381 = vadd.f32 0.0, %v6380
        %v6382 = vpop.f32.mrb[0].mxu0
        %6383 = vmatprep.mubr.bf16.mxu0 0
        %6384 = vmatmul.mubr.bf16.gmra.mrb[0].mxu0 %v6273
        %v6385 = vpop.f32.mrb[0].mxu0
        %v6386 = vadd.f32 0.0, %v6385
        %v6387 = vpop.f32.mrb[0].mxu0
        %v6388 = vpop.f32.mrb[0].mxu0
        %v6389 = vadd.f32 0.0, %v6388
        %v6390 = vpop.f32.mrb[0].mxu0
        %6391 = vmatprep.mubr.bf16.mxu0 0
        %6392 = vmatmul.mubr.bf16.gmra.mrb[0].mxu0 %v6274
        %v6393 = vpop.f32.mrb[0].mxu0
        %v6394 = vadd.f32 0.0, %v6393
        %v6395 = vpop.f32.mrb[0].mxu0
        %v6396 = vpop.f32.mrb[0].mxu0
        %v6397 = vadd.f32 0.0, %v6396
        %v6398 = vpop.f32.mrb[0].mxu0
        %6399 = vmatprep.mubr.bf16.mxu0 0
        %6400 = vmatmul.mubr.bf16.gmra.mrb[0].mxu0 %v6275
        %v6401 = vpop.f32.mrb[0].mxu0
        %v6402 = vadd.f32 0.0, %v6401
        %v6403 = vpop.f32.mrb[0].mxu0
        %v6404 = vpop.f32.mrb[0].mxu0
        %v6405 = vadd.f32 0.0, %v6404
        %v6406 = vpop.f32.mrb[0].mxu0
        %6407 = vmatprep.mubr.bf16.mxu0 0
        %6408 = vmatmul.mubr.bf16.gmra.mrb[0].mxu0 %v6276
        %v6409 = vpop.f32.mrb[0].mxu0
        %v6410 = vadd.f32 0.0, %v6409
        %v6411 = vpop.f32.mrb[0].mxu0
        %v6412 = vpop.f32.mrb[0].mxu0
        %v6413 = vadd.f32 0.0, %v6412
        %v6414 = vpop.f32.mrb[0].mxu0
        %6415 = vmatprep.mubr.bf16.mxu0 0
        %6416 = vmatmul.mubr.bf16.gmra.mrb[0].mxu0 %v6277
        %v6417 = vpop.f32.mrb[0].mxu0
        %v6418 = vadd.f32 0.0, %v6417
        %v6419 = vpop.f32.mrb[0].mxu0
        %v6420 = vpop.f32.mrb[0].mxu0
        %v6421 = vadd.f32 0.0, %v6420
        %v6422 = vpop.f32.mrb[0].mxu0
        %6423 = vmatprep.mubr.bf16.mxu0 0
        %6424 = vmatmul.mubr.bf16.gmra.mrb[0].mxu0 %v6278
        %v6425 = vpop.f32.mrb[0].mxu0
        %v6426 = vadd.f32 0.0, %v6425
        %v6427 = vpop.f32.mrb[0].mxu0
        %v6428 = vpop.f32.mrb[0].mxu0
        %v6429 = vadd.f32 0.0, %v6428
        %v6430 = vpop.f32.mrb[0].mxu0
        %6431 = vdwg.mxu0
        %v6432 = vadd.f32 %v6006, %v6370
        %v6433 = vadd.f32 %v6007, %v6373
        %v6434 = vadd.f32 %v6008, %v6378
        %v6435 = vadd.f32 %v6009, %v6381
        %v6436 = vadd.f32 %v6010, %v6386
        %v6437 = vadd.f32 %v6011, %v6389
        %v6438 = vadd.f32 %v6012, %v6394
        %v6439 = vadd.f32 %v6013, %v6397
        %v6440 = vadd.f32 %v6014, %v6402
        %v6441 = vadd.f32 %v6015, %v6405
        %v6442 = vadd.f32 %v6016, %v6410
        %v6443 = vadd.f32 %v6017, %v6413
        %v6444 = vadd.f32 %v6018, %v6418
        %v6445 = vadd.f32 %v6019, %v6421
        %v6446 = vadd.f32 %v6020, %v6426
        %v6447 = vadd.f32 %v6021, %v6429
        %v6448 = vld [vmem:[%s5779] sm:$0xe]
        %v6449 = vld [vmem:[%s5779 + $0xc] sm:$0xe]
        %v6450 = vld [vmem:[%s5779 + $0x18] sm:$0xe]
        %v6451 = vld [vmem:[%s5779 + $0x24] sm:$0xe]
        %v6452 = vld [vmem:[%s5779 + $0x30] sm:$0xe]
        %v6453 = vld [vmem:[%s5779 + $0x3c] sm:$0xe]
        %v6454 = vld [vmem:[%s5779 + $0x48] sm:$0xe]
        %v6455 = vld [vmem:[%s5779 + $0x54] sm:$0xe]
        %v6480 = vrot.slane %v6448, 5
        %v6481 = vrot.slane %v6480, 4
        %v6482 = vrot.slane %v6023, 5
        %v6483 = vsel %vm1766, %v6481, %v6482
        %v6484 = vrot.slane %v6482, 4
        %v6485 = vrot.slane %v6024, 5
        %v6486 = vsel %vm1766, %v6484, %v6485
        %v6487 = vrot.slane %v6449, 5
        %v6488 = vrot.slane %v6487, 4
        %v6489 = vrot.slane %v6026, 5
        %v6490 = vsel %vm1766, %v6488, %v6489
        %v6491 = vrot.slane %v6489, 4
        %v6492 = vrot.slane %v6027, 5
        %v6493 = vsel %vm1766, %v6491, %v6492
        %v6494 = vrot.slane %v6450, 5
        %v6495 = vrot.slane %v6494, 4
        %v6496 = vrot.slane %v6029, 5
        %v6497 = vsel %vm1766, %v6495, %v6496
        %v6498 = vrot.slane %v6496, 4
        %v6499 = vrot.slane %v6030, 5
        %v6500 = vsel %vm1766, %v6498, %v6499
        %v6501 = vrot.slane %v6451, 5
        %v6502 = vrot.slane %v6501, 4
        %v6503 = vrot.slane %v6032, 5
        %v6504 = vsel %vm1766, %v6502, %v6503
        %v6505 = vrot.slane %v6503, 4
        %v6506 = vrot.slane %v6033, 5
        %v6507 = vsel %vm1766, %v6505, %v6506
        %v6508 = vrot.slane %v6452, 5
        %v6509 = vrot.slane %v6508, 4
        %v6510 = vrot.slane %v6035, 5
        %v6511 = vsel %vm1766, %v6509, %v6510
        %v6512 = vrot.slane %v6510, 4
        %v6513 = vrot.slane %v6036, 5
        %v6514 = vsel %vm1766, %v6512, %v6513
        %v6515 = vrot.slane %v6453, 5
        %v6516 = vrot.slane %v6515, 4
        %v6517 = vrot.slane %v6038, 5
        %v6518 = vsel %vm1766, %v6516, %v6517
        %v6519 = vrot.slane %v6517, 4
        %v6520 = vrot.slane %v6039, 5
        %v6521 = vsel %vm1766, %v6519, %v6520
        %v6522 = vrot.slane %v6454, 5
        %v6523 = vrot.slane %v6522, 4
        %v6524 = vrot.slane %v6041, 5
        %v6525 = vsel %vm1766, %v6523, %v6524
        %v6526 = vrot.slane %v6524, 4
        %v6527 = vrot.slane %v6042, 5
        %v6528 = vsel %vm1766, %v6526, %v6527
        %v6529 = vrot.slane %v6455, 5
        %v6530 = vrot.slane %v6529, 4
        %v6531 = vrot.slane %v6044, 5
        %v6532 = vsel %vm1766, %v6530, %v6531
        %v6533 = vrot.slane %v6531, 4
        %v6534 = vrot.slane %v6045, 5
        %v6535 = vsel %vm1766, %v6533, %v6534
        %s6536 = scalar_lea.vmem [#allocation12], 320
        %v6537 = vld [vmem:[%s6536] sm:$0xf]
        %v6538 = vld [vmem:[%s6536 + $0x4] sm:$0xf]
        %v6539 = vld [vmem:[%s6536 + $0x8] sm:$0xf]
        %v6540 = vld [vmem:[%s6536 + $0xc] sm:$0xf]
        %v6541 = vld [vmem:[%s6536 + $0x10] sm:$0xf]
        %v6542 = vld [vmem:[%s6536 + $0x14] sm:$0xf]
        %v6543 = vld [vmem:[%s6536 + $0x18] sm:$0xf]
        %v6544 = vld [vmem:[%s6536 + $0x1c] sm:$0xf]
        %v6545 = vld [vmem:[%s6536 + $0x20] sm:$0xf]
        %v6546 = vld [vmem:[%s6536 + $0x24] sm:$0xf]
        %v6547 = vld [vmem:[%s6536 + $0x28] sm:$0xf]
        %v6548 = vld [vmem:[%s6536 + $0x2c] sm:$0xf]
        %v6549 = vld [vmem:[%s6536 + $0x30] sm:$0xf]
        %v6550 = vld [vmem:[%s6536 + $0x34] sm:$0xf]
        %v6551 = vld [vmem:[%s6536 + $0x38] sm:$0xf]
        %v6552 = vld [vmem:[%s6536 + $0x3c] sm:$0xf]
        %v6553 = vunpack.c.l.b16 %v6483
        %v6554 = vunpack.c.l.b16 %v6486
        %v6555 = vunpack.c.l.b16 %v6490
        %v6556 = vunpack.c.l.b16 %v6493
        %v6557 = vunpack.c.l.b16 %v6497
        %v6558 = vunpack.c.l.b16 %v6500
        %v6559 = vunpack.c.l.b16 %v6504
        %v6560 = vunpack.c.l.b16 %v6507
        %v6561 = vunpack.c.l.b16 %v6511
        %v6562 = vunpack.c.l.b16 %v6514
        %v6563 = vunpack.c.l.b16 %v6518
        %v6564 = vunpack.c.l.b16 %v6521
        %v6565 = vunpack.c.l.b16 %v6525
        %v6566 = vunpack.c.l.b16 %v6528
        %v6567 = vunpack.c.l.b16 %v6532
        %v6568 = vunpack.c.l.b16 %v6535
        %v6569 = vpack.c.b16 %v6554, %v6553
        %v6570 = vpack.c.b16 %v6556, %v6555
        %v6571 = vpack.c.b16 %v6558, %v6557
        %v6572 = vpack.c.b16 %v6560, %v6559
        %v6573 = vpack.c.b16 %v6562, %v6561
        %v6574 = vpack.c.b16 %v6564, %v6563
        %v6575 = vpack.c.b16 %v6566, %v6565
        %v6576 = vpack.c.b16 %v6568, %v6567
        %v6601 = vunpack.c.l.b16 %v6537
        %v6602 = vunpack.c.l.b16 %v6538
        %v6603 = vunpack.c.l.b16 %v6539
        %v6604 = vunpack.c.l.b16 %v6540
        %v6605 = vunpack.c.l.b16 %v6541
        %v6606 = vunpack.c.l.b16 %v6542
        %v6607 = vunpack.c.l.b16 %v6543
        %v6608 = vunpack.c.l.b16 %v6544
        %v6609 = vunpack.c.l.b16 %v6545
        %v6610 = vunpack.c.l.b16 %v6546
        %v6611 = vunpack.c.l.b16 %v6547
        %v6612 = vunpack.c.l.b16 %v6548
        %v6613 = vunpack.c.l.b16 %v6549
        %v6614 = vunpack.c.l.b16 %v6550
        %v6615 = vunpack.c.l.b16 %v6551
        %v6616 = vunpack.c.l.b16 %v6552
        %v6617 = vpack.c.b16 %v6602, %v6601
        %v6618 = vpack.c.b16 %v6604, %v6603
        %v6619 = vpack.c.b16 %v6606, %v6605
        %v6620 = vpack.c.b16 %v6608, %v6607
        %v6621 = vpack.c.b16 %v6610, %v6609
        %v6622 = vpack.c.b16 %v6612, %v6611
        %v6623 = vpack.c.b16 %v6614, %v6613
        %v6624 = vpack.c.b16 %v6616, %v6615
        %6633 = vmatprep.subr.bf16.mxu0 0
        %6634 = vmatpush1.bf16.msra.mxu0 %v6617
        %6635 = vmatprep.subr.bf16.mxu0 0
        %6636 = vmatpush1.bf16.msra.mxu0 %v6618
        %6637 = vmatprep.subr.bf16.mxu0 0
        %6638 = vmatpush1.bf16.msra.mxu0 %v6619
        %6639 = vmatprep.subr.bf16.mxu0 0
        %6640 = vmatpush1.bf16.msra.mxu0 %v6620
        %6641 = vmatprep.subr.bf16.mxu0 0
        %6642 = vmatpush1.bf16.msra.mxu0 %v6621
        %6643 = vmatprep.subr.bf16.mxu0 0
        %6644 = vmatpush1.bf16.msra.mxu0 %v6622
        %6645 = vmatprep.subr.bf16.mxu0 0
        %6646 = vmatpush1.bf16.msra.mxu0 %v6623
        %6647 = vmatprep.subr.bf16.mxu0 0
        %6648 = vmatpush1.bf16.msra.mxu0 %v6624
        %6649 = vmatprep.subr.bf16.mxu0 0
        %6650 = vmatpush1.bf16.msra.mxu0 0
        %6651 = vmatprep.subr.bf16.mxu0 0
        %6652 = vmatpush1.bf16.msra.mxu0 0
        %6653 = vmatprep.subr.bf16.mxu0 0
        %6654 = vmatpush1.bf16.msra.mxu0 0
        %6655 = vmatprep.subr.bf16.mxu0 0
        %6656 = vmatpush1.bf16.msra.mxu0 0
        %6657 = vmatprep.subr.bf16.mxu0 0
        %6658 = vmatpush1.bf16.msra.mxu0 0
        %6659 = vmatprep.subr.bf16.mxu0 0
        %6660 = vmatpush1.bf16.msra.mxu0 0
        %6661 = vmatprep.subr.bf16.mxu0 0
        %6662 = vmatpush1.bf16.msra.mxu0 0
        %6663 = vmatprep.subr.bf16.mxu0 0
        %6664 = vmatpush1.bf16.msra.mxu0 0
        %6665 = vmatprep.mubr.bf16.mxu0 0
        %6666 = vmatmul.mubr.bf16.gmra.mrb[0].mxu0 %v6569
        %v6667 = vpop.f32.mrb[0].mxu0
        %v6668 = vadd.f32 0.0, %v6667
        %v6669 = vpop.f32.mrb[0].mxu0
        %v6670 = vpop.f32.mrb[0].mxu0
        %v6671 = vadd.f32 0.0, %v6670
        %v6672 = vpop.f32.mrb[0].mxu0
        %6673 = vmatprep.mubr.bf16.mxu0 0
        %6674 = vmatmul.mubr.bf16.gmra.mrb[0].mxu0 %v6570
        %v6675 = vpop.f32.mrb[0].mxu0
        %v6676 = vadd.f32 0.0, %v6675
        %v6677 = vpop.f32.mrb[0].mxu0
        %v6678 = vpop.f32.mrb[0].mxu0
        %v6679 = vadd.f32 0.0, %v6678
        %v6680 = vpop.f32.mrb[0].mxu0
        %6681 = vmatprep.mubr.bf16.mxu0 0
        %6682 = vmatmul.mubr.bf16.gmra.mrb[0].mxu0 %v6571
        %v6683 = vpop.f32.mrb[0].mxu0
        %v6684 = vadd.f32 0.0, %v6683
        %v6685 = vpop.f32.mrb[0].mxu0
        %v6686 = vpop.f32.mrb[0].mxu0
        %v6687 = vadd.f32 0.0, %v6686
        %v6688 = vpop.f32.mrb[0].mxu0
        %6689 = vmatprep.mubr.bf16.mxu0 0
        %6690 = vmatmul.mubr.bf16.gmra.mrb[0].mxu0 %v6572
        %v6691 = vpop.f32.mrb[0].mxu0
        %v6692 = vadd.f32 0.0, %v6691
        %v6693 = vpop.f32.mrb[0].mxu0
        %v6694 = vpop.f32.mrb[0].mxu0
        %v6695 = vadd.f32 0.0, %v6694
        %v6696 = vpop.f32.mrb[0].mxu0
        %6697 = vmatprep.mubr.bf16.mxu0 0
        %6698 = vmatmul.mubr.bf16.gmra.mrb[0].mxu0 %v6573
        %v6699 = vpop.f32.mrb[0].mxu0
        %v6700 = vadd.f32 0.0, %v6699
        %v6701 = vpop.f32.mrb[0].mxu0
        %v6702 = vpop.f32.mrb[0].mxu0
        %v6703 = vadd.f32 0.0, %v6702
        %v6704 = vpop.f32.mrb[0].mxu0
        %6705 = vmatprep.mubr.bf16.mxu0 0
        %6706 = vmatmul.mubr.bf16.gmra.mrb[0].mxu0 %v6574
        %v6707 = vpop.f32.mrb[0].mxu0
        %v6708 = vadd.f32 0.0, %v6707
        %v6709 = vpop.f32.mrb[0].mxu0
        %v6710 = vpop.f32.mrb[0].mxu0
        %v6711 = vadd.f32 0.0, %v6710
        %v6712 = vpop.f32.mrb[0].mxu0
        %6713 = vmatprep.mubr.bf16.mxu0 0
        %6714 = vmatmul.mubr.bf16.gmra.mrb[0].mxu0 %v6575
        %v6715 = vpop.f32.mrb[0].mxu0
        %v6716 = vadd.f32 0.0, %v6715
        %v6717 = vpop.f32.mrb[0].mxu0
        %v6718 = vpop.f32.mrb[0].mxu0
        %v6719 = vadd.f32 0.0, %v6718
        %v6720 = vpop.f32.mrb[0].mxu0
        %6721 = vmatprep.mubr.bf16.mxu0 0
        %6722 = vmatmul.mubr.bf16.gmra.mrb[0].mxu0 %v6576
        %v6723 = vpop.f32.mrb[0].mxu0
        %v6724 = vadd.f32 0.0, %v6723
        %v6725 = vpop.f32.mrb[0].mxu0
        %v6726 = vpop.f32.mrb[0].mxu0
        %v6727 = vadd.f32 0.0, %v6726
        %v6728 = vpop.f32.mrb[0].mxu0
        %6729 = vdwg.mxu0
        %v6730 = vadd.f32 %v6432, %v6668
        %v6731 = vadd.f32 %v6433, %v6671
        %v6732 = vadd.f32 %v6434, %v6676
        %v6733 = vadd.f32 %v6435, %v6679
        %v6734 = vadd.f32 %v6436, %v6684
        %v6735 = vadd.f32 %v6437, %v6687
        %v6736 = vadd.f32 %v6438, %v6692
        %v6737 = vadd.f32 %v6439, %v6695
        %v6738 = vadd.f32 %v6440, %v6700
        %v6739 = vadd.f32 %v6441, %v6703
        %v6740 = vadd.f32 %v6442, %v6708
        %v6741 = vadd.f32 %v6443, %v6711
        %v6742 = vadd.f32 %v6444, %v6716
        %v6743 = vadd.f32 %v6445, %v6719
        %v6744 = vadd.f32 %v6446, %v6724
        %v6745 = vadd.f32 %v6447, %v6727
        %s6746 = scalar_lea.vmem [#allocation3], 24
        %v6747 = vld [vmem:[%s6746] sm:$0xf]
        %v6748 = vld [vmem:[%s6746 + $0x4] sm:$0xf]
        %v6749 = vld [vmem:[%s6746 + $0xc] sm:$0xf]
        %v6750 = vld [vmem:[%s6746 + $0x10] sm:$0xf]
        %v6751 = vld [vmem:[%s6746 + $0x18] sm:$0xf]
        %v6752 = vld [vmem:[%s6746 + $0x1c] sm:$0xf]
        %v6753 = vld [vmem:[%s6746 + $0x24] sm:$0xf]
        %v6754 = vld [vmem:[%s6746 + $0x28] sm:$0xf]
        %v6755 = vld [vmem:[%s6746 + $0x30] sm:$0xf]
        %v6756 = vld [vmem:[%s6746 + $0x34] sm:$0xf]
        %v6757 = vld [vmem:[%s6746 + $0x3c] sm:$0xf]
        %v6758 = vld [vmem:[%s6746 + $0x40] sm:$0xf]
        %v6759 = vld [vmem:[%s6746 + $0x48] sm:$0xf]
        %v6760 = vld [vmem:[%s6746 + $0x4c] sm:$0xf]
        %v6761 = vld [vmem:[%s6746 + $0x54] sm:$0xf]
        %v6762 = vld [vmem:[%s6746 + $0x58] sm:$0xf]
        %s6763 = scalar_lea.vmem [#allocation12], 384
        %v6764 = vld [vmem:[%s6763] sm:$0xf]
        %v6765 = vld [vmem:[%s6763 + $0x4] sm:$0xf]
        %v6766 = vld [vmem:[%s6763 + $0x8] sm:$0xf]
        %v6767 = vld [vmem:[%s6763 + $0xc] sm:$0xf]
        %v6768 = vld [vmem:[%s6763 + $0x10] sm:$0xf]
        %v6769 = vld [vmem:[%s6763 + $0x14] sm:$0xf]
        %v6770 = vld [vmem:[%s6763 + $0x18] sm:$0xf]
        %v6771 = vld [vmem:[%s6763 + $0x1c] sm:$0xf]
        %v6772 = vld [vmem:[%s6763 + $0x20] sm:$0xf]
        %v6773 = vld [vmem:[%s6763 + $0x24] sm:$0xf]
        %v6774 = vld [vmem:[%s6763 + $0x28] sm:$0xf]
        %v6775 = vld [vmem:[%s6763 + $0x2c] sm:$0xf]
        %v6776 = vld [vmem:[%s6763 + $0x30] sm:$0xf]
        %v6777 = vld [vmem:[%s6763 + $0x34] sm:$0xf]
        %v6778 = vld [vmem:[%s6763 + $0x38] sm:$0xf]
        %v6779 = vld [vmem:[%s6763 + $0x3c] sm:$0xf]
        %v6796 = vunpack.c.l.b16 %v6747
        %v6797 = vunpack.c.l.b16 %v6748
        %v6798 = vunpack.c.l.b16 %v6749
        %v6799 = vunpack.c.l.b16 %v6750
        %v6800 = vunpack.c.l.b16 %v6751
        %v6801 = vunpack.c.l.b16 %v6752
        %v6802 = vunpack.c.l.b16 %v6753
        %v6803 = vunpack.c.l.b16 %v6754
        %v6804 = vunpack.c.l.b16 %v6755
        %v6805 = vunpack.c.l.b16 %v6756
        %v6806 = vunpack.c.l.b16 %v6757
        %v6807 = vunpack.c.l.b16 %v6758
        %v6808 = vunpack.c.l.b16 %v6759
        %v6809 = vunpack.c.l.b16 %v6760
        %v6810 = vunpack.c.l.b16 %v6761
        %v6811 = vunpack.c.l.b16 %v6762
        %v6812 = vpack.c.b16 %v6797, %v6796
        %v6813 = vpack.c.b16 %v6799, %v6798
        %v6814 = vpack.c.b16 %v6801, %v6800
        %v6815 = vpack.c.b16 %v6803, %v6802
        %v6816 = vpack.c.b16 %v6805, %v6804
        %v6817 = vpack.c.b16 %v6807, %v6806
        %v6818 = vpack.c.b16 %v6809, %v6808
        %v6819 = vpack.c.b16 %v6811, %v6810
        %v6844 = vunpack.c.l.b16 %v6764
        %v6845 = vunpack.c.l.b16 %v6765
        %v6846 = vunpack.c.l.b16 %v6766
        %v6847 = vunpack.c.l.b16 %v6767
        %v6848 = vunpack.c.l.b16 %v6768
        %v6849 = vunpack.c.l.b16 %v6769
        %v6850 = vunpack.c.l.b16 %v6770
        %v6851 = vunpack.c.l.b16 %v6771
        %v6852 = vunpack.c.l.b16 %v6772
        %v6853 = vunpack.c.l.b16 %v6773
        %v6854 = vunpack.c.l.b16 %v6774
        %v6855 = vunpack.c.l.b16 %v6775
        %v6856 = vunpack.c.l.b16 %v6776
        %v6857 = vunpack.c.l.b16 %v6777
        %v6858 = vunpack.c.l.b16 %v6778
        %v6859 = vunpack.c.l.b16 %v6779
        %v6860 = vpack.c.b16 %v6845, %v6844
        %v6861 = vpack.c.b16 %v6847, %v6846
        %v6862 = vpack.c.b16 %v6849, %v6848
        %v6863 = vpack.c.b16 %v6851, %v6850
        %v6864 = vpack.c.b16 %v6853, %v6852
        %v6865 = vpack.c.b16 %v6855, %v6854
        %v6866 = vpack.c.b16 %v6857, %v6856
        %v6867 = vpack.c.b16 %v6859, %v6858
        %6876 = vmatprep.subr.bf16.mxu0 0
        %6877 = vmatpush1.bf16.msra.mxu0 %v6860
        %6878 = vmatprep.subr.bf16.mxu0 0
        %6879 = vmatpush1.bf16.msra.mxu0 %v6861
        %6880 = vmatprep.subr.bf16.mxu0 0
        %6881 = vmatpush1.bf16.msra.mxu0 %v6862
        %6882 = vmatprep.subr.bf16.mxu0 0
        %6883 = vmatpush1.bf16.msra.mxu0 %v6863
        %6884 = vmatprep.subr.bf16.mxu0 0
        %6885 = vmatpush1.bf16.msra.mxu0 %v6864
        %6886 = vmatprep.subr.bf16.mxu0 0
        %6887 = vmatpush1.bf16.msra.mxu0 %v6865
        %6888 = vmatprep.subr.bf16.mxu0 0
        %6889 = vmatpush1.bf16.msra.mxu0 %v6866
        %6890 = vmatprep.subr.bf16.mxu0 0
        %6891 = vmatpush1.bf16.msra.mxu0 %v6867
        %6892 = vmatprep.subr.bf16.mxu0 0
        %6893 = vmatpush1.bf16.msra.mxu0 0
        %6894 = vmatprep.subr.bf16.mxu0 0
        %6895 = vmatpush1.bf16.msra.mxu0 0
        %6896 = vmatprep.subr.bf16.mxu0 0
        %6897 = vmatpush1.bf16.msra.mxu0 0
        %6898 = vmatprep.subr.bf16.mxu0 0
        %6899 = vmatpush1.bf16.msra.mxu0 0
        %6900 = vmatprep.subr.bf16.mxu0 0
        %6901 = vmatpush1.bf16.msra.mxu0 0
        %6902 = vmatprep.subr.bf16.mxu0 0
        %6903 = vmatpush1.bf16.msra.mxu0 0
        %6904 = vmatprep.subr.bf16.mxu0 0
        %6905 = vmatpush1.bf16.msra.mxu0 0
        %6906 = vmatprep.subr.bf16.mxu0 0
        %6907 = vmatpush1.bf16.msra.mxu0 0
        %6908 = vmatprep.mubr.bf16.mxu0 0
        %6909 = vmatmul.mubr.bf16.gmra.mrb[0].mxu0 %v6812
        %v6910 = vpop.f32.mrb[0].mxu0
        %v6911 = vadd.f32 0.0, %v6910
        %v6912 = vpop.f32.mrb[0].mxu0
        %v6913 = vpop.f32.mrb[0].mxu0
        %v6914 = vadd.f32 0.0, %v6913
        %v6915 = vpop.f32.mrb[0].mxu0
        %6916 = vmatprep.mubr.bf16.mxu0 0
        %6917 = vmatmul.mubr.bf16.gmra.mrb[0].mxu0 %v6813
        %v6918 = vpop.f32.mrb[0].mxu0
        %v6919 = vadd.f32 0.0, %v6918
        %v6920 = vpop.f32.mrb[0].mxu0
        %v6921 = vpop.f32.mrb[0].mxu0
        %v6922 = vadd.f32 0.0, %v6921
        %v6923 = vpop.f32.mrb[0].mxu0
        %6924 = vmatprep.mubr.bf16.mxu0 0
        %6925 = vmatmul.mubr.bf16.gmra.mrb[0].mxu0 %v6814
        %v6926 = vpop.f32.mrb[0].mxu0
        %v6927 = vadd.f32 0.0, %v6926
        %v6928 = vpop.f32.mrb[0].mxu0
        %v6929 = vpop.f32.mrb[0].mxu0
        %v6930 = vadd.f32 0.0, %v6929
        %v6931 = vpop.f32.mrb[0].mxu0
        %6932 = vmatprep.mubr.bf16.mxu0 0
        %6933 = vmatmul.mubr.bf16.gmra.mrb[0].mxu0 %v6815
        %v6934 = vpop.f32.mrb[0].mxu0
        %v6935 = vadd.f32 0.0, %v6934
        %v6936 = vpop.f32.mrb[0].mxu0
        %v6937 = vpop.f32.mrb[0].mxu0
        %v6938 = vadd.f32 0.0, %v6937
        %v6939 = vpop.f32.mrb[0].mxu0
        %6940 = vmatprep.mubr.bf16.mxu0 0
        %6941 = vmatmul.mubr.bf16.gmra.mrb[0].mxu0 %v6816
        %v6942 = vpop.f32.mrb[0].mxu0
        %v6943 = vadd.f32 0.0, %v6942
        %v6944 = vpop.f32.mrb[0].mxu0
        %v6945 = vpop.f32.mrb[0].mxu0
        %v6946 = vadd.f32 0.0, %v6945
        %v6947 = vpop.f32.mrb[0].mxu0
        %6948 = vmatprep.mubr.bf16.mxu0 0
        %6949 = vmatmul.mubr.bf16.gmra.mrb[0].mxu0 %v6817
        %v6950 = vpop.f32.mrb[0].mxu0
        %v6951 = vadd.f32 0.0, %v6950
        %v6952 = vpop.f32.mrb[0].mxu0
        %v6953 = vpop.f32.mrb[0].mxu0
        %v6954 = vadd.f32 0.0, %v6953
        %v6955 = vpop.f32.mrb[0].mxu0
        %6956 = vmatprep.mubr.bf16.mxu0 0
        %6957 = vmatmul.mubr.bf16.gmra.mrb[0].mxu0 %v6818
        %v6958 = vpop.f32.mrb[0].mxu0
        %v6959 = vadd.f32 0.0, %v6958
        %v6960 = vpop.f32.mrb[0].mxu0
        %v6961 = vpop.f32.mrb[0].mxu0
        %v6962 = vadd.f32 0.0, %v6961
        %v6963 = vpop.f32.mrb[0].mxu0
        %6964 = vmatprep.mubr.bf16.mxu0 0
        %6965 = vmatmul.mubr.bf16.gmra.mrb[0].mxu0 %v6819
        %v6966 = vpop.f32.mrb[0].mxu0
        %v6967 = vadd.f32 0.0, %v6966
        %v6968 = vpop.f32.mrb[0].mxu0
        %v6969 = vpop.f32.mrb[0].mxu0
        %v6970 = vadd.f32 0.0, %v6969
        %v6971 = vpop.f32.mrb[0].mxu0
        %6972 = vdwg.mxu0
        %v6973 = vadd.f32 %v6730, %v6911
        %v6974 = vadd.f32 %v6731, %v6914
        %v6975 = vadd.f32 %v6732, %v6919
        %v6976 = vadd.f32 %v6733, %v6922
        %v6977 = vadd.f32 %v6734, %v6927
        %v6978 = vadd.f32 %v6735, %v6930
        %v6979 = vadd.f32 %v6736, %v6935
        %v6980 = vadd.f32 %v6737, %v6938
        %v6981 = vadd.f32 %v6738, %v6943
        %v6982 = vadd.f32 %v6739, %v6946
        %v6983 = vadd.f32 %v6740, %v6951
        %v6984 = vadd.f32 %v6741, %v6954
        %v6985 = vadd.f32 %v6742, %v6959
        %v6986 = vadd.f32 %v6743, %v6962
        %v6987 = vadd.f32 %v6744, %v6967
        %v6988 = vadd.f32 %v6745, %v6970
        %v6989 = vld [vmem:[%s6746] sm:$0xf]
        %v6990 = vld [vmem:[%s6746 + $0x4] sm:$0xf]
        %v6991 = vld [vmem:[%s6746 + $0x8] sm:$0x1]
        %v6992 = vld [vmem:[%s6746 + $0xc] sm:$0xf]
        %v6993 = vld [vmem:[%s6746 + $0x10] sm:$0xf]
        %v6994 = vld [vmem:[%s6746 + $0x14] sm:$0x1]
        %v6995 = vld [vmem:[%s6746 + $0x18] sm:$0xf]
        %v6996 = vld [vmem:[%s6746 + $0x1c] sm:$0xf]
        %v6997 = vld [vmem:[%s6746 + $0x20] sm:$0x1]
        %v6998 = vld [vmem:[%s6746 + $0x24] sm:$0xf]
        %v6999 = vld [vmem:[%s6746 + $0x28] sm:$0xf]
        %v7000 = vld [vmem:[%s6746 + $0x2c] sm:$0x1]
        %v7001 = vld [vmem:[%s6746 + $0x30] sm:$0xf]
        %v7002 = vld [vmem:[%s6746 + $0x34] sm:$0xf]
        %v7003 = vld [vmem:[%s6746 + $0x38] sm:$0x1]
        %v7004 = vld [vmem:[%s6746 + $0x3c] sm:$0xf]
        %v7005 = vld [vmem:[%s6746 + $0x40] sm:$0xf]
        %v7006 = vld [vmem:[%s6746 + $0x44] sm:$0x1]
        %v7007 = vld [vmem:[%s6746 + $0x48] sm:$0xf]
        %v7008 = vld [vmem:[%s6746 + $0x4c] sm:$0xf]
        %v7009 = vld [vmem:[%s6746 + $0x50] sm:$0x1]
        %v7010 = vld [vmem:[%s6746 + $0x54] sm:$0xf]
        %v7011 = vld [vmem:[%s6746 + $0x58] sm:$0xf]
        %v7012 = vld [vmem:[%s6746 + $0x5c] sm:$0x1]
        %v7014 = vshrl.u32 %v6989, 16
        %v7016 = vrot.slane %v7014, 4
        %v7017 = vshll.u32 %v6989, 16
        %v7019 = vrot.slane %v7017, 5
        %v7020 = vor.u32 %v7016, %v7019
        %v7021 = vrot.slane %v7020, 4
        %v7023 = vshll.u32 %v6990, 16
        %v7025 = vrot.slane %v7023, 5
        %v7026 = vsel %vm1245, %v7021, %v7025
        %v7027 = vshrl.u32 %v6990, 16
        %v7029 = vrot.slane %v7027, 4
        %v7030 = vor.u32 %v7029, %v7025
        %v7031 = vrot.slane %v7030, 4
        %v7033 = vshll.u32 %v6991, 16
        %v7035 = vrot.slane %v7033, 5
        %v7036 = vsel %vm1245, %v7031, %v7035
        %v7038 = vshrl.u32 %v6992, 16
        %v7040 = vrot.slane %v7038, 4
        %v7041 = vshll.u32 %v6992, 16
        %v7043 = vrot.slane %v7041, 5
        %v7044 = vor.u32 %v7040, %v7043
        %v7045 = vrot.slane %v7044, 4
        %v7047 = vshll.u32 %v6993, 16
        %v7049 = vrot.slane %v7047, 5
        %v7050 = vsel %vm1245, %v7045, %v7049
        %v7051 = vshrl.u32 %v6993, 16
        %v7053 = vrot.slane %v7051, 4
        %v7054 = vor.u32 %v7053, %v7049
        %v7055 = vrot.slane %v7054, 4
        %v7057 = vshll.u32 %v6994, 16
        %v7059 = vrot.slane %v7057, 5
        %v7060 = vsel %vm1245, %v7055, %v7059
        %v7062 = vshrl.u32 %v6995, 16
        %v7064 = vrot.slane %v7062, 4
        %v7065 = vshll.u32 %v6995, 16
        %v7067 = vrot.slane %v7065, 5
        %v7068 = vor.u32 %v7064, %v7067
        %v7069 = vrot.slane %v7068, 4
        %v7071 = vshll.u32 %v6996, 16
        %v7073 = vrot.slane %v7071, 5
        %v7074 = vsel %vm1245, %v7069, %v7073
        %v7075 = vshrl.u32 %v6996, 16
        %v7077 = vrot.slane %v7075, 4
        %v7078 = vor.u32 %v7077, %v7073
        %v7079 = vrot.slane %v7078, 4
        %v7081 = vshll.u32 %v6997, 16
        %v7083 = vrot.slane %v7081, 5
        %v7084 = vsel %vm1245, %v7079, %v7083
        %v7086 = vshrl.u32 %v6998, 16
        %v7088 = vrot.slane %v7086, 4
        %v7089 = vshll.u32 %v6998, 16
        %v7091 = vrot.slane %v7089, 5
        %v7092 = vor.u32 %v7088, %v7091
        %v7093 = vrot.slane %v7092, 4
        %v7095 = vshll.u32 %v6999, 16
        %v7097 = vrot.slane %v7095, 5
        %v7098 = vsel %vm1245, %v7093, %v7097
        %v7099 = vshrl.u32 %v6999, 16
        %v7101 = vrot.slane %v7099, 4
        %v7102 = vor.u32 %v7101, %v7097
        %v7103 = vrot.slane %v7102, 4
        %v7105 = vshll.u32 %v7000, 16
        %v7107 = vrot.slane %v7105, 5
        %v7108 = vsel %vm1245, %v7103, %v7107
        %v7110 = vshrl.u32 %v7001, 16
        %v7112 = vrot.slane %v7110, 4
        %v7113 = vshll.u32 %v7001, 16
        %v7115 = vrot.slane %v7113, 5
        %v7116 = vor.u32 %v7112, %v7115
        %v7117 = vrot.slane %v7116, 4
        %v7119 = vshll.u32 %v7002, 16
        %v7121 = vrot.slane %v7119, 5
        %v7122 = vsel %vm1245, %v7117, %v7121
        %v7123 = vshrl.u32 %v7002, 16
        %v7125 = vrot.slane %v7123, 4
        %v7126 = vor.u32 %v7125, %v7121
        %v7127 = vrot.slane %v7126, 4
        %v7129 = vshll.u32 %v7003, 16
        %v7131 = vrot.slane %v7129, 5
        %v7132 = vsel %vm1245, %v7127, %v7131
        %v7134 = vshrl.u32 %v7004, 16
        %v7136 = vrot.slane %v7134, 4
        %v7137 = vshll.u32 %v7004, 16
        %v7139 = vrot.slane %v7137, 5
        %v7140 = vor.u32 %v7136, %v7139
        %v7141 = vrot.slane %v7140, 4
        %v7143 = vshll.u32 %v7005, 16
        %v7145 = vrot.slane %v7143, 5
        %v7146 = vsel %vm1245, %v7141, %v7145
        %v7147 = vshrl.u32 %v7005, 16
        %v7149 = vrot.slane %v7147, 4
        %v7150 = vor.u32 %v7149, %v7145
        %v7151 = vrot.slane %v7150, 4
        %v7153 = vshll.u32 %v7006, 16
        %v7155 = vrot.slane %v7153, 5
        %v7156 = vsel %vm1245, %v7151, %v7155
        %v7158 = vshrl.u32 %v7007, 16
        %v7160 = vrot.slane %v7158, 4
        %v7161 = vshll.u32 %v7007, 16
        %v7163 = vrot.slane %v7161, 5
        %v7164 = vor.u32 %v7160, %v7163
        %v7165 = vrot.slane %v7164, 4
        %v7167 = vshll.u32 %v7008, 16
        %v7169 = vrot.slane %v7167, 5
        %v7170 = vsel %vm1245, %v7165, %v7169
        %v7171 = vshrl.u32 %v7008, 16
        %v7173 = vrot.slane %v7171, 4
        %v7174 = vor.u32 %v7173, %v7169
        %v7175 = vrot.slane %v7174, 4
        %v7177 = vshll.u32 %v7009, 16
        %v7179 = vrot.slane %v7177, 5
        %v7180 = vsel %vm1245, %v7175, %v7179
        %v7182 = vshrl.u32 %v7010, 16
        %v7184 = vrot.slane %v7182, 4
        %v7185 = vshll.u32 %v7010, 16
        %v7187 = vrot.slane %v7185, 5
        %v7188 = vor.u32 %v7184, %v7187
        %v7189 = vrot.slane %v7188, 4
        %v7191 = vshll.u32 %v7011, 16
        %v7193 = vrot.slane %v7191, 5
        %v7194 = vsel %vm1245, %v7189, %v7193
        %v7195 = vshrl.u32 %v7011, 16
        %v7197 = vrot.slane %v7195, 4
        %v7198 = vor.u32 %v7197, %v7193
        %v7199 = vrot.slane %v7198, 4
        %v7201 = vshll.u32 %v7012, 16
        %v7203 = vrot.slane %v7201, 5
        %v7204 = vsel %vm1245, %v7199, %v7203
        %s7205 = scalar_lea.vmem [#allocation12], 448
        %v7206 = vld [vmem:[%s7205] sm:$0xf]
        %v7207 = vld [vmem:[%s7205 + $0x4] sm:$0xf]
        %v7208 = vld [vmem:[%s7205 + $0x8] sm:$0xf]
        %v7209 = vld [vmem:[%s7205 + $0xc] sm:$0xf]
        %v7210 = vld [vmem:[%s7205 + $0x10] sm:$0xf]
        %v7211 = vld [vmem:[%s7205 + $0x14] sm:$0xf]
        %v7212 = vld [vmem:[%s7205 + $0x18] sm:$0xf]
        %v7213 = vld [vmem:[%s7205 + $0x1c] sm:$0xf]
        %v7214 = vld [vmem:[%s7205 + $0x20] sm:$0xf]
        %v7215 = vld [vmem:[%s7205 + $0x24] sm:$0xf]
        %v7216 = vld [vmem:[%s7205 + $0x28] sm:$0xf]
        %v7217 = vld [vmem:[%s7205 + $0x2c] sm:$0xf]
        %v7218 = vld [vmem:[%s7205 + $0x30] sm:$0xf]
        %v7219 = vld [vmem:[%s7205 + $0x34] sm:$0xf]
        %v7220 = vld [vmem:[%s7205 + $0x38] sm:$0xf]
        %v7221 = vld [vmem:[%s7205 + $0x3c] sm:$0xf]
        %v7222 = vunpack.c.l.b16 %v7026
        %v7223 = vunpack.c.l.b16 %v7036
        %v7224 = vunpack.c.l.b16 %v7050
        %v7225 = vunpack.c.l.b16 %v7060
        %v7226 = vunpack.c.l.b16 %v7074
        %v7227 = vunpack.c.l.b16 %v7084
        %v7228 = vunpack.c.l.b16 %v7098
        %v7229 = vunpack.c.l.b16 %v7108
        %v7230 = vunpack.c.l.b16 %v7122
        %v7231 = vunpack.c.l.b16 %v7132
        %v7232 = vunpack.c.l.b16 %v7146
        %v7233 = vunpack.c.l.b16 %v7156
        %v7234 = vunpack.c.l.b16 %v7170
        %v7235 = vunpack.c.l.b16 %v7180
        %v7236 = vunpack.c.l.b16 %v7194
        %v7237 = vunpack.c.l.b16 %v7204
        %v7238 = vpack.c.b16 %v7223, %v7222
        %v7239 = vpack.c.b16 %v7225, %v7224
        %v7240 = vpack.c.b16 %v7227, %v7226
        %v7241 = vpack.c.b16 %v7229, %v7228
        %v7242 = vpack.c.b16 %v7231, %v7230
        %v7243 = vpack.c.b16 %v7233, %v7232
        %v7244 = vpack.c.b16 %v7235, %v7234
        %v7245 = vpack.c.b16 %v7237, %v7236
        %v7270 = vunpack.c.l.b16 %v7206
        %v7271 = vunpack.c.l.b16 %v7207
        %v7272 = vunpack.c.l.b16 %v7208
        %v7273 = vunpack.c.l.b16 %v7209
        %v7274 = vunpack.c.l.b16 %v7210
        %v7275 = vunpack.c.l.b16 %v7211
        %v7276 = vunpack.c.l.b16 %v7212
        %v7277 = vunpack.c.l.b16 %v7213
        %v7278 = vunpack.c.l.b16 %v7214
        %v7279 = vunpack.c.l.b16 %v7215
        %v7280 = vunpack.c.l.b16 %v7216
        %v7281 = vunpack.c.l.b16 %v7217
        %v7282 = vunpack.c.l.b16 %v7218
        %v7283 = vunpack.c.l.b16 %v7219
        %v7284 = vunpack.c.l.b16 %v7220
        %v7285 = vunpack.c.l.b16 %v7221
        %v7286 = vpack.c.b16 %v7271, %v7270
        %v7287 = vpack.c.b16 %v7273, %v7272
        %v7288 = vpack.c.b16 %v7275, %v7274
        %v7289 = vpack.c.b16 %v7277, %v7276
        %v7290 = vpack.c.b16 %v7279, %v7278
        %v7291 = vpack.c.b16 %v7281, %v7280
        %v7292 = vpack.c.b16 %v7283, %v7282
        %v7293 = vpack.c.b16 %v7285, %v7284
        %7302 = vmatprep.subr.bf16.mxu0 0
        %7303 = vmatpush1.bf16.msra.mxu0 %v7286
        %7304 = vmatprep.subr.bf16.mxu0 0
        %7305 = vmatpush1.bf16.msra.mxu0 %v7287
        %7306 = vmatprep.subr.bf16.mxu0 0
        %7307 = vmatpush1.bf16.msra.mxu0 %v7288
        %7308 = vmatprep.subr.bf16.mxu0 0
        %7309 = vmatpush1.bf16.msra.mxu0 %v7289
        %7310 = vmatprep.subr.bf16.mxu0 0
        %7311 = vmatpush1.bf16.msra.mxu0 %v7290
        %7312 = vmatprep.subr.bf16.mxu0 0
        %7313 = vmatpush1.bf16.msra.mxu0 %v7291
        %7314 = vmatprep.subr.bf16.mxu0 0
        %7315 = vmatpush1.bf16.msra.mxu0 %v7292
        %7316 = vmatprep.subr.bf16.mxu0 0
        %7317 = vmatpush1.bf16.msra.mxu0 %v7293
        %7318 = vmatprep.subr.bf16.mxu0 0
        %7319 = vmatpush1.bf16.msra.mxu0 0
        %7320 = vmatprep.subr.bf16.mxu0 0
        %7321 = vmatpush1.bf16.msra.mxu0 0
        %7322 = vmatprep.subr.bf16.mxu0 0
        %7323 = vmatpush1.bf16.msra.mxu0 0
        %7324 = vmatprep.subr.bf16.mxu0 0
        %7325 = vmatpush1.bf16.msra.mxu0 0
        %7326 = vmatprep.subr.bf16.mxu0 0
        %7327 = vmatpush1.bf16.msra.mxu0 0
        %7328 = vmatprep.subr.bf16.mxu0 0
        %7329 = vmatpush1.bf16.msra.mxu0 0
        %7330 = vmatprep.subr.bf16.mxu0 0
        %7331 = vmatpush1.bf16.msra.mxu0 0
        %7332 = vmatprep.subr.bf16.mxu0 0
        %7333 = vmatpush1.bf16.msra.mxu0 0
        %7334 = vmatprep.mubr.bf16.mxu0 0
        %7335 = vmatmul.mubr.bf16.gmra.mrb[0].mxu0 %v7238
        %v7336 = vpop.f32.mrb[0].mxu0
        %v7337 = vadd.f32 0.0, %v7336
        %v7338 = vpop.f32.mrb[0].mxu0
        %v7339 = vpop.f32.mrb[0].mxu0
        %v7340 = vadd.f32 0.0, %v7339
        %v7341 = vpop.f32.mrb[0].mxu0
        %7342 = vmatprep.mubr.bf16.mxu0 0
        %7343 = vmatmul.mubr.bf16.gmra.mrb[0].mxu0 %v7239
        %v7344 = vpop.f32.mrb[0].mxu0
        %v7345 = vadd.f32 0.0, %v7344
        %v7346 = vpop.f32.mrb[0].mxu0
        %v7347 = vpop.f32.mrb[0].mxu0
        %v7348 = vadd.f32 0.0, %v7347
        %v7349 = vpop.f32.mrb[0].mxu0
        %7350 = vmatprep.mubr.bf16.mxu0 0
        %7351 = vmatmul.mubr.bf16.gmra.mrb[0].mxu0 %v7240
        %v7352 = vpop.f32.mrb[0].mxu0
        %v7353 = vadd.f32 0.0, %v7352
        %v7354 = vpop.f32.mrb[0].mxu0
        %v7355 = vpop.f32.mrb[0].mxu0
        %v7356 = vadd.f32 0.0, %v7355
        %v7357 = vpop.f32.mrb[0].mxu0
        %7358 = vmatprep.mubr.bf16.mxu0 0
        %7359 = vmatmul.mubr.bf16.gmra.mrb[0].mxu0 %v7241
        %v7360 = vpop.f32.mrb[0].mxu0
        %v7361 = vadd.f32 0.0, %v7360
        %v7362 = vpop.f32.mrb[0].mxu0
        %v7363 = vpop.f32.mrb[0].mxu0
        %v7364 = vadd.f32 0.0, %v7363
        %v7365 = vpop.f32.mrb[0].mxu0
        %7366 = vmatprep.mubr.bf16.mxu0 0
        %7367 = vmatmul.mubr.bf16.gmra.mrb[0].mxu0 %v7242
        %v7368 = vpop.f32.mrb[0].mxu0
        %v7369 = vadd.f32 0.0, %v7368
        %v7370 = vpop.f32.mrb[0].mxu0
        %v7371 = vpop.f32.mrb[0].mxu0
        %v7372 = vadd.f32 0.0, %v7371
        %v7373 = vpop.f32.mrb[0].mxu0
        %7374 = vmatprep.mubr.bf16.mxu0 0
        %7375 = vmatmul.mubr.bf16.gmra.mrb[0].mxu0 %v7243
        %v7376 = vpop.f32.mrb[0].mxu0
        %v7377 = vadd.f32 0.0, %v7376
        %v7378 = vpop.f32.mrb[0].mxu0
        %v7379 = vpop.f32.mrb[0].mxu0
        %v7380 = vadd.f32 0.0, %v7379
        %v7381 = vpop.f32.mrb[0].mxu0
        %7382 = vmatprep.mubr.bf16.mxu0 0
        %7383 = vmatmul.mubr.bf16.gmra.mrb[0].mxu0 %v7244
        %v7384 = vpop.f32.mrb[0].mxu0
        %v7385 = vadd.f32 0.0, %v7384
        %v7386 = vpop.f32.mrb[0].mxu0
        %v7387 = vpop.f32.mrb[0].mxu0
        %v7388 = vadd.f32 0.0, %v7387
        %v7389 = vpop.f32.mrb[0].mxu0
        %7390 = vmatprep.mubr.bf16.mxu0 0
        %7391 = vmatmul.mubr.bf16.gmra.mrb[0].mxu0 %v7245
        %v7392 = vpop.f32.mrb[0].mxu0
        %v7393 = vadd.f32 0.0, %v7392
        %v7394 = vpop.f32.mrb[0].mxu0
        %v7395 = vpop.f32.mrb[0].mxu0
        %v7396 = vadd.f32 0.0, %v7395
        %v7397 = vpop.f32.mrb[0].mxu0
        %7398 = vdwg.mxu0
        %v7399 = vadd.f32 %v6973, %v7337
        %v7400 = vadd.f32 %v6974, %v7340
        %v7401 = vadd.f32 %v6975, %v7345
        %v7402 = vadd.f32 %v6976, %v7348
        %v7403 = vadd.f32 %v6977, %v7353
        %v7404 = vadd.f32 %v6978, %v7356
        %v7405 = vadd.f32 %v6979, %v7361
        %v7406 = vadd.f32 %v6980, %v7364
        %v7407 = vadd.f32 %v6981, %v7369
        %v7408 = vadd.f32 %v6982, %v7372
        %v7409 = vadd.f32 %v6983, %v7377
        %v7410 = vadd.f32 %v6984, %v7380
        %v7411 = vadd.f32 %v6985, %v7385
        %v7412 = vadd.f32 %v6986, %v7388
        %v7413 = vadd.f32 %v6987, %v7393
        %v7414 = vadd.f32 %v6988, %v7396
        %v7415 = vld [vmem:[%s6746] sm:$0xe]
        %v7416 = vld [vmem:[%s6746 + $0xc] sm:$0xe]
        %v7417 = vld [vmem:[%s6746 + $0x18] sm:$0xe]
        %v7418 = vld [vmem:[%s6746 + $0x24] sm:$0xe]
        %v7419 = vld [vmem:[%s6746 + $0x30] sm:$0xe]
        %v7420 = vld [vmem:[%s6746 + $0x3c] sm:$0xe]
        %v7421 = vld [vmem:[%s6746 + $0x48] sm:$0xe]
        %v7422 = vld [vmem:[%s6746 + $0x54] sm:$0xe]
        %v7447 = vrot.slane %v7415, 5
        %v7448 = vrot.slane %v7447, 4
        %v7449 = vrot.slane %v6990, 5
        %v7450 = vsel %vm1766, %v7448, %v7449
        %v7451 = vrot.slane %v7449, 4
        %v7452 = vrot.slane %v6991, 5
        %v7453 = vsel %vm1766, %v7451, %v7452
        %v7454 = vrot.slane %v7416, 5
        %v7455 = vrot.slane %v7454, 4
        %v7456 = vrot.slane %v6993, 5
        %v7457 = vsel %vm1766, %v7455, %v7456
        %v7458 = vrot.slane %v7456, 4
        %v7459 = vrot.slane %v6994, 5
        %v7460 = vsel %vm1766, %v7458, %v7459
        %v7461 = vrot.slane %v7417, 5
        %v7462 = vrot.slane %v7461, 4
        %v7463 = vrot.slane %v6996, 5
        %v7464 = vsel %vm1766, %v7462, %v7463
        %v7465 = vrot.slane %v7463, 4
        %v7466 = vrot.slane %v6997, 5
        %v7467 = vsel %vm1766, %v7465, %v7466
        %v7468 = vrot.slane %v7418, 5
        %v7469 = vrot.slane %v7468, 4
        %v7470 = vrot.slane %v6999, 5
        %v7471 = vsel %vm1766, %v7469, %v7470
        %v7472 = vrot.slane %v7470, 4
        %v7473 = vrot.slane %v7000, 5
        %v7474 = vsel %vm1766, %v7472, %v7473
        %v7475 = vrot.slane %v7419, 5
        %v7476 = vrot.slane %v7475, 4
        %v7477 = vrot.slane %v7002, 5
        %v7478 = vsel %vm1766, %v7476, %v7477
        %v7479 = vrot.slane %v7477, 4
        %v7480 = vrot.slane %v7003, 5
        %v7481 = vsel %vm1766, %v7479, %v7480
        %v7482 = vrot.slane %v7420, 5
        %v7483 = vrot.slane %v7482, 4
        %v7484 = vrot.slane %v7005, 5
        %v7485 = vsel %vm1766, %v7483, %v7484
        %v7486 = vrot.slane %v7484, 4
        %v7487 = vrot.slane %v7006, 5
        %v7488 = vsel %vm1766, %v7486, %v7487
        %v7489 = vrot.slane %v7421, 5
        %v7490 = vrot.slane %v7489, 4
        %v7491 = vrot.slane %v7008, 5
        %v7492 = vsel %vm1766, %v7490, %v7491
        %v7493 = vrot.slane %v7491, 4
        %v7494 = vrot.slane %v7009, 5
        %v7495 = vsel %vm1766, %v7493, %v7494
        %v7496 = vrot.slane %v7422, 5
        %v7497 = vrot.slane %v7496, 4
        %v7498 = vrot.slane %v7011, 5
        %v7499 = vsel %vm1766, %v7497, %v7498
        %v7500 = vrot.slane %v7498, 4
        %v7501 = vrot.slane %v7012, 5
        %v7502 = vsel %vm1766, %v7500, %v7501
        %s7503 = scalar_lea.vmem [#allocation12], 512
        %v7504 = vld [vmem:[%s7503] sm:$0xf]
        %v7505 = vld [vmem:[%s7503 + $0x4] sm:$0xf]
        %v7506 = vld [vmem:[%s7503 + $0x8] sm:$0xf]
        %v7507 = vld [vmem:[%s7503 + $0xc] sm:$0xf]
        %v7508 = vld [vmem:[%s7503 + $0x10] sm:$0xf]
        %v7509 = vld [vmem:[%s7503 + $0x14] sm:$0xf]
        %v7510 = vld [vmem:[%s7503 + $0x18] sm:$0xf]
        %v7511 = vld [vmem:[%s7503 + $0x1c] sm:$0xf]
        %v7512 = vld [vmem:[%s7503 + $0x20] sm:$0xf]
        %v7513 = vld [vmem:[%s7503 + $0x24] sm:$0xf]
        %v7514 = vld [vmem:[%s7503 + $0x28] sm:$0xf]
        %v7515 = vld [vmem:[%s7503 + $0x2c] sm:$0xf]
        %v7516 = vld [vmem:[%s7503 + $0x30] sm:$0xf]
        %v7517 = vld [vmem:[%s7503 + $0x34] sm:$0xf]
        %v7518 = vld [vmem:[%s7503 + $0x38] sm:$0xf]
        %v7519 = vld [vmem:[%s7503 + $0x3c] sm:$0xf]
        %v7520 = vunpack.c.l.b16 %v7450
        %v7521 = vunpack.c.l.b16 %v7453
        %v7522 = vunpack.c.l.b16 %v7457
        %v7523 = vunpack.c.l.b16 %v7460
        %v7524 = vunpack.c.l.b16 %v7464
        %v7525 = vunpack.c.l.b16 %v7467
        %v7526 = vunpack.c.l.b16 %v7471
        %v7527 = vunpack.c.l.b16 %v7474
        %v7528 = vunpack.c.l.b16 %v7478
        %v7529 = vunpack.c.l.b16 %v7481
        %v7530 = vunpack.c.l.b16 %v7485
        %v7531 = vunpack.c.l.b16 %v7488
        %v7532 = vunpack.c.l.b16 %v7492
        %v7533 = vunpack.c.l.b16 %v7495
        %v7534 = vunpack.c.l.b16 %v7499
        %v7535 = vunpack.c.l.b16 %v7502
        %v7536 = vpack.c.b16 %v7521, %v7520
        %v7537 = vpack.c.b16 %v7523, %v7522
        %v7538 = vpack.c.b16 %v7525, %v7524
        %v7539 = vpack.c.b16 %v7527, %v7526
        %v7540 = vpack.c.b16 %v7529, %v7528
        %v7541 = vpack.c.b16 %v7531, %v7530
        %v7542 = vpack.c.b16 %v7533, %v7532
        %v7543 = vpack.c.b16 %v7535, %v7534
        %v7568 = vunpack.c.l.b16 %v7504
        %v7569 = vunpack.c.l.b16 %v7505
        %v7570 = vunpack.c.l.b16 %v7506
        %v7571 = vunpack.c.l.b16 %v7507
        %v7572 = vunpack.c.l.b16 %v7508
        %v7573 = vunpack.c.l.b16 %v7509
        %v7574 = vunpack.c.l.b16 %v7510
        %v7575 = vunpack.c.l.b16 %v7511
        %v7576 = vunpack.c.l.b16 %v7512
        %v7577 = vunpack.c.l.b16 %v7513
        %v7578 = vunpack.c.l.b16 %v7514
        %v7579 = vunpack.c.l.b16 %v7515
        %v7580 = vunpack.c.l.b16 %v7516
        %v7581 = vunpack.c.l.b16 %v7517
        %v7582 = vunpack.c.l.b16 %v7518
        %v7583 = vunpack.c.l.b16 %v7519
        %v7584 = vpack.c.b16 %v7569, %v7568
        %v7585 = vpack.c.b16 %v7571, %v7570
        %v7586 = vpack.c.b16 %v7573, %v7572
        %v7587 = vpack.c.b16 %v7575, %v7574
        %v7588 = vpack.c.b16 %v7577, %v7576
        %v7589 = vpack.c.b16 %v7579, %v7578
        %v7590 = vpack.c.b16 %v7581, %v7580
        %v7591 = vpack.c.b16 %v7583, %v7582
        %7600 = vmatprep.subr.bf16.mxu0 0
        %7601 = vmatpush1.bf16.msra.mxu0 %v7584
        %7602 = vmatprep.subr.bf16.mxu0 0
        %7603 = vmatpush1.bf16.msra.mxu0 %v7585
        %7604 = vmatprep.subr.bf16.mxu0 0
        %7605 = vmatpush1.bf16.msra.mxu0 %v7586
        %7606 = vmatprep.subr.bf16.mxu0 0
        %7607 = vmatpush1.bf16.msra.mxu0 %v7587
        %7608 = vmatprep.subr.bf16.mxu0 0
        %7609 = vmatpush1.bf16.msra.mxu0 %v7588
        %7610 = vmatprep.subr.bf16.mxu0 0
        %7611 = vmatpush1.bf16.msra.mxu0 %v7589
        %7612 = vmatprep.subr.bf16.mxu0 0
        %7613 = vmatpush1.bf16.msra.mxu0 %v7590
        %7614 = vmatprep.subr.bf16.mxu0 0
        %7615 = vmatpush1.bf16.msra.mxu0 %v7591
        %7616 = vmatprep.subr.bf16.mxu0 0
        %7617 = vmatpush1.bf16.msra.mxu0 0
        %7618 = vmatprep.subr.bf16.mxu0 0
        %7619 = vmatpush1.bf16.msra.mxu0 0
        %7620 = vmatprep.subr.bf16.mxu0 0
        %7621 = vmatpush1.bf16.msra.mxu0 0
        %7622 = vmatprep.subr.bf16.mxu0 0
        %7623 = vmatpush1.bf16.msra.mxu0 0
        %7624 = vmatprep.subr.bf16.mxu0 0
        %7625 = vmatpush1.bf16.msra.mxu0 0
        %7626 = vmatprep.subr.bf16.mxu0 0
        %7627 = vmatpush1.bf16.msra.mxu0 0
        %7628 = vmatprep.subr.bf16.mxu0 0
        %7629 = vmatpush1.bf16.msra.mxu0 0
        %7630 = vmatprep.subr.bf16.mxu0 0
        %7631 = vmatpush1.bf16.msra.mxu0 0
        %7632 = vmatprep.mubr.bf16.mxu0 0
        %7633 = vmatmul.mubr.bf16.gmra.mrb[0].mxu0 %v7536
        %v7634 = vpop.f32.mrb[0].mxu0
        %v7635 = vadd.f32 0.0, %v7634
        %v7636 = vpop.f32.mrb[0].mxu0
        %v7637 = vpop.f32.mrb[0].mxu0
        %v7638 = vadd.f32 0.0, %v7637
        %v7639 = vpop.f32.mrb[0].mxu0
        %7640 = vmatprep.mubr.bf16.mxu0 0
        %7641 = vmatmul.mubr.bf16.gmra.mrb[0].mxu0 %v7537
        %v7642 = vpop.f32.mrb[0].mxu0
        %v7643 = vadd.f32 0.0, %v7642
        %v7644 = vpop.f32.mrb[0].mxu0
        %v7645 = vpop.f32.mrb[0].mxu0
        %v7646 = vadd.f32 0.0, %v7645
        %v7647 = vpop.f32.mrb[0].mxu0
        %7648 = vmatprep.mubr.bf16.mxu0 0
        %7649 = vmatmul.mubr.bf16.gmra.mrb[0].mxu0 %v7538
        %v7650 = vpop.f32.mrb[0].mxu0
        %v7651 = vadd.f32 0.0, %v7650
        %v7652 = vpop.f32.mrb[0].mxu0
        %v7653 = vpop.f32.mrb[0].mxu0
        %v7654 = vadd.f32 0.0, %v7653
        %v7655 = vpop.f32.mrb[0].mxu0
        %7656 = vmatprep.mubr.bf16.mxu0 0
        %7657 = vmatmul.mubr.bf16.gmra.mrb[0].mxu0 %v7539
        %v7658 = vpop.f32.mrb[0].mxu0
        %v7659 = vadd.f32 0.0, %v7658
        %v7660 = vpop.f32.mrb[0].mxu0
        %v7661 = vpop.f32.mrb[0].mxu0
        %v7662 = vadd.f32 0.0, %v7661
        %v7663 = vpop.f32.mrb[0].mxu0
        %7664 = vmatprep.mubr.bf16.mxu0 0
        %7665 = vmatmul.mubr.bf16.gmra.mrb[0].mxu0 %v7540
        %v7666 = vpop.f32.mrb[0].mxu0
        %v7667 = vadd.f32 0.0, %v7666
        %v7668 = vpop.f32.mrb[0].mxu0
        %v7669 = vpop.f32.mrb[0].mxu0
        %v7670 = vadd.f32 0.0, %v7669
        %v7671 = vpop.f32.mrb[0].mxu0
        %7672 = vmatprep.mubr.bf16.mxu0 0
        %7673 = vmatmul.mubr.bf16.gmra.mrb[0].mxu0 %v7541
        %v7674 = vpop.f32.mrb[0].mxu0
        %v7675 = vadd.f32 0.0, %v7674
        %v7676 = vpop.f32.mrb[0].mxu0
        %v7677 = vpop.f32.mrb[0].mxu0
        %v7678 = vadd.f32 0.0, %v7677
        %v7679 = vpop.f32.mrb[0].mxu0
        %7680 = vmatprep.mubr.bf16.mxu0 0
        %7681 = vmatmul.mubr.bf16.gmra.mrb[0].mxu0 %v7542
        %v7682 = vpop.f32.mrb[0].mxu0
        %v7683 = vadd.f32 0.0, %v7682
        %v7684 = vpop.f32.mrb[0].mxu0
        %v7685 = vpop.f32.mrb[0].mxu0
        %v7686 = vadd.f32 0.0, %v7685
        %v7687 = vpop.f32.mrb[0].mxu0
        %7688 = vmatprep.mubr.bf16.mxu0 0
        %7689 = vmatmul.mubr.bf16.gmra.mrb[0].mxu0 %v7543
        %v7690 = vpop.f32.mrb[0].mxu0
        %v7691 = vadd.f32 0.0, %v7690
        %v7692 = vpop.f32.mrb[0].mxu0
        %v7693 = vpop.f32.mrb[0].mxu0
        %v7694 = vadd.f32 0.0, %v7693
        %v7695 = vpop.f32.mrb[0].mxu0
        %7696 = vdwg.mxu0
        %v7697 = vadd.f32 %v7399, %v7635
        %v7698 = vadd.f32 %v7400, %v7638
        %v7699 = vadd.f32 %v7401, %v7643
        %v7700 = vadd.f32 %v7402, %v7646
        %v7701 = vadd.f32 %v7403, %v7651
        %v7702 = vadd.f32 %v7404, %v7654
        %v7703 = vadd.f32 %v7405, %v7659
        %v7704 = vadd.f32 %v7406, %v7662
        %v7705 = vadd.f32 %v7407, %v7667
        %v7706 = vadd.f32 %v7408, %v7670
        %v7707 = vadd.f32 %v7409, %v7675
        %v7708 = vadd.f32 %v7410, %v7678
        %v7709 = vadd.f32 %v7411, %v7683
        %v7710 = vadd.f32 %v7412, %v7686
        %v7711 = vadd.f32 %v7413, %v7691
        %v7712 = vadd.f32 %v7414, %v7694
        %v7713 = vld [vmem:[%s389] sm:$0xf]
        %v7714 = vld [vmem:[%s389 + $0x4] sm:$0xf]
        %v7715 = vld [vmem:[%s389 + $0x8] sm:$0xf]
        %v7716 = vld [vmem:[%s389 + $0xc] sm:$0xf]
        %v7717 = vld [vmem:[%s389 + $0x10] sm:$0xf]
        %v7718 = vld [vmem:[%s389 + $0x14] sm:$0xf]
        %v7719 = vld [vmem:[%s389 + $0x18] sm:$0xf]
        %v7720 = vld [vmem:[%s389 + $0x1c] sm:$0xf]
        %v7721 = vld [vmem:[%s389 + $0x20] sm:$0xf]
        %v7722 = vld [vmem:[%s389 + $0x24] sm:$0xf]
        %v7723 = vld [vmem:[%s389 + $0x28] sm:$0xf]
        %v7724 = vld [vmem:[%s389 + $0x2c] sm:$0xf]
        %v7725 = vld [vmem:[%s389 + $0x30] sm:$0xf]
        %v7726 = vld [vmem:[%s389 + $0x34] sm:$0xf]
        %v7727 = vld [vmem:[%s389 + $0x38] sm:$0xf]
        %v7728 = vld [vmem:[%s389 + $0x3c] sm:$0xf]
        %v7729 = vunpack.c.l.bf16 %v7713
        %v7730 = vunpack.c.l.bf16 %v7714
        %v7731 = vunpack.c.l.bf16 %v7715
        %v7732 = vunpack.c.l.bf16 %v7716
        %v7733 = vunpack.c.l.bf16 %v7717
        %v7734 = vunpack.c.l.bf16 %v7718
        %v7735 = vunpack.c.l.bf16 %v7719
        %v7736 = vunpack.c.l.bf16 %v7720
        %v7737 = vunpack.c.l.bf16 %v7721
        %v7738 = vunpack.c.l.bf16 %v7722
        %v7739 = vunpack.c.l.bf16 %v7723
        %v7740 = vunpack.c.l.bf16 %v7724
        %v7741 = vunpack.c.l.bf16 %v7725
        %v7742 = vunpack.c.l.bf16 %v7726
        %v7743 = vunpack.c.l.bf16 %v7727
        %v7744 = vunpack.c.l.bf16 %v7728
        %v7745 = vadd.f32 %v7697, %v7729
        %v7746 = vadd.f32 %v7698, %v7730
        %v7747 = vadd.f32 %v7699, %v7731
        %v7748 = vadd.f32 %v7700, %v7732
        %v7749 = vadd.f32 %v7701, %v7733
        %v7750 = vadd.f32 %v7702, %v7734
        %v7751 = vadd.f32 %v7703, %v7735
        %v7752 = vadd.f32 %v7704, %v7736
        %v7753 = vadd.f32 %v7705, %v7737
        %v7754 = vadd.f32 %v7706, %v7738
        %v7755 = vadd.f32 %v7707, %v7739
        %v7756 = vadd.f32 %v7708, %v7740
        %v7757 = vadd.f32 %v7709, %v7741
        %v7758 = vadd.f32 %v7710, %v7742
        %v7759 = vadd.f32 %v7711, %v7743
        %v7760 = vadd.f32 %v7712, %v7744
        %v7761 = vpack.c.bf16 %v7746, %v7745
        %v7762 = vpack.c.bf16 %v7748, %v7747
        %v7763 = vpack.c.bf16 %v7750, %v7749
        %v7764 = vpack.c.bf16 %v7752, %v7751
        %v7765 = vpack.c.bf16 %v7754, %v7753
        %v7766 = vpack.c.bf16 %v7756, %v7755
        %v7767 = vpack.c.bf16 %v7758, %v7757
        %v7768 = vpack.c.bf16 %v7760, %v7759
        %v7777 = vunpack.c.l.b16 %v7761
        %v7778 = vunpack.c.h.b16 %v7761
        %v7779 = vunpack.c.l.b16 %v7762
        %v7780 = vunpack.c.h.b16 %v7762
        %v7781 = vunpack.c.l.b16 %v7763
        %v7782 = vunpack.c.h.b16 %v7763
        %v7783 = vunpack.c.l.b16 %v7764
        %v7784 = vunpack.c.h.b16 %v7764
        %v7785 = vunpack.c.l.b16 %v7765
        %v7786 = vunpack.c.h.b16 %v7765
        %v7787 = vunpack.c.l.b16 %v7766
        %v7788 = vunpack.c.h.b16 %v7766
        %v7789 = vunpack.c.l.b16 %v7767
        %v7790 = vunpack.c.h.b16 %v7767
        %v7791 = vunpack.c.l.b16 %v7768
        %v7792 = vunpack.c.h.b16 %v7768
        %v7793 = vpack.c.b16 %v7777, %v7777
        %v7794 = vpack.c.b16 %v7778, %v7778
        %v7795 = vpack.c.b16 %v7779, %v7779
        %v7796 = vpack.c.b16 %v7780, %v7780
        %v7797 = vpack.c.b16 %v7781, %v7781
        %v7798 = vpack.c.b16 %v7782, %v7782
        %v7799 = vpack.c.b16 %v7783, %v7783
        %v7800 = vpack.c.b16 %v7784, %v7784
        %v7801 = vpack.c.b16 %v7785, %v7785
        %v7802 = vpack.c.b16 %v7786, %v7786
        %v7803 = vpack.c.b16 %v7787, %v7787
        %v7804 = vpack.c.b16 %v7788, %v7788
        %v7805 = vpack.c.b16 %v7789, %v7789
        %v7806 = vpack.c.b16 %v7790, %v7790
        %v7807 = vpack.c.b16 %v7791, %v7791
        %v7808 = vpack.c.b16 %v7792, %v7792
        %7825 = vst [vmem:[%s455] sm:$0xf] %v7793
        %7826 = vst [vmem:[%s455 + $0x4] sm:$0xf] %v7794
        %7827 = vst [vmem:[%s455 + $0x8] sm:$0xf] %v7795
        %7828 = vst [vmem:[%s455 + $0xc] sm:$0xf] %v7796
        %7829 = vst [vmem:[%s455 + $0x10] sm:$0xf] %v7797
        %7830 = vst [vmem:[%s455 + $0x14] sm:$0xf] %v7798
        %7831 = vst [vmem:[%s455 + $0x18] sm:$0xf] %v7799
        %7832 = vst [vmem:[%s455 + $0x1c] sm:$0xf] %v7800
        %7833 = vst [vmem:[%s455 + $0x20] sm:$0xf] %v7801
        %7834 = vst [vmem:[%s455 + $0x24] sm:$0xf] %v7802
        %7835 = vst [vmem:[%s455 + $0x28] sm:$0xf] %v7803
        %7836 = vst [vmem:[%s455 + $0x2c] sm:$0xf] %v7804
        %7837 = vst [vmem:[%s455 + $0x30] sm:$0xf] %v7805
        %7838 = vst [vmem:[%s455 + $0x34] sm:$0xf] %v7806
        %7839 = vst [vmem:[%s455 + $0x38] sm:$0xf] %v7807
        %7840 = vst [vmem:[%s455 + $0x3c] sm:$0xf] %v7808
        %s7841 = sand.u32 %s234, 1
        %s7842 = scalar_lea.sflag [#allocation6], %s7841
        %s7843 = sand.u32 %s234, 1
        %s7844 = smul.addr %s7843, 64
        %s7845 = scalar_lea.vmem [#allocation13], %s7844
        // Predicated region
        $region93: #{tpu_custom_call.1} parent=47 // pred_check
          %p7846 = pneg %p244
        $region94: #{tpu_custom_call.1} parent=47 // pred_check_branch
          %7848 = sbr.rel (%p7846) target = $region96
        $region95: #{tpu_custom_call.1} parent=47 // pred_region
          %s7849 = smul.u32 8, %s33
          %s7851 = ssub.s32 1024, 1024
          %7852 = vsyncadd %s7842, %s7851
          %s7853 = smul.addr %s7849, 2
          %s7854 = smul.addr %s32, 32
          %s7855 = sadd.s32 %s7853, %s7854
          %s7856 = smul.addr %s7855, 64
          %s7857 = scalar_lea.hbm %s7, %s7856
          %s7858 = sshll.u32 %s7845, 4
          %s7859 = int_to_ptr.vmem [resolvable:$true] %s7858
          %7864 = dma.vmem_to_hbm [thread:$0]  %s7859, 1024, %s7857, %s7842, 64, 64, 4
        $region96: #{tpu_custom_call.1} parent=47 // pred_fallthru
          _
      $region48: #{tpu_custom_call.1} parent=5 // pred_fallthru
        _
      %p7865 = scmp.le.s32.totalorder 2, %s23
      // Predicated region
      $region97: #{tpu_custom_call.1} parent=5 // pred_check
        %p7866 = pneg %p7865
      $region98: #{tpu_custom_call.1} parent=5 // pred_check_branch
        %7868 = sbr.rel (%p7866) target = $region100
      $region99: #{tpu_custom_call.1} parent=5 // pred_region
        %s7869 = ssub.s32 %s23, 2
        // Predicated region
        $region101: #{tpu_custom_call.1} parent=99 // pred_check
          %p7870 = pneg %p250
        $region102: #{tpu_custom_call.1} parent=99 // pred_check_branch
          %7872 = sbr.rel (%p7870) target = $region104
        $region103: #{tpu_custom_call.1} parent=99 // pred_region
          %s7873 = sand.u32 %s235, 1
          %s7874 = scalar_lea.sflag [#allocation6], %s7873
          %s7875 = sand.u32 %s235, 1
          %s7876 = smul.addr %s7875, 64
          %s7877 = scalar_lea.vmem [#allocation13], %s7876
          %7878 = dma.done %s7874, 1024
        $region104: #{tpu_custom_call.1} parent=99 // pred_fallthru
          _
      $region100: #{tpu_custom_call.1} parent=5 // pred_fallthru
        _
    $region6: #{tpu_custom_call.1} parent=1 // loop_footer
      %s27 = sadd.s32 1, %s23
    $region7: #{tpu_custom_call.1} parent=1 // loop_footer_branch
      %22 = sbr.rel target = $region3
    $region8: #{tpu_custom_call.1} parent=1 // loop_exit
      _
    %7879 = vsyncpa [#allocation5], 1
    %s7880 = scalar_lea.sflag [#allocation5], 1
    %7881 = vsyncpa %s7880, 1
    %7882 = vsyncpa [#allocation8], 1
    %s7883 = scalar_lea.sflag [#allocation8], 1
    %7884 = vsyncpa %s7883, 1
    %7885 = vsyncpa [#allocation11], 1
    %7886 = vsyncpa [#allocation6], 1
    %s7887 = scalar_lea.sflag [#allocation6], 1
    %7888 = vsyncpa %s7887, 1

</llo_original>
